<compile_context>
chip_gen: v5e
topology: v5e:2x2
jax: 0.10.0
libtpu: 0.0.40
codegen_flags: <defaults>
</compile_context>

<pallas_src>
import jax
import jax.numpy as jnp
from jax.experimental import pallas as pl
from jax.experimental.pallas import tpu as pltpu

EPS = 1e-5
BF16 = jnp.bfloat16


def _round_up(x, m):
    return (x + m - 1) // m * m


# ---------------------------------------------------------------------------
# Kernel 1: stride-1 3x3 conv, "flat-offset" formulation (no im2col in HBM).
#   X      : (Mp + 2*base, Cin_p) bf16  -- flattened zero-padded NHWC + guard rows
#   W      : (9, Cin_p, Cout)     bf16  -- BN output scale pre-folded
#   bias   : (1, Cout)            f32   -- folded BN shift
#   alpha  : (1, Cout)            f32   -- PReLU slope
#   out    : (Mp, Cout)           bf16  -- conv on the *padded* grid; the wrapper
#                                          slices the valid interior back out.
# Each grid step manually DMAs rows [i*tm, i*tm + tm + 2*base) into VMEM; the
# 9 taps are statically shifted (tm, Cin) windows of that buffer.
# ---------------------------------------------------------------------------
def _make_conv3x3s1_kernel(tm, base, wp, buf_rows, cout):
    offsets = [base + (dy - 1) * wp + (dx - 1) for dy in range(3) for dx in range(3)]

    def kernel(x_hbm, w_ref, bias_ref, alpha_ref, o_ref, xbuf, sem):
        i = pl.program_id(0)
        start = pl.multiple_of(i * tm, 8)
        cp = pltpu.make_async_copy(x_hbm.at[pl.ds(start, buf_rows)], xbuf, sem)
        cp.start()
        cp.wait()
        acc = jnp.zeros((tm, cout), jnp.float32)
        for t in range(9):                               # static unroll, 9 MXU calls
            a = xbuf[pl.ds(offsets[t], tm), :]
            acc = acc + jnp.dot(a, w_ref[t], preferred_element_type=jnp.float32)
        y = acc + bias_ref[...]
        y = jnp.where(y > 0, y, y * alpha_ref[...])      # PReLU
        o_ref[...] = y.astype(o_ref.dtype)

    return kernel


def conv3x3_s1(x, cw, bias, alpha, pre_scale=None, pre_shift=None):
    """3x3 stride-1 pad-1 conv + folded-BN bias + PReLU.  Optional exact input-side
    BN affine (pre_scale/pre_shift) is fused into the padding glue."""
    n, h, w, c = x.shape
    if pre_scale is not None:
        x = x.astype(jnp.float32) * pre_scale + pre_shift
    x = x.astype(BF16)
    hp, wp = h + 2, w + 2
    xp = jnp.pad(x, ((0, 0), (1, 1), (1, 1), (0, 0)))
    m = n * hp * wp
    cin_p = cw.shape[1]
    cout = cw.shape[2]
    base = _round_up(wp + 1, 8)
    tm = 1024 if m > 1024 else _round_up(m, 8)
    mp = _round_up(m, tm)
    buf_rows = tm + 2 * base
    xflat = jnp.zeros((mp + 2 * base, cin_p), BF16)
    xflat = xflat.at[base:base + m, :c].set(xp.reshape(m, c))

    out = pl.pallas_call(
        _make_conv3x3s1_kernel(tm, base, wp, buf_rows, cout),
        out_shape=jax.ShapeDtypeStruct((mp, cout), BF16),
        grid_spec=pltpu.PrefetchScalarGridSpec(
            num_scalar_prefetch=0,
            grid=(mp // tm,),
            in_specs=[
                pl.BlockSpec(memory_space=pl.ANY),                     # X stays in HBM
                pl.BlockSpec((9, cin_p, cout), lambda i: (0, 0, 0)),   # weights, resident
                pl.BlockSpec((1, cout), lambda i: (0, 0)),             # bias
                pl.BlockSpec((1, cout), lambda i: (0, 0)),             # PReLU alpha
            ],
            out_specs=pl.BlockSpec((tm, cout), lambda i: (i, 0)),
            scratch_shapes=[pltpu.VMEM((buf_rows, cin_p), BF16),
                            pltpu.SemaphoreType.DMA(())],
        ),
        compiler_params=pltpu.CompilerParams(
            dimension_semantics=("parallel",)),
    )(xflat, cw, bias, alpha)
    # drop the (garbage) border ring of the padded grid -> valid conv output
    return out[:m].reshape(n, hp, wp, cout)[:, 1:hp - 1, 1:wp - 1, :]


# ---------------------------------------------------------------------------
# Kernel 2: tiled matmul with fused bias (+PReLU) (+residual), bf16 in / f32 acc.
# Used for: stride-2 conv2 (via bf16 im2col), downsample conv1x1, and the fc layer.
# ---------------------------------------------------------------------------
def _make_matmul_kernel(use_prelu, use_residual):
    def kernel(*refs):
        a_ref, b_ref, bias_ref = refs[:3]
        pos = 3
        alpha_ref = res_ref = None
        if use_prelu:
            alpha_ref = refs[pos]; pos += 1
        if use_residual:
            res_ref = refs[pos]; pos += 1
        o_ref = refs[pos]
        acc_ref = refs[pos + 1]

        k = pl.program_id(2)

        @pl.when(k == 0)
        def _():
            acc_ref[...] = jnp.zeros_like(acc_ref)

        acc_ref[...] += jnp.dot(a_ref[...], b_ref[...],
                                preferred_element_type=jnp.float32)

        @pl.when(k == pl.num_programs(2) - 1)
        def _():
            y = acc_ref[...] + bias_ref[...]
            if use_prelu:
                y = jnp.where(y > 0, y, y * alpha_ref[...])
            if use_residual:
                y = y + res_ref[...].astype(jnp.float32)
            o_ref[...] = y.astype(o_ref.dtype)

    return kernel


def fused_matmul(a, b, bias, alpha=None, residual=None, out_dtype=BF16):
    """out = maybe_prelu(a @ b + bias) [+ residual].
    `b` / `bias` / `alpha` are pre-folded, pre-padded, bf16/f32 (done at prep time);
    only the activations `a` / `residual` are padded and cast here."""
    M, K = a.shape
    Kp, N = b.shape
    tm = 512 if M >= 4096 else (256 if M >= 256 else _round_up(M, 8))
    tn = min(N, 256) if M >= 256 else min(N, 128)      # keep >=2 N-tiles when M collapses
    tk = Kp if Kp <= 8192 else 2048                    # single K step whenever it fits
    Mp = _round_up(M, tm)

    a_p = jnp.zeros((Mp, Kp), BF16).at[:M, :K].set(a.astype(BF16))
    use_prelu = alpha is not None
    use_residual = residual is not None

    inputs = [a_p, b, bias]
    in_specs = [
        pl.BlockSpec((tm, tk), lambda i, j, k: (i, k)),
        pl.BlockSpec((tk, tn), lambda i, j, k: (k, j)),
        pl.BlockSpec((1, tn), lambda i, j, k: (0, j)),
    ]
    if use_prelu:
        inputs.append(alpha)
        in_specs.append(pl.BlockSpec((1, tn), lambda i, j, k: (0, j)))
    if use_residual:
        r_p = jnp.zeros((Mp, N), BF16).at[:M, :].set(residual.astype(BF16))
        inputs.append(r_p)
        in_specs.append(pl.BlockSpec((tm, tn), lambda i, j, k: (i, j)))

    out = pl.pallas_call(
        _make_matmul_kernel(use_prelu, use_residual),
        out_shape=jax.ShapeDtypeStruct((Mp, N), out_dtype),
        grid_spec=pltpu.PrefetchScalarGridSpec(
            num_scalar_prefetch=0,
            grid=(Mp // tm, N // tn, Kp // tk),
            in_specs=in_specs,
            out_specs=pl.BlockSpec((tm, tn), lambda i, j, k: (i, j)),
            scratch_shapes=[pltpu.VMEM((tm, tn), jnp.float32)],
        ),
        compiler_params=pltpu.CompilerParams(
            dimension_semantics=("parallel", "parallel", "arbitrary")),
    )(*inputs)
    return out[:M]


# ------------------------------ JAX glue ops --------------------------------

def conv3x3_im2col(x, cw, bias, stride, residual):
    """Residual-carrying conv2 (stride 1 or 2) via bf16 im2col + fused matmul.
    Runs at the (smaller) output resolution; weights/BN pre-folded."""
    n, h, w, c = x.shape
    ho = (h + 2 - 3) // stride + 1
    wo = (w + 2 - 3) // stride + 1
    xp = jnp.pad(x.astype(BF16), ((0, 0), (1, 1), (1, 1), (0, 0)))
    cols = []
    for dy in range(3):
        for dx in range(3):
            cols.append(xp[:, dy:dy + stride * (ho - 1) + 1:stride,
                           dx:dx + stride * (wo - 1) + 1:stride, :])
    patches = jnp.concatenate(cols, axis=-1).reshape(n * ho * wo, 9 * c)
    cout = cw.shape[1]
    res_flat = residual.reshape(n * ho * wo, cout)
    y = fused_matmul(patches, cw, bias, residual=res_flat)
    return y.reshape(n, ho, wo, cout)


def conv1x1_bn(x, cw, bias, stride):
    """Downsample branch: conv1x1 (stride) + folded BN."""
    xs = x[:, ::stride, ::stride, :]
    n, ho, wo, c = xs.shape
    cout = cw.shape[1]
    y = fused_matmul(xs.reshape(n * ho * wo, c), cw, bias)
    return y.reshape(n, ho, wo, cout)


def basic_block(x, p):
    """IBasicBlock: bn1 -> conv1 -> bn2 -> prelu -> conv2 -> bn3 (+ identity).
    bn2/bn3/downsample-BN folded into weights; bn1 fused into conv1's pad glue."""
    u = conv3x3_s1(x, p['conv1_w'], p['conv1_bias'], p['prelu'],
                   pre_scale=p['bn1_scale'], pre_shift=p['bn1_shift'])
    if p['downsample'] is not None:
        d = p['downsample']
        ident = conv1x1_bn(x, d['w'], d['bias'], p['stride'])
    else:
        ident = x
    return conv3x3_im2col(u, p['conv2_w'], p['conv2_bias'], p['stride'], ident)


def iresnet_forward(prep, x_nchw):
    x = jnp.transpose(x_nchw, (0, 2, 3, 1)).astype(jnp.float32)   # NCHW -> NHWC
    s = prep['stem']
    x = conv3x3_s1(x, s['w'], s['bias'], s['alpha'])              # conv1+bn1+prelu fused
    for blk in prep['blocks']:
        x = basic_block(x, blk)
    n = x.shape[0]
    # torch.flatten(x, 1) operates on NCHW order
    xf = jnp.transpose(x, (0, 3, 1, 2)).reshape(n, -1)
    # Dropout(p=0) eval: identity.  Final bn2 + fc + features BatchNorm1d are all
    # folded into prep['fc_w'] / prep['fc_b'].
    out = fused_matmul(xf, prep['fc_w'], prep['fc_b'], out_dtype=jnp.float32)
    # TODO(synk): training-only CosFace margin loss head is not part of the eval path.
    return out


# --------------------------- parameter preparation --------------------------

def bn_params(c):
    gamma = jnp.ones((c,), jnp.float32)
    beta = jnp.zeros((c,), jnp.float32)
    mean = jnp.zeros((c,), jnp.float32)     # default running stats (eval mode)
    var = jnp.ones((c,), jnp.float32)
    scale = gamma / jnp.sqrt(var + EPS)
    shift = beta - mean * scale
    return scale, shift


def build_raw_params(key, layers=(1, 1, 1, 1), num_features=512):
    keys = iter(jax.random.split(key, 64))

    def conv_w(cout, cin, k):
        return 0.1 * jax.random.normal(next(keys), (cout, cin, k, k), jnp.float32)

    params = {
        'conv1_w': conv_w(64, 3, 3),
        'bn1': bn_params(64),
        'prelu': 0.25 * jnp.ones((64,), jnp.float32),
    }
    blocks = []
    inplanes = 64
    for planes, nblocks in zip((64, 128, 256, 512), layers):
        for bi in range(nblocks):
            stride = 2 if bi == 0 else 1
            ds = None
            if stride != 1 or inplanes != planes:
                ds = {'w': conv_w(planes, inplanes, 1), 'bn': bn_params(planes)}
            blocks.append({
                'bn1': bn_params(inplanes),
                'conv1_w': conv_w(planes, inplanes, 3),
                'bn2': bn_params(planes),
                'prelu': 0.25 * jnp.ones((planes,), jnp.float32),
                'conv2_w': conv_w(planes, planes, 3),
                'bn3': bn_params(planes),
                'downsample': ds,
                'stride': stride,
            })
            inplanes = planes
    params['blocks'] = blocks
    params['bn2'] = bn_params(512)
    fan_in = 512 * 7 * 7                      # fc_scale = 7*7
    bound = 1.0 / (fan_in ** 0.5)
    params['fc_w'] = jax.random.uniform(next(keys), (num_features, fan_in),
                                        jnp.float32, -bound, bound)
    params['fc_b'] = jax.random.uniform(next(keys), (num_features,),
                                        jnp.float32, -bound, bound)
    params['features'] = bn_params(num_features)   # BatchNorm1d, weight fixed to 1
    return params


def _prep_conv3x3_flat(w, out_scale, out_shift, alpha, cin_pad):
    """(Cout,Cin,3,3) torch weight -> (9, Cin_p, Cout) bf16, output BN folded."""
    cout, cin = w.shape[0], w.shape[1]
    w9 = jnp.transpose(w, (2, 3, 1, 0)).reshape(9, cin, cout) * out_scale[None, None, :]
    if cin_pad > cin:
        w9 = jnp.pad(w9, ((0, 0), (0, cin_pad - cin), (0, 0)))
    return (w9.astype(BF16),
            out_shift.reshape(1, cout).astype(jnp.float32),
            alpha.reshape(1, cout).astype(jnp.float32))


def _prep_conv3x3_mat(w, out_scale, out_shift):
    cout, cin = w.shape[0], w.shape[1]
    wm = (jnp.transpose(w, (2, 3, 1, 0)).reshape(9 * cin, cout)
          * out_scale[None, :]).astype(BF16)
    return wm, out_shift.reshape(1, cout).astype(jnp.float32)


def _prep_conv1x1_mat(w, out_scale, out_shift):
    cout, cin = w.shape[0], w.shape[1]
    wm = (w.reshape(cout, cin).T * out_scale[None, :]).astype(BF16)
    return wm, out_shift.reshape(1, cout).astype(jnp.float32)


def prepare_params(raw):
    """One-time weight folding / transposition / padding / bf16 casting."""
    prep = {}
    w, b, a = _prep_conv3x3_flat(raw['conv1_w'], *raw['bn1'], raw['prelu'], cin_pad=8)
    prep['stem'] = {'w': w, 'bias': b, 'alpha': a}

    blocks = []
    for rb in raw['blocks']:
        s1, t1 = rb['bn1']
        cin = rb['conv1_w'].shape[1]
        w1, b1, a1 = _prep_conv3x3_flat(rb['conv1_w'], *rb['bn2'], rb['prelu'],
                                        cin_pad=max(cin, 8))
        w2, b2 = _prep_conv3x3_mat(rb['conv2_w'], *rb['bn3'])
        ds = None
        if rb['downsample'] is not None:
            wd, bd = _prep_conv1x1_mat(rb['downsample']['w'], *rb['downsample']['bn'])
            ds = {'w': wd, 'bias': bd}
        blocks.append({
            'bn1_scale': s1, 'bn1_shift': t1,
            'conv1_w': w1, 'conv1_bias': b1, 'prelu': a1,
            'conv2_w': w2, 'conv2_bias': b2,
            'downsample': ds, 'stride': rb['stride'],
        })
    prep['blocks'] = blocks

    # Fold model-level bn2 (per channel, NCHW-flatten order) and the 'features'
    # BatchNorm1d into the fc weight/bias; pre-transpose, pad K and cast to bf16.
    s2, t2 = raw['bn2']
    fs, ft = raw['features']
    fc_w, fc_b = raw['fc_w'], raw['fc_b']              # (F, 512*49), (F,)
    spatial = fc_w.shape[1] // s2.shape[0]             # 49
    col_scale = jnp.repeat(s2, spatial)
    col_shift = jnp.repeat(t2, spatial)
    w_eff = fc_w * col_scale[None, :]
    b_eff = fc_b + fc_w @ col_shift
    w_eff = w_eff * fs[:, None]
    b_eff = fs * b_eff + ft
    K, F = w_eff.shape[1], w_eff.shape[0]
    Kp = K if K <= 8192 else _round_up(K, 2048)
    wt = jnp.zeros((Kp, F), jnp.float32).at[:K, :].set(w_eff.T)
    prep['fc_w'] = wt.astype(BF16)
    prep['fc_b'] = b_eff.reshape(1, F).astype(jnp.float32)
    return prep


if __name__ == "__main__":
    key = jax.random.PRNGKey(0)
    pkey, xkey = jax.random.split(key)
    # Smallest faithful config: layers=[1,1,1,1]; spatial must be 112 so that the
    # four stride-2 stages yield 7x7 (the module hard-codes fc_scale = 7*7).
    raw = build_raw_params(pkey, layers=(1, 1, 1, 1), num_features=512)
    prep = prepare_params(raw)                     # one-time folding / layout prep
    x = jax.random.normal(xkey, (2, 3, 112, 112), jnp.float32)   # NCHW, like PyTorch
    out = iresnet_forward(prep, x)
    out = jax.block_until_ready(out)
    assert out.shape == (2, 512)
    assert bool(jnp.all(jnp.isfinite(out)))
    print("KERNEL_OK")
</pallas_src>

<mosaic_0001>
module attributes {stable_mosaic.version = 11 : i64} {
  func.func @kernel(%arg0: i32, %arg1: memref<26864x8xbf16, #tpu.memory_space<any>>, %arg2: memref<9x8x64xbf16, #tpu.memory_space<vmem>>, %arg3: memref<1x64xf32, #tpu.memory_space<vmem>>, %arg4: memref<1x64xf32, #tpu.memory_space<vmem>>, %arg5: memref<1024x64xbf16, #tpu.memory_space<vmem>>, %arg6: memref<1264x8xbf16, #tpu.memory_space<vmem>>, %arg7: memref<!tpu.dma_semaphore, #tpu.memory_space<semaphore_mem>>) attributes {dimension_semantics = [#tpu.dimension_semantics<parallel>], iteration_bounds = array<i64: 26>, scalar_prefetch = 0 : i64, scratch_operands = 2 : i64, tpu.core_type = #tpu.core_type<tc>, window_params = [{}, {pipeline_mode = #tpu.pipeline_mode<synchronous>, transform_indices = @transform_1, window_bounds = array<i64: 9, 8, 64>}, {pipeline_mode = #tpu.pipeline_mode<synchronous>, transform_indices = @transform_2, window_bounds = array<i64: 1, 64>}, {pipeline_mode = #tpu.pipeline_mode<synchronous>, transform_indices = @transform_3, window_bounds = array<i64: 1, 64>}, {transform_indices = @transform_4, window_bounds = array<i64: 1024, 64>}]} {
    %c1024_i32 = arith.constant 1024 : i32
    %0 = arith.muli %arg0, %c1024_i32 : i32
    %1 = tpu.assume_multiple %0, 8 : i32
    %c0_i32 = arith.constant 0 : i32
    %2 = tpu.memref_slice %arg1[%1, %c0_i32] : memref<26864x8xbf16, #tpu.memory_space<any>> -> memref<1264x8xbf16, #tpu.memory_space<any>>
    tpu.enqueue_dma source(%2 : memref<1264x8xbf16, #tpu.memory_space<any>>) target(%arg6 : memref<1264x8xbf16, #tpu.memory_space<vmem>>) target_semaphore(%arg7 : memref<!tpu.dma_semaphore, #tpu.memory_space<semaphore_mem>>)
    %c0_i32_0 = arith.constant 0 : i32
    %3 = tpu.memref_slice %arg1[%1, %c0_i32_0] : memref<26864x8xbf16, #tpu.memory_space<any>> -> memref<1264x8xbf16, #tpu.memory_space<any>>
    tpu.wait_dma2 semaphore(%arg7 : memref<!tpu.dma_semaphore, #tpu.memory_space<semaphore_mem>>) src(%3 : memref<1264x8xbf16, #tpu.memory_space<any>>) dst(%arg6 : memref<1264x8xbf16, #tpu.memory_space<vmem>>)
    %cst = arith.constant 0.000000e+00 : f32
    %4 = vector.broadcast %cst : f32 to vector<1024x64xf32>
    %c5 = arith.constant 5 : index
    %c0 = arith.constant 0 : index
    %5 = vector.load %arg6[%c5, %c0] : memref<1264x8xbf16, #tpu.memory_space<vmem>>, vector<1024x8xbf16>
    %c0_1 = arith.constant 0 : index
    %c0_2 = arith.constant 0 : index
    %c0_3 = arith.constant 0 : index
    %6 = vector.load %arg2[%c0_1, %c0_2, %c0_3] : memref<9x8x64xbf16, #tpu.memory_space<vmem>>, vector<1x8x64xbf16>
    %7 = vector.shape_cast %6 : vector<1x8x64xbf16> to vector<8x64xbf16>
    %cst_4 = arith.constant dense<0.000000e+00> : vector<1024x64xf32>
    %8 = tpu.matmul %5, %7, %cst_4 {dimension_numbers = #tpu.dot_dimension_numbers<[1], [0], [0], [1], [0, 0, 1, 1], [], []>} : vector<1024x8xbf16>, vector<8x64xbf16>, vector<1024x64xf32> -> vector<1024x64xf32>
    %9 = arith.addf %4, %8 : vector<1024x64xf32>
    %c6 = arith.constant 6 : index
    %c0_5 = arith.constant 0 : index
    %10 = vector.load %arg6[%c6, %c0_5] : memref<1264x8xbf16, #tpu.memory_space<vmem>>, vector<1024x8xbf16>
    %c1 = arith.constant 1 : index
    %c0_6 = arith.constant 0 : index
    %c0_7 = arith.constant 0 : index
    %11 = vector.load %arg2[%c1, %c0_6, %c0_7] : memref<9x8x64xbf16, #tpu.memory_space<vmem>>, vector<1x8x64xbf16>
    %12 = vector.shape_cast %11 : vector<1x8x64xbf16> to vector<8x64xbf16>
    %cst_8 = arith.constant dense<0.000000e+00> : vector<1024x64xf32>
    %13 = tpu.matmul %10, %12, %cst_8 {dimension_numbers = #tpu.dot_dimension_numbers<[1], [0], [0], [1], [0, 0, 1, 1], [], []>} : vector<1024x8xbf16>, vector<8x64xbf16>, vector<1024x64xf32> -> vector<1024x64xf32>
    %14 = arith.addf %9, %13 : vector<1024x64xf32>
    %c7 = arith.constant 7 : index
    %c0_9 = arith.constant 0 : index
    %15 = vector.load %arg6[%c7, %c0_9] : memref<1264x8xbf16, #tpu.memory_space<vmem>>, vector<1024x8xbf16>
    %c2 = arith.constant 2 : index
    %c0_10 = arith.constant 0 : index
    %c0_11 = arith.constant 0 : index
    %16 = vector.load %arg2[%c2, %c0_10, %c0_11] : memref<9x8x64xbf16, #tpu.memory_space<vmem>>, vector<1x8x64xbf16>
    %17 = vector.shape_cast %16 : vector<1x8x64xbf16> to vector<8x64xbf16>
    %cst_12 = arith.constant dense<0.000000e+00> : vector<1024x64xf32>
    %18 = tpu.matmul %15, %17, %cst_12 {dimension_numbers = #tpu.dot_dimension_numbers<[1], [0], [0], [1], [0, 0, 1, 1], [], []>} : vector<1024x8xbf16>, vector<8x64xbf16>, vector<1024x64xf32> -> vector<1024x64xf32>
    %19 = arith.addf %14, %18 : vector<1024x64xf32>
    %c119 = arith.constant 119 : index
    %c0_13 = arith.constant 0 : index
    %20 = vector.load %arg6[%c119, %c0_13] : memref<1264x8xbf16, #tpu.memory_space<vmem>>, vector<1024x8xbf16>
    %c3 = arith.constant 3 : index
    %c0_14 = arith.constant 0 : index
    %c0_15 = arith.constant 0 : index
    %21 = vector.load %arg2[%c3, %c0_14, %c0_15] : memref<9x8x64xbf16, #tpu.memory_space<vmem>>, vector<1x8x64xbf16>
    %22 = vector.shape_cast %21 : vector<1x8x64xbf16> to vector<8x64xbf16>
    %cst_16 = arith.constant dense<0.000000e+00> : vector<1024x64xf32>
    %23 = tpu.matmul %20, %22, %cst_16 {dimension_numbers = #tpu.dot_dimension_numbers<[1], [0], [0], [1], [0, 0, 1, 1], [], []>} : vector<1024x8xbf16>, vector<8x64xbf16>, vector<1024x64xf32> -> vector<1024x64xf32>
    %24 = arith.addf %19, %23 : vector<1024x64xf32>
    %c120 = arith.constant 120 : index
    %c0_17 = arith.constant 0 : index
    %25 = vector.load %arg6[%c120, %c0_17] : memref<1264x8xbf16, #tpu.memory_space<vmem>>, vector<1024x8xbf16>
    %c4 = arith.constant 4 : index
    %c0_18 = arith.constant 0 : index
    %c0_19 = arith.constant 0 : index
    %26 = vector.load %arg2[%c4, %c0_18, %c0_19] : memref<9x8x64xbf16, #tpu.memory_space<vmem>>, vector<1x8x64xbf16>
    %27 = vector.shape_cast %26 : vector<1x8x64xbf16> to vector<8x64xbf16>
    %cst_20 = arith.constant dense<0.000000e+00> : vector<1024x64xf32>
    %28 = tpu.matmul %25, %27, %cst_20 {dimension_numbers = #tpu.dot_dimension_numbers<[1], [0], [0], [1], [0, 0, 1, 1], [], []>} : vector<1024x8xbf16>, vector<8x64xbf16>, vector<1024x64xf32> -> vector<1024x64xf32>
    %29 = arith.addf %24, %28 : vector<1024x64xf32>
    %c121 = arith.constant 121 : index
    %c0_21 = arith.constant 0 : index
    %30 = vector.load %arg6[%c121, %c0_21] : memref<1264x8xbf16, #tpu.memory_space<vmem>>, vector<1024x8xbf16>
    %c5_22 = arith.constant 5 : index
    %c0_23 = arith.constant 0 : index
    %c0_24 = arith.constant 0 : index
    %31 = vector.load %arg2[%c5_22, %c0_23, %c0_24] : memref<9x8x64xbf16, #tpu.memory_space<vmem>>, vector<1x8x64xbf16>
    %32 = vector.shape_cast %31 : vector<1x8x64xbf16> to vector<8x64xbf16>
    %cst_25 = arith.constant dense<0.000000e+00> : vector<1024x64xf32>
    %33 = tpu.matmul %30, %32, %cst_25 {dimension_numbers = #tpu.dot_dimension_numbers<[1], [0], [0], [1], [0, 0, 1, 1], [], []>} : vector<1024x8xbf16>, vector<8x64xbf16>, vector<1024x64xf32> -> vector<1024x64xf32>
    %34 = arith.addf %29, %33 : vector<1024x64xf32>
    %c233 = arith.constant 233 : index
    %c0_26 = arith.constant 0 : index
    %35 = vector.load %arg6[%c233, %c0_26] : memref<1264x8xbf16, #tpu.memory_space<vmem>>, vector<1024x8xbf16>
    %c6_27 = arith.constant 6 : index
    %c0_28 = arith.constant 0 : index
    %c0_29 = arith.constant 0 : index
    %36 = vector.load %arg2[%c6_27, %c0_28, %c0_29] : memref<9x8x64xbf16, #tpu.memory_space<vmem>>, vector<1x8x64xbf16>
    %37 = vector.shape_cast %36 : vector<1x8x64xbf16> to vector<8x64xbf16>
    %cst_30 = arith.constant dense<0.000000e+00> : vector<1024x64xf32>
    %38 = tpu.matmul %35, %37, %cst_30 {dimension_numbers = #tpu.dot_dimension_numbers<[1], [0], [0], [1], [0, 0, 1, 1], [], []>} : vector<1024x8xbf16>, vector<8x64xbf16>, vector<1024x64xf32> -> vector<1024x64xf32>
    %39 = arith.addf %34, %38 : vector<1024x64xf32>
    %c234 = arith.constant 234 : index
    %c0_31 = arith.constant 0 : index
    %40 = vector.load %arg6[%c234, %c0_31] : memref<1264x8xbf16, #tpu.memory_space<vmem>>, vector<1024x8xbf16>
    %c7_32 = arith.constant 7 : index
    %c0_33 = arith.constant 0 : index
    %c0_34 = arith.constant 0 : index
    %41 = vector.load %arg2[%c7_32, %c0_33, %c0_34] : memref<9x8x64xbf16, #tpu.memory_space<vmem>>, vector<1x8x64xbf16>
    %42 = vector.shape_cast %41 : vector<1x8x64xbf16> to vector<8x64xbf16>
    %cst_35 = arith.constant dense<0.000000e+00> : vector<1024x64xf32>
    %43 = tpu.matmul %40, %42, %cst_35 {dimension_numbers = #tpu.dot_dimension_numbers<[1], [0], [0], [1], [0, 0, 1, 1], [], []>} : vector<1024x8xbf16>, vector<8x64xbf16>, vector<1024x64xf32> -> vector<1024x64xf32>
    %44 = arith.addf %39, %43 : vector<1024x64xf32>
    %c235 = arith.constant 235 : index
    %c0_36 = arith.constant 0 : index
    %45 = vector.load %arg6[%c235, %c0_36] : memref<1264x8xbf16, #tpu.memory_space<vmem>>, vector<1024x8xbf16>
    %c8 = arith.constant 8 : index
    %c0_37 = arith.constant 0 : index
    %c0_38 = arith.constant 0 : index
    %46 = vector.load %arg2[%c8, %c0_37, %c0_38] : memref<9x8x64xbf16, #tpu.memory_space<vmem>>, vector<1x8x64xbf16>
    %47 = vector.shape_cast %46 : vector<1x8x64xbf16> to vector<8x64xbf16>
    %cst_39 = arith.constant dense<0.000000e+00> : vector<1024x64xf32>
    %48 = tpu.matmul %45, %47, %cst_39 {dimension_numbers = #tpu.dot_dimension_numbers<[1], [0], [0], [1], [0, 0, 1, 1], [], []>} : vector<1024x8xbf16>, vector<8x64xbf16>, vector<1024x64xf32> -> vector<1024x64xf32>
    %49 = arith.addf %44, %48 : vector<1024x64xf32>
    %c0_40 = arith.constant 0 : index
    %c0_41 = arith.constant 0 : index
    %50 = vector.load %arg3[%c0_40, %c0_41] : memref<1x64xf32, #tpu.memory_space<vmem>>, vector<1x64xf32>
    %51 = vector.broadcast %50 : vector<1x64xf32> to vector<1024x64xf32>
    %52 = arith.addf %49, %51 : vector<1024x64xf32>
    %cst_42 = arith.constant 0.000000e+00 : f32
    %53 = vector.broadcast %cst_42 : f32 to vector<1024x64xf32>
    %54 = arith.cmpf ogt, %52, %53 : vector<1024x64xf32>
    %c0_43 = arith.constant 0 : index
    %c0_44 = arith.constant 0 : index
    %55 = vector.load %arg4[%c0_43, %c0_44] : memref<1x64xf32, #tpu.memory_space<vmem>>, vector<1x64xf32>
    %56 = vector.broadcast %55 : vector<1x64xf32> to vector<1024x64xf32>
    %57 = arith.mulf %52, %56 : vector<1024x64xf32>
    %58 = arith.select %54, %52, %57 : vector<1024x64xi1>, vector<1024x64xf32>
    %59 = arith.truncf %58 : vector<1024x64xf32> to vector<1024x64xbf16>
    %c0_45 = arith.constant 0 : index
    %c0_46 = arith.constant 0 : index
    %60 = vector.load %arg5[%c0_45, %c0_46] : memref<1024x64xbf16, #tpu.memory_space<vmem>>, vector<1024x64xbf16>
    tpu.vector_store %arg5[%c0_45, %c0_46], %59 {strides = array<i32>} : memref<1024x64xbf16, #tpu.memory_space<vmem>>, vector<1024x64xbf16>,
    return
  }
  func.func @transform_1(%arg0: i32) -> (i32, i32, i32) {
    %c0_i32 = arith.constant 0 : i32
    %c0_i32_0 = arith.constant 0 : i32
    %c0_i32_1 = arith.constant 0 : i32
    %c0_i32_2 = arith.constant 0 : i32
    return %c0_i32, %c0_i32_0, %c0_i32_1 : i32, i32, i32
  }
  func.func @transform_2(%arg0: i32) -> (i32, i32) {
    %c0_i32 = arith.constant 0 : i32
    %c0_i32_0 = arith.constant 0 : i32
    %c0_i32_1 = arith.constant 0 : i32
    return %c0_i32, %c0_i32_0 : i32, i32
  }
  func.func @transform_3(%arg0: i32) -> (i32, i32) {
    %c0_i32 = arith.constant 0 : i32
    %c0_i32_0 = arith.constant 0 : i32
    %c0_i32_1 = arith.constant 0 : i32
    return %c0_i32, %c0_i32_0 : i32, i32
  }
  func.func @transform_4(%arg0: i32) -> (i32, i32) {
    %c0_i32 = arith.constant 0 : i32
    %c0_i32_0 = arith.constant 0 : i32
    return %arg0, %c0_i32 : i32, i32
  }
}

</mosaic_0001>

<llo_original>
// kernel: tpu_custom_call.1
$region0: #{tpu_custom_call.1}
  #allocation0 [shape = 'u32[]', space=smem, size = 0x4, offset = 0x4, fixed_abs, tag = 'smem constant byte address 0x4 - core index']
  #allocation1 [shape = 'u32[72,128]{1,0:T(1,128)}', space=vmem, size = 0x9000, scoped, tag = 'internal scratch']
  #allocation2 [shape = 'bf16[1264,8]{1,0:T(8,128)(2,1)}', space=vmem, size = 0x4f000, scoped, tag = 'scratch operand']
  #allocation3 [shape = 's32[1]{0}', space=sflag, size = 0x4, scoped, tag = 'scratch operand']
  #allocation4 [shape = 's32[]', space=sflag, size = 0x4, offset = 0, fixed_abs, tag = 'sflag constant byte address 0x0 - dummy sync flag']
  %s0 = inlined_call_operand.vmem [shape: bf16[26864,8], index: 0, kind: input, shape index: {}]
  %s1 = inlined_call_operand.vmem [shape: bf16[9,8,64], index: 1, kind: input, shape index: {}]
  %s2 = inlined_call_operand.vmem [shape: f32[1,64], index: 2, kind: input, shape index: {}]
  %s3 = inlined_call_operand.vmem [shape: f32[1,64], index: 3, kind: input, shape index: {}]
  %s4 = inlined_call_operand.vmem [shape: bf16[26624,64], index: 4, kind: output, shape index: {}]
  %s5 = sld [smem:[#allocation0]]
  $region64: #{tpu_custom_call.1} parent=0
    _
  %s7 = ssub.s32 1, %s5
  %s8 = scalar_select 0, %s7, %s5
  loop: start=0, step=1, limit=28
  $region2: #{tpu_custom_call.1} parent=0 // loop_pre_header
    _
  $region3: #{tpu_custom_call.1} parent=0 // loop_header
    %s10 = sphi 0, %s14
    %p11 = scmp.ge.s32.totalorder %s10, 28
    %s18 = sphi 0, %s18
    %s20 = sphi 0, %s18
    %s21 = sphi 0, %s20
    %s35 = sphi 0, %s21
    %s39 = sphi 0, %s39
    %s41 = sphi 0, %s39
    %s42 = sphi 0, %s41
    %s56 = sphi 0, %s42
    %s60 = sphi 0, %s60
    %s62 = sphi 0, %s60
    %s63 = sphi 0, %s62
    %s77 = sphi 0, %s63
    %s83 = sphi 0, %s85
    %s86 = sphi 0, %s83
    %s87 = sphi 0, %s86
    %s103 = sphi 0, %s87
  $region4: #{tpu_custom_call.1} parent=0 // loop_header_branch
    %13 = sbr.rel (%p11) target = $region8
  $region5: #{tpu_custom_call.1} parent=0 // loop_body
    %s15 = ssub.s32 %s10, 1
    %s16 = ssub.s32 %s10, 2
    %s17 = sadd.s32 %s10, 1
    %s19 = sadd.s32 %s18, 1
    %p22 = scmp.eq.s32.totalorder %s10, 25
    %p23 = scmp.ne.s32.totalorder %s18, %s20
    %p24 = scmp.eq.s32.totalorder %s10, 0
    %p25 = por %p23, %p24
    %p26 = scmp.ne.s32.totalorder %s18, %s20
    %p27 = scmp.eq.s32.totalorder %s15, 25
    %p28 = por %p26, %p27
    %p29 = scmp.ne.s32.totalorder %s20, %s21
    %p30 = scmp.eq.s32.totalorder %s15, 0
    %p31 = por %p29, %p30
    %p32 = scmp.ne.s32.totalorder %s20, %s21
    %p33 = scmp.eq.s32.totalorder %s16, 25
    %p34 = por %p32, %p33
    %p36 = scmp.ne.s32.totalorder %s21, %s35
    %p37 = scmp.eq.s32.totalorder %s16, 0
    %p38 = por %p36, %p37
    %s40 = sadd.s32 %s39, 1
    %p43 = scmp.eq.s32.totalorder %s10, 25
    %p44 = scmp.ne.s32.totalorder %s39, %s41
    %p45 = scmp.eq.s32.totalorder %s10, 0
    %p46 = por %p44, %p45
    %p47 = scmp.ne.s32.totalorder %s39, %s41
    %p48 = scmp.eq.s32.totalorder %s15, 25
    %p49 = por %p47, %p48
    %p50 = scmp.ne.s32.totalorder %s41, %s42
    %p51 = scmp.eq.s32.totalorder %s15, 0
    %p52 = por %p50, %p51
    %p53 = scmp.ne.s32.totalorder %s41, %s42
    %p54 = scmp.eq.s32.totalorder %s16, 25
    %p55 = por %p53, %p54
    %p57 = scmp.ne.s32.totalorder %s42, %s56
    %p58 = scmp.eq.s32.totalorder %s16, 0
    %p59 = por %p57, %p58
    %s61 = sadd.s32 %s60, 1
    %p64 = scmp.eq.s32.totalorder %s10, 25
    %p65 = scmp.ne.s32.totalorder %s60, %s62
    %p66 = scmp.eq.s32.totalorder %s10, 0
    %p67 = por %p65, %p66
    %p68 = scmp.ne.s32.totalorder %s60, %s62
    %p69 = scmp.eq.s32.totalorder %s15, 25
    %p70 = por %p68, %p69
    %p71 = scmp.ne.s32.totalorder %s62, %s63
    %p72 = scmp.eq.s32.totalorder %s15, 0
    %p73 = por %p71, %p72
    %p74 = scmp.ne.s32.totalorder %s62, %s63
    %p75 = scmp.eq.s32.totalorder %s16, 25
    %p76 = por %p74, %p75
    %p78 = scmp.ne.s32.totalorder %s63, %s77
    %p79 = scmp.eq.s32.totalorder %s16, 0
    %p80 = por %p78, %p79
    %s81 = ssub.s32 %s10, %s17
    %p82 = scmp.eq.s32.totalorder %s81, 0
    %s84 = sadd.s32 %s83, 1
    %s85 = scalar_select %p82, %s83, %s84
    %p88 = pneg %p82
    %p89 = scmp.eq.s32.totalorder %s10, 25
    %p90 = por %p88, %p89
    %p91 = scmp.ne.s32.totalorder %s83, %s86
    %p92 = scmp.eq.s32.totalorder %s10, 0
    %p93 = por %p91, %p92
    %p94 = scmp.ne.s32.totalorder %s83, %s86
    %p95 = scmp.eq.s32.totalorder %s15, 25
    %p96 = por %p94, %p95
    %p97 = scmp.ne.s32.totalorder %s86, %s87
    %p98 = scmp.eq.s32.totalorder %s15, 0
    %p99 = por %p97, %p98
    %p100 = scmp.ne.s32.totalorder %s86, %s87
    %p101 = scmp.eq.s32.totalorder %s16, 25
    %p102 = por %p100, %p101
    %p104 = scmp.ne.s32.totalorder %s87, %s103
    %p105 = scmp.eq.s32.totalorder %s16, 0
    %p106 = por %p104, %p105
    %p107 = scmp.le.s32.totalorder 1, %s10
    %p108 = scmp.lt.s32.totalorder %s10, 27
    %p109 = pnand %p107, %p108
    %p110 = pneg %p109
    // Predicated region
    $region9: #{tpu_custom_call.1} parent=5 // pred_check
      _
    $region10: #{tpu_custom_call.1} parent=5 // pred_check_branch
      %112 = sbr.rel (%p109) target = $region12
    $region11: #{tpu_custom_call.1} parent=5 // pred_region
      %s113 = ssub.s32 %s10, 1
      // Predicated region
      $region13: #{tpu_custom_call.1} parent=11 // pred_check
        %p114 = pneg %p31
      $region14: #{tpu_custom_call.1} parent=11 // pred_check_branch
        %116 = sbr.rel (%p114) target = $region16
      $region15: #{tpu_custom_call.1} parent=11 // pred_region
        _
      $region16: #{tpu_custom_call.1} parent=11 // pred_fallthru
        _
      // Predicated region
      $region17: #{tpu_custom_call.1} parent=11 // pred_check
        %p117 = pneg %p52
      $region18: #{tpu_custom_call.1} parent=11 // pred_check_branch
        %119 = sbr.rel (%p117) target = $region20
      $region19: #{tpu_custom_call.1} parent=11 // pred_region
        _
      $region20: #{tpu_custom_call.1} parent=11 // pred_fallthru
        _
      // Predicated region
      $region21: #{tpu_custom_call.1} parent=11 // pred_check
        %p120 = pneg %p73
      $region22: #{tpu_custom_call.1} parent=11 // pred_check_branch
        %122 = sbr.rel (%p120) target = $region24
      $region23: #{tpu_custom_call.1} parent=11 // pred_region
        _
      $region24: #{tpu_custom_call.1} parent=11 // pred_fallthru
        _
    $region12: #{tpu_custom_call.1} parent=5 // pred_fallthru
      _
    %p123 = scmp.lt.s32.totalorder %s10, 26
    // Predicated region
    $region25: #{tpu_custom_call.1} parent=5 // pred_check
      %p124 = pneg %p123
    $region26: #{tpu_custom_call.1} parent=5 // pred_check_branch
      %126 = sbr.rel (%p124) target = $region28
    $region27: #{tpu_custom_call.1} parent=5 // pred_region
      _
    $region28: #{tpu_custom_call.1} parent=5 // pred_fallthru
      _
    %p127 = scmp.le.s32.totalorder 1, %s10
    %p128 = scmp.lt.s32.totalorder %s10, 27
    %p129 = pnand %p127, %p128
    %p130 = pneg %p129
    // Predicated region
    $region29: #{tpu_custom_call.1} parent=5 // pred_check
      _
    $region30: #{tpu_custom_call.1} parent=5 // pred_check_branch
      %132 = sbr.rel (%p129) target = $region32
    $region31: #{tpu_custom_call.1} parent=5 // pred_region
      %s133 = ssub.s32 %s10, 1
      %p134 = pneg %p31
      %p135 = pneg %p28
      %p136 = pneg %p52
      %p137 = pneg %p49
      %p138 = pneg %p73
      %p139 = pneg %p70
      %p140 = pneg %p99
      %p141 = pneg %p96
      %s142 = smul.u32 128, %s15
      %p143 = scmp.lt.s32.totalorder %s142, 3327
      %s144 = scalar_select %p143, %s142, 3327
      %s145 = smul.addr %s144, 4
      %s146 = scalar_lea.vmem %s4, %s145
      %s147 = smul.u32 128, %s15
      %p148 = scmp.lt.s32.totalorder %s147, 3327
      %s149 = scalar_select %p148, %s147, 3327
      %s150 = smul.addr %s149, 4
      %s151 = scalar_lea.vmem %s4, %s150
      %s152 = smul.u32 128, %s15
      %s154 = smul.u32 %s15, 1024
      %s155 = sshra.s32 %s154, 3
      %s156 = sand.u32 %s154, 7
      %s157 = smul.addr %s155, 4
      %s158 = scalar_lea.vmem %s0, %s157
      // Predicated region
      $region33: #{tpu_custom_call.1} parent=31 // pred_check
        _
      $region34: #{tpu_custom_call.1} parent=31 // pred_check_branch
        %160 = sbr.rel (0) target = $region36
      $region35: #{tpu_custom_call.1} parent=31 // pred_region
        loop: start=0, step=1, limit=1
        $region37: #{tpu_custom_call.1} parent=35 // loop_pre_header
          _
        $region38: #{tpu_custom_call.1} parent=35 // loop_header
          %s162 = sphi 0, %s166
          %p163 = scmp.ge.s32.totalorder %s162, 1
          %s167 = sphi %s158, %s158
          %s168 = sphi [#allocation2], [#allocation2]
        $region39: #{tpu_custom_call.1} parent=35 // loop_header_branch
          %165 = sbr.rel (%p163) target = $region43
        $region40: #{tpu_custom_call.1} parent=35 // loop_body
          %v169 = vld [vmem:[%s167] sm:$0xff]
          %170 = vst [vmem:[%s168] sm:$0xff] %v169
          %v171 = vld [vmem:[%s167 + $0x8] sm:$0xff]
          %172 = vst [vmem:[%s168 + $0x8] sm:$0xff] %v171
          %v173 = vld [vmem:[%s167 + $0x10] sm:$0xff]
          %174 = vst [vmem:[%s168 + $0x10] sm:$0xff] %v173
          %v175 = vld [vmem:[%s167 + $0x18] sm:$0xff]
          %176 = vst [vmem:[%s168 + $0x18] sm:$0xff] %v175
          %v177 = vld [vmem:[%s167 + $0x20] sm:$0xff]
          %178 = vst [vmem:[%s168 + $0x20] sm:$0xff] %v177
          %v179 = vld [vmem:[%s167 + $0x28] sm:$0xff]
          %180 = vst [vmem:[%s168 + $0x28] sm:$0xff] %v179
          %v181 = vld [vmem:[%s167 + $0x30] sm:$0xff]
          %182 = vst [vmem:[%s168 + $0x30] sm:$0xff] %v181
          %v183 = vld [vmem:[%s167 + $0x38] sm:$0xff]
          %184 = vst [vmem:[%s168 + $0x38] sm:$0xff] %v183
          %v185 = vld [vmem:[%s167 + $0x40] sm:$0xff]
          %186 = vst [vmem:[%s168 + $0x40] sm:$0xff] %v185
          %v187 = vld [vmem:[%s167 + $0x48] sm:$0xff]
          %188 = vst [vmem:[%s168 + $0x48] sm:$0xff] %v187
          %v189 = vld [vmem:[%s167 + $0x50] sm:$0xff]
          %190 = vst [vmem:[%s168 + $0x50] sm:$0xff] %v189
          %v191 = vld [vmem:[%s167 + $0x58] sm:$0xff]
          %192 = vst [vmem:[%s168 + $0x58] sm:$0xff] %v191
          %v193 = vld [vmem:[%s167 + $0x60] sm:$0xff]
          %194 = vst [vmem:[%s168 + $0x60] sm:$0xff] %v193
          %v195 = vld [vmem:[%s167 + $0x68] sm:$0xff]
          %196 = vst [vmem:[%s168 + $0x68] sm:$0xff] %v195
          %v197 = vld [vmem:[%s167 + $0x70] sm:$0xff]
          %198 = vst [vmem:[%s168 + $0x70] sm:$0xff] %v197
          %v199 = vld [vmem:[%s167 + $0x78] sm:$0xff]
          %200 = vst [vmem:[%s168 + $0x78] sm:$0xff] %v199
          %v201 = vld [vmem:[%s167 + $0x80] sm:$0xff]
          %202 = vst [vmem:[%s168 + $0x80] sm:$0xff] %v201
          %v203 = vld [vmem:[%s167 + $0x88] sm:$0xff]
          %204 = vst [vmem:[%s168 + $0x88] sm:$0xff] %v203
          %v205 = vld [vmem:[%s167 + $0x90] sm:$0xff]
          %206 = vst [vmem:[%s168 + $0x90] sm:$0xff] %v205
          %v207 = vld [vmem:[%s167 + $0x98] sm:$0xff]
          %208 = vst [vmem:[%s168 + $0x98] sm:$0xff] %v207
          %v209 = vld [vmem:[%s167 + $0xa0] sm:$0xff]
          %210 = vst [vmem:[%s168 + $0xa0] sm:$0xff] %v209
          %v211 = vld [vmem:[%s167 + $0xa8] sm:$0xff]
          %212 = vst [vmem:[%s168 + $0xa8] sm:$0xff] %v211
          %v213 = vld [vmem:[%s167 + $0xb0] sm:$0xff]
          %214 = vst [vmem:[%s168 + $0xb0] sm:$0xff] %v213
          %v215 = vld [vmem:[%s167 + $0xb8] sm:$0xff]
          %216 = vst [vmem:[%s168 + $0xb8] sm:$0xff] %v215
          %v217 = vld [vmem:[%s167 + $0xc0] sm:$0xff]
          %218 = vst [vmem:[%s168 + $0xc0] sm:$0xff] %v217
          %v219 = vld [vmem:[%s167 + $0xc8] sm:$0xff]
          %220 = vst [vmem:[%s168 + $0xc8] sm:$0xff] %v219
          %v221 = vld [vmem:[%s167 + $0xd0] sm:$0xff]
          %222 = vst [vmem:[%s168 + $0xd0] sm:$0xff] %v221
          %v223 = vld [vmem:[%s167 + $0xd8] sm:$0xff]
          %224 = vst [vmem:[%s168 + $0xd8] sm:$0xff] %v223
          %v225 = vld [vmem:[%s167 + $0xe0] sm:$0xff]
          %226 = vst [vmem:[%s168 + $0xe0] sm:$0xff] %v225
          %v227 = vld [vmem:[%s167 + $0xe8] sm:$0xff]
          %228 = vst [vmem:[%s168 + $0xe8] sm:$0xff] %v227
          %v229 = vld [vmem:[%s167 + $0xf0] sm:$0xff]
          %230 = vst [vmem:[%s168 + $0xf0] sm:$0xff] %v229
          %v231 = vld [vmem:[%s167 + $0xf8] sm:$0xff]
          %232 = vst [vmem:[%s168 + $0xf8] sm:$0xff] %v231
          %v233 = vld [vmem:[%s167 + $0x100] sm:$0xff]
          %234 = vst [vmem:[%s168 + $0x100] sm:$0xff] %v233
          %v235 = vld [vmem:[%s167 + $0x108] sm:$0xff]
          %236 = vst [vmem:[%s168 + $0x108] sm:$0xff] %v235
          %v237 = vld [vmem:[%s167 + $0x110] sm:$0xff]
          %238 = vst [vmem:[%s168 + $0x110] sm:$0xff] %v237
          %v239 = vld [vmem:[%s167 + $0x118] sm:$0xff]
          %240 = vst [vmem:[%s168 + $0x118] sm:$0xff] %v239
          %v241 = vld [vmem:[%s167 + $0x120] sm:$0xff]
          %242 = vst [vmem:[%s168 + $0x120] sm:$0xff] %v241
          %v243 = vld [vmem:[%s167 + $0x128] sm:$0xff]
          %244 = vst [vmem:[%s168 + $0x128] sm:$0xff] %v243
          %v245 = vld [vmem:[%s167 + $0x130] sm:$0xff]
          %246 = vst [vmem:[%s168 + $0x130] sm:$0xff] %v245
          %v247 = vld [vmem:[%s167 + $0x138] sm:$0xff]
          %248 = vst [vmem:[%s168 + $0x138] sm:$0xff] %v247
          %v249 = vld [vmem:[%s167 + $0x140] sm:$0xff]
          %250 = vst [vmem:[%s168 + $0x140] sm:$0xff] %v249
          %v251 = vld [vmem:[%s167 + $0x148] sm:$0xff]
          %252 = vst [vmem:[%s168 + $0x148] sm:$0xff] %v251
          %v253 = vld [vmem:[%s167 + $0x150] sm:$0xff]
          %254 = vst [vmem:[%s168 + $0x150] sm:$0xff] %v253
          %v255 = vld [vmem:[%s167 + $0x158] sm:$0xff]
          %256 = vst [vmem:[%s168 + $0x158] sm:$0xff] %v255
          %v257 = vld [vmem:[%s167 + $0x160] sm:$0xff]
          %258 = vst [vmem:[%s168 + $0x160] sm:$0xff] %v257
          %v259 = vld [vmem:[%s167 + $0x168] sm:$0xff]
          %260 = vst [vmem:[%s168 + $0x168] sm:$0xff] %v259
          %v261 = vld [vmem:[%s167 + $0x170] sm:$0xff]
          %262 = vst [vmem:[%s168 + $0x170] sm:$0xff] %v261
          %v263 = vld [vmem:[%s167 + $0x178] sm:$0xff]
          %264 = vst [vmem:[%s168 + $0x178] sm:$0xff] %v263
          %v265 = vld [vmem:[%s167 + $0x180] sm:$0xff]
          %266 = vst [vmem:[%s168 + $0x180] sm:$0xff] %v265
          %v267 = vld [vmem:[%s167 + $0x188] sm:$0xff]
          %268 = vst [vmem:[%s168 + $0x188] sm:$0xff] %v267
          %v269 = vld [vmem:[%s167 + $0x190] sm:$0xff]
          %270 = vst [vmem:[%s168 + $0x190] sm:$0xff] %v269
          %v271 = vld [vmem:[%s167 + $0x198] sm:$0xff]
          %272 = vst [vmem:[%s168 + $0x198] sm:$0xff] %v271
          %v273 = vld [vmem:[%s167 + $0x1a0] sm:$0xff]
          %274 = vst [vmem:[%s168 + $0x1a0] sm:$0xff] %v273
          %v275 = vld [vmem:[%s167 + $0x1a8] sm:$0xff]
          %276 = vst [vmem:[%s168 + $0x1a8] sm:$0xff] %v275
          %v277 = vld [vmem:[%s167 + $0x1b0] sm:$0xff]
          %278 = vst [vmem:[%s168 + $0x1b0] sm:$0xff] %v277
          %v279 = vld [vmem:[%s167 + $0x1b8] sm:$0xff]
          %280 = vst [vmem:[%s168 + $0x1b8] sm:$0xff] %v279
          %v281 = vld [vmem:[%s167 + $0x1c0] sm:$0xff]
          %282 = vst [vmem:[%s168 + $0x1c0] sm:$0xff] %v281
          %v283 = vld [vmem:[%s167 + $0x1c8] sm:$0xff]
          %284 = vst [vmem:[%s168 + $0x1c8] sm:$0xff] %v283
          %v285 = vld [vmem:[%s167 + $0x1d0] sm:$0xff]
          %286 = vst [vmem:[%s168 + $0x1d0] sm:$0xff] %v285
          %v287 = vld [vmem:[%s167 + $0x1d8] sm:$0xff]
          %288 = vst [vmem:[%s168 + $0x1d8] sm:$0xff] %v287
          %v289 = vld [vmem:[%s167 + $0x1e0] sm:$0xff]
          %290 = vst [vmem:[%s168 + $0x1e0] sm:$0xff] %v289
          %v291 = vld [vmem:[%s167 + $0x1e8] sm:$0xff]
          %292 = vst [vmem:[%s168 + $0x1e8] sm:$0xff] %v291
          %v293 = vld [vmem:[%s167 + $0x1f0] sm:$0xff]
          %294 = vst [vmem:[%s168 + $0x1f0] sm:$0xff] %v293
          %v295 = vld [vmem:[%s167 + $0x1f8] sm:$0xff]
          %296 = vst [vmem:[%s168 + $0x1f8] sm:$0xff] %v295
          %v297 = vld [vmem:[%s167 + $0x200] sm:$0xff]
          %298 = vst [vmem:[%s168 + $0x200] sm:$0xff] %v297
          %v299 = vld [vmem:[%s167 + $0x208] sm:$0xff]
          %300 = vst [vmem:[%s168 + $0x208] sm:$0xff] %v299
          %v301 = vld [vmem:[%s167 + $0x210] sm:$0xff]
          %302 = vst [vmem:[%s168 + $0x210] sm:$0xff] %v301
          %v303 = vld [vmem:[%s167 + $0x218] sm:$0xff]
          %304 = vst [vmem:[%s168 + $0x218] sm:$0xff] %v303
          %v305 = vld [vmem:[%s167 + $0x220] sm:$0xff]
          %306 = vst [vmem:[%s168 + $0x220] sm:$0xff] %v305
          %v307 = vld [vmem:[%s167 + $0x228] sm:$0xff]
          %308 = vst [vmem:[%s168 + $0x228] sm:$0xff] %v307
          %v309 = vld [vmem:[%s167 + $0x230] sm:$0xff]
          %310 = vst [vmem:[%s168 + $0x230] sm:$0xff] %v309
          %v311 = vld [vmem:[%s167 + $0x238] sm:$0xff]
          %312 = vst [vmem:[%s168 + $0x238] sm:$0xff] %v311
          %v313 = vld [vmem:[%s167 + $0x240] sm:$0xff]
          %314 = vst [vmem:[%s168 + $0x240] sm:$0xff] %v313
          %v315 = vld [vmem:[%s167 + $0x248] sm:$0xff]
          %316 = vst [vmem:[%s168 + $0x248] sm:$0xff] %v315
          %v317 = vld [vmem:[%s167 + $0x250] sm:$0xff]
          %318 = vst [vmem:[%s168 + $0x250] sm:$0xff] %v317
          %v319 = vld [vmem:[%s167 + $0x258] sm:$0xff]
          %320 = vst [vmem:[%s168 + $0x258] sm:$0xff] %v319
          %v321 = vld [vmem:[%s167 + $0x260] sm:$0xff]
          %322 = vst [vmem:[%s168 + $0x260] sm:$0xff] %v321
          %v323 = vld [vmem:[%s167 + $0x268] sm:$0xff]
          %324 = vst [vmem:[%s168 + $0x268] sm:$0xff] %v323
          %v325 = vld [vmem:[%s167 + $0x270] sm:$0xff]
          %326 = vst [vmem:[%s168 + $0x270] sm:$0xff] %v325
        $region41: #{tpu_custom_call.1} parent=35 // loop_footer
          %s166 = sadd.s32 1, %s162
        $region42: #{tpu_custom_call.1} parent=35 // loop_footer_branch
          %161 = sbr.rel target = $region38
        $region43: #{tpu_custom_call.1} parent=35 // loop_exit
          _
      $region36: #{tpu_custom_call.1} parent=31 // pred_fallthru
        _
      // Predicated region
      $region44: #{tpu_custom_call.1} parent=31 // pred_check
        _
      $region45: #{tpu_custom_call.1} parent=31 // pred_check_branch
        %328 = sbr.rel target = $region47
      $region46: #{tpu_custom_call.1} parent=31 // pred_region
        _
      $region47: #{tpu_custom_call.1} parent=31 // pred_fallthru
        _
      // Predicated region
      $region48: #{tpu_custom_call.1} parent=31 // pred_check
        _
      $region49: #{tpu_custom_call.1} parent=31 // pred_check_branch
        %331 = sbr.rel (0) target = $region51
      $region50: #{tpu_custom_call.1} parent=31 // pred_region
        %332 = vsyncadd [#allocation3], 10112
      $region51: #{tpu_custom_call.1} parent=31 // pred_fallthru
        _
      %s333 = smul.u32 4, 158
      %s334 = smul.u32 %s333, 1
      %s335 = sshll.u32 %s334, 4
      %336 = dma.done [#allocation3], %s335
      %v337 = vld [vmem:[#allocation2] sm:$0xc]
      %v338 = vld [vmem:[#allocation2 + $0x4] sm:$0xf]
      %v339 = vld [vmem:[#allocation2 + $0x8] sm:$0xf]
      %v340 = vld [vmem:[#allocation2 + $0xc] sm:$0xf]
      %v341 = vld [vmem:[#allocation2 + $0x10] sm:$0xf]
      %v342 = vld [vmem:[#allocation2 + $0x14] sm:$0xf]
      %v343 = vld [vmem:[#allocation2 + $0x18] sm:$0xf]
      %v344 = vld [vmem:[#allocation2 + $0x1c] sm:$0xf]
      %v345 = vld [vmem:[#allocation2 + $0x20] sm:$0xf]
      %v346 = vld [vmem:[#allocation2 + $0x24] sm:$0xf]
      %v347 = vld [vmem:[#allocation2 + $0x28] sm:$0xf]
      %v348 = vld [vmem:[#allocation2 + $0x2c] sm:$0xf]
      %v349 = vld [vmem:[#allocation2 + $0x30] sm:$0xf]
      %v350 = vld [vmem:[#allocation2 + $0x34] sm:$0xf]
      %v351 = vld [vmem:[#allocation2 + $0x38] sm:$0xf]
      %v352 = vld [vmem:[#allocation2 + $0x3c] sm:$0xf]
      %v353 = vld [vmem:[#allocation2 + $0x40] sm:$0xf]
      %v354 = vld [vmem:[#allocation2 + $0x44] sm:$0xf]
      %v355 = vld [vmem:[#allocation2 + $0x48] sm:$0xf]
      %v356 = vld [vmem:[#allocation2 + $0x4c] sm:$0xf]
      %v357 = vld [vmem:[#allocation2 + $0x50] sm:$0xf]
      %v358 = vld [vmem:[#allocation2 + $0x54] sm:$0xf]
      %v359 = vld [vmem:[#allocation2 + $0x58] sm:$0xf]
      %v360 = vld [vmem:[#allocation2 + $0x5c] sm:$0xf]
      %v361 = vld [vmem:[#allocation2 + $0x60] sm:$0xf]
      %v362 = vld [vmem:[#allocation2 + $0x64] sm:$0xf]
      %v363 = vld [vmem:[#allocation2 + $0x68] sm:$0xf]
      %v364 = vld [vmem:[#allocation2 + $0x6c] sm:$0xf]
      %v365 = vld [vmem:[#allocation2 + $0x70] sm:$0xf]
      %v366 = vld [vmem:[#allocation2 + $0x74] sm:$0xf]
      %v367 = vld [vmem:[#allocation2 + $0x78] sm:$0xf]
      %v368 = vld [vmem:[#allocation2 + $0x7c] sm:$0xf]
      %v369 = vld [vmem:[#allocation2 + $0x80] sm:$0xf]
      %v370 = vld [vmem:[#allocation2 + $0x84] sm:$0xf]
      %v371 = vld [vmem:[#allocation2 + $0x88] sm:$0xf]
      %v372 = vld [vmem:[#allocation2 + $0x8c] sm:$0xf]
      %v373 = vld [vmem:[#allocation2 + $0x90] sm:$0xf]
      %v374 = vld [vmem:[#allocation2 + $0x94] sm:$0xf]
      %v375 = vld [vmem:[#allocation2 + $0x98] sm:$0xf]
      %v376 = vld [vmem:[#allocation2 + $0x9c] sm:$0xf]
      %v377 = vld [vmem:[#allocation2 + $0xa0] sm:$0xf]
      %v378 = vld [vmem:[#allocation2 + $0xa4] sm:$0xf]
      %v379 = vld [vmem:[#allocation2 + $0xa8] sm:$0xf]
      %v380 = vld [vmem:[#allocation2 + $0xac] sm:$0xf]
      %v381 = vld [vmem:[#allocation2 + $0xb0] sm:$0xf]
      %v382 = vld [vmem:[#allocation2 + $0xb4] sm:$0xf]
      %v383 = vld [vmem:[#allocation2 + $0xb8] sm:$0xf]
      %v384 = vld [vmem:[#allocation2 + $0xbc] sm:$0xf]
      %v385 = vld [vmem:[#allocation2 + $0xc0] sm:$0xf]
      %v386 = vld [vmem:[#allocation2 + $0xc4] sm:$0xf]
      %v387 = vld [vmem:[#allocation2 + $0xc8] sm:$0xf]
      %v388 = vld [vmem:[#allocation2 + $0xcc] sm:$0xf]
      %v389 = vld [vmem:[#allocation2 + $0xd0] sm:$0xf]
      %v390 = vld [vmem:[#allocation2 + $0xd4] sm:$0xf]
      %v391 = vld [vmem:[#allocation2 + $0xd8] sm:$0xf]
      %v392 = vld [vmem:[#allocation2 + $0xdc] sm:$0xf]
      %v393 = vld [vmem:[#allocation2 + $0xe0] sm:$0xf]
      %v394 = vld [vmem:[#allocation2 + $0xe4] sm:$0xf]
      %v395 = vld [vmem:[#allocation2 + $0xe8] sm:$0xf]
      %v396 = vld [vmem:[#allocation2 + $0xec] sm:$0xf]
      %v397 = vld [vmem:[#allocation2 + $0xf0] sm:$0xf]
      %v398 = vld [vmem:[#allocation2 + $0xf4] sm:$0xf]
      %v399 = vld [vmem:[#allocation2 + $0xf8] sm:$0xf]
      %v400 = vld [vmem:[#allocation2 + $0xfc] sm:$0xf]
      %v401 = vld [vmem:[#allocation2 + $0x100] sm:$0xf]
      %v402 = vld [vmem:[#allocation2 + $0x104] sm:$0xf]
      %v403 = vld [vmem:[#allocation2 + $0x108] sm:$0xf]
      %v404 = vld [vmem:[#allocation2 + $0x10c] sm:$0xf]
      %v405 = vld [vmem:[#allocation2 + $0x110] sm:$0xf]
      %v406 = vld [vmem:[#allocation2 + $0x114] sm:$0xf]
      %v407 = vld [vmem:[#allocation2 + $0x118] sm:$0xf]
      %v408 = vld [vmem:[#allocation2 + $0x11c] sm:$0xf]
      %v409 = vld [vmem:[#allocation2 + $0x120] sm:$0xf]
      %v410 = vld [vmem:[#allocation2 + $0x124] sm:$0xf]
      %v411 = vld [vmem:[#allocation2 + $0x128] sm:$0xf]
      %v412 = vld [vmem:[#allocation2 + $0x12c] sm:$0xf]
      %v413 = vld [vmem:[#allocation2 + $0x130] sm:$0xf]
      %v414 = vld [vmem:[#allocation2 + $0x134] sm:$0xf]
      %v415 = vld [vmem:[#allocation2 + $0x138] sm:$0xf]
      %v416 = vld [vmem:[#allocation2 + $0x13c] sm:$0xf]
      %v417 = vld [vmem:[#allocation2 + $0x140] sm:$0xf]
      %v418 = vld [vmem:[#allocation2 + $0x144] sm:$0xf]
      %v419 = vld [vmem:[#allocation2 + $0x148] sm:$0xf]
      %v420 = vld [vmem:[#allocation2 + $0x14c] sm:$0xf]
      %v421 = vld [vmem:[#allocation2 + $0x150] sm:$0xf]
      %v422 = vld [vmem:[#allocation2 + $0x154] sm:$0xf]
      %v423 = vld [vmem:[#allocation2 + $0x158] sm:$0xf]
      %v424 = vld [vmem:[#allocation2 + $0x15c] sm:$0xf]
      %v425 = vld [vmem:[#allocation2 + $0x160] sm:$0xf]
      %v426 = vld [vmem:[#allocation2 + $0x164] sm:$0xf]
      %v427 = vld [vmem:[#allocation2 + $0x168] sm:$0xf]
      %v428 = vld [vmem:[#allocation2 + $0x16c] sm:$0xf]
      %v429 = vld [vmem:[#allocation2 + $0x170] sm:$0xf]
      %v430 = vld [vmem:[#allocation2 + $0x174] sm:$0xf]
      %v431 = vld [vmem:[#allocation2 + $0x178] sm:$0xf]
      %v432 = vld [vmem:[#allocation2 + $0x17c] sm:$0xf]
      %v433 = vld [vmem:[#allocation2 + $0x180] sm:$0xf]
      %v434 = vld [vmem:[#allocation2 + $0x184] sm:$0xf]
      %v435 = vld [vmem:[#allocation2 + $0x188] sm:$0xf]
      %v436 = vld [vmem:[#allocation2 + $0x18c] sm:$0xf]
      %v437 = vld [vmem:[#allocation2 + $0x190] sm:$0xf]
      %v438 = vld [vmem:[#allocation2 + $0x194] sm:$0xf]
      %v439 = vld [vmem:[#allocation2 + $0x198] sm:$0xf]
      %v440 = vld [vmem:[#allocation2 + $0x19c] sm:$0xf]
      %v441 = vld [vmem:[#allocation2 + $0x1a0] sm:$0xf]
      %v442 = vld [vmem:[#allocation2 + $0x1a4] sm:$0xf]
      %v443 = vld [vmem:[#allocation2 + $0x1a8] sm:$0xf]
      %v444 = vld [vmem:[#allocation2 + $0x1ac] sm:$0xf]
      %v445 = vld [vmem:[#allocation2 + $0x1b0] sm:$0xf]
      %v446 = vld [vmem:[#allocation2 + $0x1b4] sm:$0xf]
      %v447 = vld [vmem:[#allocation2 + $0x1b8] sm:$0xf]
      %v448 = vld [vmem:[#allocation2 + $0x1bc] sm:$0xf]
      %v449 = vld [vmem:[#allocation2 + $0x1c0] sm:$0xf]
      %v450 = vld [vmem:[#allocation2 + $0x1c4] sm:$0xf]
      %v451 = vld [vmem:[#allocation2 + $0x1c8] sm:$0xf]
      %v452 = vld [vmem:[#allocation2 + $0x1cc] sm:$0xf]
      %v453 = vld [vmem:[#allocation2 + $0x1d0] sm:$0xf]
      %v454 = vld [vmem:[#allocation2 + $0x1d4] sm:$0xf]
      %v455 = vld [vmem:[#allocation2 + $0x1d8] sm:$0xf]
      %v456 = vld [vmem:[#allocation2 + $0x1dc] sm:$0xf]
      %v457 = vld [vmem:[#allocation2 + $0x1e0] sm:$0xf]
      %v458 = vld [vmem:[#allocation2 + $0x1e4] sm:$0xf]
      %v459 = vld [vmem:[#allocation2 + $0x1e8] sm:$0xf]
      %v460 = vld [vmem:[#allocation2 + $0x1ec] sm:$0xf]
      %v461 = vld [vmem:[#allocation2 + $0x1f0] sm:$0xf]
      %v462 = vld [vmem:[#allocation2 + $0x1f4] sm:$0xf]
      %v463 = vld [vmem:[#allocation2 + $0x1f8] sm:$0xf]
      %v464 = vld [vmem:[#allocation2 + $0x1fc] sm:$0xf]
      %v465 = vld [vmem:[#allocation2 + $0x200] sm:$0x7]
      %v466 = vld [vmem:[%s1] sm:$0xf]
      %v467 = vld [vmem:[#allocation2] sm:$0x8]
      %s468 = scalar_lea.vmem %s1, 4
      %v469 = vld [vmem:[%s468] sm:$0xf]
      %v599 = vunpack.c.l.b16 %v467
      %v600 = vunpack.c.l.b16 %v338
      %v601 = vunpack.c.l.b16 %v339
      %v602 = vunpack.c.l.b16 %v340
      %v603 = vunpack.c.l.b16 %v341
      %v604 = vunpack.c.l.b16 %v342
      %v605 = vunpack.c.l.b16 %v343
      %v606 = vunpack.c.l.b16 %v344
      %v607 = vunpack.c.l.b16 %v345
      %v608 = vunpack.c.l.b16 %v346
      %v609 = vunpack.c.l.b16 %v347
      %v610 = vunpack.c.l.b16 %v348
      %v611 = vunpack.c.l.b16 %v349
      %v612 = vunpack.c.l.b16 %v350
      %v613 = vunpack.c.l.b16 %v351
      %v614 = vunpack.c.l.b16 %v352
      %v615 = vunpack.c.l.b16 %v353
      %v616 = vunpack.c.l.b16 %v354
      %v617 = vunpack.c.l.b16 %v355
      %v618 = vunpack.c.l.b16 %v356
      %v619 = vunpack.c.l.b16 %v357
      %v620 = vunpack.c.l.b16 %v358
      %v621 = vunpack.c.l.b16 %v359
      %v622 = vunpack.c.l.b16 %v360
      %v623 = vunpack.c.l.b16 %v361
      %v624 = vunpack.c.l.b16 %v362
      %v625 = vunpack.c.l.b16 %v363
      %v626 = vunpack.c.l.b16 %v364
      %v627 = vunpack.c.l.b16 %v365
      %v628 = vunpack.c.l.b16 %v366
      %v629 = vunpack.c.l.b16 %v367
      %v630 = vunpack.c.l.b16 %v368
      %v631 = vunpack.c.l.b16 %v369
      %v632 = vunpack.c.l.b16 %v370
      %v633 = vunpack.c.l.b16 %v371
      %v634 = vunpack.c.l.b16 %v372
      %v635 = vunpack.c.l.b16 %v373
      %v636 = vunpack.c.l.b16 %v374
      %v637 = vunpack.c.l.b16 %v375
      %v638 = vunpack.c.l.b16 %v376
      %v639 = vunpack.c.l.b16 %v377
      %v640 = vunpack.c.l.b16 %v378
      %v641 = vunpack.c.l.b16 %v379
      %v642 = vunpack.c.l.b16 %v380
      %v643 = vunpack.c.l.b16 %v381
      %v644 = vunpack.c.l.b16 %v382
      %v645 = vunpack.c.l.b16 %v383
      %v646 = vunpack.c.l.b16 %v384
      %v647 = vunpack.c.l.b16 %v385
      %v648 = vunpack.c.l.b16 %v386
      %v649 = vunpack.c.l.b16 %v387
      %v650 = vunpack.c.l.b16 %v388
      %v651 = vunpack.c.l.b16 %v389
      %v652 = vunpack.c.l.b16 %v390
      %v653 = vunpack.c.l.b16 %v391
      %v654 = vunpack.c.l.b16 %v392
      %v655 = vunpack.c.l.b16 %v393
      %v656 = vunpack.c.l.b16 %v394
      %v657 = vunpack.c.l.b16 %v395
      %v658 = vunpack.c.l.b16 %v396
      %v659 = vunpack.c.l.b16 %v397
      %v660 = vunpack.c.l.b16 %v398
      %v661 = vunpack.c.l.b16 %v399
      %v662 = vunpack.c.l.b16 %v400
      %v663 = vunpack.c.l.b16 %v401
      %v664 = vunpack.c.l.b16 %v402
      %v665 = vunpack.c.l.b16 %v403
      %v666 = vunpack.c.l.b16 %v404
      %v667 = vunpack.c.l.b16 %v405
      %v668 = vunpack.c.l.b16 %v406
      %v669 = vunpack.c.l.b16 %v407
      %v670 = vunpack.c.l.b16 %v408
      %v671 = vunpack.c.l.b16 %v409
      %v672 = vunpack.c.l.b16 %v410
      %v673 = vunpack.c.l.b16 %v411
      %v674 = vunpack.c.l.b16 %v412
      %v675 = vunpack.c.l.b16 %v413
      %v676 = vunpack.c.l.b16 %v414
      %v677 = vunpack.c.l.b16 %v415
      %v678 = vunpack.c.l.b16 %v416
      %v679 = vunpack.c.l.b16 %v417
      %v680 = vunpack.c.l.b16 %v418
      %v681 = vunpack.c.l.b16 %v419
      %v682 = vunpack.c.l.b16 %v420
      %v683 = vunpack.c.l.b16 %v421
      %v684 = vunpack.c.l.b16 %v422
      %v685 = vunpack.c.l.b16 %v423
      %v686 = vunpack.c.l.b16 %v424
      %v687 = vunpack.c.l.b16 %v425
      %v688 = vunpack.c.l.b16 %v426
      %v689 = vunpack.c.l.b16 %v427
      %v690 = vunpack.c.l.b16 %v428
      %v691 = vunpack.c.l.b16 %v429
      %v692 = vunpack.c.l.b16 %v430
      %v693 = vunpack.c.l.b16 %v431
      %v694 = vunpack.c.l.b16 %v432
      %v695 = vunpack.c.l.b16 %v433
      %v696 = vunpack.c.l.b16 %v434
      %v697 = vunpack.c.l.b16 %v435
      %v698 = vunpack.c.l.b16 %v436
      %v699 = vunpack.c.l.b16 %v437
      %v700 = vunpack.c.l.b16 %v438
      %v701 = vunpack.c.l.b16 %v439
      %v702 = vunpack.c.l.b16 %v440
      %v703 = vunpack.c.l.b16 %v441
      %v704 = vunpack.c.l.b16 %v442
      %v705 = vunpack.c.l.b16 %v443
      %v706 = vunpack.c.l.b16 %v444
      %v707 = vunpack.c.l.b16 %v445
      %v708 = vunpack.c.l.b16 %v446
      %v709 = vunpack.c.l.b16 %v447
      %v710 = vunpack.c.l.b16 %v448
      %v711 = vunpack.c.l.b16 %v449
      %v712 = vunpack.c.l.b16 %v450
      %v713 = vunpack.c.l.b16 %v451
      %v714 = vunpack.c.l.b16 %v452
      %v715 = vunpack.c.l.b16 %v453
      %v716 = vunpack.c.l.b16 %v454
      %v717 = vunpack.c.l.b16 %v455
      %v718 = vunpack.c.l.b16 %v456
      %v719 = vunpack.c.l.b16 %v457
      %v720 = vunpack.c.l.b16 %v458
      %v721 = vunpack.c.l.b16 %v459
      %v722 = vunpack.c.l.b16 %v460
      %v723 = vunpack.c.l.b16 %v461
      %v724 = vunpack.c.l.b16 %v462
      %v725 = vunpack.c.l.b16 %v463
      %v726 = vunpack.c.l.b16 %v464
      %v727 = vunpack.c.l.b16 %v465
      %v728 = vpack.c.b16 %v600, %v599
      %v729 = vpack.c.b16 %v602, %v601
      %v730 = vpack.c.b16 %v604, %v603
      %v731 = vpack.c.b16 %v606, %v605
      %v732 = vpack.c.b16 %v608, %v607
      %v733 = vpack.c.b16 %v610, %v609
      %v734 = vpack.c.b16 %v612, %v611
      %v735 = vpack.c.b16 %v614, %v613
      %v736 = vpack.c.b16 %v616, %v615
      %v737 = vpack.c.b16 %v618, %v617
      %v738 = vpack.c.b16 %v620, %v619
      %v739 = vpack.c.b16 %v622, %v621
      %v740 = vpack.c.b16 %v624, %v623
      %v741 = vpack.c.b16 %v626, %v625
      %v742 = vpack.c.b16 %v628, %v627
      %v743 = vpack.c.b16 %v630, %v629
      %v744 = vpack.c.b16 %v632, %v631
      %v745 = vpack.c.b16 %v634, %v633
      %v746 = vpack.c.b16 %v636, %v635
      %v747 = vpack.c.b16 %v638, %v637
      %v748 = vpack.c.b16 %v640, %v639
      %v749 = vpack.c.b16 %v642, %v641
      %v750 = vpack.c.b16 %v644, %v643
      %v751 = vpack.c.b16 %v646, %v645
      %v752 = vpack.c.b16 %v648, %v647
      %v753 = vpack.c.b16 %v650, %v649
      %v754 = vpack.c.b16 %v652, %v651
      %v755 = vpack.c.b16 %v654, %v653
      %v756 = vpack.c.b16 %v656, %v655
      %v757 = vpack.c.b16 %v658, %v657
      %v758 = vpack.c.b16 %v660, %v659
      %v759 = vpack.c.b16 %v662, %v661
      %v760 = vpack.c.b16 %v664, %v663
      %v761 = vpack.c.b16 %v666, %v665
      %v762 = vpack.c.b16 %v668, %v667
      %v763 = vpack.c.b16 %v670, %v669
      %v764 = vpack.c.b16 %v672, %v671
      %v765 = vpack.c.b16 %v674, %v673
      %v766 = vpack.c.b16 %v676, %v675
      %v767 = vpack.c.b16 %v678, %v677
      %v768 = vpack.c.b16 %v680, %v679
      %v769 = vpack.c.b16 %v682, %v681
      %v770 = vpack.c.b16 %v684, %v683
      %v771 = vpack.c.b16 %v686, %v685
      %v772 = vpack.c.b16 %v688, %v687
      %v773 = vpack.c.b16 %v690, %v689
      %v774 = vpack.c.b16 %v692, %v691
      %v775 = vpack.c.b16 %v694, %v693
      %v776 = vpack.c.b16 %v696, %v695
      %v777 = vpack.c.b16 %v698, %v697
      %v778 = vpack.c.b16 %v700, %v699
      %v779 = vpack.c.b16 %v702, %v701
      %v780 = vpack.c.b16 %v704, %v703
      %v781 = vpack.c.b16 %v706, %v705
      %v782 = vpack.c.b16 %v708, %v707
      %v783 = vpack.c.b16 %v710, %v709
      %v784 = vpack.c.b16 %v712, %v711
      %v785 = vpack.c.b16 %v714, %v713
      %v786 = vpack.c.b16 %v716, %v715
      %v787 = vpack.c.b16 %v718, %v717
      %v788 = vpack.c.b16 %v720, %v719
      %v789 = vpack.c.b16 %v722, %v721
      %v790 = vpack.c.b16 %v724, %v723
      %v791 = vpack.c.b16 %v726, %v725
      %v792 = vpack.c.b16 %v727, %v727
      %vm793 = vcmask 1044480
      %v794 = vrot.slane %v728, 3
      %v795 = vrot.slane %v729, 3
      %v796 = vsel %vm793, %v794, %v795
      %v797 = vrot.slane %v730, 3
      %v798 = vsel %vm793, %v795, %v797
      %v799 = vrot.slane %v731, 3
      %v800 = vsel %vm793, %v797, %v799
      %v801 = vrot.slane %v732, 3
      %v802 = vsel %vm793, %v799, %v801
      %v803 = vrot.slane %v733, 3
      %v804 = vsel %vm793, %v801, %v803
      %v805 = vrot.slane %v734, 3
      %v806 = vsel %vm793, %v803, %v805
      %v807 = vrot.slane %v735, 3
      %v808 = vsel %vm793, %v805, %v807
      %v809 = vrot.slane %v736, 3
      %v810 = vsel %vm793, %v807, %v809
      %v811 = vrot.slane %v737, 3
      %v812 = vsel %vm793, %v809, %v811
      %v813 = vrot.slane %v738, 3
      %v814 = vsel %vm793, %v811, %v813
      %v815 = vrot.slane %v739, 3
      %v816 = vsel %vm793, %v813, %v815
      %v817 = vrot.slane %v740, 3
      %v818 = vsel %vm793, %v815, %v817
      %v819 = vrot.slane %v741, 3
      %v820 = vsel %vm793, %v817, %v819
      %v821 = vrot.slane %v742, 3
      %v822 = vsel %vm793, %v819, %v821
      %v823 = vrot.slane %v743, 3
      %v824 = vsel %vm793, %v821, %v823
      %v825 = vrot.slane %v744, 3
      %v826 = vsel %vm793, %v823, %v825
      %v827 = vrot.slane %v745, 3
      %v828 = vsel %vm793, %v825, %v827
      %v829 = vrot.slane %v746, 3
      %v830 = vsel %vm793, %v827, %v829
      %v831 = vrot.slane %v747, 3
      %v832 = vsel %vm793, %v829, %v831
      %v833 = vrot.slane %v748, 3
      %v834 = vsel %vm793, %v831, %v833
      %v835 = vrot.slane %v749, 3
      %v836 = vsel %vm793, %v833, %v835
      %v837 = vrot.slane %v750, 3
      %v838 = vsel %vm793, %v835, %v837
      %v839 = vrot.slane %v751, 3
      %v840 = vsel %vm793, %v837, %v839
      %v841 = vrot.slane %v752, 3
      %v842 = vsel %vm793, %v839, %v841
      %v843 = vrot.slane %v753, 3
      %v844 = vsel %vm793, %v841, %v843
      %v845 = vrot.slane %v754, 3
      %v846 = vsel %vm793, %v843, %v845
      %v847 = vrot.slane %v755, 3
      %v848 = vsel %vm793, %v845, %v847
      %v849 = vrot.slane %v756, 3
      %v850 = vsel %vm793, %v847, %v849
      %v851 = vrot.slane %v757, 3
      %v852 = vsel %vm793, %v849, %v851
      %v853 = vrot.slane %v758, 3
      %v854 = vsel %vm793, %v851, %v853
      %v855 = vrot.slane %v759, 3
      %v856 = vsel %vm793, %v853, %v855
      %v857 = vrot.slane %v760, 3
      %v858 = vsel %vm793, %v855, %v857
      %v859 = vrot.slane %v761, 3
      %v860 = vsel %vm793, %v857, %v859
      %v861 = vrot.slane %v762, 3
      %v862 = vsel %vm793, %v859, %v861
      %v863 = vrot.slane %v763, 3
      %v864 = vsel %vm793, %v861, %v863
      %v865 = vrot.slane %v764, 3
      %v866 = vsel %vm793, %v863, %v865
      %v867 = vrot.slane %v765, 3
      %v868 = vsel %vm793, %v865, %v867
      %v869 = vrot.slane %v766, 3
      %v870 = vsel %vm793, %v867, %v869
      %v871 = vrot.slane %v767, 3
      %v872 = vsel %vm793, %v869, %v871
      %v873 = vrot.slane %v768, 3
      %v874 = vsel %vm793, %v871, %v873
      %v875 = vrot.slane %v769, 3
      %v876 = vsel %vm793, %v873, %v875
      %v877 = vrot.slane %v770, 3
      %v878 = vsel %vm793, %v875, %v877
      %v879 = vrot.slane %v771, 3
      %v880 = vsel %vm793, %v877, %v879
      %v881 = vrot.slane %v772, 3
      %v882 = vsel %vm793, %v879, %v881
      %v883 = vrot.slane %v773, 3
      %v884 = vsel %vm793, %v881, %v883
      %v885 = vrot.slane %v774, 3
      %v886 = vsel %vm793, %v883, %v885
      %v887 = vrot.slane %v775, 3
      %v888 = vsel %vm793, %v885, %v887
      %v889 = vrot.slane %v776, 3
      %v890 = vsel %vm793, %v887, %v889
      %v891 = vrot.slane %v777, 3
      %v892 = vsel %vm793, %v889, %v891
      %v893 = vrot.slane %v778, 3
      %v894 = vsel %vm793, %v891, %v893
      %v895 = vrot.slane %v779, 3
      %v896 = vsel %vm793, %v893, %v895
      %v897 = vrot.slane %v780, 3
      %v898 = vsel %vm793, %v895, %v897
      %v899 = vrot.slane %v781, 3
      %v900 = vsel %vm793, %v897, %v899
      %v901 = vrot.slane %v782, 3
      %v902 = vsel %vm793, %v899, %v901
      %v903 = vrot.slane %v783, 3
      %v904 = vsel %vm793, %v901, %v903
      %v905 = vrot.slane %v784, 3
      %v906 = vsel %vm793, %v903, %v905
      %v907 = vrot.slane %v785, 3
      %v908 = vsel %vm793, %v905, %v907
      %v909 = vrot.slane %v786, 3
      %v910 = vsel %vm793, %v907, %v909
      %v911 = vrot.slane %v787, 3
      %v912 = vsel %vm793, %v909, %v911
      %v913 = vrot.slane %v788, 3
      %v914 = vsel %vm793, %v911, %v913
      %v915 = vrot.slane %v789, 3
      %v916 = vsel %vm793, %v913, %v915
      %v917 = vrot.slane %v790, 3
      %v918 = vsel %vm793, %v915, %v917
      %v919 = vrot.slane %v791, 3
      %v920 = vsel %vm793, %v917, %v919
      %v921 = vrot.slane %v792, 3
      %v922 = vsel %vm793, %v919, %v921
      %vm923 = vcmask 64512
      %v925 = vsel %vm923, %v796, 0
      %v928 = vsel %vm923, %v798, 0
      %v931 = vsel %vm923, %v800, 0
      %v934 = vsel %vm923, %v802, 0
      %v937 = vsel %vm923, %v804, 0
      %v940 = vsel %vm923, %v806, 0
      %v943 = vsel %vm923, %v808, 0
      %v946 = vsel %vm923, %v810, 0
      %v949 = vsel %vm923, %v812, 0
      %v952 = vsel %vm923, %v814, 0
      %v955 = vsel %vm923, %v816, 0
      %v958 = vsel %vm923, %v818, 0
      %v961 = vsel %vm923, %v820, 0
      %v964 = vsel %vm923, %v822, 0
      %v967 = vsel %vm923, %v824, 0
      %v970 = vsel %vm923, %v826, 0
      %v973 = vsel %vm923, %v828, 0
      %v976 = vsel %vm923, %v830, 0
      %v979 = vsel %vm923, %v832, 0
      %v982 = vsel %vm923, %v834, 0
      %v985 = vsel %vm923, %v836, 0
      %v988 = vsel %vm923, %v838, 0
      %v991 = vsel %vm923, %v840, 0
      %v994 = vsel %vm923, %v842, 0
      %v997 = vsel %vm923, %v844, 0
      %v1000 = vsel %vm923, %v846, 0
      %v1003 = vsel %vm923, %v848, 0
      %v1006 = vsel %vm923, %v850, 0
      %v1009 = vsel %vm923, %v852, 0
      %v1012 = vsel %vm923, %v854, 0
      %v1015 = vsel %vm923, %v856, 0
      %v1018 = vsel %vm923, %v858, 0
      %v1021 = vsel %vm923, %v860, 0
      %v1024 = vsel %vm923, %v862, 0
      %v1027 = vsel %vm923, %v864, 0
      %v1030 = vsel %vm923, %v866, 0
      %v1033 = vsel %vm923, %v868, 0
      %v1036 = vsel %vm923, %v870, 0
      %v1039 = vsel %vm923, %v872, 0
      %v1042 = vsel %vm923, %v874, 0
      %v1045 = vsel %vm923, %v876, 0
      %v1048 = vsel %vm923, %v878, 0
      %v1051 = vsel %vm923, %v880, 0
      %v1054 = vsel %vm923, %v882, 0
      %v1057 = vsel %vm923, %v884, 0
      %v1060 = vsel %vm923, %v886, 0
      %v1063 = vsel %vm923, %v888, 0
      %v1066 = vsel %vm923, %v890, 0
      %v1069 = vsel %vm923, %v892, 0
      %v1072 = vsel %vm923, %v894, 0
      %v1075 = vsel %vm923, %v896, 0
      %v1078 = vsel %vm923, %v898, 0
      %v1081 = vsel %vm923, %v900, 0
      %v1084 = vsel %vm923, %v902, 0
      %v1087 = vsel %vm923, %v904, 0
      %v1090 = vsel %vm923, %v906, 0
      %v1093 = vsel %vm923, %v908, 0
      %v1096 = vsel %vm923, %v910, 0
      %v1099 = vsel %vm923, %v912, 0
      %v1102 = vsel %vm923, %v914, 0
      %v1105 = vsel %vm923, %v916, 0
      %v1108 = vsel %vm923, %v918, 0
      %v1111 = vsel %vm923, %v920, 0
      %v1114 = vsel %vm923, %v922, 0
      %vm1116 = vcmask 1043456
      %v1118 = vsel %vm1116, %v469, 0
      %1120 = vmatpush.bf16.msra.mxu0 0
      %1121 = vmatpush.bf16.msra.mxu0 0
      %1122 = vmatpush.bf16.msra.mxu0 0
      %1123 = vmatpush.bf16.msra.mxu0 0
      %1124 = vmatpush.bf16.msra.mxu0 0
      %1125 = vmatpush.bf16.msra.mxu0 0
      %1126 = vmatpush.bf16.msra.mxu0 0
      %1127 = vmatpush.bf16.msra.mxu0 %v1118
      %1128 = vmatmul.bf16.gmra.mxu0 %v925
      %v1129 = vpop.f32.mrf.mxu0
      %v1130 = vadd.f32 0.0, %v1129
      %v1131 = vpop.f32.mrf.mxu0
      %v1132 = vadd.f32 0.0, %v1131
      %1133 = vmatmul.bf16.gmra.mxu0 %v928
      %v1134 = vpop.f32.mrf.mxu0
      %v1135 = vadd.f32 0.0, %v1134
      %v1136 = vpop.f32.mrf.mxu0
      %v1137 = vadd.f32 0.0, %v1136
      %1138 = vmatmul.bf16.gmra.mxu0 %v931
      %v1139 = vpop.f32.mrf.mxu0
      %v1140 = vadd.f32 0.0, %v1139
      %v1141 = vpop.f32.mrf.mxu0
      %v1142 = vadd.f32 0.0, %v1141
      %1143 = vmatmul.bf16.gmra.mxu0 %v934
      %v1144 = vpop.f32.mrf.mxu0
      %v1145 = vadd.f32 0.0, %v1144
      %v1146 = vpop.f32.mrf.mxu0
      %v1147 = vadd.f32 0.0, %v1146
      %1148 = vmatmul.bf16.gmra.mxu0 %v937
      %v1149 = vpop.f32.mrf.mxu0
      %v1150 = vadd.f32 0.0, %v1149
      %v1151 = vpop.f32.mrf.mxu0
      %v1152 = vadd.f32 0.0, %v1151
      %1153 = vmatmul.bf16.gmra.mxu0 %v940
      %v1154 = vpop.f32.mrf.mxu0
      %v1155 = vadd.f32 0.0, %v1154
      %v1156 = vpop.f32.mrf.mxu0
      %v1157 = vadd.f32 0.0, %v1156
      %1158 = vmatmul.bf16.gmra.mxu0 %v943
      %v1159 = vpop.f32.mrf.mxu0
      %v1160 = vadd.f32 0.0, %v1159
      %v1161 = vpop.f32.mrf.mxu0
      %v1162 = vadd.f32 0.0, %v1161
      %1163 = vmatmul.bf16.gmra.mxu0 %v946
      %v1164 = vpop.f32.mrf.mxu0
      %v1165 = vadd.f32 0.0, %v1164
      %v1166 = vpop.f32.mrf.mxu0
      %v1167 = vadd.f32 0.0, %v1166
      %1168 = vmatmul.bf16.gmra.mxu0 %v949
      %v1169 = vpop.f32.mrf.mxu0
      %v1170 = vadd.f32 0.0, %v1169
      %v1171 = vpop.f32.mrf.mxu0
      %v1172 = vadd.f32 0.0, %v1171
      %1173 = vmatmul.bf16.gmra.mxu0 %v952
      %v1174 = vpop.f32.mrf.mxu0
      %v1175 = vadd.f32 0.0, %v1174
      %v1176 = vpop.f32.mrf.mxu0
      %v1177 = vadd.f32 0.0, %v1176
      %1178 = vmatmul.bf16.gmra.mxu0 %v955
      %v1179 = vpop.f32.mrf.mxu0
      %v1180 = vadd.f32 0.0, %v1179
      %v1181 = vpop.f32.mrf.mxu0
      %v1182 = vadd.f32 0.0, %v1181
      %1183 = vmatmul.bf16.gmra.mxu0 %v958
      %v1184 = vpop.f32.mrf.mxu0
      %v1185 = vadd.f32 0.0, %v1184
      %v1186 = vpop.f32.mrf.mxu0
      %v1187 = vadd.f32 0.0, %v1186
      %1188 = vmatmul.bf16.gmra.mxu0 %v961
      %v1189 = vpop.f32.mrf.mxu0
      %v1190 = vadd.f32 0.0, %v1189
      %v1191 = vpop.f32.mrf.mxu0
      %v1192 = vadd.f32 0.0, %v1191
      %1193 = vmatmul.bf16.gmra.mxu0 %v964
      %v1194 = vpop.f32.mrf.mxu0
      %v1195 = vadd.f32 0.0, %v1194
      %v1196 = vpop.f32.mrf.mxu0
      %v1197 = vadd.f32 0.0, %v1196
      %1198 = vmatmul.bf16.gmra.mxu0 %v967
      %v1199 = vpop.f32.mrf.mxu0
      %v1200 = vadd.f32 0.0, %v1199
      %v1201 = vpop.f32.mrf.mxu0
      %v1202 = vadd.f32 0.0, %v1201
      %1203 = vmatmul.bf16.gmra.mxu0 %v970
      %v1204 = vpop.f32.mrf.mxu0
      %v1205 = vadd.f32 0.0, %v1204
      %v1206 = vpop.f32.mrf.mxu0
      %v1207 = vadd.f32 0.0, %v1206
      %1208 = vmatmul.bf16.gmra.mxu0 %v973
      %v1209 = vpop.f32.mrf.mxu0
      %v1210 = vadd.f32 0.0, %v1209
      %v1211 = vpop.f32.mrf.mxu0
      %v1212 = vadd.f32 0.0, %v1211
      %1213 = vmatmul.bf16.gmra.mxu0 %v976
      %v1214 = vpop.f32.mrf.mxu0
      %v1215 = vadd.f32 0.0, %v1214
      %v1216 = vpop.f32.mrf.mxu0
      %v1217 = vadd.f32 0.0, %v1216
      %1218 = vmatmul.bf16.gmra.mxu0 %v979
      %v1219 = vpop.f32.mrf.mxu0
      %v1220 = vadd.f32 0.0, %v1219
      %v1221 = vpop.f32.mrf.mxu0
      %v1222 = vadd.f32 0.0, %v1221
      %1223 = vmatmul.bf16.gmra.mxu0 %v982
      %v1224 = vpop.f32.mrf.mxu0
      %v1225 = vadd.f32 0.0, %v1224
      %v1226 = vpop.f32.mrf.mxu0
      %v1227 = vadd.f32 0.0, %v1226
      %1228 = vmatmul.bf16.gmra.mxu0 %v985
      %v1229 = vpop.f32.mrf.mxu0
      %v1230 = vadd.f32 0.0, %v1229
      %v1231 = vpop.f32.mrf.mxu0
      %v1232 = vadd.f32 0.0, %v1231
      %1233 = vmatmul.bf16.gmra.mxu0 %v988
      %v1234 = vpop.f32.mrf.mxu0
      %v1235 = vadd.f32 0.0, %v1234
      %v1236 = vpop.f32.mrf.mxu0
      %v1237 = vadd.f32 0.0, %v1236
      %1238 = vmatmul.bf16.gmra.mxu0 %v991
      %v1239 = vpop.f32.mrf.mxu0
      %v1240 = vadd.f32 0.0, %v1239
      %v1241 = vpop.f32.mrf.mxu0
      %v1242 = vadd.f32 0.0, %v1241
      %1243 = vmatmul.bf16.gmra.mxu0 %v994
      %v1244 = vpop.f32.mrf.mxu0
      %v1245 = vadd.f32 0.0, %v1244
      %v1246 = vpop.f32.mrf.mxu0
      %v1247 = vadd.f32 0.0, %v1246
      %1248 = vmatmul.bf16.gmra.mxu0 %v997
      %v1249 = vpop.f32.mrf.mxu0
      %v1250 = vadd.f32 0.0, %v1249
      %v1251 = vpop.f32.mrf.mxu0
      %v1252 = vadd.f32 0.0, %v1251
      %1253 = vmatmul.bf16.gmra.mxu0 %v1000
      %v1254 = vpop.f32.mrf.mxu0
      %v1255 = vadd.f32 0.0, %v1254
      %v1256 = vpop.f32.mrf.mxu0
      %v1257 = vadd.f32 0.0, %v1256
      %1258 = vmatmul.bf16.gmra.mxu0 %v1003
      %v1259 = vpop.f32.mrf.mxu0
      %v1260 = vadd.f32 0.0, %v1259
      %v1261 = vpop.f32.mrf.mxu0
      %v1262 = vadd.f32 0.0, %v1261
      %1263 = vmatmul.bf16.gmra.mxu0 %v1006
      %v1264 = vpop.f32.mrf.mxu0
      %v1265 = vadd.f32 0.0, %v1264
      %v1266 = vpop.f32.mrf.mxu0
      %v1267 = vadd.f32 0.0, %v1266
      %1268 = vmatmul.bf16.gmra.mxu0 %v1009
      %v1269 = vpop.f32.mrf.mxu0
      %v1270 = vadd.f32 0.0, %v1269
      %v1271 = vpop.f32.mrf.mxu0
      %v1272 = vadd.f32 0.0, %v1271
      %1273 = vmatmul.bf16.gmra.mxu0 %v1012
      %v1274 = vpop.f32.mrf.mxu0
      %v1275 = vadd.f32 0.0, %v1274
      %v1276 = vpop.f32.mrf.mxu0
      %v1277 = vadd.f32 0.0, %v1276
      %1278 = vmatmul.bf16.gmra.mxu0 %v1015
      %v1279 = vpop.f32.mrf.mxu0
      %v1280 = vadd.f32 0.0, %v1279
      %v1281 = vpop.f32.mrf.mxu0
      %v1282 = vadd.f32 0.0, %v1281
      %1283 = vmatmul.bf16.gmra.mxu0 %v1018
      %v1284 = vpop.f32.mrf.mxu0
      %v1285 = vadd.f32 0.0, %v1284
      %v1286 = vpop.f32.mrf.mxu0
      %v1287 = vadd.f32 0.0, %v1286
      %1288 = vmatmul.bf16.gmra.mxu0 %v1021
      %v1289 = vpop.f32.mrf.mxu0
      %v1290 = vadd.f32 0.0, %v1289
      %v1291 = vpop.f32.mrf.mxu0
      %v1292 = vadd.f32 0.0, %v1291
      %1293 = vmatmul.bf16.gmra.mxu0 %v1024
      %v1294 = vpop.f32.mrf.mxu0
      %v1295 = vadd.f32 0.0, %v1294
      %v1296 = vpop.f32.mrf.mxu0
      %v1297 = vadd.f32 0.0, %v1296
      %1298 = vmatmul.bf16.gmra.mxu0 %v1027
      %v1299 = vpop.f32.mrf.mxu0
      %v1300 = vadd.f32 0.0, %v1299
      %v1301 = vpop.f32.mrf.mxu0
      %v1302 = vadd.f32 0.0, %v1301
      %1303 = vmatmul.bf16.gmra.mxu0 %v1030
      %v1304 = vpop.f32.mrf.mxu0
      %v1305 = vadd.f32 0.0, %v1304
      %v1306 = vpop.f32.mrf.mxu0
      %v1307 = vadd.f32 0.0, %v1306
      %1308 = vmatmul.bf16.gmra.mxu0 %v1033
      %v1309 = vpop.f32.mrf.mxu0
      %v1310 = vadd.f32 0.0, %v1309
      %v1311 = vpop.f32.mrf.mxu0
      %v1312 = vadd.f32 0.0, %v1311
      %1313 = vmatmul.bf16.gmra.mxu0 %v1036
      %v1314 = vpop.f32.mrf.mxu0
      %v1315 = vadd.f32 0.0, %v1314
      %v1316 = vpop.f32.mrf.mxu0
      %v1317 = vadd.f32 0.0, %v1316
      %1318 = vmatmul.bf16.gmra.mxu0 %v1039
      %v1319 = vpop.f32.mrf.mxu0
      %v1320 = vadd.f32 0.0, %v1319
      %v1321 = vpop.f32.mrf.mxu0
      %v1322 = vadd.f32 0.0, %v1321
      %1323 = vmatmul.bf16.gmra.mxu0 %v1042
      %v1324 = vpop.f32.mrf.mxu0
      %v1325 = vadd.f32 0.0, %v1324
      %v1326 = vpop.f32.mrf.mxu0
      %v1327 = vadd.f32 0.0, %v1326
      %1328 = vmatmul.bf16.gmra.mxu0 %v1045
      %v1329 = vpop.f32.mrf.mxu0
      %v1330 = vadd.f32 0.0, %v1329
      %v1331 = vpop.f32.mrf.mxu0
      %v1332 = vadd.f32 0.0, %v1331
      %1333 = vmatmul.bf16.gmra.mxu0 %v1048
      %v1334 = vpop.f32.mrf.mxu0
      %v1335 = vadd.f32 0.0, %v1334
      %v1336 = vpop.f32.mrf.mxu0
      %v1337 = vadd.f32 0.0, %v1336
      %1338 = vmatmul.bf16.gmra.mxu0 %v1051
      %v1339 = vpop.f32.mrf.mxu0
      %v1340 = vadd.f32 0.0, %v1339
      %v1341 = vpop.f32.mrf.mxu0
      %v1342 = vadd.f32 0.0, %v1341
      %1343 = vmatmul.bf16.gmra.mxu0 %v1054
      %v1344 = vpop.f32.mrf.mxu0
      %v1345 = vadd.f32 0.0, %v1344
      %v1346 = vpop.f32.mrf.mxu0
      %v1347 = vadd.f32 0.0, %v1346
      %1348 = vmatmul.bf16.gmra.mxu0 %v1057
      %v1349 = vpop.f32.mrf.mxu0
      %v1350 = vadd.f32 0.0, %v1349
      %v1351 = vpop.f32.mrf.mxu0
      %v1352 = vadd.f32 0.0, %v1351
      %1353 = vmatmul.bf16.gmra.mxu0 %v1060
      %v1354 = vpop.f32.mrf.mxu0
      %v1355 = vadd.f32 0.0, %v1354
      %v1356 = vpop.f32.mrf.mxu0
      %v1357 = vadd.f32 0.0, %v1356
      %1358 = vmatmul.bf16.gmra.mxu0 %v1063
      %v1359 = vpop.f32.mrf.mxu0
      %v1360 = vadd.f32 0.0, %v1359
      %v1361 = vpop.f32.mrf.mxu0
      %v1362 = vadd.f32 0.0, %v1361
      %1363 = vmatmul.bf16.gmra.mxu0 %v1066
      %v1364 = vpop.f32.mrf.mxu0
      %v1365 = vadd.f32 0.0, %v1364
      %v1366 = vpop.f32.mrf.mxu0
      %v1367 = vadd.f32 0.0, %v1366
      %1368 = vmatmul.bf16.gmra.mxu0 %v1069
      %v1369 = vpop.f32.mrf.mxu0
      %v1370 = vadd.f32 0.0, %v1369
      %v1371 = vpop.f32.mrf.mxu0
      %v1372 = vadd.f32 0.0, %v1371
      %1373 = vmatmul.bf16.gmra.mxu0 %v1072
      %v1374 = vpop.f32.mrf.mxu0
      %v1375 = vadd.f32 0.0, %v1374
      %v1376 = vpop.f32.mrf.mxu0
      %v1377 = vadd.f32 0.0, %v1376
      %1378 = vmatmul.bf16.gmra.mxu0 %v1075
      %v1379 = vpop.f32.mrf.mxu0
      %v1380 = vadd.f32 0.0, %v1379
      %v1381 = vpop.f32.mrf.mxu0
      %v1382 = vadd.f32 0.0, %v1381
      %1383 = vmatmul.bf16.gmra.mxu0 %v1078
      %v1384 = vpop.f32.mrf.mxu0
      %v1385 = vadd.f32 0.0, %v1384
      %v1386 = vpop.f32.mrf.mxu0
      %v1387 = vadd.f32 0.0, %v1386
      %1388 = vmatmul.bf16.gmra.mxu0 %v1081
      %v1389 = vpop.f32.mrf.mxu0
      %v1390 = vadd.f32 0.0, %v1389
      %v1391 = vpop.f32.mrf.mxu0
      %v1392 = vadd.f32 0.0, %v1391
      %1393 = vmatmul.bf16.gmra.mxu0 %v1084
      %v1394 = vpop.f32.mrf.mxu0
      %v1395 = vadd.f32 0.0, %v1394
      %v1396 = vpop.f32.mrf.mxu0
      %v1397 = vadd.f32 0.0, %v1396
      %1398 = vmatmul.bf16.gmra.mxu0 %v1087
      %v1399 = vpop.f32.mrf.mxu0
      %v1400 = vadd.f32 0.0, %v1399
      %v1401 = vpop.f32.mrf.mxu0
      %v1402 = vadd.f32 0.0, %v1401
      %1403 = vmatmul.bf16.gmra.mxu0 %v1090
      %v1404 = vpop.f32.mrf.mxu0
      %v1405 = vadd.f32 0.0, %v1404
      %v1406 = vpop.f32.mrf.mxu0
      %v1407 = vadd.f32 0.0, %v1406
      %1408 = vmatmul.bf16.gmra.mxu0 %v1093
      %v1409 = vpop.f32.mrf.mxu0
      %v1410 = vadd.f32 0.0, %v1409
      %v1411 = vpop.f32.mrf.mxu0
      %v1412 = vadd.f32 0.0, %v1411
      %1413 = vmatmul.bf16.gmra.mxu0 %v1096
      %v1414 = vpop.f32.mrf.mxu0
      %v1415 = vadd.f32 0.0, %v1414
      %v1416 = vpop.f32.mrf.mxu0
      %v1417 = vadd.f32 0.0, %v1416
      %1418 = vmatmul.bf16.gmra.mxu0 %v1099
      %v1419 = vpop.f32.mrf.mxu0
      %v1420 = vadd.f32 0.0, %v1419
      %v1421 = vpop.f32.mrf.mxu0
      %v1422 = vadd.f32 0.0, %v1421
      %1423 = vmatmul.bf16.gmra.mxu0 %v1102
      %v1424 = vpop.f32.mrf.mxu0
      %v1425 = vadd.f32 0.0, %v1424
      %v1426 = vpop.f32.mrf.mxu0
      %v1427 = vadd.f32 0.0, %v1426
      %1428 = vmatmul.bf16.gmra.mxu0 %v1105
      %v1429 = vpop.f32.mrf.mxu0
      %v1430 = vadd.f32 0.0, %v1429
      %v1431 = vpop.f32.mrf.mxu0
      %v1432 = vadd.f32 0.0, %v1431
      %1433 = vmatmul.bf16.gmra.mxu0 %v1108
      %v1434 = vpop.f32.mrf.mxu0
      %v1435 = vadd.f32 0.0, %v1434
      %v1436 = vpop.f32.mrf.mxu0
      %v1437 = vadd.f32 0.0, %v1436
      %1438 = vmatmul.bf16.gmra.mxu0 %v1111
      %v1439 = vpop.f32.mrf.mxu0
      %v1440 = vadd.f32 0.0, %v1439
      %v1441 = vpop.f32.mrf.mxu0
      %v1442 = vadd.f32 0.0, %v1441
      %1443 = vmatmul.bf16.gmra.mxu0 %v1114
      %v1444 = vpop.f32.mrf.mxu0
      %v1445 = vadd.f32 0.0, %v1444
      %v1446 = vpop.f32.mrf.mxu0
      %v1447 = vadd.f32 0.0, %v1446
      %1448 = vdwg.mxu0
      %v1450 = vunpack.c.l.b16 %v337
      %v1451 = vpack.c.b16 %v600, %v1450
      %vm1452 = vsmask.f32 5376
      %v1454 = vshrl.u32 %v1451, 16
      %v1456 = vrot.slane %v1454, 2
      %v1457 = vshll.u32 %v1451, 16
      %v1459 = vrot.slane %v1457, 3
      %v1460 = vor.u32 %v1456, %v1459
      %v1462 = vshrl.u32 %v729, 16
      %v1464 = vrot.slane %v1462, 2
      %v1465 = vshll.u32 %v729, 16
      %v1467 = vrot.slane %v1465, 3
      %v1468 = vor.u32 %v1464, %v1467
      %v1469 = vsel %vm1452, %v1460, %v1468
      %v1471 = vshrl.u32 %v730, 16
      %v1473 = vrot.slane %v1471, 2
      %v1474 = vshll.u32 %v730, 16
      %v1476 = vrot.slane %v1474, 3
      %v1477 = vor.u32 %v1473, %v1476
      %v1478 = vsel %vm1452, %v1468, %v1477
      %v1480 = vshrl.u32 %v731, 16
      %v1482 = vrot.slane %v1480, 2
      %v1483 = vshll.u32 %v731, 16
      %v1485 = vrot.slane %v1483, 3
      %v1486 = vor.u32 %v1482, %v1485
      %v1487 = vsel %vm1452, %v1477, %v1486
      %v1489 = vshrl.u32 %v732, 16
      %v1491 = vrot.slane %v1489, 2
      %v1492 = vshll.u32 %v732, 16
      %v1494 = vrot.slane %v1492, 3
      %v1495 = vor.u32 %v1491, %v1494
      %v1496 = vsel %vm1452, %v1486, %v1495
      %v1498 = vshrl.u32 %v733, 16
      %v1500 = vrot.slane %v1498, 2
      %v1501 = vshll.u32 %v733, 16
      %v1503 = vrot.slane %v1501, 3
      %v1504 = vor.u32 %v1500, %v1503
      %v1505 = vsel %vm1452, %v1495, %v1504
      %v1507 = vshrl.u32 %v734, 16
      %v1509 = vrot.slane %v1507, 2
      %v1510 = vshll.u32 %v734, 16
      %v1512 = vrot.slane %v1510, 3
      %v1513 = vor.u32 %v1509, %v1512
      %v1514 = vsel %vm1452, %v1504, %v1513
      %v1516 = vshrl.u32 %v735, 16
      %v1518 = vrot.slane %v1516, 2
      %v1519 = vshll.u32 %v735, 16
      %v1521 = vrot.slane %v1519, 3
      %v1522 = vor.u32 %v1518, %v1521
      %v1523 = vsel %vm1452, %v1513, %v1522
      %v1525 = vshrl.u32 %v736, 16
      %v1527 = vrot.slane %v1525, 2
      %v1528 = vshll.u32 %v736, 16
      %v1530 = vrot.slane %v1528, 3
      %v1531 = vor.u32 %v1527, %v1530
      %v1532 = vsel %vm1452, %v1522, %v1531
      %v1534 = vshrl.u32 %v737, 16
      %v1536 = vrot.slane %v1534, 2
      %v1537 = vshll.u32 %v737, 16
      %v1539 = vrot.slane %v1537, 3
      %v1540 = vor.u32 %v1536, %v1539
      %v1541 = vsel %vm1452, %v1531, %v1540
      %v1543 = vshrl.u32 %v738, 16
      %v1545 = vrot.slane %v1543, 2
      %v1546 = vshll.u32 %v738, 16
      %v1548 = vrot.slane %v1546, 3
      %v1549 = vor.u32 %v1545, %v1548
      %v1550 = vsel %vm1452, %v1540, %v1549
      %v1552 = vshrl.u32 %v739, 16
      %v1554 = vrot.slane %v1552, 2
      %v1555 = vshll.u32 %v739, 16
      %v1557 = vrot.slane %v1555, 3
      %v1558 = vor.u32 %v1554, %v1557
      %v1559 = vsel %vm1452, %v1549, %v1558
      %v1561 = vshrl.u32 %v740, 16
      %v1563 = vrot.slane %v1561, 2
      %v1564 = vshll.u32 %v740, 16
      %v1566 = vrot.slane %v1564, 3
      %v1567 = vor.u32 %v1563, %v1566
      %v1568 = vsel %vm1452, %v1558, %v1567
      %v1570 = vshrl.u32 %v741, 16
      %v1572 = vrot.slane %v1570, 2
      %v1573 = vshll.u32 %v741, 16
      %v1575 = vrot.slane %v1573, 3
      %v1576 = vor.u32 %v1572, %v1575
      %v1577 = vsel %vm1452, %v1567, %v1576
      %v1579 = vshrl.u32 %v742, 16
      %v1581 = vrot.slane %v1579, 2
      %v1582 = vshll.u32 %v742, 16
      %v1584 = vrot.slane %v1582, 3
      %v1585 = vor.u32 %v1581, %v1584
      %v1586 = vsel %vm1452, %v1576, %v1585
      %v1588 = vshrl.u32 %v743, 16
      %v1590 = vrot.slane %v1588, 2
      %v1591 = vshll.u32 %v743, 16
      %v1593 = vrot.slane %v1591, 3
      %v1594 = vor.u32 %v1590, %v1593
      %v1595 = vsel %vm1452, %v1585, %v1594
      %v1597 = vshrl.u32 %v744, 16
      %v1599 = vrot.slane %v1597, 2
      %v1600 = vshll.u32 %v744, 16
      %v1602 = vrot.slane %v1600, 3
      %v1603 = vor.u32 %v1599, %v1602
      %v1604 = vsel %vm1452, %v1594, %v1603
      %v1606 = vshrl.u32 %v745, 16
      %v1608 = vrot.slane %v1606, 2
      %v1609 = vshll.u32 %v745, 16
      %v1611 = vrot.slane %v1609, 3
      %v1612 = vor.u32 %v1608, %v1611
      %v1613 = vsel %vm1452, %v1603, %v1612
      %v1615 = vshrl.u32 %v746, 16
      %v1617 = vrot.slane %v1615, 2
      %v1618 = vshll.u32 %v746, 16
      %v1620 = vrot.slane %v1618, 3
      %v1621 = vor.u32 %v1617, %v1620
      %v1622 = vsel %vm1452, %v1612, %v1621
      %v1624 = vshrl.u32 %v747, 16
      %v1626 = vrot.slane %v1624, 2
      %v1627 = vshll.u32 %v747, 16
      %v1629 = vrot.slane %v1627, 3
      %v1630 = vor.u32 %v1626, %v1629
      %v1631 = vsel %vm1452, %v1621, %v1630
      %v1633 = vshrl.u32 %v748, 16
      %v1635 = vrot.slane %v1633, 2
      %v1636 = vshll.u32 %v748, 16
      %v1638 = vrot.slane %v1636, 3
      %v1639 = vor.u32 %v1635, %v1638
      %v1640 = vsel %vm1452, %v1630, %v1639
      %v1642 = vshrl.u32 %v749, 16
      %v1644 = vrot.slane %v1642, 2
      %v1645 = vshll.u32 %v749, 16
      %v1647 = vrot.slane %v1645, 3
      %v1648 = vor.u32 %v1644, %v1647
      %v1649 = vsel %vm1452, %v1639, %v1648
      %v1651 = vshrl.u32 %v750, 16
      %v1653 = vrot.slane %v1651, 2
      %v1654 = vshll.u32 %v750, 16
      %v1656 = vrot.slane %v1654, 3
      %v1657 = vor.u32 %v1653, %v1656
      %v1658 = vsel %vm1452, %v1648, %v1657
      %v1660 = vshrl.u32 %v751, 16
      %v1662 = vrot.slane %v1660, 2
      %v1663 = vshll.u32 %v751, 16
      %v1665 = vrot.slane %v1663, 3
      %v1666 = vor.u32 %v1662, %v1665
      %v1667 = vsel %vm1452, %v1657, %v1666
      %v1669 = vshrl.u32 %v752, 16
      %v1671 = vrot.slane %v1669, 2
      %v1672 = vshll.u32 %v752, 16
      %v1674 = vrot.slane %v1672, 3
      %v1675 = vor.u32 %v1671, %v1674
      %v1676 = vsel %vm1452, %v1666, %v1675
      %v1678 = vshrl.u32 %v753, 16
      %v1680 = vrot.slane %v1678, 2
      %v1681 = vshll.u32 %v753, 16
      %v1683 = vrot.slane %v1681, 3
      %v1684 = vor.u32 %v1680, %v1683
      %v1685 = vsel %vm1452, %v1675, %v1684
      %v1687 = vshrl.u32 %v754, 16
      %v1689 = vrot.slane %v1687, 2
      %v1690 = vshll.u32 %v754, 16
      %v1692 = vrot.slane %v1690, 3
      %v1693 = vor.u32 %v1689, %v1692
      %v1694 = vsel %vm1452, %v1684, %v1693
      %v1696 = vshrl.u32 %v755, 16
      %v1698 = vrot.slane %v1696, 2
      %v1699 = vshll.u32 %v755, 16
      %v1701 = vrot.slane %v1699, 3
      %v1702 = vor.u32 %v1698, %v1701
      %v1703 = vsel %vm1452, %v1693, %v1702
      %v1705 = vshrl.u32 %v756, 16
      %v1707 = vrot.slane %v1705, 2
      %v1708 = vshll.u32 %v756, 16
      %v1710 = vrot.slane %v1708, 3
      %v1711 = vor.u32 %v1707, %v1710
      %v1712 = vsel %vm1452, %v1702, %v1711
      %v1714 = vshrl.u32 %v757, 16
      %v1716 = vrot.slane %v1714, 2
      %v1717 = vshll.u32 %v757, 16
      %v1719 = vrot.slane %v1717, 3
      %v1720 = vor.u32 %v1716, %v1719
      %v1721 = vsel %vm1452, %v1711, %v1720
      %v1723 = vshrl.u32 %v758, 16
      %v1725 = vrot.slane %v1723, 2
      %v1726 = vshll.u32 %v758, 16
      %v1728 = vrot.slane %v1726, 3
      %v1729 = vor.u32 %v1725, %v1728
      %v1730 = vsel %vm1452, %v1720, %v1729
      %v1732 = vshrl.u32 %v759, 16
      %v1734 = vrot.slane %v1732, 2
      %v1735 = vshll.u32 %v759, 16
      %v1737 = vrot.slane %v1735, 3
      %v1738 = vor.u32 %v1734, %v1737
      %v1739 = vsel %vm1452, %v1729, %v1738
      %v1741 = vshrl.u32 %v760, 16
      %v1743 = vrot.slane %v1741, 2
      %v1744 = vshll.u32 %v760, 16
      %v1746 = vrot.slane %v1744, 3
      %v1747 = vor.u32 %v1743, %v1746
      %v1748 = vsel %vm1452, %v1738, %v1747
      %v1750 = vshrl.u32 %v761, 16
      %v1752 = vrot.slane %v1750, 2
      %v1753 = vshll.u32 %v761, 16
      %v1755 = vrot.slane %v1753, 3
      %v1756 = vor.u32 %v1752, %v1755
      %v1757 = vsel %vm1452, %v1747, %v1756
      %v1759 = vshrl.u32 %v762, 16
      %v1761 = vrot.slane %v1759, 2
      %v1762 = vshll.u32 %v762, 16
      %v1764 = vrot.slane %v1762, 3
      %v1765 = vor.u32 %v1761, %v1764
      %v1766 = vsel %vm1452, %v1756, %v1765
      %v1768 = vshrl.u32 %v763, 16
      %v1770 = vrot.slane %v1768, 2
      %v1771 = vshll.u32 %v763, 16
      %v1773 = vrot.slane %v1771, 3
      %v1774 = vor.u32 %v1770, %v1773
      %v1775 = vsel %vm1452, %v1765, %v1774
      %v1777 = vshrl.u32 %v764, 16
      %v1779 = vrot.slane %v1777, 2
      %v1780 = vshll.u32 %v764, 16
      %v1782 = vrot.slane %v1780, 3
      %v1783 = vor.u32 %v1779, %v1782
      %v1784 = vsel %vm1452, %v1774, %v1783
      %v1786 = vshrl.u32 %v765, 16
      %v1788 = vrot.slane %v1786, 2
      %v1789 = vshll.u32 %v765, 16
      %v1791 = vrot.slane %v1789, 3
      %v1792 = vor.u32 %v1788, %v1791
      %v1793 = vsel %vm1452, %v1783, %v1792
      %v1795 = vshrl.u32 %v766, 16
      %v1797 = vrot.slane %v1795, 2
      %v1798 = vshll.u32 %v766, 16
      %v1800 = vrot.slane %v1798, 3
      %v1801 = vor.u32 %v1797, %v1800
      %v1802 = vsel %vm1452, %v1792, %v1801
      %v1804 = vshrl.u32 %v767, 16
      %v1806 = vrot.slane %v1804, 2
      %v1807 = vshll.u32 %v767, 16
      %v1809 = vrot.slane %v1807, 3
      %v1810 = vor.u32 %v1806, %v1809
      %v1811 = vsel %vm1452, %v1801, %v1810
      %v1813 = vshrl.u32 %v768, 16
      %v1815 = vrot.slane %v1813, 2
      %v1816 = vshll.u32 %v768, 16
      %v1818 = vrot.slane %v1816, 3
      %v1819 = vor.u32 %v1815, %v1818
      %v1820 = vsel %vm1452, %v1810, %v1819
      %v1822 = vshrl.u32 %v769, 16
      %v1824 = vrot.slane %v1822, 2
      %v1825 = vshll.u32 %v769, 16
      %v1827 = vrot.slane %v1825, 3
      %v1828 = vor.u32 %v1824, %v1827
      %v1829 = vsel %vm1452, %v1819, %v1828
      %v1831 = vshrl.u32 %v770, 16
      %v1833 = vrot.slane %v1831, 2
      %v1834 = vshll.u32 %v770, 16
      %v1836 = vrot.slane %v1834, 3
      %v1837 = vor.u32 %v1833, %v1836
      %v1838 = vsel %vm1452, %v1828, %v1837
      %v1840 = vshrl.u32 %v771, 16
      %v1842 = vrot.slane %v1840, 2
      %v1843 = vshll.u32 %v771, 16
      %v1845 = vrot.slane %v1843, 3
      %v1846 = vor.u32 %v1842, %v1845
      %v1847 = vsel %vm1452, %v1837, %v1846
      %v1849 = vshrl.u32 %v772, 16
      %v1851 = vrot.slane %v1849, 2
      %v1852 = vshll.u32 %v772, 16
      %v1854 = vrot.slane %v1852, 3
      %v1855 = vor.u32 %v1851, %v1854
      %v1856 = vsel %vm1452, %v1846, %v1855
      %v1858 = vshrl.u32 %v773, 16
      %v1860 = vrot.slane %v1858, 2
      %v1861 = vshll.u32 %v773, 16
      %v1863 = vrot.slane %v1861, 3
      %v1864 = vor.u32 %v1860, %v1863
      %v1865 = vsel %vm1452, %v1855, %v1864
      %v1867 = vshrl.u32 %v774, 16
      %v1869 = vrot.slane %v1867, 2
      %v1870 = vshll.u32 %v774, 16
      %v1872 = vrot.slane %v1870, 3
      %v1873 = vor.u32 %v1869, %v1872
      %v1874 = vsel %vm1452, %v1864, %v1873
      %v1876 = vshrl.u32 %v775, 16
      %v1878 = vrot.slane %v1876, 2
      %v1879 = vshll.u32 %v775, 16
      %v1881 = vrot.slane %v1879, 3
      %v1882 = vor.u32 %v1878, %v1881
      %v1883 = vsel %vm1452, %v1873, %v1882
      %v1885 = vshrl.u32 %v776, 16
      %v1887 = vrot.slane %v1885, 2
      %v1888 = vshll.u32 %v776, 16
      %v1890 = vrot.slane %v1888, 3
      %v1891 = vor.u32 %v1887, %v1890
      %v1892 = vsel %vm1452, %v1882, %v1891
      %v1894 = vshrl.u32 %v777, 16
      %v1896 = vrot.slane %v1894, 2
      %v1897 = vshll.u32 %v777, 16
      %v1899 = vrot.slane %v1897, 3
      %v1900 = vor.u32 %v1896, %v1899
      %v1901 = vsel %vm1452, %v1891, %v1900
      %v1903 = vshrl.u32 %v778, 16
      %v1905 = vrot.slane %v1903, 2
      %v1906 = vshll.u32 %v778, 16
      %v1908 = vrot.slane %v1906, 3
      %v1909 = vor.u32 %v1905, %v1908
      %v1910 = vsel %vm1452, %v1900, %v1909
      %v1912 = vshrl.u32 %v779, 16
      %v1914 = vrot.slane %v1912, 2
      %v1915 = vshll.u32 %v779, 16
      %v1917 = vrot.slane %v1915, 3
      %v1918 = vor.u32 %v1914, %v1917
      %v1919 = vsel %vm1452, %v1909, %v1918
      %v1921 = vshrl.u32 %v780, 16
      %v1923 = vrot.slane %v1921, 2
      %v1924 = vshll.u32 %v780, 16
      %v1926 = vrot.slane %v1924, 3
      %v1927 = vor.u32 %v1923, %v1926
      %v1928 = vsel %vm1452, %v1918, %v1927
      %v1930 = vshrl.u32 %v781, 16
      %v1932 = vrot.slane %v1930, 2
      %v1933 = vshll.u32 %v781, 16
      %v1935 = vrot.slane %v1933, 3
      %v1936 = vor.u32 %v1932, %v1935
      %v1937 = vsel %vm1452, %v1927, %v1936
      %v1939 = vshrl.u32 %v782, 16
      %v1941 = vrot.slane %v1939, 2
      %v1942 = vshll.u32 %v782, 16
      %v1944 = vrot.slane %v1942, 3
      %v1945 = vor.u32 %v1941, %v1944
      %v1946 = vsel %vm1452, %v1936, %v1945
      %v1948 = vshrl.u32 %v783, 16
      %v1950 = vrot.slane %v1948, 2
      %v1951 = vshll.u32 %v783, 16
      %v1953 = vrot.slane %v1951, 3
      %v1954 = vor.u32 %v1950, %v1953
      %v1955 = vsel %vm1452, %v1945, %v1954
      %v1957 = vshrl.u32 %v784, 16
      %v1959 = vrot.slane %v1957, 2
      %v1960 = vshll.u32 %v784, 16
      %v1962 = vrot.slane %v1960, 3
      %v1963 = vor.u32 %v1959, %v1962
      %v1964 = vsel %vm1452, %v1954, %v1963
      %v1966 = vshrl.u32 %v785, 16
      %v1968 = vrot.slane %v1966, 2
      %v1969 = vshll.u32 %v785, 16
      %v1971 = vrot.slane %v1969, 3
      %v1972 = vor.u32 %v1968, %v1971
      %v1973 = vsel %vm1452, %v1963, %v1972
      %v1975 = vshrl.u32 %v786, 16
      %v1977 = vrot.slane %v1975, 2
      %v1978 = vshll.u32 %v786, 16
      %v1980 = vrot.slane %v1978, 3
      %v1981 = vor.u32 %v1977, %v1980
      %v1982 = vsel %vm1452, %v1972, %v1981
      %v1984 = vshrl.u32 %v787, 16
      %v1986 = vrot.slane %v1984, 2
      %v1987 = vshll.u32 %v787, 16
      %v1989 = vrot.slane %v1987, 3
      %v1990 = vor.u32 %v1986, %v1989
      %v1991 = vsel %vm1452, %v1981, %v1990
      %v1993 = vshrl.u32 %v788, 16
      %v1995 = vrot.slane %v1993, 2
      %v1996 = vshll.u32 %v788, 16
      %v1998 = vrot.slane %v1996, 3
      %v1999 = vor.u32 %v1995, %v1998
      %v2000 = vsel %vm1452, %v1990, %v1999
      %v2002 = vshrl.u32 %v789, 16
      %v2004 = vrot.slane %v2002, 2
      %v2005 = vshll.u32 %v789, 16
      %v2007 = vrot.slane %v2005, 3
      %v2008 = vor.u32 %v2004, %v2007
      %v2009 = vsel %vm1452, %v1999, %v2008
      %v2011 = vshrl.u32 %v790, 16
      %v2013 = vrot.slane %v2011, 2
      %v2014 = vshll.u32 %v790, 16
      %v2016 = vrot.slane %v2014, 3
      %v2017 = vor.u32 %v2013, %v2016
      %v2018 = vsel %vm1452, %v2008, %v2017
      %v2020 = vshrl.u32 %v791, 16
      %v2022 = vrot.slane %v2020, 2
      %v2023 = vshll.u32 %v791, 16
      %v2025 = vrot.slane %v2023, 3
      %v2026 = vor.u32 %v2022, %v2025
      %v2027 = vsel %vm1452, %v2017, %v2026
      %v2029 = vshrl.u32 %v792, 16
      %v2031 = vrot.slane %v2029, 2
      %v2032 = vshll.u32 %v792, 16
      %v2034 = vrot.slane %v2032, 3
      %v2035 = vor.u32 %v2031, %v2034
      %v2036 = vsel %vm1452, %v2026, %v2035
      %v2038 = vsel %vm923, %v1469, 0
      %v2041 = vsel %vm923, %v1478, 0
      %v2044 = vsel %vm923, %v1487, 0
      %v2047 = vsel %vm923, %v1496, 0
      %v2050 = vsel %vm923, %v1505, 0
      %v2053 = vsel %vm923, %v1514, 0
      %v2056 = vsel %vm923, %v1523, 0
      %v2059 = vsel %vm923, %v1532, 0
      %v2062 = vsel %vm923, %v1541, 0
      %v2065 = vsel %vm923, %v1550, 0
      %v2068 = vsel %vm923, %v1559, 0
      %v2071 = vsel %vm923, %v1568, 0
      %v2074 = vsel %vm923, %v1577, 0
      %v2077 = vsel %vm923, %v1586, 0
      %v2080 = vsel %vm923, %v1595, 0
      %v2083 = vsel %vm923, %v1604, 0
      %v2086 = vsel %vm923, %v1613, 0
      %v2089 = vsel %vm923, %v1622, 0
      %v2092 = vsel %vm923, %v1631, 0
      %v2095 = vsel %vm923, %v1640, 0
      %v2098 = vsel %vm923, %v1649, 0
      %v2101 = vsel %vm923, %v1658, 0
      %v2104 = vsel %vm923, %v1667, 0
      %v2107 = vsel %vm923, %v1676, 0
      %v2110 = vsel %vm923, %v1685, 0
      %v2113 = vsel %vm923, %v1694, 0
      %v2116 = vsel %vm923, %v1703, 0
      %v2119 = vsel %vm923, %v1712, 0
      %v2122 = vsel %vm923, %v1721, 0
      %v2125 = vsel %vm923, %v1730, 0
      %v2128 = vsel %vm923, %v1739, 0
      %v2131 = vsel %vm923, %v1748, 0
      %v2134 = vsel %vm923, %v1757, 0
      %v2137 = vsel %vm923, %v1766, 0
      %v2140 = vsel %vm923, %v1775, 0
      %v2143 = vsel %vm923, %v1784, 0
      %v2146 = vsel %vm923, %v1793, 0
      %v2149 = vsel %vm923, %v1802, 0
      %v2152 = vsel %vm923, %v1811, 0
      %v2155 = vsel %vm923, %v1820, 0
      %v2158 = vsel %vm923, %v1829, 0
      %v2161 = vsel %vm923, %v1838, 0
      %v2164 = vsel %vm923, %v1847, 0
      %v2167 = vsel %vm923, %v1856, 0
      %v2170 = vsel %vm923, %v1865, 0
      %v2173 = vsel %vm923, %v1874, 0
      %v2176 = vsel %vm923, %v1883, 0
      %v2179 = vsel %vm923, %v1892, 0
      %v2182 = vsel %vm923, %v1901, 0
      %v2185 = vsel %vm923, %v1910, 0
      %v2188 = vsel %vm923, %v1919, 0
      %v2191 = vsel %vm923, %v1928, 0
      %v2194 = vsel %vm923, %v1937, 0
      %v2197 = vsel %vm923, %v1946, 0
      %v2200 = vsel %vm923, %v1955, 0
      %v2203 = vsel %vm923, %v1964, 0
      %v2206 = vsel %vm923, %v1973, 0
      %v2209 = vsel %vm923, %v1982, 0
      %v2212 = vsel %vm923, %v1991, 0
      %v2215 = vsel %vm923, %v2000, 0
      %v2218 = vsel %vm923, %v2009, 0
      %v2221 = vsel %vm923, %v2018, 0
      %v2224 = vsel %vm923, %v2027, 0
      %v2227 = vsel %vm923, %v2036, 0
      %v2230 = vsel %vm1116, %v466, 0
      %2232 = vmatpush.bf16.msra.mxu0 0
      %2233 = vmatpush.bf16.msra.mxu0 0
      %2234 = vmatpush.bf16.msra.mxu0 0
      %2235 = vmatpush.bf16.msra.mxu0 0
      %2236 = vmatpush.bf16.msra.mxu0 0
      %2237 = vmatpush.bf16.msra.mxu0 0
      %2238 = vmatpush.bf16.msra.mxu0 0
      %2239 = vmatpush.bf16.msra.mxu0 %v2230
      %2240 = vmatmul.bf16.gmra.mxu0 %v2038
      %v2241 = vpop.f32.mrf.mxu0
      %v2242 = vadd.f32 %v1130, %v2241
      %v2243 = vpop.f32.mrf.mxu0
      %v2244 = vadd.f32 %v1132, %v2243
      %2245 = vmatmul.bf16.gmra.mxu0 %v2041
      %v2246 = vpop.f32.mrf.mxu0
      %v2247 = vadd.f32 %v1135, %v2246
      %v2248 = vpop.f32.mrf.mxu0
      %v2249 = vadd.f32 %v1137, %v2248
      %2250 = vmatmul.bf16.gmra.mxu0 %v2044
      %v2251 = vpop.f32.mrf.mxu0
      %v2252 = vadd.f32 %v1140, %v2251
      %v2253 = vpop.f32.mrf.mxu0
      %v2254 = vadd.f32 %v1142, %v2253
      %2255 = vmatmul.bf16.gmra.mxu0 %v2047
      %v2256 = vpop.f32.mrf.mxu0
      %v2257 = vadd.f32 %v1145, %v2256
      %v2258 = vpop.f32.mrf.mxu0
      %v2259 = vadd.f32 %v1147, %v2258
      %2260 = vmatmul.bf16.gmra.mxu0 %v2050
      %v2261 = vpop.f32.mrf.mxu0
      %v2262 = vadd.f32 %v1150, %v2261
      %v2263 = vpop.f32.mrf.mxu0
      %v2264 = vadd.f32 %v1152, %v2263
      %2265 = vmatmul.bf16.gmra.mxu0 %v2053
      %v2266 = vpop.f32.mrf.mxu0
      %v2267 = vadd.f32 %v1155, %v2266
      %v2268 = vpop.f32.mrf.mxu0
      %v2269 = vadd.f32 %v1157, %v2268
      %2270 = vmatmul.bf16.gmra.mxu0 %v2056
      %v2271 = vpop.f32.mrf.mxu0
      %v2272 = vadd.f32 %v1160, %v2271
      %v2273 = vpop.f32.mrf.mxu0
      %v2274 = vadd.f32 %v1162, %v2273
      %2275 = vmatmul.bf16.gmra.mxu0 %v2059
      %v2276 = vpop.f32.mrf.mxu0
      %v2277 = vadd.f32 %v1165, %v2276
      %v2278 = vpop.f32.mrf.mxu0
      %v2279 = vadd.f32 %v1167, %v2278
      %2280 = vmatmul.bf16.gmra.mxu0 %v2062
      %v2281 = vpop.f32.mrf.mxu0
      %v2282 = vadd.f32 %v1170, %v2281
      %v2283 = vpop.f32.mrf.mxu0
      %v2284 = vadd.f32 %v1172, %v2283
      %2285 = vmatmul.bf16.gmra.mxu0 %v2065
      %v2286 = vpop.f32.mrf.mxu0
      %v2287 = vadd.f32 %v1175, %v2286
      %v2288 = vpop.f32.mrf.mxu0
      %v2289 = vadd.f32 %v1177, %v2288
      %2290 = vmatmul.bf16.gmra.mxu0 %v2068
      %v2291 = vpop.f32.mrf.mxu0
      %v2292 = vadd.f32 %v1180, %v2291
      %v2293 = vpop.f32.mrf.mxu0
      %v2294 = vadd.f32 %v1182, %v2293
      %2295 = vmatmul.bf16.gmra.mxu0 %v2071
      %v2296 = vpop.f32.mrf.mxu0
      %v2297 = vadd.f32 %v1185, %v2296
      %v2298 = vpop.f32.mrf.mxu0
      %v2299 = vadd.f32 %v1187, %v2298
      %2300 = vmatmul.bf16.gmra.mxu0 %v2074
      %v2301 = vpop.f32.mrf.mxu0
      %v2302 = vadd.f32 %v1190, %v2301
      %v2303 = vpop.f32.mrf.mxu0
      %v2304 = vadd.f32 %v1192, %v2303
      %2305 = vmatmul.bf16.gmra.mxu0 %v2077
      %v2306 = vpop.f32.mrf.mxu0
      %v2307 = vadd.f32 %v1195, %v2306
      %v2308 = vpop.f32.mrf.mxu0
      %v2309 = vadd.f32 %v1197, %v2308
      %2310 = vmatmul.bf16.gmra.mxu0 %v2080
      %v2311 = vpop.f32.mrf.mxu0
      %v2312 = vadd.f32 %v1200, %v2311
      %v2313 = vpop.f32.mrf.mxu0
      %v2314 = vadd.f32 %v1202, %v2313
      %2315 = vmatmul.bf16.gmra.mxu0 %v2083
      %v2316 = vpop.f32.mrf.mxu0
      %v2317 = vadd.f32 %v1205, %v2316
      %v2318 = vpop.f32.mrf.mxu0
      %v2319 = vadd.f32 %v1207, %v2318
      %2320 = vmatmul.bf16.gmra.mxu0 %v2086
      %v2321 = vpop.f32.mrf.mxu0
      %v2322 = vadd.f32 %v1210, %v2321
      %v2323 = vpop.f32.mrf.mxu0
      %v2324 = vadd.f32 %v1212, %v2323
      %2325 = vmatmul.bf16.gmra.mxu0 %v2089
      %v2326 = vpop.f32.mrf.mxu0
      %v2327 = vadd.f32 %v1215, %v2326
      %v2328 = vpop.f32.mrf.mxu0
      %v2329 = vadd.f32 %v1217, %v2328
      %2330 = vmatmul.bf16.gmra.mxu0 %v2092
      %v2331 = vpop.f32.mrf.mxu0
      %v2332 = vadd.f32 %v1220, %v2331
      %v2333 = vpop.f32.mrf.mxu0
      %v2334 = vadd.f32 %v1222, %v2333
      %2335 = vmatmul.bf16.gmra.mxu0 %v2095
      %v2336 = vpop.f32.mrf.mxu0
      %v2337 = vadd.f32 %v1225, %v2336
      %v2338 = vpop.f32.mrf.mxu0
      %v2339 = vadd.f32 %v1227, %v2338
      %2340 = vmatmul.bf16.gmra.mxu0 %v2098
      %v2341 = vpop.f32.mrf.mxu0
      %v2342 = vadd.f32 %v1230, %v2341
      %v2343 = vpop.f32.mrf.mxu0
      %v2344 = vadd.f32 %v1232, %v2343
      %2345 = vmatmul.bf16.gmra.mxu0 %v2101
      %v2346 = vpop.f32.mrf.mxu0
      %v2347 = vadd.f32 %v1235, %v2346
      %v2348 = vpop.f32.mrf.mxu0
      %v2349 = vadd.f32 %v1237, %v2348
      %2350 = vmatmul.bf16.gmra.mxu0 %v2104
      %v2351 = vpop.f32.mrf.mxu0
      %v2352 = vadd.f32 %v1240, %v2351
      %v2353 = vpop.f32.mrf.mxu0
      %v2354 = vadd.f32 %v1242, %v2353
      %2355 = vmatmul.bf16.gmra.mxu0 %v2107
      %v2356 = vpop.f32.mrf.mxu0
      %v2357 = vadd.f32 %v1245, %v2356
      %v2358 = vpop.f32.mrf.mxu0
      %v2359 = vadd.f32 %v1247, %v2358
      %2360 = vmatmul.bf16.gmra.mxu0 %v2110
      %v2361 = vpop.f32.mrf.mxu0
      %v2362 = vadd.f32 %v1250, %v2361
      %v2363 = vpop.f32.mrf.mxu0
      %v2364 = vadd.f32 %v1252, %v2363
      %2365 = vmatmul.bf16.gmra.mxu0 %v2113
      %v2366 = vpop.f32.mrf.mxu0
      %v2367 = vadd.f32 %v1255, %v2366
      %v2368 = vpop.f32.mrf.mxu0
      %v2369 = vadd.f32 %v1257, %v2368
      %2370 = vmatmul.bf16.gmra.mxu0 %v2116
      %v2371 = vpop.f32.mrf.mxu0
      %v2372 = vadd.f32 %v1260, %v2371
      %v2373 = vpop.f32.mrf.mxu0
      %v2374 = vadd.f32 %v1262, %v2373
      %2375 = vmatmul.bf16.gmra.mxu0 %v2119
      %v2376 = vpop.f32.mrf.mxu0
      %v2377 = vadd.f32 %v1265, %v2376
      %v2378 = vpop.f32.mrf.mxu0
      %v2379 = vadd.f32 %v1267, %v2378
      %2380 = vmatmul.bf16.gmra.mxu0 %v2122
      %v2381 = vpop.f32.mrf.mxu0
      %v2382 = vadd.f32 %v1270, %v2381
      %v2383 = vpop.f32.mrf.mxu0
      %v2384 = vadd.f32 %v1272, %v2383
      %2385 = vmatmul.bf16.gmra.mxu0 %v2125
      %v2386 = vpop.f32.mrf.mxu0
      %v2387 = vadd.f32 %v1275, %v2386
      %v2388 = vpop.f32.mrf.mxu0
      %v2389 = vadd.f32 %v1277, %v2388
      %2390 = vmatmul.bf16.gmra.mxu0 %v2128
      %v2391 = vpop.f32.mrf.mxu0
      %v2392 = vadd.f32 %v1280, %v2391
      %v2393 = vpop.f32.mrf.mxu0
      %v2394 = vadd.f32 %v1282, %v2393
      %2395 = vmatmul.bf16.gmra.mxu0 %v2131
      %v2396 = vpop.f32.mrf.mxu0
      %v2397 = vadd.f32 %v1285, %v2396
      %v2398 = vpop.f32.mrf.mxu0
      %v2399 = vadd.f32 %v1287, %v2398
      %2400 = vmatmul.bf16.gmra.mxu0 %v2134
      %v2401 = vpop.f32.mrf.mxu0
      %v2402 = vadd.f32 %v1290, %v2401
      %v2403 = vpop.f32.mrf.mxu0
      %v2404 = vadd.f32 %v1292, %v2403
      %2405 = vmatmul.bf16.gmra.mxu0 %v2137
      %v2406 = vpop.f32.mrf.mxu0
      %v2407 = vadd.f32 %v1295, %v2406
      %v2408 = vpop.f32.mrf.mxu0
      %v2409 = vadd.f32 %v1297, %v2408
      %2410 = vmatmul.bf16.gmra.mxu0 %v2140
      %v2411 = vpop.f32.mrf.mxu0
      %v2412 = vadd.f32 %v1300, %v2411
      %v2413 = vpop.f32.mrf.mxu0
      %v2414 = vadd.f32 %v1302, %v2413
      %2415 = vmatmul.bf16.gmra.mxu0 %v2143
      %v2416 = vpop.f32.mrf.mxu0
      %v2417 = vadd.f32 %v1305, %v2416
      %v2418 = vpop.f32.mrf.mxu0
      %v2419 = vadd.f32 %v1307, %v2418
      %2420 = vmatmul.bf16.gmra.mxu0 %v2146
      %v2421 = vpop.f32.mrf.mxu0
      %v2422 = vadd.f32 %v1310, %v2421
      %v2423 = vpop.f32.mrf.mxu0
      %v2424 = vadd.f32 %v1312, %v2423
      %2425 = vmatmul.bf16.gmra.mxu0 %v2149
      %v2426 = vpop.f32.mrf.mxu0
      %v2427 = vadd.f32 %v1315, %v2426
      %v2428 = vpop.f32.mrf.mxu0
      %v2429 = vadd.f32 %v1317, %v2428
      %2430 = vmatmul.bf16.gmra.mxu0 %v2152
      %v2431 = vpop.f32.mrf.mxu0
      %v2432 = vadd.f32 %v1320, %v2431
      %v2433 = vpop.f32.mrf.mxu0
      %v2434 = vadd.f32 %v1322, %v2433
      %2435 = vmatmul.bf16.gmra.mxu0 %v2155
      %v2436 = vpop.f32.mrf.mxu0
      %v2437 = vadd.f32 %v1325, %v2436
      %v2438 = vpop.f32.mrf.mxu0
      %v2439 = vadd.f32 %v1327, %v2438
      %2440 = vmatmul.bf16.gmra.mxu0 %v2158
      %v2441 = vpop.f32.mrf.mxu0
      %v2442 = vadd.f32 %v1330, %v2441
      %v2443 = vpop.f32.mrf.mxu0
      %v2444 = vadd.f32 %v1332, %v2443
      %2445 = vmatmul.bf16.gmra.mxu0 %v2161
      %v2446 = vpop.f32.mrf.mxu0
      %v2447 = vadd.f32 %v1335, %v2446
      %v2448 = vpop.f32.mrf.mxu0
      %v2449 = vadd.f32 %v1337, %v2448
      %2450 = vmatmul.bf16.gmra.mxu0 %v2164
      %v2451 = vpop.f32.mrf.mxu0
      %v2452 = vadd.f32 %v1340, %v2451
      %v2453 = vpop.f32.mrf.mxu0
      %v2454 = vadd.f32 %v1342, %v2453
      %2455 = vmatmul.bf16.gmra.mxu0 %v2167
      %v2456 = vpop.f32.mrf.mxu0
      %v2457 = vadd.f32 %v1345, %v2456
      %v2458 = vpop.f32.mrf.mxu0
      %v2459 = vadd.f32 %v1347, %v2458
      %2460 = vmatmul.bf16.gmra.mxu0 %v2170
      %v2461 = vpop.f32.mrf.mxu0
      %v2462 = vadd.f32 %v1350, %v2461
      %v2463 = vpop.f32.mrf.mxu0
      %v2464 = vadd.f32 %v1352, %v2463
      %2465 = vmatmul.bf16.gmra.mxu0 %v2173
      %v2466 = vpop.f32.mrf.mxu0
      %v2467 = vadd.f32 %v1355, %v2466
      %v2468 = vpop.f32.mrf.mxu0
      %v2469 = vadd.f32 %v1357, %v2468
      %2470 = vmatmul.bf16.gmra.mxu0 %v2176
      %v2471 = vpop.f32.mrf.mxu0
      %v2472 = vadd.f32 %v1360, %v2471
      %v2473 = vpop.f32.mrf.mxu0
      %v2474 = vadd.f32 %v1362, %v2473
      %2475 = vmatmul.bf16.gmra.mxu0 %v2179
      %v2476 = vpop.f32.mrf.mxu0
      %v2477 = vadd.f32 %v1365, %v2476
      %v2478 = vpop.f32.mrf.mxu0
      %v2479 = vadd.f32 %v1367, %v2478
      %2480 = vmatmul.bf16.gmra.mxu0 %v2182
      %v2481 = vpop.f32.mrf.mxu0
      %v2482 = vadd.f32 %v1370, %v2481
      %v2483 = vpop.f32.mrf.mxu0
      %v2484 = vadd.f32 %v1372, %v2483
      %2485 = vmatmul.bf16.gmra.mxu0 %v2185
      %v2486 = vpop.f32.mrf.mxu0
      %v2487 = vadd.f32 %v1375, %v2486
      %v2488 = vpop.f32.mrf.mxu0
      %v2489 = vadd.f32 %v1377, %v2488
      %2490 = vmatmul.bf16.gmra.mxu0 %v2188
      %v2491 = vpop.f32.mrf.mxu0
      %v2492 = vadd.f32 %v1380, %v2491
      %v2493 = vpop.f32.mrf.mxu0
      %v2494 = vadd.f32 %v1382, %v2493
      %2495 = vmatmul.bf16.gmra.mxu0 %v2191
      %v2496 = vpop.f32.mrf.mxu0
      %v2497 = vadd.f32 %v1385, %v2496
      %v2498 = vpop.f32.mrf.mxu0
      %v2499 = vadd.f32 %v1387, %v2498
      %2500 = vmatmul.bf16.gmra.mxu0 %v2194
      %v2501 = vpop.f32.mrf.mxu0
      %v2502 = vadd.f32 %v1390, %v2501
      %v2503 = vpop.f32.mrf.mxu0
      %v2504 = vadd.f32 %v1392, %v2503
      %2505 = vmatmul.bf16.gmra.mxu0 %v2197
      %v2506 = vpop.f32.mrf.mxu0
      %v2507 = vadd.f32 %v1395, %v2506
      %v2508 = vpop.f32.mrf.mxu0
      %v2509 = vadd.f32 %v1397, %v2508
      %2510 = vmatmul.bf16.gmra.mxu0 %v2200
      %v2511 = vpop.f32.mrf.mxu0
      %v2512 = vadd.f32 %v1400, %v2511
      %v2513 = vpop.f32.mrf.mxu0
      %v2514 = vadd.f32 %v1402, %v2513
      %2515 = vmatmul.bf16.gmra.mxu0 %v2203
      %v2516 = vpop.f32.mrf.mxu0
      %v2517 = vadd.f32 %v1405, %v2516
      %v2518 = vpop.f32.mrf.mxu0
      %v2519 = vadd.f32 %v1407, %v2518
      %2520 = vmatmul.bf16.gmra.mxu0 %v2206
      %v2521 = vpop.f32.mrf.mxu0
      %v2522 = vadd.f32 %v1410, %v2521
      %v2523 = vpop.f32.mrf.mxu0
      %v2524 = vadd.f32 %v1412, %v2523
      %2525 = vmatmul.bf16.gmra.mxu0 %v2209
      %v2526 = vpop.f32.mrf.mxu0
      %v2527 = vadd.f32 %v1415, %v2526
      %v2528 = vpop.f32.mrf.mxu0
      %v2529 = vadd.f32 %v1417, %v2528
      %2530 = vmatmul.bf16.gmra.mxu0 %v2212
      %v2531 = vpop.f32.mrf.mxu0
      %v2532 = vadd.f32 %v1420, %v2531
      %v2533 = vpop.f32.mrf.mxu0
      %v2534 = vadd.f32 %v1422, %v2533
      %2535 = vmatmul.bf16.gmra.mxu0 %v2215
      %v2536 = vpop.f32.mrf.mxu0
      %v2537 = vadd.f32 %v1425, %v2536
      %v2538 = vpop.f32.mrf.mxu0
      %v2539 = vadd.f32 %v1427, %v2538
      %2540 = vmatmul.bf16.gmra.mxu0 %v2218
      %v2541 = vpop.f32.mrf.mxu0
      %v2542 = vadd.f32 %v1430, %v2541
      %v2543 = vpop.f32.mrf.mxu0
      %v2544 = vadd.f32 %v1432, %v2543
      %2545 = vmatmul.bf16.gmra.mxu0 %v2221
      %v2546 = vpop.f32.mrf.mxu0
      %v2547 = vadd.f32 %v1435, %v2546
      %v2548 = vpop.f32.mrf.mxu0
      %v2549 = vadd.f32 %v1437, %v2548
      %2550 = vmatmul.bf16.gmra.mxu0 %v2224
      %v2551 = vpop.f32.mrf.mxu0
      %v2552 = vadd.f32 %v1440, %v2551
      %v2553 = vpop.f32.mrf.mxu0
      %v2554 = vadd.f32 %v1442, %v2553
      %2555 = vmatmul.bf16.gmra.mxu0 %v2227
      %v2556 = vpop.f32.mrf.mxu0
      %v2557 = vadd.f32 %v1445, %v2556
      %v2558 = vpop.f32.mrf.mxu0
      %v2559 = vadd.f32 %v1447, %v2558
      %2560 = vdwg.mxu0
      %v2561 = vld [vmem:[#allocation2 + $0x200] sm:$0xf]
      %s2562 = scalar_lea.vmem %s1, 8
      %v2563 = vld [vmem:[%s2562] sm:$0xf]
      %v2565 = vunpack.c.l.b16 %v2561
      %v2566 = vpack.c.b16 %v2565, %v2565
      %vm2567 = vsmask.f32 4352
      %v2569 = vshrl.u32 %v728, 16
      %v2571 = vrot.slane %v2569, 3
      %v2572 = vshll.u32 %v728, 16
      %v2574 = vrot.slane %v2572, 4
      %v2575 = vor.u32 %v2571, %v2574
      %v2576 = vrot.slane %v1462, 3
      %v2577 = vrot.slane %v1465, 4
      %v2578 = vor.u32 %v2576, %v2577
      %v2579 = vsel %vm2567, %v2575, %v2578
      %v2580 = vrot.slane %v1471, 3
      %v2581 = vrot.slane %v1474, 4
      %v2582 = vor.u32 %v2580, %v2581
      %v2583 = vsel %vm2567, %v2578, %v2582
      %v2584 = vrot.slane %v1480, 3
      %v2585 = vrot.slane %v1483, 4
      %v2586 = vor.u32 %v2584, %v2585
      %v2587 = vsel %vm2567, %v2582, %v2586
      %v2588 = vrot.slane %v1489, 3
      %v2589 = vrot.slane %v1492, 4
      %v2590 = vor.u32 %v2588, %v2589
      %v2591 = vsel %vm2567, %v2586, %v2590
      %v2592 = vrot.slane %v1498, 3
      %v2593 = vrot.slane %v1501, 4
      %v2594 = vor.u32 %v2592, %v2593
      %v2595 = vsel %vm2567, %v2590, %v2594
      %v2596 = vrot.slane %v1507, 3
      %v2597 = vrot.slane %v1510, 4
      %v2598 = vor.u32 %v2596, %v2597
      %v2599 = vsel %vm2567, %v2594, %v2598
      %v2600 = vrot.slane %v1516, 3
      %v2601 = vrot.slane %v1519, 4
      %v2602 = vor.u32 %v2600, %v2601
      %v2603 = vsel %vm2567, %v2598, %v2602
      %v2604 = vrot.slane %v1525, 3
      %v2605 = vrot.slane %v1528, 4
      %v2606 = vor.u32 %v2604, %v2605
      %v2607 = vsel %vm2567, %v2602, %v2606
      %v2608 = vrot.slane %v1534, 3
      %v2609 = vrot.slane %v1537, 4
      %v2610 = vor.u32 %v2608, %v2609
      %v2611 = vsel %vm2567, %v2606, %v2610
      %v2612 = vrot.slane %v1543, 3
      %v2613 = vrot.slane %v1546, 4
      %v2614 = vor.u32 %v2612, %v2613
      %v2615 = vsel %vm2567, %v2610, %v2614
      %v2616 = vrot.slane %v1552, 3
      %v2617 = vrot.slane %v1555, 4
      %v2618 = vor.u32 %v2616, %v2617
      %v2619 = vsel %vm2567, %v2614, %v2618
      %v2620 = vrot.slane %v1561, 3
      %v2621 = vrot.slane %v1564, 4
      %v2622 = vor.u32 %v2620, %v2621
      %v2623 = vsel %vm2567, %v2618, %v2622
      %v2624 = vrot.slane %v1570, 3
      %v2625 = vrot.slane %v1573, 4
      %v2626 = vor.u32 %v2624, %v2625
      %v2627 = vsel %vm2567, %v2622, %v2626
      %v2628 = vrot.slane %v1579, 3
      %v2629 = vrot.slane %v1582, 4
      %v2630 = vor.u32 %v2628, %v2629
      %v2631 = vsel %vm2567, %v2626, %v2630
      %v2632 = vrot.slane %v1588, 3
      %v2633 = vrot.slane %v1591, 4
      %v2634 = vor.u32 %v2632, %v2633
      %v2635 = vsel %vm2567, %v2630, %v2634
      %v2636 = vrot.slane %v1597, 3
      %v2637 = vrot.slane %v1600, 4
      %v2638 = vor.u32 %v2636, %v2637
      %v2639 = vsel %vm2567, %v2634, %v2638
      %v2640 = vrot.slane %v1606, 3
      %v2641 = vrot.slane %v1609, 4
      %v2642 = vor.u32 %v2640, %v2641
      %v2643 = vsel %vm2567, %v2638, %v2642
      %v2644 = vrot.slane %v1615, 3
      %v2645 = vrot.slane %v1618, 4
      %v2646 = vor.u32 %v2644, %v2645
      %v2647 = vsel %vm2567, %v2642, %v2646
      %v2648 = vrot.slane %v1624, 3
      %v2649 = vrot.slane %v1627, 4
      %v2650 = vor.u32 %v2648, %v2649
      %v2651 = vsel %vm2567, %v2646, %v2650
      %v2652 = vrot.slane %v1633, 3
      %v2653 = vrot.slane %v1636, 4
      %v2654 = vor.u32 %v2652, %v2653
      %v2655 = vsel %vm2567, %v2650, %v2654
      %v2656 = vrot.slane %v1642, 3
      %v2657 = vrot.slane %v1645, 4
      %v2658 = vor.u32 %v2656, %v2657
      %v2659 = vsel %vm2567, %v2654, %v2658
      %v2660 = vrot.slane %v1651, 3
      %v2661 = vrot.slane %v1654, 4
      %v2662 = vor.u32 %v2660, %v2661
      %v2663 = vsel %vm2567, %v2658, %v2662
      %v2664 = vrot.slane %v1660, 3
      %v2665 = vrot.slane %v1663, 4
      %v2666 = vor.u32 %v2664, %v2665
      %v2667 = vsel %vm2567, %v2662, %v2666
      %v2668 = vrot.slane %v1669, 3
      %v2669 = vrot.slane %v1672, 4
      %v2670 = vor.u32 %v2668, %v2669
      %v2671 = vsel %vm2567, %v2666, %v2670
      %v2672 = vrot.slane %v1678, 3
      %v2673 = vrot.slane %v1681, 4
      %v2674 = vor.u32 %v2672, %v2673
      %v2675 = vsel %vm2567, %v2670, %v2674
      %v2676 = vrot.slane %v1687, 3
      %v2677 = vrot.slane %v1690, 4
      %v2678 = vor.u32 %v2676, %v2677
      %v2679 = vsel %vm2567, %v2674, %v2678
      %v2680 = vrot.slane %v1696, 3
      %v2681 = vrot.slane %v1699, 4
      %v2682 = vor.u32 %v2680, %v2681
      %v2683 = vsel %vm2567, %v2678, %v2682
      %v2684 = vrot.slane %v1705, 3
      %v2685 = vrot.slane %v1708, 4
      %v2686 = vor.u32 %v2684, %v2685
      %v2687 = vsel %vm2567, %v2682, %v2686
      %v2688 = vrot.slane %v1714, 3
      %v2689 = vrot.slane %v1717, 4
      %v2690 = vor.u32 %v2688, %v2689
      %v2691 = vsel %vm2567, %v2686, %v2690
      %v2692 = vrot.slane %v1723, 3
      %v2693 = vrot.slane %v1726, 4
      %v2694 = vor.u32 %v2692, %v2693
      %v2695 = vsel %vm2567, %v2690, %v2694
      %v2696 = vrot.slane %v1732, 3
      %v2697 = vrot.slane %v1735, 4
      %v2698 = vor.u32 %v2696, %v2697
      %v2699 = vsel %vm2567, %v2694, %v2698
      %v2700 = vrot.slane %v1741, 3
      %v2701 = vrot.slane %v1744, 4
      %v2702 = vor.u32 %v2700, %v2701
      %v2703 = vsel %vm2567, %v2698, %v2702
      %v2704 = vrot.slane %v1750, 3
      %v2705 = vrot.slane %v1753, 4
      %v2706 = vor.u32 %v2704, %v2705
      %v2707 = vsel %vm2567, %v2702, %v2706
      %v2708 = vrot.slane %v1759, 3
      %v2709 = vrot.slane %v1762, 4
      %v2710 = vor.u32 %v2708, %v2709
      %v2711 = vsel %vm2567, %v2706, %v2710
      %v2712 = vrot.slane %v1768, 3
      %v2713 = vrot.slane %v1771, 4
      %v2714 = vor.u32 %v2712, %v2713
      %v2715 = vsel %vm2567, %v2710, %v2714
      %v2716 = vrot.slane %v1777, 3
      %v2717 = vrot.slane %v1780, 4
      %v2718 = vor.u32 %v2716, %v2717
      %v2719 = vsel %vm2567, %v2714, %v2718
      %v2720 = vrot.slane %v1786, 3
      %v2721 = vrot.slane %v1789, 4
      %v2722 = vor.u32 %v2720, %v2721
      %v2723 = vsel %vm2567, %v2718, %v2722
      %v2724 = vrot.slane %v1795, 3
      %v2725 = vrot.slane %v1798, 4
      %v2726 = vor.u32 %v2724, %v2725
      %v2727 = vsel %vm2567, %v2722, %v2726
      %v2728 = vrot.slane %v1804, 3
      %v2729 = vrot.slane %v1807, 4
      %v2730 = vor.u32 %v2728, %v2729
      %v2731 = vsel %vm2567, %v2726, %v2730
      %v2732 = vrot.slane %v1813, 3
      %v2733 = vrot.slane %v1816, 4
      %v2734 = vor.u32 %v2732, %v2733
      %v2735 = vsel %vm2567, %v2730, %v2734
      %v2736 = vrot.slane %v1822, 3
      %v2737 = vrot.slane %v1825, 4
      %v2738 = vor.u32 %v2736, %v2737
      %v2739 = vsel %vm2567, %v2734, %v2738
      %v2740 = vrot.slane %v1831, 3
      %v2741 = vrot.slane %v1834, 4
      %v2742 = vor.u32 %v2740, %v2741
      %v2743 = vsel %vm2567, %v2738, %v2742
      %v2744 = vrot.slane %v1840, 3
      %v2745 = vrot.slane %v1843, 4
      %v2746 = vor.u32 %v2744, %v2745
      %v2747 = vsel %vm2567, %v2742, %v2746
      %v2748 = vrot.slane %v1849, 3
      %v2749 = vrot.slane %v1852, 4
      %v2750 = vor.u32 %v2748, %v2749
      %v2751 = vsel %vm2567, %v2746, %v2750
      %v2752 = vrot.slane %v1858, 3
      %v2753 = vrot.slane %v1861, 4
      %v2754 = vor.u32 %v2752, %v2753
      %v2755 = vsel %vm2567, %v2750, %v2754
      %v2756 = vrot.slane %v1867, 3
      %v2757 = vrot.slane %v1870, 4
      %v2758 = vor.u32 %v2756, %v2757
      %v2759 = vsel %vm2567, %v2754, %v2758
      %v2760 = vrot.slane %v1876, 3
      %v2761 = vrot.slane %v1879, 4
      %v2762 = vor.u32 %v2760, %v2761
      %v2763 = vsel %vm2567, %v2758, %v2762
      %v2764 = vrot.slane %v1885, 3
      %v2765 = vrot.slane %v1888, 4
      %v2766 = vor.u32 %v2764, %v2765
      %v2767 = vsel %vm2567, %v2762, %v2766
      %v2768 = vrot.slane %v1894, 3
      %v2769 = vrot.slane %v1897, 4
      %v2770 = vor.u32 %v2768, %v2769
      %v2771 = vsel %vm2567, %v2766, %v2770
      %v2772 = vrot.slane %v1903, 3
      %v2773 = vrot.slane %v1906, 4
      %v2774 = vor.u32 %v2772, %v2773
      %v2775 = vsel %vm2567, %v2770, %v2774
      %v2776 = vrot.slane %v1912, 3
      %v2777 = vrot.slane %v1915, 4
      %v2778 = vor.u32 %v2776, %v2777
      %v2779 = vsel %vm2567, %v2774, %v2778
      %v2780 = vrot.slane %v1921, 3
      %v2781 = vrot.slane %v1924, 4
      %v2782 = vor.u32 %v2780, %v2781
      %v2783 = vsel %vm2567, %v2778, %v2782
      %v2784 = vrot.slane %v1930, 3
      %v2785 = vrot.slane %v1933, 4
      %v2786 = vor.u32 %v2784, %v2785
      %v2787 = vsel %vm2567, %v2782, %v2786
      %v2788 = vrot.slane %v1939, 3
      %v2789 = vrot.slane %v1942, 4
      %v2790 = vor.u32 %v2788, %v2789
      %v2791 = vsel %vm2567, %v2786, %v2790
      %v2792 = vrot.slane %v1948, 3
      %v2793 = vrot.slane %v1951, 4
      %v2794 = vor.u32 %v2792, %v2793
      %v2795 = vsel %vm2567, %v2790, %v2794
      %v2796 = vrot.slane %v1957, 3
      %v2797 = vrot.slane %v1960, 4
      %v2798 = vor.u32 %v2796, %v2797
      %v2799 = vsel %vm2567, %v2794, %v2798
      %v2800 = vrot.slane %v1966, 3
      %v2801 = vrot.slane %v1969, 4
      %v2802 = vor.u32 %v2800, %v2801
      %v2803 = vsel %vm2567, %v2798, %v2802
      %v2804 = vrot.slane %v1975, 3
      %v2805 = vrot.slane %v1978, 4
      %v2806 = vor.u32 %v2804, %v2805
      %v2807 = vsel %vm2567, %v2802, %v2806
      %v2808 = vrot.slane %v1984, 3
      %v2809 = vrot.slane %v1987, 4
      %v2810 = vor.u32 %v2808, %v2809
      %v2811 = vsel %vm2567, %v2806, %v2810
      %v2812 = vrot.slane %v1993, 3
      %v2813 = vrot.slane %v1996, 4
      %v2814 = vor.u32 %v2812, %v2813
      %v2815 = vsel %vm2567, %v2810, %v2814
      %v2816 = vrot.slane %v2002, 3
      %v2817 = vrot.slane %v2005, 4
      %v2818 = vor.u32 %v2816, %v2817
      %v2819 = vsel %vm2567, %v2814, %v2818
      %v2820 = vrot.slane %v2011, 3
      %v2821 = vrot.slane %v2014, 4
      %v2822 = vor.u32 %v2820, %v2821
      %v2823 = vsel %vm2567, %v2818, %v2822
      %v2824 = vrot.slane %v2020, 3
      %v2825 = vrot.slane %v2023, 4
      %v2826 = vor.u32 %v2824, %v2825
      %v2827 = vsel %vm2567, %v2822, %v2826
      %v2829 = vshrl.u32 %v2566, 16
      %v2831 = vrot.slane %v2829, 3
      %v2832 = vshll.u32 %v2566, 16
      %v2834 = vrot.slane %v2832, 4
      %v2835 = vor.u32 %v2831, %v2834
      %v2836 = vsel %vm2567, %v2826, %v2835
      %v2838 = vsel %vm923, %v2579, 0
      %v2841 = vsel %vm923, %v2583, 0
      %v2844 = vsel %vm923, %v2587, 0
      %v2847 = vsel %vm923, %v2591, 0
      %v2850 = vsel %vm923, %v2595, 0
      %v2853 = vsel %vm923, %v2599, 0
      %v2856 = vsel %vm923, %v2603, 0
      %v2859 = vsel %vm923, %v2607, 0
      %v2862 = vsel %vm923, %v2611, 0
      %v2865 = vsel %vm923, %v2615, 0
      %v2868 = vsel %vm923, %v2619, 0
      %v2871 = vsel %vm923, %v2623, 0
      %v2874 = vsel %vm923, %v2627, 0
      %v2877 = vsel %vm923, %v2631, 0
      %v2880 = vsel %vm923, %v2635, 0
      %v2883 = vsel %vm923, %v2639, 0
      %v2886 = vsel %vm923, %v2643, 0
      %v2889 = vsel %vm923, %v2647, 0
      %v2892 = vsel %vm923, %v2651, 0
      %v2895 = vsel %vm923, %v2655, 0
      %v2898 = vsel %vm923, %v2659, 0
      %v2901 = vsel %vm923, %v2663, 0
      %v2904 = vsel %vm923, %v2667, 0
      %v2907 = vsel %vm923, %v2671, 0
      %v2910 = vsel %vm923, %v2675, 0
      %v2913 = vsel %vm923, %v2679, 0
      %v2916 = vsel %vm923, %v2683, 0
      %v2919 = vsel %vm923, %v2687, 0
      %v2922 = vsel %vm923, %v2691, 0
      %v2925 = vsel %vm923, %v2695, 0
      %v2928 = vsel %vm923, %v2699, 0
      %v2931 = vsel %vm923, %v2703, 0
      %v2934 = vsel %vm923, %v2707, 0
      %v2937 = vsel %vm923, %v2711, 0
      %v2940 = vsel %vm923, %v2715, 0
      %v2943 = vsel %vm923, %v2719, 0
      %v2946 = vsel %vm923, %v2723, 0
      %v2949 = vsel %vm923, %v2727, 0
      %v2952 = vsel %vm923, %v2731, 0
      %v2955 = vsel %vm923, %v2735, 0
      %v2958 = vsel %vm923, %v2739, 0
      %v2961 = vsel %vm923, %v2743, 0
      %v2964 = vsel %vm923, %v2747, 0
      %v2967 = vsel %vm923, %v2751, 0
      %v2970 = vsel %vm923, %v2755, 0
      %v2973 = vsel %vm923, %v2759, 0
      %v2976 = vsel %vm923, %v2763, 0
      %v2979 = vsel %vm923, %v2767, 0
      %v2982 = vsel %vm923, %v2771, 0
      %v2985 = vsel %vm923, %v2775, 0
      %v2988 = vsel %vm923, %v2779, 0
      %v2991 = vsel %vm923, %v2783, 0
      %v2994 = vsel %vm923, %v2787, 0
      %v2997 = vsel %vm923, %v2791, 0
      %v3000 = vsel %vm923, %v2795, 0
      %v3003 = vsel %vm923, %v2799, 0
      %v3006 = vsel %vm923, %v2803, 0
      %v3009 = vsel %vm923, %v2807, 0
      %v3012 = vsel %vm923, %v2811, 0
      %v3015 = vsel %vm923, %v2815, 0
      %v3018 = vsel %vm923, %v2819, 0
      %v3021 = vsel %vm923, %v2823, 0
      %v3024 = vsel %vm923, %v2827, 0
      %v3027 = vsel %vm923, %v2836, 0
      %v3030 = vsel %vm1116, %v2563, 0
      %3032 = vmatpush.bf16.msra.mxu0 0
      %3033 = vmatpush.bf16.msra.mxu0 0
      %3034 = vmatpush.bf16.msra.mxu0 0
      %3035 = vmatpush.bf16.msra.mxu0 0
      %3036 = vmatpush.bf16.msra.mxu0 0
      %3037 = vmatpush.bf16.msra.mxu0 0
      %3038 = vmatpush.bf16.msra.mxu0 0
      %3039 = vmatpush.bf16.msra.mxu0 %v3030
      %3040 = vmatmul.bf16.gmra.mxu0 %v2838
      %v3041 = vpop.f32.mrf.mxu0
      %v3042 = vadd.f32 0.0, %v3041
      %v3043 = vpop.f32.mrf.mxu0
      %v3044 = vadd.f32 0.0, %v3043
      %3045 = vmatmul.bf16.gmra.mxu0 %v2841
      %v3046 = vpop.f32.mrf.mxu0
      %v3047 = vadd.f32 0.0, %v3046
      %v3048 = vpop.f32.mrf.mxu0
      %v3049 = vadd.f32 0.0, %v3048
      %3050 = vmatmul.bf16.gmra.mxu0 %v2844
      %v3051 = vpop.f32.mrf.mxu0
      %v3052 = vadd.f32 0.0, %v3051
      %v3053 = vpop.f32.mrf.mxu0
      %v3054 = vadd.f32 0.0, %v3053
      %3055 = vmatmul.bf16.gmra.mxu0 %v2847
      %v3056 = vpop.f32.mrf.mxu0
      %v3057 = vadd.f32 0.0, %v3056
      %v3058 = vpop.f32.mrf.mxu0
      %v3059 = vadd.f32 0.0, %v3058
      %3060 = vmatmul.bf16.gmra.mxu0 %v2850
      %v3061 = vpop.f32.mrf.mxu0
      %v3062 = vadd.f32 0.0, %v3061
      %v3063 = vpop.f32.mrf.mxu0
      %v3064 = vadd.f32 0.0, %v3063
      %3065 = vmatmul.bf16.gmra.mxu0 %v2853
      %v3066 = vpop.f32.mrf.mxu0
      %v3067 = vadd.f32 0.0, %v3066
      %v3068 = vpop.f32.mrf.mxu0
      %v3069 = vadd.f32 0.0, %v3068
      %3070 = vmatmul.bf16.gmra.mxu0 %v2856
      %v3071 = vpop.f32.mrf.mxu0
      %v3072 = vadd.f32 0.0, %v3071
      %v3073 = vpop.f32.mrf.mxu0
      %v3074 = vadd.f32 0.0, %v3073
      %3075 = vmatmul.bf16.gmra.mxu0 %v2859
      %v3076 = vpop.f32.mrf.mxu0
      %v3077 = vadd.f32 0.0, %v3076
      %v3078 = vpop.f32.mrf.mxu0
      %v3079 = vadd.f32 0.0, %v3078
      %3080 = vmatmul.bf16.gmra.mxu0 %v2862
      %v3081 = vpop.f32.mrf.mxu0
      %v3082 = vadd.f32 0.0, %v3081
      %v3083 = vpop.f32.mrf.mxu0
      %v3084 = vadd.f32 0.0, %v3083
      %3085 = vmatmul.bf16.gmra.mxu0 %v2865
      %v3086 = vpop.f32.mrf.mxu0
      %v3087 = vadd.f32 0.0, %v3086
      %v3088 = vpop.f32.mrf.mxu0
      %v3089 = vadd.f32 0.0, %v3088
      %3090 = vmatmul.bf16.gmra.mxu0 %v2868
      %v3091 = vpop.f32.mrf.mxu0
      %v3092 = vadd.f32 0.0, %v3091
      %v3093 = vpop.f32.mrf.mxu0
      %v3094 = vadd.f32 0.0, %v3093
      %3095 = vmatmul.bf16.gmra.mxu0 %v2871
      %v3096 = vpop.f32.mrf.mxu0
      %v3097 = vadd.f32 0.0, %v3096
      %v3098 = vpop.f32.mrf.mxu0
      %v3099 = vadd.f32 0.0, %v3098
      %3100 = vmatmul.bf16.gmra.mxu0 %v2874
      %v3101 = vpop.f32.mrf.mxu0
      %v3102 = vadd.f32 0.0, %v3101
      %v3103 = vpop.f32.mrf.mxu0
      %v3104 = vadd.f32 0.0, %v3103
      %3105 = vmatmul.bf16.gmra.mxu0 %v2877
      %v3106 = vpop.f32.mrf.mxu0
      %v3107 = vadd.f32 0.0, %v3106
      %v3108 = vpop.f32.mrf.mxu0
      %v3109 = vadd.f32 0.0, %v3108
      %3110 = vmatmul.bf16.gmra.mxu0 %v2880
      %v3111 = vpop.f32.mrf.mxu0
      %v3112 = vadd.f32 0.0, %v3111
      %v3113 = vpop.f32.mrf.mxu0
      %v3114 = vadd.f32 0.0, %v3113
      %3115 = vmatmul.bf16.gmra.mxu0 %v2883
      %v3116 = vpop.f32.mrf.mxu0
      %v3117 = vadd.f32 0.0, %v3116
      %v3118 = vpop.f32.mrf.mxu0
      %v3119 = vadd.f32 0.0, %v3118
      %3120 = vmatmul.bf16.gmra.mxu0 %v2886
      %v3121 = vpop.f32.mrf.mxu0
      %v3122 = vadd.f32 0.0, %v3121
      %v3123 = vpop.f32.mrf.mxu0
      %v3124 = vadd.f32 0.0, %v3123
      %3125 = vmatmul.bf16.gmra.mxu0 %v2889
      %v3126 = vpop.f32.mrf.mxu0
      %v3127 = vadd.f32 0.0, %v3126
      %v3128 = vpop.f32.mrf.mxu0
      %v3129 = vadd.f32 0.0, %v3128
      %3130 = vmatmul.bf16.gmra.mxu0 %v2892
      %v3131 = vpop.f32.mrf.mxu0
      %v3132 = vadd.f32 0.0, %v3131
      %v3133 = vpop.f32.mrf.mxu0
      %v3134 = vadd.f32 0.0, %v3133
      %3135 = vmatmul.bf16.gmra.mxu0 %v2895
      %v3136 = vpop.f32.mrf.mxu0
      %v3137 = vadd.f32 0.0, %v3136
      %v3138 = vpop.f32.mrf.mxu0
      %v3139 = vadd.f32 0.0, %v3138
      %3140 = vmatmul.bf16.gmra.mxu0 %v2898
      %v3141 = vpop.f32.mrf.mxu0
      %v3142 = vadd.f32 0.0, %v3141
      %v3143 = vpop.f32.mrf.mxu0
      %v3144 = vadd.f32 0.0, %v3143
      %3145 = vmatmul.bf16.gmra.mxu0 %v2901
      %v3146 = vpop.f32.mrf.mxu0
      %v3147 = vadd.f32 0.0, %v3146
      %v3148 = vpop.f32.mrf.mxu0
      %v3149 = vadd.f32 0.0, %v3148
      %3150 = vmatmul.bf16.gmra.mxu0 %v2904
      %v3151 = vpop.f32.mrf.mxu0
      %v3152 = vadd.f32 0.0, %v3151
      %v3153 = vpop.f32.mrf.mxu0
      %v3154 = vadd.f32 0.0, %v3153
      %3155 = vmatmul.bf16.gmra.mxu0 %v2907
      %v3156 = vpop.f32.mrf.mxu0
      %v3157 = vadd.f32 0.0, %v3156
      %v3158 = vpop.f32.mrf.mxu0
      %v3159 = vadd.f32 0.0, %v3158
      %3160 = vmatmul.bf16.gmra.mxu0 %v2910
      %v3161 = vpop.f32.mrf.mxu0
      %v3162 = vadd.f32 0.0, %v3161
      %v3163 = vpop.f32.mrf.mxu0
      %v3164 = vadd.f32 0.0, %v3163
      %3165 = vmatmul.bf16.gmra.mxu0 %v2913
      %v3166 = vpop.f32.mrf.mxu0
      %v3167 = vadd.f32 0.0, %v3166
      %v3168 = vpop.f32.mrf.mxu0
      %v3169 = vadd.f32 0.0, %v3168
      %3170 = vmatmul.bf16.gmra.mxu0 %v2916
      %v3171 = vpop.f32.mrf.mxu0
      %v3172 = vadd.f32 0.0, %v3171
      %v3173 = vpop.f32.mrf.mxu0
      %v3174 = vadd.f32 0.0, %v3173
      %3175 = vmatmul.bf16.gmra.mxu0 %v2919
      %v3176 = vpop.f32.mrf.mxu0
      %v3177 = vadd.f32 0.0, %v3176
      %v3178 = vpop.f32.mrf.mxu0
      %v3179 = vadd.f32 0.0, %v3178
      %3180 = vmatmul.bf16.gmra.mxu0 %v2922
      %v3181 = vpop.f32.mrf.mxu0
      %v3182 = vadd.f32 0.0, %v3181
      %v3183 = vpop.f32.mrf.mxu0
      %v3184 = vadd.f32 0.0, %v3183
      %3185 = vmatmul.bf16.gmra.mxu0 %v2925
      %v3186 = vpop.f32.mrf.mxu0
      %v3187 = vadd.f32 0.0, %v3186
      %v3188 = vpop.f32.mrf.mxu0
      %v3189 = vadd.f32 0.0, %v3188
      %3190 = vmatmul.bf16.gmra.mxu0 %v2928
      %v3191 = vpop.f32.mrf.mxu0
      %v3192 = vadd.f32 0.0, %v3191
      %v3193 = vpop.f32.mrf.mxu0
      %v3194 = vadd.f32 0.0, %v3193
      %3195 = vmatmul.bf16.gmra.mxu0 %v2931
      %v3196 = vpop.f32.mrf.mxu0
      %v3197 = vadd.f32 0.0, %v3196
      %v3198 = vpop.f32.mrf.mxu0
      %v3199 = vadd.f32 0.0, %v3198
      %3200 = vmatmul.bf16.gmra.mxu0 %v2934
      %v3201 = vpop.f32.mrf.mxu0
      %v3202 = vadd.f32 0.0, %v3201
      %v3203 = vpop.f32.mrf.mxu0
      %v3204 = vadd.f32 0.0, %v3203
      %3205 = vmatmul.bf16.gmra.mxu0 %v2937
      %v3206 = vpop.f32.mrf.mxu0
      %v3207 = vadd.f32 0.0, %v3206
      %v3208 = vpop.f32.mrf.mxu0
      %v3209 = vadd.f32 0.0, %v3208
      %3210 = vmatmul.bf16.gmra.mxu0 %v2940
      %v3211 = vpop.f32.mrf.mxu0
      %v3212 = vadd.f32 0.0, %v3211
      %v3213 = vpop.f32.mrf.mxu0
      %v3214 = vadd.f32 0.0, %v3213
      %3215 = vmatmul.bf16.gmra.mxu0 %v2943
      %v3216 = vpop.f32.mrf.mxu0
      %v3217 = vadd.f32 0.0, %v3216
      %v3218 = vpop.f32.mrf.mxu0
      %v3219 = vadd.f32 0.0, %v3218
      %3220 = vmatmul.bf16.gmra.mxu0 %v2946
      %v3221 = vpop.f32.mrf.mxu0
      %v3222 = vadd.f32 0.0, %v3221
      %v3223 = vpop.f32.mrf.mxu0
      %v3224 = vadd.f32 0.0, %v3223
      %3225 = vmatmul.bf16.gmra.mxu0 %v2949
      %v3226 = vpop.f32.mrf.mxu0
      %v3227 = vadd.f32 0.0, %v3226
      %v3228 = vpop.f32.mrf.mxu0
      %v3229 = vadd.f32 0.0, %v3228
      %3230 = vmatmul.bf16.gmra.mxu0 %v2952
      %v3231 = vpop.f32.mrf.mxu0
      %v3232 = vadd.f32 0.0, %v3231
      %v3233 = vpop.f32.mrf.mxu0
      %v3234 = vadd.f32 0.0, %v3233
      %3235 = vmatmul.bf16.gmra.mxu0 %v2955
      %v3236 = vpop.f32.mrf.mxu0
      %v3237 = vadd.f32 0.0, %v3236
      %v3238 = vpop.f32.mrf.mxu0
      %v3239 = vadd.f32 0.0, %v3238
      %3240 = vmatmul.bf16.gmra.mxu0 %v2958
      %v3241 = vpop.f32.mrf.mxu0
      %v3242 = vadd.f32 0.0, %v3241
      %v3243 = vpop.f32.mrf.mxu0
      %v3244 = vadd.f32 0.0, %v3243
      %3245 = vmatmul.bf16.gmra.mxu0 %v2961
      %v3246 = vpop.f32.mrf.mxu0
      %v3247 = vadd.f32 0.0, %v3246
      %v3248 = vpop.f32.mrf.mxu0
      %v3249 = vadd.f32 0.0, %v3248
      %3250 = vmatmul.bf16.gmra.mxu0 %v2964
      %v3251 = vpop.f32.mrf.mxu0
      %v3252 = vadd.f32 0.0, %v3251
      %v3253 = vpop.f32.mrf.mxu0
      %v3254 = vadd.f32 0.0, %v3253
      %3255 = vmatmul.bf16.gmra.mxu0 %v2967
      %v3256 = vpop.f32.mrf.mxu0
      %v3257 = vadd.f32 0.0, %v3256
      %v3258 = vpop.f32.mrf.mxu0
      %v3259 = vadd.f32 0.0, %v3258
      %3260 = vmatmul.bf16.gmra.mxu0 %v2970
      %v3261 = vpop.f32.mrf.mxu0
      %v3262 = vadd.f32 0.0, %v3261
      %v3263 = vpop.f32.mrf.mxu0
      %v3264 = vadd.f32 0.0, %v3263
      %3265 = vmatmul.bf16.gmra.mxu0 %v2973
      %v3266 = vpop.f32.mrf.mxu0
      %v3267 = vadd.f32 0.0, %v3266
      %v3268 = vpop.f32.mrf.mxu0
      %v3269 = vadd.f32 0.0, %v3268
      %3270 = vmatmul.bf16.gmra.mxu0 %v2976
      %v3271 = vpop.f32.mrf.mxu0
      %v3272 = vadd.f32 0.0, %v3271
      %v3273 = vpop.f32.mrf.mxu0
      %v3274 = vadd.f32 0.0, %v3273
      %3275 = vmatmul.bf16.gmra.mxu0 %v2979
      %v3276 = vpop.f32.mrf.mxu0
      %v3277 = vadd.f32 0.0, %v3276
      %v3278 = vpop.f32.mrf.mxu0
      %v3279 = vadd.f32 0.0, %v3278
      %3280 = vmatmul.bf16.gmra.mxu0 %v2982
      %v3281 = vpop.f32.mrf.mxu0
      %v3282 = vadd.f32 0.0, %v3281
      %v3283 = vpop.f32.mrf.mxu0
      %v3284 = vadd.f32 0.0, %v3283
      %3285 = vmatmul.bf16.gmra.mxu0 %v2985
      %v3286 = vpop.f32.mrf.mxu0
      %v3287 = vadd.f32 0.0, %v3286
      %v3288 = vpop.f32.mrf.mxu0
      %v3289 = vadd.f32 0.0, %v3288
      %3290 = vmatmul.bf16.gmra.mxu0 %v2988
      %v3291 = vpop.f32.mrf.mxu0
      %v3292 = vadd.f32 0.0, %v3291
      %v3293 = vpop.f32.mrf.mxu0
      %v3294 = vadd.f32 0.0, %v3293
      %3295 = vmatmul.bf16.gmra.mxu0 %v2991
      %v3296 = vpop.f32.mrf.mxu0
      %v3297 = vadd.f32 0.0, %v3296
      %v3298 = vpop.f32.mrf.mxu0
      %v3299 = vadd.f32 0.0, %v3298
      %3300 = vmatmul.bf16.gmra.mxu0 %v2994
      %v3301 = vpop.f32.mrf.mxu0
      %v3302 = vadd.f32 0.0, %v3301
      %v3303 = vpop.f32.mrf.mxu0
      %v3304 = vadd.f32 0.0, %v3303
      %3305 = vmatmul.bf16.gmra.mxu0 %v2997
      %v3306 = vpop.f32.mrf.mxu0
      %v3307 = vadd.f32 0.0, %v3306
      %v3308 = vpop.f32.mrf.mxu0
      %v3309 = vadd.f32 0.0, %v3308
      %3310 = vmatmul.bf16.gmra.mxu0 %v3000
      %v3311 = vpop.f32.mrf.mxu0
      %v3312 = vadd.f32 0.0, %v3311
      %v3313 = vpop.f32.mrf.mxu0
      %v3314 = vadd.f32 0.0, %v3313
      %3315 = vmatmul.bf16.gmra.mxu0 %v3003
      %v3316 = vpop.f32.mrf.mxu0
      %v3317 = vadd.f32 0.0, %v3316
      %v3318 = vpop.f32.mrf.mxu0
      %v3319 = vadd.f32 0.0, %v3318
      %3320 = vmatmul.bf16.gmra.mxu0 %v3006
      %v3321 = vpop.f32.mrf.mxu0
      %v3322 = vadd.f32 0.0, %v3321
      %v3323 = vpop.f32.mrf.mxu0
      %v3324 = vadd.f32 0.0, %v3323
      %3325 = vmatmul.bf16.gmra.mxu0 %v3009
      %v3326 = vpop.f32.mrf.mxu0
      %v3327 = vadd.f32 0.0, %v3326
      %v3328 = vpop.f32.mrf.mxu0
      %v3329 = vadd.f32 0.0, %v3328
      %3330 = vmatmul.bf16.gmra.mxu0 %v3012
      %v3331 = vpop.f32.mrf.mxu0
      %v3332 = vadd.f32 0.0, %v3331
      %v3333 = vpop.f32.mrf.mxu0
      %v3334 = vadd.f32 0.0, %v3333
      %3335 = vmatmul.bf16.gmra.mxu0 %v3015
      %v3336 = vpop.f32.mrf.mxu0
      %v3337 = vadd.f32 0.0, %v3336
      %v3338 = vpop.f32.mrf.mxu0
      %v3339 = vadd.f32 0.0, %v3338
      %3340 = vmatmul.bf16.gmra.mxu0 %v3018
      %v3341 = vpop.f32.mrf.mxu0
      %v3342 = vadd.f32 0.0, %v3341
      %v3343 = vpop.f32.mrf.mxu0
      %v3344 = vadd.f32 0.0, %v3343
      %3345 = vmatmul.bf16.gmra.mxu0 %v3021
      %v3346 = vpop.f32.mrf.mxu0
      %v3347 = vadd.f32 0.0, %v3346
      %v3348 = vpop.f32.mrf.mxu0
      %v3349 = vadd.f32 0.0, %v3348
      %3350 = vmatmul.bf16.gmra.mxu0 %v3024
      %v3351 = vpop.f32.mrf.mxu0
      %v3352 = vadd.f32 0.0, %v3351
      %v3353 = vpop.f32.mrf.mxu0
      %v3354 = vadd.f32 0.0, %v3353
      %3355 = vmatmul.bf16.gmra.mxu0 %v3027
      %v3356 = vpop.f32.mrf.mxu0
      %v3357 = vadd.f32 0.0, %v3356
      %v3358 = vpop.f32.mrf.mxu0
      %v3359 = vadd.f32 0.0, %v3358
      %3360 = vdwg.mxu0
      %v3361 = vadd.f32 %v2242, %v3042
      %v3362 = vadd.f32 %v2244, %v3044
      %v3363 = vadd.f32 %v2247, %v3047
      %v3364 = vadd.f32 %v2249, %v3049
      %v3365 = vadd.f32 %v2252, %v3052
      %v3366 = vadd.f32 %v2254, %v3054
      %v3367 = vadd.f32 %v2257, %v3057
      %v3368 = vadd.f32 %v2259, %v3059
      %v3369 = vadd.f32 %v2262, %v3062
      %v3370 = vadd.f32 %v2264, %v3064
      %v3371 = vadd.f32 %v2267, %v3067
      %v3372 = vadd.f32 %v2269, %v3069
      %v3373 = vadd.f32 %v2272, %v3072
      %v3374 = vadd.f32 %v2274, %v3074
      %v3375 = vadd.f32 %v2277, %v3077
      %v3376 = vadd.f32 %v2279, %v3079
      %v3377 = vadd.f32 %v2282, %v3082
      %v3378 = vadd.f32 %v2284, %v3084
      %v3379 = vadd.f32 %v2287, %v3087
      %v3380 = vadd.f32 %v2289, %v3089
      %v3381 = vadd.f32 %v2292, %v3092
      %v3382 = vadd.f32 %v2294, %v3094
      %v3383 = vadd.f32 %v2297, %v3097
      %v3384 = vadd.f32 %v2299, %v3099
      %v3385 = vadd.f32 %v2302, %v3102
      %v3386 = vadd.f32 %v2304, %v3104
      %v3387 = vadd.f32 %v2307, %v3107
      %v3388 = vadd.f32 %v2309, %v3109
      %v3389 = vadd.f32 %v2312, %v3112
      %v3390 = vadd.f32 %v2314, %v3114
      %v3391 = vadd.f32 %v2317, %v3117
      %v3392 = vadd.f32 %v2319, %v3119
      %v3393 = vadd.f32 %v2322, %v3122
      %v3394 = vadd.f32 %v2324, %v3124
      %v3395 = vadd.f32 %v2327, %v3127
      %v3396 = vadd.f32 %v2329, %v3129
      %v3397 = vadd.f32 %v2332, %v3132
      %v3398 = vadd.f32 %v2334, %v3134
      %v3399 = vadd.f32 %v2337, %v3137
      %v3400 = vadd.f32 %v2339, %v3139
      %v3401 = vadd.f32 %v2342, %v3142
      %v3402 = vadd.f32 %v2344, %v3144
      %v3403 = vadd.f32 %v2347, %v3147
      %v3404 = vadd.f32 %v2349, %v3149
      %v3405 = vadd.f32 %v2352, %v3152
      %v3406 = vadd.f32 %v2354, %v3154
      %v3407 = vadd.f32 %v2357, %v3157
      %v3408 = vadd.f32 %v2359, %v3159
      %v3409 = vadd.f32 %v2362, %v3162
      %v3410 = vadd.f32 %v2364, %v3164
      %v3411 = vadd.f32 %v2367, %v3167
      %v3412 = vadd.f32 %v2369, %v3169
      %v3413 = vadd.f32 %v2372, %v3172
      %v3414 = vadd.f32 %v2374, %v3174
      %v3415 = vadd.f32 %v2377, %v3177
      %v3416 = vadd.f32 %v2379, %v3179
      %v3417 = vadd.f32 %v2382, %v3182
      %v3418 = vadd.f32 %v2384, %v3184
      %v3419 = vadd.f32 %v2387, %v3187
      %v3420 = vadd.f32 %v2389, %v3189
      %v3421 = vadd.f32 %v2392, %v3192
      %v3422 = vadd.f32 %v2394, %v3194
      %v3423 = vadd.f32 %v2397, %v3197
      %v3424 = vadd.f32 %v2399, %v3199
      %v3425 = vadd.f32 %v2402, %v3202
      %v3426 = vadd.f32 %v2404, %v3204
      %v3427 = vadd.f32 %v2407, %v3207
      %v3428 = vadd.f32 %v2409, %v3209
      %v3429 = vadd.f32 %v2412, %v3212
      %v3430 = vadd.f32 %v2414, %v3214
      %v3431 = vadd.f32 %v2417, %v3217
      %v3432 = vadd.f32 %v2419, %v3219
      %v3433 = vadd.f32 %v2422, %v3222
      %v3434 = vadd.f32 %v2424, %v3224
      %v3435 = vadd.f32 %v2427, %v3227
      %v3436 = vadd.f32 %v2429, %v3229
      %v3437 = vadd.f32 %v2432, %v3232
      %v3438 = vadd.f32 %v2434, %v3234
      %v3439 = vadd.f32 %v2437, %v3237
      %v3440 = vadd.f32 %v2439, %v3239
      %v3441 = vadd.f32 %v2442, %v3242
      %v3442 = vadd.f32 %v2444, %v3244
      %v3443 = vadd.f32 %v2447, %v3247
      %v3444 = vadd.f32 %v2449, %v3249
      %v3445 = vadd.f32 %v2452, %v3252
      %v3446 = vadd.f32 %v2454, %v3254
      %v3447 = vadd.f32 %v2457, %v3257
      %v3448 = vadd.f32 %v2459, %v3259
      %v3449 = vadd.f32 %v2462, %v3262
      %v3450 = vadd.f32 %v2464, %v3264
      %v3451 = vadd.f32 %v2467, %v3267
      %v3452 = vadd.f32 %v2469, %v3269
      %v3453 = vadd.f32 %v2472, %v3272
      %v3454 = vadd.f32 %v2474, %v3274
      %v3455 = vadd.f32 %v2477, %v3277
      %v3456 = vadd.f32 %v2479, %v3279
      %v3457 = vadd.f32 %v2482, %v3282
      %v3458 = vadd.f32 %v2484, %v3284
      %v3459 = vadd.f32 %v2487, %v3287
      %v3460 = vadd.f32 %v2489, %v3289
      %v3461 = vadd.f32 %v2492, %v3292
      %v3462 = vadd.f32 %v2494, %v3294
      %v3463 = vadd.f32 %v2497, %v3297
      %v3464 = vadd.f32 %v2499, %v3299
      %v3465 = vadd.f32 %v2502, %v3302
      %v3466 = vadd.f32 %v2504, %v3304
      %v3467 = vadd.f32 %v2507, %v3307
      %v3468 = vadd.f32 %v2509, %v3309
      %v3469 = vadd.f32 %v2512, %v3312
      %v3470 = vadd.f32 %v2514, %v3314
      %v3471 = vadd.f32 %v2517, %v3317
      %v3472 = vadd.f32 %v2519, %v3319
      %v3473 = vadd.f32 %v2522, %v3322
      %v3474 = vadd.f32 %v2524, %v3324
      %v3475 = vadd.f32 %v2527, %v3327
      %v3476 = vadd.f32 %v2529, %v3329
      %v3477 = vadd.f32 %v2532, %v3332
      %v3478 = vadd.f32 %v2534, %v3334
      %v3479 = vadd.f32 %v2537, %v3337
      %v3480 = vadd.f32 %v2539, %v3339
      %v3481 = vadd.f32 %v2542, %v3342
      %v3482 = vadd.f32 %v2544, %v3344
      %v3483 = vadd.f32 %v2547, %v3347
      %v3484 = vadd.f32 %v2549, %v3349
      %v3485 = vadd.f32 %v2552, %v3352
      %v3486 = vadd.f32 %v2554, %v3354
      %v3487 = vadd.f32 %v2557, %v3357
      %v3488 = vadd.f32 %v2559, %v3359
      %v3489 = vld [vmem:[#allocation2 + $0x38] sm:$0x8]
      %v3490 = vld [vmem:[#allocation2 + $0x3c] sm:$0xf]
      %v3491 = vld [vmem:[#allocation2 + $0x40] sm:$0xf]
      %v3492 = vld [vmem:[#allocation2 + $0x44] sm:$0xf]
      %v3493 = vld [vmem:[#allocation2 + $0x48] sm:$0xf]
      %v3494 = vld [vmem:[#allocation2 + $0x4c] sm:$0xf]
      %v3495 = vld [vmem:[#allocation2 + $0x50] sm:$0xf]
      %v3496 = vld [vmem:[#allocation2 + $0x54] sm:$0xf]
      %v3497 = vld [vmem:[#allocation2 + $0x58] sm:$0xf]
      %v3498 = vld [vmem:[#allocation2 + $0x5c] sm:$0xf]
      %v3499 = vld [vmem:[#allocation2 + $0x60] sm:$0xf]
      %v3500 = vld [vmem:[#allocation2 + $0x64] sm:$0xf]
      %v3501 = vld [vmem:[#allocation2 + $0x68] sm:$0xf]
      %v3502 = vld [vmem:[#allocation2 + $0x6c] sm:$0xf]
      %v3503 = vld [vmem:[#allocation2 + $0x70] sm:$0xf]
      %v3504 = vld [vmem:[#allocation2 + $0x74] sm:$0xf]
      %v3505 = vld [vmem:[#allocation2 + $0x78] sm:$0xf]
      %v3506 = vld [vmem:[#allocation2 + $0x7c] sm:$0xf]
      %v3507 = vld [vmem:[#allocation2 + $0x80] sm:$0xf]
      %v3508 = vld [vmem:[#allocation2 + $0x84] sm:$0xf]
      %v3509 = vld [vmem:[#allocation2 + $0x88] sm:$0xf]
      %v3510 = vld [vmem:[#allocation2 + $0x8c] sm:$0xf]
      %v3511 = vld [vmem:[#allocation2 + $0x90] sm:$0xf]
      %v3512 = vld [vmem:[#allocation2 + $0x94] sm:$0xf]
      %v3513 = vld [vmem:[#allocation2 + $0x98] sm:$0xf]
      %v3514 = vld [vmem:[#allocation2 + $0x9c] sm:$0xf]
      %v3515 = vld [vmem:[#allocation2 + $0xa0] sm:$0xf]
      %v3516 = vld [vmem:[#allocation2 + $0xa4] sm:$0xf]
      %v3517 = vld [vmem:[#allocation2 + $0xa8] sm:$0xf]
      %v3518 = vld [vmem:[#allocation2 + $0xac] sm:$0xf]
      %v3519 = vld [vmem:[#allocation2 + $0xb0] sm:$0xf]
      %v3520 = vld [vmem:[#allocation2 + $0xb4] sm:$0xf]
      %v3521 = vld [vmem:[#allocation2 + $0xb8] sm:$0xf]
      %v3522 = vld [vmem:[#allocation2 + $0xbc] sm:$0xf]
      %v3523 = vld [vmem:[#allocation2 + $0xc0] sm:$0xf]
      %v3524 = vld [vmem:[#allocation2 + $0xc4] sm:$0xf]
      %v3525 = vld [vmem:[#allocation2 + $0xc8] sm:$0xf]
      %v3526 = vld [vmem:[#allocation2 + $0xcc] sm:$0xf]
      %v3527 = vld [vmem:[#allocation2 + $0xd0] sm:$0xf]
      %v3528 = vld [vmem:[#allocation2 + $0xd4] sm:$0xf]
      %v3529 = vld [vmem:[#allocation2 + $0xd8] sm:$0xf]
      %v3530 = vld [vmem:[#allocation2 + $0xdc] sm:$0xf]
      %v3531 = vld [vmem:[#allocation2 + $0xe0] sm:$0xf]
      %v3532 = vld [vmem:[#allocation2 + $0xe4] sm:$0xf]
      %v3533 = vld [vmem:[#allocation2 + $0xe8] sm:$0xf]
      %v3534 = vld [vmem:[#allocation2 + $0xec] sm:$0xf]
      %v3535 = vld [vmem:[#allocation2 + $0xf0] sm:$0xf]
      %v3536 = vld [vmem:[#allocation2 + $0xf4] sm:$0xf]
      %v3537 = vld [vmem:[#allocation2 + $0xf8] sm:$0xf]
      %v3538 = vld [vmem:[#allocation2 + $0xfc] sm:$0xf]
      %v3539 = vld [vmem:[#allocation2 + $0x100] sm:$0xf]
      %v3540 = vld [vmem:[#allocation2 + $0x104] sm:$0xf]
      %v3541 = vld [vmem:[#allocation2 + $0x108] sm:$0xf]
      %v3542 = vld [vmem:[#allocation2 + $0x10c] sm:$0xf]
      %v3543 = vld [vmem:[#allocation2 + $0x110] sm:$0xf]
      %v3544 = vld [vmem:[#allocation2 + $0x114] sm:$0xf]
      %v3545 = vld [vmem:[#allocation2 + $0x118] sm:$0xf]
      %v3546 = vld [vmem:[#allocation2 + $0x11c] sm:$0xf]
      %v3547 = vld [vmem:[#allocation2 + $0x120] sm:$0xf]
      %v3548 = vld [vmem:[#allocation2 + $0x124] sm:$0xf]
      %v3549 = vld [vmem:[#allocation2 + $0x128] sm:$0xf]
      %v3550 = vld [vmem:[#allocation2 + $0x12c] sm:$0xf]
      %v3551 = vld [vmem:[#allocation2 + $0x130] sm:$0xf]
      %v3552 = vld [vmem:[#allocation2 + $0x134] sm:$0xf]
      %v3553 = vld [vmem:[#allocation2 + $0x138] sm:$0xf]
      %v3554 = vld [vmem:[#allocation2 + $0x13c] sm:$0xf]
      %v3555 = vld [vmem:[#allocation2 + $0x140] sm:$0xf]
      %v3556 = vld [vmem:[#allocation2 + $0x144] sm:$0xf]
      %v3557 = vld [vmem:[#allocation2 + $0x148] sm:$0xf]
      %v3558 = vld [vmem:[#allocation2 + $0x14c] sm:$0xf]
      %v3559 = vld [vmem:[#allocation2 + $0x150] sm:$0xf]
      %v3560 = vld [vmem:[#allocation2 + $0x154] sm:$0xf]
      %v3561 = vld [vmem:[#allocation2 + $0x158] sm:$0xf]
      %v3562 = vld [vmem:[#allocation2 + $0x15c] sm:$0xf]
      %v3563 = vld [vmem:[#allocation2 + $0x160] sm:$0xf]
      %v3564 = vld [vmem:[#allocation2 + $0x164] sm:$0xf]
      %v3565 = vld [vmem:[#allocation2 + $0x168] sm:$0xf]
      %v3566 = vld [vmem:[#allocation2 + $0x16c] sm:$0xf]
      %v3567 = vld [vmem:[#allocation2 + $0x170] sm:$0xf]
      %v3568 = vld [vmem:[#allocation2 + $0x174] sm:$0xf]
      %v3569 = vld [vmem:[#allocation2 + $0x178] sm:$0xf]
      %v3570 = vld [vmem:[#allocation2 + $0x17c] sm:$0xf]
      %v3571 = vld [vmem:[#allocation2 + $0x180] sm:$0xf]
      %v3572 = vld [vmem:[#allocation2 + $0x184] sm:$0xf]
      %v3573 = vld [vmem:[#allocation2 + $0x188] sm:$0xf]
      %v3574 = vld [vmem:[#allocation2 + $0x18c] sm:$0xf]
      %v3575 = vld [vmem:[#allocation2 + $0x190] sm:$0xf]
      %v3576 = vld [vmem:[#allocation2 + $0x194] sm:$0xf]
      %v3577 = vld [vmem:[#allocation2 + $0x198] sm:$0xf]
      %v3578 = vld [vmem:[#allocation2 + $0x19c] sm:$0xf]
      %v3579 = vld [vmem:[#allocation2 + $0x1a0] sm:$0xf]
      %v3580 = vld [vmem:[#allocation2 + $0x1a4] sm:$0xf]
      %v3581 = vld [vmem:[#allocation2 + $0x1a8] sm:$0xf]
      %v3582 = vld [vmem:[#allocation2 + $0x1ac] sm:$0xf]
      %v3583 = vld [vmem:[#allocation2 + $0x1b0] sm:$0xf]
      %v3584 = vld [vmem:[#allocation2 + $0x1b4] sm:$0xf]
      %v3585 = vld [vmem:[#allocation2 + $0x1b8] sm:$0xf]
      %v3586 = vld [vmem:[#allocation2 + $0x1bc] sm:$0xf]
      %v3587 = vld [vmem:[#allocation2 + $0x1c0] sm:$0xf]
      %v3588 = vld [vmem:[#allocation2 + $0x1c4] sm:$0xf]
      %v3589 = vld [vmem:[#allocation2 + $0x1c8] sm:$0xf]
      %v3590 = vld [vmem:[#allocation2 + $0x1cc] sm:$0xf]
      %v3591 = vld [vmem:[#allocation2 + $0x1d0] sm:$0xf]
      %v3592 = vld [vmem:[#allocation2 + $0x1d4] sm:$0xf]
      %v3593 = vld [vmem:[#allocation2 + $0x1d8] sm:$0xf]
      %v3594 = vld [vmem:[#allocation2 + $0x1dc] sm:$0xf]
      %v3595 = vld [vmem:[#allocation2 + $0x1e0] sm:$0xf]
      %v3596 = vld [vmem:[#allocation2 + $0x1e4] sm:$0xf]
      %v3597 = vld [vmem:[#allocation2 + $0x1e8] sm:$0xf]
      %v3598 = vld [vmem:[#allocation2 + $0x1ec] sm:$0xf]
      %v3599 = vld [vmem:[#allocation2 + $0x1f0] sm:$0xf]
      %v3600 = vld [vmem:[#allocation2 + $0x1f4] sm:$0xf]
      %v3601 = vld [vmem:[#allocation2 + $0x1f8] sm:$0xf]
      %v3602 = vld [vmem:[#allocation2 + $0x1fc] sm:$0xf]
      %v3603 = vld [vmem:[#allocation2 + $0x200] sm:$0xf]
      %v3604 = vld [vmem:[#allocation2 + $0x204] sm:$0xf]
      %v3605 = vld [vmem:[#allocation2 + $0x208] sm:$0xf]
      %v3606 = vld [vmem:[#allocation2 + $0x20c] sm:$0xf]
      %v3607 = vld [vmem:[#allocation2 + $0x210] sm:$0xf]
      %v3608 = vld [vmem:[#allocation2 + $0x214] sm:$0xf]
      %v3609 = vld [vmem:[#allocation2 + $0x218] sm:$0xf]
      %v3610 = vld [vmem:[#allocation2 + $0x21c] sm:$0xf]
      %v3611 = vld [vmem:[#allocation2 + $0x220] sm:$0xf]
      %v3612 = vld [vmem:[#allocation2 + $0x224] sm:$0xf]
      %v3613 = vld [vmem:[#allocation2 + $0x228] sm:$0xf]
      %v3614 = vld [vmem:[#allocation2 + $0x22c] sm:$0xf]
      %v3615 = vld [vmem:[#allocation2 + $0x230] sm:$0xf]
      %v3616 = vld [vmem:[#allocation2 + $0x234] sm:$0xf]
      %v3617 = vld [vmem:[#allocation2 + $0x238] sm:$0xf]
      %s3618 = scalar_lea.vmem %s1, 12
      %v3619 = vld [vmem:[%s3618] sm:$0xf]
      %v3749 = vunpack.c.l.b16 %v3489
      %v3750 = vunpack.c.l.b16 %v3490
      %v3751 = vunpack.c.l.b16 %v3491
      %v3752 = vunpack.c.l.b16 %v3492
      %v3753 = vunpack.c.l.b16 %v3493
      %v3754 = vunpack.c.l.b16 %v3494
      %v3755 = vunpack.c.l.b16 %v3495
      %v3756 = vunpack.c.l.b16 %v3496
      %v3757 = vunpack.c.l.b16 %v3497
      %v3758 = vunpack.c.l.b16 %v3498
      %v3759 = vunpack.c.l.b16 %v3499
      %v3760 = vunpack.c.l.b16 %v3500
      %v3761 = vunpack.c.l.b16 %v3501
      %v3762 = vunpack.c.l.b16 %v3502
      %v3763 = vunpack.c.l.b16 %v3503
      %v3764 = vunpack.c.l.b16 %v3504
      %v3765 = vunpack.c.l.b16 %v3505
      %v3766 = vunpack.c.l.b16 %v3506
      %v3767 = vunpack.c.l.b16 %v3507
      %v3768 = vunpack.c.l.b16 %v3508
      %v3769 = vunpack.c.l.b16 %v3509
      %v3770 = vunpack.c.l.b16 %v3510
      %v3771 = vunpack.c.l.b16 %v3511
      %v3772 = vunpack.c.l.b16 %v3512
      %v3773 = vunpack.c.l.b16 %v3513
      %v3774 = vunpack.c.l.b16 %v3514
      %v3775 = vunpack.c.l.b16 %v3515
      %v3776 = vunpack.c.l.b16 %v3516
      %v3777 = vunpack.c.l.b16 %v3517
      %v3778 = vunpack.c.l.b16 %v3518
      %v3779 = vunpack.c.l.b16 %v3519
      %v3780 = vunpack.c.l.b16 %v3520
      %v3781 = vunpack.c.l.b16 %v3521
      %v3782 = vunpack.c.l.b16 %v3522
      %v3783 = vunpack.c.l.b16 %v3523
      %v3784 = vunpack.c.l.b16 %v3524
      %v3785 = vunpack.c.l.b16 %v3525
      %v3786 = vunpack.c.l.b16 %v3526
      %v3787 = vunpack.c.l.b16 %v3527
      %v3788 = vunpack.c.l.b16 %v3528
      %v3789 = vunpack.c.l.b16 %v3529
      %v3790 = vunpack.c.l.b16 %v3530
      %v3791 = vunpack.c.l.b16 %v3531
      %v3792 = vunpack.c.l.b16 %v3532
      %v3793 = vunpack.c.l.b16 %v3533
      %v3794 = vunpack.c.l.b16 %v3534
      %v3795 = vunpack.c.l.b16 %v3535
      %v3796 = vunpack.c.l.b16 %v3536
      %v3797 = vunpack.c.l.b16 %v3537
      %v3798 = vunpack.c.l.b16 %v3538
      %v3799 = vunpack.c.l.b16 %v3539
      %v3800 = vunpack.c.l.b16 %v3540
      %v3801 = vunpack.c.l.b16 %v3541
      %v3802 = vunpack.c.l.b16 %v3542
      %v3803 = vunpack.c.l.b16 %v3543
      %v3804 = vunpack.c.l.b16 %v3544
      %v3805 = vunpack.c.l.b16 %v3545
      %v3806 = vunpack.c.l.b16 %v3546
      %v3807 = vunpack.c.l.b16 %v3547
      %v3808 = vunpack.c.l.b16 %v3548
      %v3809 = vunpack.c.l.b16 %v3549
      %v3810 = vunpack.c.l.b16 %v3550
      %v3811 = vunpack.c.l.b16 %v3551
      %v3812 = vunpack.c.l.b16 %v3552
      %v3813 = vunpack.c.l.b16 %v3553
      %v3814 = vunpack.c.l.b16 %v3554
      %v3815 = vunpack.c.l.b16 %v3555
      %v3816 = vunpack.c.l.b16 %v3556
      %v3817 = vunpack.c.l.b16 %v3557
      %v3818 = vunpack.c.l.b16 %v3558
      %v3819 = vunpack.c.l.b16 %v3559
      %v3820 = vunpack.c.l.b16 %v3560
      %v3821 = vunpack.c.l.b16 %v3561
      %v3822 = vunpack.c.l.b16 %v3562
      %v3823 = vunpack.c.l.b16 %v3563
      %v3824 = vunpack.c.l.b16 %v3564
      %v3825 = vunpack.c.l.b16 %v3565
      %v3826 = vunpack.c.l.b16 %v3566
      %v3827 = vunpack.c.l.b16 %v3567
      %v3828 = vunpack.c.l.b16 %v3568
      %v3829 = vunpack.c.l.b16 %v3569
      %v3830 = vunpack.c.l.b16 %v3570
      %v3831 = vunpack.c.l.b16 %v3571
      %v3832 = vunpack.c.l.b16 %v3572
      %v3833 = vunpack.c.l.b16 %v3573
      %v3834 = vunpack.c.l.b16 %v3574
      %v3835 = vunpack.c.l.b16 %v3575
      %v3836 = vunpack.c.l.b16 %v3576
      %v3837 = vunpack.c.l.b16 %v3577
      %v3838 = vunpack.c.l.b16 %v3578
      %v3839 = vunpack.c.l.b16 %v3579
      %v3840 = vunpack.c.l.b16 %v3580
      %v3841 = vunpack.c.l.b16 %v3581
      %v3842 = vunpack.c.l.b16 %v3582
      %v3843 = vunpack.c.l.b16 %v3583
      %v3844 = vunpack.c.l.b16 %v3584
      %v3845 = vunpack.c.l.b16 %v3585
      %v3846 = vunpack.c.l.b16 %v3586
      %v3847 = vunpack.c.l.b16 %v3587
      %v3848 = vunpack.c.l.b16 %v3588
      %v3849 = vunpack.c.l.b16 %v3589
      %v3850 = vunpack.c.l.b16 %v3590
      %v3851 = vunpack.c.l.b16 %v3591
      %v3852 = vunpack.c.l.b16 %v3592
      %v3853 = vunpack.c.l.b16 %v3593
      %v3854 = vunpack.c.l.b16 %v3594
      %v3855 = vunpack.c.l.b16 %v3595
      %v3856 = vunpack.c.l.b16 %v3596
      %v3857 = vunpack.c.l.b16 %v3597
      %v3858 = vunpack.c.l.b16 %v3598
      %v3859 = vunpack.c.l.b16 %v3599
      %v3860 = vunpack.c.l.b16 %v3600
      %v3861 = vunpack.c.l.b16 %v3601
      %v3862 = vunpack.c.l.b16 %v3602
      %v3863 = vunpack.c.l.b16 %v3603
      %v3864 = vunpack.c.l.b16 %v3604
      %v3865 = vunpack.c.l.b16 %v3605
      %v3866 = vunpack.c.l.b16 %v3606
      %v3867 = vunpack.c.l.b16 %v3607
      %v3868 = vunpack.c.l.b16 %v3608
      %v3869 = vunpack.c.l.b16 %v3609
      %v3870 = vunpack.c.l.b16 %v3610
      %v3871 = vunpack.c.l.b16 %v3611
      %v3872 = vunpack.c.l.b16 %v3612
      %v3873 = vunpack.c.l.b16 %v3613
      %v3874 = vunpack.c.l.b16 %v3614
      %v3875 = vunpack.c.l.b16 %v3615
      %v3876 = vunpack.c.l.b16 %v3616
      %v3877 = vunpack.c.l.b16 %v3617
      %v3878 = vpack.c.b16 %v3750, %v3749
      %v3879 = vpack.c.b16 %v3752, %v3751
      %v3880 = vpack.c.b16 %v3754, %v3753
      %v3881 = vpack.c.b16 %v3756, %v3755
      %v3882 = vpack.c.b16 %v3758, %v3757
      %v3883 = vpack.c.b16 %v3760, %v3759
      %v3884 = vpack.c.b16 %v3762, %v3761
      %v3885 = vpack.c.b16 %v3764, %v3763
      %v3886 = vpack.c.b16 %v3766, %v3765
      %v3887 = vpack.c.b16 %v3768, %v3767
      %v3888 = vpack.c.b16 %v3770, %v3769
      %v3889 = vpack.c.b16 %v3772, %v3771
      %v3890 = vpack.c.b16 %v3774, %v3773
      %v3891 = vpack.c.b16 %v3776, %v3775
      %v3892 = vpack.c.b16 %v3778, %v3777
      %v3893 = vpack.c.b16 %v3780, %v3779
      %v3894 = vpack.c.b16 %v3782, %v3781
      %v3895 = vpack.c.b16 %v3784, %v3783
      %v3896 = vpack.c.b16 %v3786, %v3785
      %v3897 = vpack.c.b16 %v3788, %v3787
      %v3898 = vpack.c.b16 %v3790, %v3789
      %v3899 = vpack.c.b16 %v3792, %v3791
      %v3900 = vpack.c.b16 %v3794, %v3793
      %v3901 = vpack.c.b16 %v3796, %v3795
      %v3902 = vpack.c.b16 %v3798, %v3797
      %v3903 = vpack.c.b16 %v3800, %v3799
      %v3904 = vpack.c.b16 %v3802, %v3801
      %v3905 = vpack.c.b16 %v3804, %v3803
      %v3906 = vpack.c.b16 %v3806, %v3805
      %v3907 = vpack.c.b16 %v3808, %v3807
      %v3908 = vpack.c.b16 %v3810, %v3809
      %v3909 = vpack.c.b16 %v3812, %v3811
      %v3910 = vpack.c.b16 %v3814, %v3813
      %v3911 = vpack.c.b16 %v3816, %v3815
      %v3912 = vpack.c.b16 %v3818, %v3817
      %v3913 = vpack.c.b16 %v3820, %v3819
      %v3914 = vpack.c.b16 %v3822, %v3821
      %v3915 = vpack.c.b16 %v3824, %v3823
      %v3916 = vpack.c.b16 %v3826, %v3825
      %v3917 = vpack.c.b16 %v3828, %v3827
      %v3918 = vpack.c.b16 %v3830, %v3829
      %v3919 = vpack.c.b16 %v3832, %v3831
      %v3920 = vpack.c.b16 %v3834, %v3833
      %v3921 = vpack.c.b16 %v3836, %v3835
      %v3922 = vpack.c.b16 %v3838, %v3837
      %v3923 = vpack.c.b16 %v3840, %v3839
      %v3924 = vpack.c.b16 %v3842, %v3841
      %v3925 = vpack.c.b16 %v3844, %v3843
      %v3926 = vpack.c.b16 %v3846, %v3845
      %v3927 = vpack.c.b16 %v3848, %v3847
      %v3928 = vpack.c.b16 %v3850, %v3849
      %v3929 = vpack.c.b16 %v3852, %v3851
      %v3930 = vpack.c.b16 %v3854, %v3853
      %v3931 = vpack.c.b16 %v3856, %v3855
      %v3932 = vpack.c.b16 %v3858, %v3857
      %v3933 = vpack.c.b16 %v3860, %v3859
      %v3934 = vpack.c.b16 %v3862, %v3861
      %v3935 = vpack.c.b16 %v3864, %v3863
      %v3936 = vpack.c.b16 %v3866, %v3865
      %v3937 = vpack.c.b16 %v3868, %v3867
      %v3938 = vpack.c.b16 %v3870, %v3869
      %v3939 = vpack.c.b16 %v3872, %v3871
      %v3940 = vpack.c.b16 %v3874, %v3873
      %v3941 = vpack.c.b16 %v3876, %v3875
      %v3942 = vpack.c.b16 %v3877, %v3877
      %v3944 = vshrl.u32 %v3878, 16
      %v3946 = vrot.slane %v3944, 3
      %v3947 = vshll.u32 %v3878, 16
      %v3949 = vrot.slane %v3947, 4
      %v3950 = vor.u32 %v3946, %v3949
      %v3952 = vshrl.u32 %v3879, 16
      %v3954 = vrot.slane %v3952, 3
      %v3955 = vshll.u32 %v3879, 16
      %v3957 = vrot.slane %v3955, 4
      %v3958 = vor.u32 %v3954, %v3957
      %v3959 = vsel %vm2567, %v3950, %v3958
      %v3961 = vshrl.u32 %v3880, 16
      %v3963 = vrot.slane %v3961, 3
      %v3964 = vshll.u32 %v3880, 16
      %v3966 = vrot.slane %v3964, 4
      %v3967 = vor.u32 %v3963, %v3966
      %v3968 = vsel %vm2567, %v3958, %v3967
      %v3970 = vshrl.u32 %v3881, 16
      %v3972 = vrot.slane %v3970, 3
      %v3973 = vshll.u32 %v3881, 16
      %v3975 = vrot.slane %v3973, 4
      %v3976 = vor.u32 %v3972, %v3975
      %v3977 = vsel %vm2567, %v3967, %v3976
      %v3979 = vshrl.u32 %v3882, 16
      %v3981 = vrot.slane %v3979, 3
      %v3982 = vshll.u32 %v3882, 16
      %v3984 = vrot.slane %v3982, 4
      %v3985 = vor.u32 %v3981, %v3984
      %v3986 = vsel %vm2567, %v3976, %v3985
      %v3988 = vshrl.u32 %v3883, 16
      %v3990 = vrot.slane %v3988, 3
      %v3991 = vshll.u32 %v3883, 16
      %v3993 = vrot.slane %v3991, 4
      %v3994 = vor.u32 %v3990, %v3993
      %v3995 = vsel %vm2567, %v3985, %v3994
      %v3997 = vshrl.u32 %v3884, 16
      %v3999 = vrot.slane %v3997, 3
      %v4000 = vshll.u32 %v3884, 16
      %v4002 = vrot.slane %v4000, 4
      %v4003 = vor.u32 %v3999, %v4002
      %v4004 = vsel %vm2567, %v3994, %v4003
      %v4006 = vshrl.u32 %v3885, 16
      %v4008 = vrot.slane %v4006, 3
      %v4009 = vshll.u32 %v3885, 16
      %v4011 = vrot.slane %v4009, 4
      %v4012 = vor.u32 %v4008, %v4011
      %v4013 = vsel %vm2567, %v4003, %v4012
      %v4015 = vshrl.u32 %v3886, 16
      %v4017 = vrot.slane %v4015, 3
      %v4018 = vshll.u32 %v3886, 16
      %v4020 = vrot.slane %v4018, 4
      %v4021 = vor.u32 %v4017, %v4020
      %v4022 = vsel %vm2567, %v4012, %v4021
      %v4024 = vshrl.u32 %v3887, 16
      %v4026 = vrot.slane %v4024, 3
      %v4027 = vshll.u32 %v3887, 16
      %v4029 = vrot.slane %v4027, 4
      %v4030 = vor.u32 %v4026, %v4029
      %v4031 = vsel %vm2567, %v4021, %v4030
      %v4033 = vshrl.u32 %v3888, 16
      %v4035 = vrot.slane %v4033, 3
      %v4036 = vshll.u32 %v3888, 16
      %v4038 = vrot.slane %v4036, 4
      %v4039 = vor.u32 %v4035, %v4038
      %v4040 = vsel %vm2567, %v4030, %v4039
      %v4042 = vshrl.u32 %v3889, 16
      %v4044 = vrot.slane %v4042, 3
      %v4045 = vshll.u32 %v3889, 16
      %v4047 = vrot.slane %v4045, 4
      %v4048 = vor.u32 %v4044, %v4047
      %v4049 = vsel %vm2567, %v4039, %v4048
      %v4051 = vshrl.u32 %v3890, 16
      %v4053 = vrot.slane %v4051, 3
      %v4054 = vshll.u32 %v3890, 16
      %v4056 = vrot.slane %v4054, 4
      %v4057 = vor.u32 %v4053, %v4056
      %v4058 = vsel %vm2567, %v4048, %v4057
      %v4060 = vshrl.u32 %v3891, 16
      %v4062 = vrot.slane %v4060, 3
      %v4063 = vshll.u32 %v3891, 16
      %v4065 = vrot.slane %v4063, 4
      %v4066 = vor.u32 %v4062, %v4065
      %v4067 = vsel %vm2567, %v4057, %v4066
      %v4069 = vshrl.u32 %v3892, 16
      %v4071 = vrot.slane %v4069, 3
      %v4072 = vshll.u32 %v3892, 16
      %v4074 = vrot.slane %v4072, 4
      %v4075 = vor.u32 %v4071, %v4074
      %v4076 = vsel %vm2567, %v4066, %v4075
      %v4078 = vshrl.u32 %v3893, 16
      %v4080 = vrot.slane %v4078, 3
      %v4081 = vshll.u32 %v3893, 16
      %v4083 = vrot.slane %v4081, 4
      %v4084 = vor.u32 %v4080, %v4083
      %v4085 = vsel %vm2567, %v4075, %v4084
      %v4087 = vshrl.u32 %v3894, 16
      %v4089 = vrot.slane %v4087, 3
      %v4090 = vshll.u32 %v3894, 16
      %v4092 = vrot.slane %v4090, 4
      %v4093 = vor.u32 %v4089, %v4092
      %v4094 = vsel %vm2567, %v4084, %v4093
      %v4096 = vshrl.u32 %v3895, 16
      %v4098 = vrot.slane %v4096, 3
      %v4099 = vshll.u32 %v3895, 16
      %v4101 = vrot.slane %v4099, 4
      %v4102 = vor.u32 %v4098, %v4101
      %v4103 = vsel %vm2567, %v4093, %v4102
      %v4105 = vshrl.u32 %v3896, 16
      %v4107 = vrot.slane %v4105, 3
      %v4108 = vshll.u32 %v3896, 16
      %v4110 = vrot.slane %v4108, 4
      %v4111 = vor.u32 %v4107, %v4110
      %v4112 = vsel %vm2567, %v4102, %v4111
      %v4114 = vshrl.u32 %v3897, 16
      %v4116 = vrot.slane %v4114, 3
      %v4117 = vshll.u32 %v3897, 16
      %v4119 = vrot.slane %v4117, 4
      %v4120 = vor.u32 %v4116, %v4119
      %v4121 = vsel %vm2567, %v4111, %v4120
      %v4123 = vshrl.u32 %v3898, 16
      %v4125 = vrot.slane %v4123, 3
      %v4126 = vshll.u32 %v3898, 16
      %v4128 = vrot.slane %v4126, 4
      %v4129 = vor.u32 %v4125, %v4128
      %v4130 = vsel %vm2567, %v4120, %v4129
      %v4132 = vshrl.u32 %v3899, 16
      %v4134 = vrot.slane %v4132, 3
      %v4135 = vshll.u32 %v3899, 16
      %v4137 = vrot.slane %v4135, 4
      %v4138 = vor.u32 %v4134, %v4137
      %v4139 = vsel %vm2567, %v4129, %v4138
      %v4141 = vshrl.u32 %v3900, 16
      %v4143 = vrot.slane %v4141, 3
      %v4144 = vshll.u32 %v3900, 16
      %v4146 = vrot.slane %v4144, 4
      %v4147 = vor.u32 %v4143, %v4146
      %v4148 = vsel %vm2567, %v4138, %v4147
      %v4150 = vshrl.u32 %v3901, 16
      %v4152 = vrot.slane %v4150, 3
      %v4153 = vshll.u32 %v3901, 16
      %v4155 = vrot.slane %v4153, 4
      %v4156 = vor.u32 %v4152, %v4155
      %v4157 = vsel %vm2567, %v4147, %v4156
      %v4159 = vshrl.u32 %v3902, 16
      %v4161 = vrot.slane %v4159, 3
      %v4162 = vshll.u32 %v3902, 16
      %v4164 = vrot.slane %v4162, 4
      %v4165 = vor.u32 %v4161, %v4164
      %v4166 = vsel %vm2567, %v4156, %v4165
      %v4168 = vshrl.u32 %v3903, 16
      %v4170 = vrot.slane %v4168, 3
      %v4171 = vshll.u32 %v3903, 16
      %v4173 = vrot.slane %v4171, 4
      %v4174 = vor.u32 %v4170, %v4173
      %v4175 = vsel %vm2567, %v4165, %v4174
      %v4177 = vshrl.u32 %v3904, 16
      %v4179 = vrot.slane %v4177, 3
      %v4180 = vshll.u32 %v3904, 16
      %v4182 = vrot.slane %v4180, 4
      %v4183 = vor.u32 %v4179, %v4182
      %v4184 = vsel %vm2567, %v4174, %v4183
      %v4186 = vshrl.u32 %v3905, 16
      %v4188 = vrot.slane %v4186, 3
      %v4189 = vshll.u32 %v3905, 16
      %v4191 = vrot.slane %v4189, 4
      %v4192 = vor.u32 %v4188, %v4191
      %v4193 = vsel %vm2567, %v4183, %v4192
      %v4195 = vshrl.u32 %v3906, 16
      %v4197 = vrot.slane %v4195, 3
      %v4198 = vshll.u32 %v3906, 16
      %v4200 = vrot.slane %v4198, 4
      %v4201 = vor.u32 %v4197, %v4200
      %v4202 = vsel %vm2567, %v4192, %v4201
      %v4204 = vshrl.u32 %v3907, 16
      %v4206 = vrot.slane %v4204, 3
      %v4207 = vshll.u32 %v3907, 16
      %v4209 = vrot.slane %v4207, 4
      %v4210 = vor.u32 %v4206, %v4209
      %v4211 = vsel %vm2567, %v4201, %v4210
      %v4213 = vshrl.u32 %v3908, 16
      %v4215 = vrot.slane %v4213, 3
      %v4216 = vshll.u32 %v3908, 16
      %v4218 = vrot.slane %v4216, 4
      %v4219 = vor.u32 %v4215, %v4218
      %v4220 = vsel %vm2567, %v4210, %v4219
      %v4222 = vshrl.u32 %v3909, 16
      %v4224 = vrot.slane %v4222, 3
      %v4225 = vshll.u32 %v3909, 16
      %v4227 = vrot.slane %v4225, 4
      %v4228 = vor.u32 %v4224, %v4227
      %v4229 = vsel %vm2567, %v4219, %v4228
      %v4231 = vshrl.u32 %v3910, 16
      %v4233 = vrot.slane %v4231, 3
      %v4234 = vshll.u32 %v3910, 16
      %v4236 = vrot.slane %v4234, 4
      %v4237 = vor.u32 %v4233, %v4236
      %v4238 = vsel %vm2567, %v4228, %v4237
      %v4240 = vshrl.u32 %v3911, 16
      %v4242 = vrot.slane %v4240, 3
      %v4243 = vshll.u32 %v3911, 16
      %v4245 = vrot.slane %v4243, 4
      %v4246 = vor.u32 %v4242, %v4245
      %v4247 = vsel %vm2567, %v4237, %v4246
      %v4249 = vshrl.u32 %v3912, 16
      %v4251 = vrot.slane %v4249, 3
      %v4252 = vshll.u32 %v3912, 16
      %v4254 = vrot.slane %v4252, 4
      %v4255 = vor.u32 %v4251, %v4254
      %v4256 = vsel %vm2567, %v4246, %v4255
      %v4258 = vshrl.u32 %v3913, 16
      %v4260 = vrot.slane %v4258, 3
      %v4261 = vshll.u32 %v3913, 16
      %v4263 = vrot.slane %v4261, 4
      %v4264 = vor.u32 %v4260, %v4263
      %v4265 = vsel %vm2567, %v4255, %v4264
      %v4267 = vshrl.u32 %v3914, 16
      %v4269 = vrot.slane %v4267, 3
      %v4270 = vshll.u32 %v3914, 16
      %v4272 = vrot.slane %v4270, 4
      %v4273 = vor.u32 %v4269, %v4272
      %v4274 = vsel %vm2567, %v4264, %v4273
      %v4276 = vshrl.u32 %v3915, 16
      %v4278 = vrot.slane %v4276, 3
      %v4279 = vshll.u32 %v3915, 16
      %v4281 = vrot.slane %v4279, 4
      %v4282 = vor.u32 %v4278, %v4281
      %v4283 = vsel %vm2567, %v4273, %v4282
      %v4285 = vshrl.u32 %v3916, 16
      %v4287 = vrot.slane %v4285, 3
      %v4288 = vshll.u32 %v3916, 16
      %v4290 = vrot.slane %v4288, 4
      %v4291 = vor.u32 %v4287, %v4290
      %v4292 = vsel %vm2567, %v4282, %v4291
      %v4294 = vshrl.u32 %v3917, 16
      %v4296 = vrot.slane %v4294, 3
      %v4297 = vshll.u32 %v3917, 16
      %v4299 = vrot.slane %v4297, 4
      %v4300 = vor.u32 %v4296, %v4299
      %v4301 = vsel %vm2567, %v4291, %v4300
      %v4303 = vshrl.u32 %v3918, 16
      %v4305 = vrot.slane %v4303, 3
      %v4306 = vshll.u32 %v3918, 16
      %v4308 = vrot.slane %v4306, 4
      %v4309 = vor.u32 %v4305, %v4308
      %v4310 = vsel %vm2567, %v4300, %v4309
      %v4312 = vshrl.u32 %v3919, 16
      %v4314 = vrot.slane %v4312, 3
      %v4315 = vshll.u32 %v3919, 16
      %v4317 = vrot.slane %v4315, 4
      %v4318 = vor.u32 %v4314, %v4317
      %v4319 = vsel %vm2567, %v4309, %v4318
      %v4321 = vshrl.u32 %v3920, 16
      %v4323 = vrot.slane %v4321, 3
      %v4324 = vshll.u32 %v3920, 16
      %v4326 = vrot.slane %v4324, 4
      %v4327 = vor.u32 %v4323, %v4326
      %v4328 = vsel %vm2567, %v4318, %v4327
      %v4330 = vshrl.u32 %v3921, 16
      %v4332 = vrot.slane %v4330, 3
      %v4333 = vshll.u32 %v3921, 16
      %v4335 = vrot.slane %v4333, 4
      %v4336 = vor.u32 %v4332, %v4335
      %v4337 = vsel %vm2567, %v4327, %v4336
      %v4339 = vshrl.u32 %v3922, 16
      %v4341 = vrot.slane %v4339, 3
      %v4342 = vshll.u32 %v3922, 16
      %v4344 = vrot.slane %v4342, 4
      %v4345 = vor.u32 %v4341, %v4344
      %v4346 = vsel %vm2567, %v4336, %v4345
      %v4348 = vshrl.u32 %v3923, 16
      %v4350 = vrot.slane %v4348, 3
      %v4351 = vshll.u32 %v3923, 16
      %v4353 = vrot.slane %v4351, 4
      %v4354 = vor.u32 %v4350, %v4353
      %v4355 = vsel %vm2567, %v4345, %v4354
      %v4357 = vshrl.u32 %v3924, 16
      %v4359 = vrot.slane %v4357, 3
      %v4360 = vshll.u32 %v3924, 16
      %v4362 = vrot.slane %v4360, 4
      %v4363 = vor.u32 %v4359, %v4362
      %v4364 = vsel %vm2567, %v4354, %v4363
      %v4366 = vshrl.u32 %v3925, 16
      %v4368 = vrot.slane %v4366, 3
      %v4369 = vshll.u32 %v3925, 16
      %v4371 = vrot.slane %v4369, 4
      %v4372 = vor.u32 %v4368, %v4371
      %v4373 = vsel %vm2567, %v4363, %v4372
      %v4375 = vshrl.u32 %v3926, 16
      %v4377 = vrot.slane %v4375, 3
      %v4378 = vshll.u32 %v3926, 16
      %v4380 = vrot.slane %v4378, 4
      %v4381 = vor.u32 %v4377, %v4380
      %v4382 = vsel %vm2567, %v4372, %v4381
      %v4384 = vshrl.u32 %v3927, 16
      %v4386 = vrot.slane %v4384, 3
      %v4387 = vshll.u32 %v3927, 16
      %v4389 = vrot.slane %v4387, 4
      %v4390 = vor.u32 %v4386, %v4389
      %v4391 = vsel %vm2567, %v4381, %v4390
      %v4393 = vshrl.u32 %v3928, 16
      %v4395 = vrot.slane %v4393, 3
      %v4396 = vshll.u32 %v3928, 16
      %v4398 = vrot.slane %v4396, 4
      %v4399 = vor.u32 %v4395, %v4398
      %v4400 = vsel %vm2567, %v4390, %v4399
      %v4402 = vshrl.u32 %v3929, 16
      %v4404 = vrot.slane %v4402, 3
      %v4405 = vshll.u32 %v3929, 16
      %v4407 = vrot.slane %v4405, 4
      %v4408 = vor.u32 %v4404, %v4407
      %v4409 = vsel %vm2567, %v4399, %v4408
      %v4411 = vshrl.u32 %v3930, 16
      %v4413 = vrot.slane %v4411, 3
      %v4414 = vshll.u32 %v3930, 16
      %v4416 = vrot.slane %v4414, 4
      %v4417 = vor.u32 %v4413, %v4416
      %v4418 = vsel %vm2567, %v4408, %v4417
      %v4420 = vshrl.u32 %v3931, 16
      %v4422 = vrot.slane %v4420, 3
      %v4423 = vshll.u32 %v3931, 16
      %v4425 = vrot.slane %v4423, 4
      %v4426 = vor.u32 %v4422, %v4425
      %v4427 = vsel %vm2567, %v4417, %v4426
      %v4429 = vshrl.u32 %v3932, 16
      %v4431 = vrot.slane %v4429, 3
      %v4432 = vshll.u32 %v3932, 16
      %v4434 = vrot.slane %v4432, 4
      %v4435 = vor.u32 %v4431, %v4434
      %v4436 = vsel %vm2567, %v4426, %v4435
      %v4438 = vshrl.u32 %v3933, 16
      %v4440 = vrot.slane %v4438, 3
      %v4441 = vshll.u32 %v3933, 16
      %v4443 = vrot.slane %v4441, 4
      %v4444 = vor.u32 %v4440, %v4443
      %v4445 = vsel %vm2567, %v4435, %v4444
      %v4447 = vshrl.u32 %v3934, 16
      %v4449 = vrot.slane %v4447, 3
      %v4450 = vshll.u32 %v3934, 16
      %v4452 = vrot.slane %v4450, 4
      %v4453 = vor.u32 %v4449, %v4452
      %v4454 = vsel %vm2567, %v4444, %v4453
      %v4456 = vshrl.u32 %v3935, 16
      %v4458 = vrot.slane %v4456, 3
      %v4459 = vshll.u32 %v3935, 16
      %v4461 = vrot.slane %v4459, 4
      %v4462 = vor.u32 %v4458, %v4461
      %v4463 = vsel %vm2567, %v4453, %v4462
      %v4465 = vshrl.u32 %v3936, 16
      %v4467 = vrot.slane %v4465, 3
      %v4468 = vshll.u32 %v3936, 16
      %v4470 = vrot.slane %v4468, 4
      %v4471 = vor.u32 %v4467, %v4470
      %v4472 = vsel %vm2567, %v4462, %v4471
      %v4474 = vshrl.u32 %v3937, 16
      %v4476 = vrot.slane %v4474, 3
      %v4477 = vshll.u32 %v3937, 16
      %v4479 = vrot.slane %v4477, 4
      %v4480 = vor.u32 %v4476, %v4479
      %v4481 = vsel %vm2567, %v4471, %v4480
      %v4483 = vshrl.u32 %v3938, 16
      %v4485 = vrot.slane %v4483, 3
      %v4486 = vshll.u32 %v3938, 16
      %v4488 = vrot.slane %v4486, 4
      %v4489 = vor.u32 %v4485, %v4488
      %v4490 = vsel %vm2567, %v4480, %v4489
      %v4492 = vshrl.u32 %v3939, 16
      %v4494 = vrot.slane %v4492, 3
      %v4495 = vshll.u32 %v3939, 16
      %v4497 = vrot.slane %v4495, 4
      %v4498 = vor.u32 %v4494, %v4497
      %v4499 = vsel %vm2567, %v4489, %v4498
      %v4501 = vshrl.u32 %v3940, 16
      %v4503 = vrot.slane %v4501, 3
      %v4504 = vshll.u32 %v3940, 16
      %v4506 = vrot.slane %v4504, 4
      %v4507 = vor.u32 %v4503, %v4506
      %v4508 = vsel %vm2567, %v4498, %v4507
      %v4510 = vshrl.u32 %v3941, 16
      %v4512 = vrot.slane %v4510, 3
      %v4513 = vshll.u32 %v3941, 16
      %v4515 = vrot.slane %v4513, 4
      %v4516 = vor.u32 %v4512, %v4515
      %v4517 = vsel %vm2567, %v4507, %v4516
      %v4519 = vshrl.u32 %v3942, 16
      %v4521 = vrot.slane %v4519, 3
      %v4522 = vshll.u32 %v3942, 16
      %v4524 = vrot.slane %v4522, 4
      %v4525 = vor.u32 %v4521, %v4524
      %v4526 = vsel %vm2567, %v4516, %v4525
      %v4528 = vsel %vm923, %v3959, 0
      %v4531 = vsel %vm923, %v3968, 0
      %v4534 = vsel %vm923, %v3977, 0
      %v4537 = vsel %vm923, %v3986, 0
      %v4540 = vsel %vm923, %v3995, 0
      %v4543 = vsel %vm923, %v4004, 0
      %v4546 = vsel %vm923, %v4013, 0
      %v4549 = vsel %vm923, %v4022, 0
      %v4552 = vsel %vm923, %v4031, 0
      %v4555 = vsel %vm923, %v4040, 0
      %v4558 = vsel %vm923, %v4049, 0
      %v4561 = vsel %vm923, %v4058, 0
      %v4564 = vsel %vm923, %v4067, 0
      %v4567 = vsel %vm923, %v4076, 0
      %v4570 = vsel %vm923, %v4085, 0
      %v4573 = vsel %vm923, %v4094, 0
      %v4576 = vsel %vm923, %v4103, 0
      %v4579 = vsel %vm923, %v4112, 0
      %v4582 = vsel %vm923, %v4121, 0
      %v4585 = vsel %vm923, %v4130, 0
      %v4588 = vsel %vm923, %v4139, 0
      %v4591 = vsel %vm923, %v4148, 0
      %v4594 = vsel %vm923, %v4157, 0
      %v4597 = vsel %vm923, %v4166, 0
      %v4600 = vsel %vm923, %v4175, 0
      %v4603 = vsel %vm923, %v4184, 0
      %v4606 = vsel %vm923, %v4193, 0
      %v4609 = vsel %vm923, %v4202, 0
      %v4612 = vsel %vm923, %v4211, 0
      %v4615 = vsel %vm923, %v4220, 0
      %v4618 = vsel %vm923, %v4229, 0
      %v4621 = vsel %vm923, %v4238, 0
      %v4624 = vsel %vm923, %v4247, 0
      %v4627 = vsel %vm923, %v4256, 0
      %v4630 = vsel %vm923, %v4265, 0
      %v4633 = vsel %vm923, %v4274, 0
      %v4636 = vsel %vm923, %v4283, 0
      %v4639 = vsel %vm923, %v4292, 0
      %v4642 = vsel %vm923, %v4301, 0
      %v4645 = vsel %vm923, %v4310, 0
      %v4648 = vsel %vm923, %v4319, 0
      %v4651 = vsel %vm923, %v4328, 0
      %v4654 = vsel %vm923, %v4337, 0
      %v4657 = vsel %vm923, %v4346, 0
      %v4660 = vsel %vm923, %v4355, 0
      %v4663 = vsel %vm923, %v4364, 0
      %v4666 = vsel %vm923, %v4373, 0
      %v4669 = vsel %vm923, %v4382, 0
      %v4672 = vsel %vm923, %v4391, 0
      %v4675 = vsel %vm923, %v4400, 0
      %v4678 = vsel %vm923, %v4409, 0
      %v4681 = vsel %vm923, %v4418, 0
      %v4684 = vsel %vm923, %v4427, 0
      %v4687 = vsel %vm923, %v4436, 0
      %v4690 = vsel %vm923, %v4445, 0
      %v4693 = vsel %vm923, %v4454, 0
      %v4696 = vsel %vm923, %v4463, 0
      %v4699 = vsel %vm923, %v4472, 0
      %v4702 = vsel %vm923, %v4481, 0
      %v4705 = vsel %vm923, %v4490, 0
      %v4708 = vsel %vm923, %v4499, 0
      %v4711 = vsel %vm923, %v4508, 0
      %v4714 = vsel %vm923, %v4517, 0
      %v4717 = vsel %vm923, %v4526, 0
      %v4720 = vsel %vm1116, %v3619, 0
      %4722 = vmatpush.bf16.msra.mxu0 0
      %4723 = vmatpush.bf16.msra.mxu0 0
      %4724 = vmatpush.bf16.msra.mxu0 0
      %4725 = vmatpush.bf16.msra.mxu0 0
      %4726 = vmatpush.bf16.msra.mxu0 0
      %4727 = vmatpush.bf16.msra.mxu0 0
      %4728 = vmatpush.bf16.msra.mxu0 0
      %4729 = vmatpush.bf16.msra.mxu0 %v4720
      %4730 = vmatmul.bf16.gmra.mxu0 %v4528
      %v4731 = vpop.f32.mrf.mxu0
      %v4732 = vadd.f32 0.0, %v4731
      %v4733 = vpop.f32.mrf.mxu0
      %v4734 = vadd.f32 0.0, %v4733
      %4735 = vmatmul.bf16.gmra.mxu0 %v4531
      %v4736 = vpop.f32.mrf.mxu0
      %v4737 = vadd.f32 0.0, %v4736
      %v4738 = vpop.f32.mrf.mxu0
      %v4739 = vadd.f32 0.0, %v4738
      %4740 = vmatmul.bf16.gmra.mxu0 %v4534
      %v4741 = vpop.f32.mrf.mxu0
      %v4742 = vadd.f32 0.0, %v4741
      %v4743 = vpop.f32.mrf.mxu0
      %v4744 = vadd.f32 0.0, %v4743
      %4745 = vmatmul.bf16.gmra.mxu0 %v4537
      %v4746 = vpop.f32.mrf.mxu0
      %v4747 = vadd.f32 0.0, %v4746
      %v4748 = vpop.f32.mrf.mxu0
      %v4749 = vadd.f32 0.0, %v4748
      %4750 = vmatmul.bf16.gmra.mxu0 %v4540
      %v4751 = vpop.f32.mrf.mxu0
      %v4752 = vadd.f32 0.0, %v4751
      %v4753 = vpop.f32.mrf.mxu0
      %v4754 = vadd.f32 0.0, %v4753
      %4755 = vmatmul.bf16.gmra.mxu0 %v4543
      %v4756 = vpop.f32.mrf.mxu0
      %v4757 = vadd.f32 0.0, %v4756
      %v4758 = vpop.f32.mrf.mxu0
      %v4759 = vadd.f32 0.0, %v4758
      %4760 = vmatmul.bf16.gmra.mxu0 %v4546
      %v4761 = vpop.f32.mrf.mxu0
      %v4762 = vadd.f32 0.0, %v4761
      %v4763 = vpop.f32.mrf.mxu0
      %v4764 = vadd.f32 0.0, %v4763
      %4765 = vmatmul.bf16.gmra.mxu0 %v4549
      %v4766 = vpop.f32.mrf.mxu0
      %v4767 = vadd.f32 0.0, %v4766
      %v4768 = vpop.f32.mrf.mxu0
      %v4769 = vadd.f32 0.0, %v4768
      %4770 = vmatmul.bf16.gmra.mxu0 %v4552
      %v4771 = vpop.f32.mrf.mxu0
      %v4772 = vadd.f32 0.0, %v4771
      %v4773 = vpop.f32.mrf.mxu0
      %v4774 = vadd.f32 0.0, %v4773
      %4775 = vmatmul.bf16.gmra.mxu0 %v4555
      %v4776 = vpop.f32.mrf.mxu0
      %v4777 = vadd.f32 0.0, %v4776
      %v4778 = vpop.f32.mrf.mxu0
      %v4779 = vadd.f32 0.0, %v4778
      %4780 = vmatmul.bf16.gmra.mxu0 %v4558
      %v4781 = vpop.f32.mrf.mxu0
      %v4782 = vadd.f32 0.0, %v4781
      %v4783 = vpop.f32.mrf.mxu0
      %v4784 = vadd.f32 0.0, %v4783
      %4785 = vmatmul.bf16.gmra.mxu0 %v4561
      %v4786 = vpop.f32.mrf.mxu0
      %v4787 = vadd.f32 0.0, %v4786
      %v4788 = vpop.f32.mrf.mxu0
      %v4789 = vadd.f32 0.0, %v4788
      %4790 = vmatmul.bf16.gmra.mxu0 %v4564
      %v4791 = vpop.f32.mrf.mxu0
      %v4792 = vadd.f32 0.0, %v4791
      %v4793 = vpop.f32.mrf.mxu0
      %v4794 = vadd.f32 0.0, %v4793
      %4795 = vmatmul.bf16.gmra.mxu0 %v4567
      %v4796 = vpop.f32.mrf.mxu0
      %v4797 = vadd.f32 0.0, %v4796
      %v4798 = vpop.f32.mrf.mxu0
      %v4799 = vadd.f32 0.0, %v4798
      %4800 = vmatmul.bf16.gmra.mxu0 %v4570
      %v4801 = vpop.f32.mrf.mxu0
      %v4802 = vadd.f32 0.0, %v4801
      %v4803 = vpop.f32.mrf.mxu0
      %v4804 = vadd.f32 0.0, %v4803
      %4805 = vmatmul.bf16.gmra.mxu0 %v4573
      %v4806 = vpop.f32.mrf.mxu0
      %v4807 = vadd.f32 0.0, %v4806
      %v4808 = vpop.f32.mrf.mxu0
      %v4809 = vadd.f32 0.0, %v4808
      %4810 = vmatmul.bf16.gmra.mxu0 %v4576
      %v4811 = vpop.f32.mrf.mxu0
      %v4812 = vadd.f32 0.0, %v4811
      %v4813 = vpop.f32.mrf.mxu0
      %v4814 = vadd.f32 0.0, %v4813
      %4815 = vmatmul.bf16.gmra.mxu0 %v4579
      %v4816 = vpop.f32.mrf.mxu0
      %v4817 = vadd.f32 0.0, %v4816
      %v4818 = vpop.f32.mrf.mxu0
      %v4819 = vadd.f32 0.0, %v4818
      %4820 = vmatmul.bf16.gmra.mxu0 %v4582
      %v4821 = vpop.f32.mrf.mxu0
      %v4822 = vadd.f32 0.0, %v4821
      %v4823 = vpop.f32.mrf.mxu0
      %v4824 = vadd.f32 0.0, %v4823
      %4825 = vmatmul.bf16.gmra.mxu0 %v4585
      %v4826 = vpop.f32.mrf.mxu0
      %v4827 = vadd.f32 0.0, %v4826
      %v4828 = vpop.f32.mrf.mxu0
      %v4829 = vadd.f32 0.0, %v4828
      %4830 = vmatmul.bf16.gmra.mxu0 %v4588
      %v4831 = vpop.f32.mrf.mxu0
      %v4832 = vadd.f32 0.0, %v4831
      %v4833 = vpop.f32.mrf.mxu0
      %v4834 = vadd.f32 0.0, %v4833
      %4835 = vmatmul.bf16.gmra.mxu0 %v4591
      %v4836 = vpop.f32.mrf.mxu0
      %v4837 = vadd.f32 0.0, %v4836
      %v4838 = vpop.f32.mrf.mxu0
      %v4839 = vadd.f32 0.0, %v4838
      %4840 = vmatmul.bf16.gmra.mxu0 %v4594
      %v4841 = vpop.f32.mrf.mxu0
      %v4842 = vadd.f32 0.0, %v4841
      %v4843 = vpop.f32.mrf.mxu0
      %v4844 = vadd.f32 0.0, %v4843
      %4845 = vmatmul.bf16.gmra.mxu0 %v4597
      %v4846 = vpop.f32.mrf.mxu0
      %v4847 = vadd.f32 0.0, %v4846
      %v4848 = vpop.f32.mrf.mxu0
      %v4849 = vadd.f32 0.0, %v4848
      %4850 = vmatmul.bf16.gmra.mxu0 %v4600
      %v4851 = vpop.f32.mrf.mxu0
      %v4852 = vadd.f32 0.0, %v4851
      %v4853 = vpop.f32.mrf.mxu0
      %v4854 = vadd.f32 0.0, %v4853
      %4855 = vmatmul.bf16.gmra.mxu0 %v4603
      %v4856 = vpop.f32.mrf.mxu0
      %v4857 = vadd.f32 0.0, %v4856
      %v4858 = vpop.f32.mrf.mxu0
      %v4859 = vadd.f32 0.0, %v4858
      %4860 = vmatmul.bf16.gmra.mxu0 %v4606
      %v4861 = vpop.f32.mrf.mxu0
      %v4862 = vadd.f32 0.0, %v4861
      %v4863 = vpop.f32.mrf.mxu0
      %v4864 = vadd.f32 0.0, %v4863
      %4865 = vmatmul.bf16.gmra.mxu0 %v4609
      %v4866 = vpop.f32.mrf.mxu0
      %v4867 = vadd.f32 0.0, %v4866
      %v4868 = vpop.f32.mrf.mxu0
      %v4869 = vadd.f32 0.0, %v4868
      %4870 = vmatmul.bf16.gmra.mxu0 %v4612
      %v4871 = vpop.f32.mrf.mxu0
      %v4872 = vadd.f32 0.0, %v4871
      %v4873 = vpop.f32.mrf.mxu0
      %v4874 = vadd.f32 0.0, %v4873
      %4875 = vmatmul.bf16.gmra.mxu0 %v4615
      %v4876 = vpop.f32.mrf.mxu0
      %v4877 = vadd.f32 0.0, %v4876
      %v4878 = vpop.f32.mrf.mxu0
      %v4879 = vadd.f32 0.0, %v4878
      %4880 = vmatmul.bf16.gmra.mxu0 %v4618
      %v4881 = vpop.f32.mrf.mxu0
      %v4882 = vadd.f32 0.0, %v4881
      %v4883 = vpop.f32.mrf.mxu0
      %v4884 = vadd.f32 0.0, %v4883
      %4885 = vmatmul.bf16.gmra.mxu0 %v4621
      %v4886 = vpop.f32.mrf.mxu0
      %v4887 = vadd.f32 0.0, %v4886
      %v4888 = vpop.f32.mrf.mxu0
      %v4889 = vadd.f32 0.0, %v4888
      %4890 = vmatmul.bf16.gmra.mxu0 %v4624
      %v4891 = vpop.f32.mrf.mxu0
      %v4892 = vadd.f32 0.0, %v4891
      %v4893 = vpop.f32.mrf.mxu0
      %v4894 = vadd.f32 0.0, %v4893
      %4895 = vmatmul.bf16.gmra.mxu0 %v4627
      %v4896 = vpop.f32.mrf.mxu0
      %v4897 = vadd.f32 0.0, %v4896
      %v4898 = vpop.f32.mrf.mxu0
      %v4899 = vadd.f32 0.0, %v4898
      %4900 = vmatmul.bf16.gmra.mxu0 %v4630
      %v4901 = vpop.f32.mrf.mxu0
      %v4902 = vadd.f32 0.0, %v4901
      %v4903 = vpop.f32.mrf.mxu0
      %v4904 = vadd.f32 0.0, %v4903
      %4905 = vmatmul.bf16.gmra.mxu0 %v4633
      %v4906 = vpop.f32.mrf.mxu0
      %v4907 = vadd.f32 0.0, %v4906
      %v4908 = vpop.f32.mrf.mxu0
      %v4909 = vadd.f32 0.0, %v4908
      %4910 = vmatmul.bf16.gmra.mxu0 %v4636
      %v4911 = vpop.f32.mrf.mxu0
      %v4912 = vadd.f32 0.0, %v4911
      %v4913 = vpop.f32.mrf.mxu0
      %v4914 = vadd.f32 0.0, %v4913
      %4915 = vmatmul.bf16.gmra.mxu0 %v4639
      %v4916 = vpop.f32.mrf.mxu0
      %v4917 = vadd.f32 0.0, %v4916
      %v4918 = vpop.f32.mrf.mxu0
      %v4919 = vadd.f32 0.0, %v4918
      %4920 = vmatmul.bf16.gmra.mxu0 %v4642
      %v4921 = vpop.f32.mrf.mxu0
      %v4922 = vadd.f32 0.0, %v4921
      %v4923 = vpop.f32.mrf.mxu0
      %v4924 = vadd.f32 0.0, %v4923
      %4925 = vmatmul.bf16.gmra.mxu0 %v4645
      %v4926 = vpop.f32.mrf.mxu0
      %v4927 = vadd.f32 0.0, %v4926
      %v4928 = vpop.f32.mrf.mxu0
      %v4929 = vadd.f32 0.0, %v4928
      %4930 = vmatmul.bf16.gmra.mxu0 %v4648
      %v4931 = vpop.f32.mrf.mxu0
      %v4932 = vadd.f32 0.0, %v4931
      %v4933 = vpop.f32.mrf.mxu0
      %v4934 = vadd.f32 0.0, %v4933
      %4935 = vmatmul.bf16.gmra.mxu0 %v4651
      %v4936 = vpop.f32.mrf.mxu0
      %v4937 = vadd.f32 0.0, %v4936
      %v4938 = vpop.f32.mrf.mxu0
      %v4939 = vadd.f32 0.0, %v4938
      %4940 = vmatmul.bf16.gmra.mxu0 %v4654
      %v4941 = vpop.f32.mrf.mxu0
      %v4942 = vadd.f32 0.0, %v4941
      %v4943 = vpop.f32.mrf.mxu0
      %v4944 = vadd.f32 0.0, %v4943
      %4945 = vmatmul.bf16.gmra.mxu0 %v4657
      %v4946 = vpop.f32.mrf.mxu0
      %v4947 = vadd.f32 0.0, %v4946
      %v4948 = vpop.f32.mrf.mxu0
      %v4949 = vadd.f32 0.0, %v4948
      %4950 = vmatmul.bf16.gmra.mxu0 %v4660
      %v4951 = vpop.f32.mrf.mxu0
      %v4952 = vadd.f32 0.0, %v4951
      %v4953 = vpop.f32.mrf.mxu0
      %v4954 = vadd.f32 0.0, %v4953
      %4955 = vmatmul.bf16.gmra.mxu0 %v4663
      %v4956 = vpop.f32.mrf.mxu0
      %v4957 = vadd.f32 0.0, %v4956
      %v4958 = vpop.f32.mrf.mxu0
      %v4959 = vadd.f32 0.0, %v4958
      %4960 = vmatmul.bf16.gmra.mxu0 %v4666
      %v4961 = vpop.f32.mrf.mxu0
      %v4962 = vadd.f32 0.0, %v4961
      %v4963 = vpop.f32.mrf.mxu0
      %v4964 = vadd.f32 0.0, %v4963
      %4965 = vmatmul.bf16.gmra.mxu0 %v4669
      %v4966 = vpop.f32.mrf.mxu0
      %v4967 = vadd.f32 0.0, %v4966
      %v4968 = vpop.f32.mrf.mxu0
      %v4969 = vadd.f32 0.0, %v4968
      %4970 = vmatmul.bf16.gmra.mxu0 %v4672
      %v4971 = vpop.f32.mrf.mxu0
      %v4972 = vadd.f32 0.0, %v4971
      %v4973 = vpop.f32.mrf.mxu0
      %v4974 = vadd.f32 0.0, %v4973
      %4975 = vmatmul.bf16.gmra.mxu0 %v4675
      %v4976 = vpop.f32.mrf.mxu0
      %v4977 = vadd.f32 0.0, %v4976
      %v4978 = vpop.f32.mrf.mxu0
      %v4979 = vadd.f32 0.0, %v4978
      %4980 = vmatmul.bf16.gmra.mxu0 %v4678
      %v4981 = vpop.f32.mrf.mxu0
      %v4982 = vadd.f32 0.0, %v4981
      %v4983 = vpop.f32.mrf.mxu0
      %v4984 = vadd.f32 0.0, %v4983
      %4985 = vmatmul.bf16.gmra.mxu0 %v4681
      %v4986 = vpop.f32.mrf.mxu0
      %v4987 = vadd.f32 0.0, %v4986
      %v4988 = vpop.f32.mrf.mxu0
      %v4989 = vadd.f32 0.0, %v4988
      %4990 = vmatmul.bf16.gmra.mxu0 %v4684
      %v4991 = vpop.f32.mrf.mxu0
      %v4992 = vadd.f32 0.0, %v4991
      %v4993 = vpop.f32.mrf.mxu0
      %v4994 = vadd.f32 0.0, %v4993
      %4995 = vmatmul.bf16.gmra.mxu0 %v4687
      %v4996 = vpop.f32.mrf.mxu0
      %v4997 = vadd.f32 0.0, %v4996
      %v4998 = vpop.f32.mrf.mxu0
      %v4999 = vadd.f32 0.0, %v4998
      %5000 = vmatmul.bf16.gmra.mxu0 %v4690
      %v5001 = vpop.f32.mrf.mxu0
      %v5002 = vadd.f32 0.0, %v5001
      %v5003 = vpop.f32.mrf.mxu0
      %v5004 = vadd.f32 0.0, %v5003
      %5005 = vmatmul.bf16.gmra.mxu0 %v4693
      %v5006 = vpop.f32.mrf.mxu0
      %v5007 = vadd.f32 0.0, %v5006
      %v5008 = vpop.f32.mrf.mxu0
      %v5009 = vadd.f32 0.0, %v5008
      %5010 = vmatmul.bf16.gmra.mxu0 %v4696
      %v5011 = vpop.f32.mrf.mxu0
      %v5012 = vadd.f32 0.0, %v5011
      %v5013 = vpop.f32.mrf.mxu0
      %v5014 = vadd.f32 0.0, %v5013
      %5015 = vmatmul.bf16.gmra.mxu0 %v4699
      %v5016 = vpop.f32.mrf.mxu0
      %v5017 = vadd.f32 0.0, %v5016
      %v5018 = vpop.f32.mrf.mxu0
      %v5019 = vadd.f32 0.0, %v5018
      %5020 = vmatmul.bf16.gmra.mxu0 %v4702
      %v5021 = vpop.f32.mrf.mxu0
      %v5022 = vadd.f32 0.0, %v5021
      %v5023 = vpop.f32.mrf.mxu0
      %v5024 = vadd.f32 0.0, %v5023
      %5025 = vmatmul.bf16.gmra.mxu0 %v4705
      %v5026 = vpop.f32.mrf.mxu0
      %v5027 = vadd.f32 0.0, %v5026
      %v5028 = vpop.f32.mrf.mxu0
      %v5029 = vadd.f32 0.0, %v5028
      %5030 = vmatmul.bf16.gmra.mxu0 %v4708
      %v5031 = vpop.f32.mrf.mxu0
      %v5032 = vadd.f32 0.0, %v5031
      %v5033 = vpop.f32.mrf.mxu0
      %v5034 = vadd.f32 0.0, %v5033
      %5035 = vmatmul.bf16.gmra.mxu0 %v4711
      %v5036 = vpop.f32.mrf.mxu0
      %v5037 = vadd.f32 0.0, %v5036
      %v5038 = vpop.f32.mrf.mxu0
      %v5039 = vadd.f32 0.0, %v5038
      %5040 = vmatmul.bf16.gmra.mxu0 %v4714
      %v5041 = vpop.f32.mrf.mxu0
      %v5042 = vadd.f32 0.0, %v5041
      %v5043 = vpop.f32.mrf.mxu0
      %v5044 = vadd.f32 0.0, %v5043
      %5045 = vmatmul.bf16.gmra.mxu0 %v4717
      %v5046 = vpop.f32.mrf.mxu0
      %v5047 = vadd.f32 0.0, %v5046
      %v5048 = vpop.f32.mrf.mxu0
      %v5049 = vadd.f32 0.0, %v5048
      %5050 = vdwg.mxu0
      %v5051 = vadd.f32 %v3361, %v4732
      %v5052 = vadd.f32 %v3362, %v4734
      %v5053 = vadd.f32 %v3363, %v4737
      %v5054 = vadd.f32 %v3364, %v4739
      %v5055 = vadd.f32 %v3365, %v4742
      %v5056 = vadd.f32 %v3366, %v4744
      %v5057 = vadd.f32 %v3367, %v4747
      %v5058 = vadd.f32 %v3368, %v4749
      %v5059 = vadd.f32 %v3369, %v4752
      %v5060 = vadd.f32 %v3370, %v4754
      %v5061 = vadd.f32 %v3371, %v4757
      %v5062 = vadd.f32 %v3372, %v4759
      %v5063 = vadd.f32 %v3373, %v4762
      %v5064 = vadd.f32 %v3374, %v4764
      %v5065 = vadd.f32 %v3375, %v4767
      %v5066 = vadd.f32 %v3376, %v4769
      %v5067 = vadd.f32 %v3377, %v4772
      %v5068 = vadd.f32 %v3378, %v4774
      %v5069 = vadd.f32 %v3379, %v4777
      %v5070 = vadd.f32 %v3380, %v4779
      %v5071 = vadd.f32 %v3381, %v4782
      %v5072 = vadd.f32 %v3382, %v4784
      %v5073 = vadd.f32 %v3383, %v4787
      %v5074 = vadd.f32 %v3384, %v4789
      %v5075 = vadd.f32 %v3385, %v4792
      %v5076 = vadd.f32 %v3386, %v4794
      %v5077 = vadd.f32 %v3387, %v4797
      %v5078 = vadd.f32 %v3388, %v4799
      %v5079 = vadd.f32 %v3389, %v4802
      %v5080 = vadd.f32 %v3390, %v4804
      %v5081 = vadd.f32 %v3391, %v4807
      %v5082 = vadd.f32 %v3392, %v4809
      %v5083 = vadd.f32 %v3393, %v4812
      %v5084 = vadd.f32 %v3394, %v4814
      %v5085 = vadd.f32 %v3395, %v4817
      %v5086 = vadd.f32 %v3396, %v4819
      %v5087 = vadd.f32 %v3397, %v4822
      %v5088 = vadd.f32 %v3398, %v4824
      %v5089 = vadd.f32 %v3399, %v4827
      %v5090 = vadd.f32 %v3400, %v4829
      %v5091 = vadd.f32 %v3401, %v4832
      %v5092 = vadd.f32 %v3402, %v4834
      %v5093 = vadd.f32 %v3403, %v4837
      %v5094 = vadd.f32 %v3404, %v4839
      %v5095 = vadd.f32 %v3405, %v4842
      %v5096 = vadd.f32 %v3406, %v4844
      %v5097 = vadd.f32 %v3407, %v4847
      %v5098 = vadd.f32 %v3408, %v4849
      %v5099 = vadd.f32 %v3409, %v4852
      %v5100 = vadd.f32 %v3410, %v4854
      %v5101 = vadd.f32 %v3411, %v4857
      %v5102 = vadd.f32 %v3412, %v4859
      %v5103 = vadd.f32 %v3413, %v4862
      %v5104 = vadd.f32 %v3414, %v4864
      %v5105 = vadd.f32 %v3415, %v4867
      %v5106 = vadd.f32 %v3416, %v4869
      %v5107 = vadd.f32 %v3417, %v4872
      %v5108 = vadd.f32 %v3418, %v4874
      %v5109 = vadd.f32 %v3419, %v4877
      %v5110 = vadd.f32 %v3420, %v4879
      %v5111 = vadd.f32 %v3421, %v4882
      %v5112 = vadd.f32 %v3422, %v4884
      %v5113 = vadd.f32 %v3423, %v4887
      %v5114 = vadd.f32 %v3424, %v4889
      %v5115 = vadd.f32 %v3425, %v4892
      %v5116 = vadd.f32 %v3426, %v4894
      %v5117 = vadd.f32 %v3427, %v4897
      %v5118 = vadd.f32 %v3428, %v4899
      %v5119 = vadd.f32 %v3429, %v4902
      %v5120 = vadd.f32 %v3430, %v4904
      %v5121 = vadd.f32 %v3431, %v4907
      %v5122 = vadd.f32 %v3432, %v4909
      %v5123 = vadd.f32 %v3433, %v4912
      %v5124 = vadd.f32 %v3434, %v4914
      %v5125 = vadd.f32 %v3435, %v4917
      %v5126 = vadd.f32 %v3436, %v4919
      %v5127 = vadd.f32 %v3437, %v4922
      %v5128 = vadd.f32 %v3438, %v4924
      %v5129 = vadd.f32 %v3439, %v4927
      %v5130 = vadd.f32 %v3440, %v4929
      %v5131 = vadd.f32 %v3441, %v4932
      %v5132 = vadd.f32 %v3442, %v4934
      %v5133 = vadd.f32 %v3443, %v4937
      %v5134 = vadd.f32 %v3444, %v4939
      %v5135 = vadd.f32 %v3445, %v4942
      %v5136 = vadd.f32 %v3446, %v4944
      %v5137 = vadd.f32 %v3447, %v4947
      %v5138 = vadd.f32 %v3448, %v4949
      %v5139 = vadd.f32 %v3449, %v4952
      %v5140 = vadd.f32 %v3450, %v4954
      %v5141 = vadd.f32 %v3451, %v4957
      %v5142 = vadd.f32 %v3452, %v4959
      %v5143 = vadd.f32 %v3453, %v4962
      %v5144 = vadd.f32 %v3454, %v4964
      %v5145 = vadd.f32 %v3455, %v4967
      %v5146 = vadd.f32 %v3456, %v4969
      %v5147 = vadd.f32 %v3457, %v4972
      %v5148 = vadd.f32 %v3458, %v4974
      %v5149 = vadd.f32 %v3459, %v4977
      %v5150 = vadd.f32 %v3460, %v4979
      %v5151 = vadd.f32 %v3461, %v4982
      %v5152 = vadd.f32 %v3462, %v4984
      %v5153 = vadd.f32 %v3463, %v4987
      %v5154 = vadd.f32 %v3464, %v4989
      %v5155 = vadd.f32 %v3465, %v4992
      %v5156 = vadd.f32 %v3466, %v4994
      %v5157 = vadd.f32 %v3467, %v4997
      %v5158 = vadd.f32 %v3468, %v4999
      %v5159 = vadd.f32 %v3469, %v5002
      %v5160 = vadd.f32 %v3470, %v5004
      %v5161 = vadd.f32 %v3471, %v5007
      %v5162 = vadd.f32 %v3472, %v5009
      %v5163 = vadd.f32 %v3473, %v5012
      %v5164 = vadd.f32 %v3474, %v5014
      %v5165 = vadd.f32 %v3475, %v5017
      %v5166 = vadd.f32 %v3476, %v5019
      %v5167 = vadd.f32 %v3477, %v5022
      %v5168 = vadd.f32 %v3478, %v5024
      %v5169 = vadd.f32 %v3479, %v5027
      %v5170 = vadd.f32 %v3480, %v5029
      %v5171 = vadd.f32 %v3481, %v5032
      %v5172 = vadd.f32 %v3482, %v5034
      %v5173 = vadd.f32 %v3483, %v5037
      %v5174 = vadd.f32 %v3484, %v5039
      %v5175 = vadd.f32 %v3485, %v5042
      %v5176 = vadd.f32 %v3486, %v5044
      %v5177 = vadd.f32 %v3487, %v5047
      %v5178 = vadd.f32 %v3488, %v5049
      %s5179 = scalar_lea.vmem %s1, 16
      %v5180 = vld [vmem:[%s5179] sm:$0xf]
      %v5181 = vpack.c.b16 %v3751, %v3750
      %v5182 = vpack.c.b16 %v3753, %v3752
      %v5183 = vpack.c.b16 %v3755, %v3754
      %v5184 = vpack.c.b16 %v3757, %v3756
      %v5185 = vpack.c.b16 %v3759, %v3758
      %v5186 = vpack.c.b16 %v3761, %v3760
      %v5187 = vpack.c.b16 %v3763, %v3762
      %v5188 = vpack.c.b16 %v3765, %v3764
      %v5189 = vpack.c.b16 %v3767, %v3766
      %v5190 = vpack.c.b16 %v3769, %v3768
      %v5191 = vpack.c.b16 %v3771, %v3770
      %v5192 = vpack.c.b16 %v3773, %v3772
      %v5193 = vpack.c.b16 %v3775, %v3774
      %v5194 = vpack.c.b16 %v3777, %v3776
      %v5195 = vpack.c.b16 %v3779, %v3778
      %v5196 = vpack.c.b16 %v3781, %v3780
      %v5197 = vpack.c.b16 %v3783, %v3782
      %v5198 = vpack.c.b16 %v3785, %v3784
      %v5199 = vpack.c.b16 %v3787, %v3786
      %v5200 = vpack.c.b16 %v3789, %v3788
      %v5201 = vpack.c.b16 %v3791, %v3790
      %v5202 = vpack.c.b16 %v3793, %v3792
      %v5203 = vpack.c.b16 %v3795, %v3794
      %v5204 = vpack.c.b16 %v3797, %v3796
      %v5205 = vpack.c.b16 %v3799, %v3798
      %v5206 = vpack.c.b16 %v3801, %v3800
      %v5207 = vpack.c.b16 %v3803, %v3802
      %v5208 = vpack.c.b16 %v3805, %v3804
      %v5209 = vpack.c.b16 %v3807, %v3806
      %v5210 = vpack.c.b16 %v3809, %v3808
      %v5211 = vpack.c.b16 %v3811, %v3810
      %v5212 = vpack.c.b16 %v3813, %v3812
      %v5213 = vpack.c.b16 %v3815, %v3814
      %v5214 = vpack.c.b16 %v3817, %v3816
      %v5215 = vpack.c.b16 %v3819, %v3818
      %v5216 = vpack.c.b16 %v3821, %v3820
      %v5217 = vpack.c.b16 %v3823, %v3822
      %v5218 = vpack.c.b16 %v3825, %v3824
      %v5219 = vpack.c.b16 %v3827, %v3826
      %v5220 = vpack.c.b16 %v3829, %v3828
      %v5221 = vpack.c.b16 %v3831, %v3830
      %v5222 = vpack.c.b16 %v3833, %v3832
      %v5223 = vpack.c.b16 %v3835, %v3834
      %v5224 = vpack.c.b16 %v3837, %v3836
      %v5225 = vpack.c.b16 %v3839, %v3838
      %v5226 = vpack.c.b16 %v3841, %v3840
      %v5227 = vpack.c.b16 %v3843, %v3842
      %v5228 = vpack.c.b16 %v3845, %v3844
      %v5229 = vpack.c.b16 %v3847, %v3846
      %v5230 = vpack.c.b16 %v3849, %v3848
      %v5231 = vpack.c.b16 %v3851, %v3850
      %v5232 = vpack.c.b16 %v3853, %v3852
      %v5233 = vpack.c.b16 %v3855, %v3854
      %v5234 = vpack.c.b16 %v3857, %v3856
      %v5235 = vpack.c.b16 %v3859, %v3858
      %v5236 = vpack.c.b16 %v3861, %v3860
      %v5237 = vpack.c.b16 %v3863, %v3862
      %v5238 = vpack.c.b16 %v3865, %v3864
      %v5239 = vpack.c.b16 %v3867, %v3866
      %v5240 = vpack.c.b16 %v3869, %v3868
      %v5241 = vpack.c.b16 %v3871, %v3870
      %v5242 = vpack.c.b16 %v3873, %v3872
      %v5243 = vpack.c.b16 %v3875, %v3874
      %v5244 = vpack.c.b16 %v3877, %v3876
      %v5246 = vsel %vm923, %v5181, 0
      %v5249 = vsel %vm923, %v5182, 0
      %v5252 = vsel %vm923, %v5183, 0
      %v5255 = vsel %vm923, %v5184, 0
      %v5258 = vsel %vm923, %v5185, 0
      %v5261 = vsel %vm923, %v5186, 0
      %v5264 = vsel %vm923, %v5187, 0
      %v5267 = vsel %vm923, %v5188, 0
      %v5270 = vsel %vm923, %v5189, 0
      %v5273 = vsel %vm923, %v5190, 0
      %v5276 = vsel %vm923, %v5191, 0
      %v5279 = vsel %vm923, %v5192, 0
      %v5282 = vsel %vm923, %v5193, 0
      %v5285 = vsel %vm923, %v5194, 0
      %v5288 = vsel %vm923, %v5195, 0
      %v5291 = vsel %vm923, %v5196, 0
      %v5294 = vsel %vm923, %v5197, 0
      %v5297 = vsel %vm923, %v5198, 0
      %v5300 = vsel %vm923, %v5199, 0
      %v5303 = vsel %vm923, %v5200, 0
      %v5306 = vsel %vm923, %v5201, 0
      %v5309 = vsel %vm923, %v5202, 0
      %v5312 = vsel %vm923, %v5203, 0
      %v5315 = vsel %vm923, %v5204, 0
      %v5318 = vsel %vm923, %v5205, 0
      %v5321 = vsel %vm923, %v5206, 0
      %v5324 = vsel %vm923, %v5207, 0
      %v5327 = vsel %vm923, %v5208, 0
      %v5330 = vsel %vm923, %v5209, 0
      %v5333 = vsel %vm923, %v5210, 0
      %v5336 = vsel %vm923, %v5211, 0
      %v5339 = vsel %vm923, %v5212, 0
      %v5342 = vsel %vm923, %v5213, 0
      %v5345 = vsel %vm923, %v5214, 0
      %v5348 = vsel %vm923, %v5215, 0
      %v5351 = vsel %vm923, %v5216, 0
      %v5354 = vsel %vm923, %v5217, 0
      %v5357 = vsel %vm923, %v5218, 0
      %v5360 = vsel %vm923, %v5219, 0
      %v5363 = vsel %vm923, %v5220, 0
      %v5366 = vsel %vm923, %v5221, 0
      %v5369 = vsel %vm923, %v5222, 0
      %v5372 = vsel %vm923, %v5223, 0
      %v5375 = vsel %vm923, %v5224, 0
      %v5378 = vsel %vm923, %v5225, 0
      %v5381 = vsel %vm923, %v5226, 0
      %v5384 = vsel %vm923, %v5227, 0
      %v5387 = vsel %vm923, %v5228, 0
      %v5390 = vsel %vm923, %v5229, 0
      %v5393 = vsel %vm923, %v5230, 0
      %v5396 = vsel %vm923, %v5231, 0
      %v5399 = vsel %vm923, %v5232, 0
      %v5402 = vsel %vm923, %v5233, 0
      %v5405 = vsel %vm923, %v5234, 0
      %v5408 = vsel %vm923, %v5235, 0
      %v5411 = vsel %vm923, %v5236, 0
      %v5414 = vsel %vm923, %v5237, 0
      %v5417 = vsel %vm923, %v5238, 0
      %v5420 = vsel %vm923, %v5239, 0
      %v5423 = vsel %vm923, %v5240, 0
      %v5426 = vsel %vm923, %v5241, 0
      %v5429 = vsel %vm923, %v5242, 0
      %v5432 = vsel %vm923, %v5243, 0
      %v5435 = vsel %vm923, %v5244, 0
      %v5438 = vsel %vm1116, %v5180, 0
      %5440 = vmatpush.bf16.msra.mxu0 0
      %5441 = vmatpush.bf16.msra.mxu0 0
      %5442 = vmatpush.bf16.msra.mxu0 0
      %5443 = vmatpush.bf16.msra.mxu0 0
      %5444 = vmatpush.bf16.msra.mxu0 0
      %5445 = vmatpush.bf16.msra.mxu0 0
      %5446 = vmatpush.bf16.msra.mxu0 0
      %5447 = vmatpush.bf16.msra.mxu0 %v5438
      %5448 = vmatmul.bf16.gmra.mxu0 %v5246
      %v5449 = vpop.f32.mrf.mxu0
      %v5450 = vadd.f32 0.0, %v5449
      %v5451 = vpop.f32.mrf.mxu0
      %v5452 = vadd.f32 0.0, %v5451
      %5453 = vmatmul.bf16.gmra.mxu0 %v5249
      %v5454 = vpop.f32.mrf.mxu0
      %v5455 = vadd.f32 0.0, %v5454
      %v5456 = vpop.f32.mrf.mxu0
      %v5457 = vadd.f32 0.0, %v5456
      %5458 = vmatmul.bf16.gmra.mxu0 %v5252
      %v5459 = vpop.f32.mrf.mxu0
      %v5460 = vadd.f32 0.0, %v5459
      %v5461 = vpop.f32.mrf.mxu0
      %v5462 = vadd.f32 0.0, %v5461
      %5463 = vmatmul.bf16.gmra.mxu0 %v5255
      %v5464 = vpop.f32.mrf.mxu0
      %v5465 = vadd.f32 0.0, %v5464
      %v5466 = vpop.f32.mrf.mxu0
      %v5467 = vadd.f32 0.0, %v5466
      %5468 = vmatmul.bf16.gmra.mxu0 %v5258
      %v5469 = vpop.f32.mrf.mxu0
      %v5470 = vadd.f32 0.0, %v5469
      %v5471 = vpop.f32.mrf.mxu0
      %v5472 = vadd.f32 0.0, %v5471
      %5473 = vmatmul.bf16.gmra.mxu0 %v5261
      %v5474 = vpop.f32.mrf.mxu0
      %v5475 = vadd.f32 0.0, %v5474
      %v5476 = vpop.f32.mrf.mxu0
      %v5477 = vadd.f32 0.0, %v5476
      %5478 = vmatmul.bf16.gmra.mxu0 %v5264
      %v5479 = vpop.f32.mrf.mxu0
      %v5480 = vadd.f32 0.0, %v5479
      %v5481 = vpop.f32.mrf.mxu0
      %v5482 = vadd.f32 0.0, %v5481
      %5483 = vmatmul.bf16.gmra.mxu0 %v5267
      %v5484 = vpop.f32.mrf.mxu0
      %v5485 = vadd.f32 0.0, %v5484
      %v5486 = vpop.f32.mrf.mxu0
      %v5487 = vadd.f32 0.0, %v5486
      %5488 = vmatmul.bf16.gmra.mxu0 %v5270
      %v5489 = vpop.f32.mrf.mxu0
      %v5490 = vadd.f32 0.0, %v5489
      %v5491 = vpop.f32.mrf.mxu0
      %v5492 = vadd.f32 0.0, %v5491
      %5493 = vmatmul.bf16.gmra.mxu0 %v5273
      %v5494 = vpop.f32.mrf.mxu0
      %v5495 = vadd.f32 0.0, %v5494
      %v5496 = vpop.f32.mrf.mxu0
      %v5497 = vadd.f32 0.0, %v5496
      %5498 = vmatmul.bf16.gmra.mxu0 %v5276
      %v5499 = vpop.f32.mrf.mxu0
      %v5500 = vadd.f32 0.0, %v5499
      %v5501 = vpop.f32.mrf.mxu0
      %v5502 = vadd.f32 0.0, %v5501
      %5503 = vmatmul.bf16.gmra.mxu0 %v5279
      %v5504 = vpop.f32.mrf.mxu0
      %v5505 = vadd.f32 0.0, %v5504
      %v5506 = vpop.f32.mrf.mxu0
      %v5507 = vadd.f32 0.0, %v5506
      %5508 = vmatmul.bf16.gmra.mxu0 %v5282
      %v5509 = vpop.f32.mrf.mxu0
      %v5510 = vadd.f32 0.0, %v5509
      %v5511 = vpop.f32.mrf.mxu0
      %v5512 = vadd.f32 0.0, %v5511
      %5513 = vmatmul.bf16.gmra.mxu0 %v5285
      %v5514 = vpop.f32.mrf.mxu0
      %v5515 = vadd.f32 0.0, %v5514
      %v5516 = vpop.f32.mrf.mxu0
      %v5517 = vadd.f32 0.0, %v5516
      %5518 = vmatmul.bf16.gmra.mxu0 %v5288
      %v5519 = vpop.f32.mrf.mxu0
      %v5520 = vadd.f32 0.0, %v5519
      %v5521 = vpop.f32.mrf.mxu0
      %v5522 = vadd.f32 0.0, %v5521
      %5523 = vmatmul.bf16.gmra.mxu0 %v5291
      %v5524 = vpop.f32.mrf.mxu0
      %v5525 = vadd.f32 0.0, %v5524
      %v5526 = vpop.f32.mrf.mxu0
      %v5527 = vadd.f32 0.0, %v5526
      %5528 = vmatmul.bf16.gmra.mxu0 %v5294
      %v5529 = vpop.f32.mrf.mxu0
      %v5530 = vadd.f32 0.0, %v5529
      %v5531 = vpop.f32.mrf.mxu0
      %v5532 = vadd.f32 0.0, %v5531
      %5533 = vmatmul.bf16.gmra.mxu0 %v5297
      %v5534 = vpop.f32.mrf.mxu0
      %v5535 = vadd.f32 0.0, %v5534
      %v5536 = vpop.f32.mrf.mxu0
      %v5537 = vadd.f32 0.0, %v5536
      %5538 = vmatmul.bf16.gmra.mxu0 %v5300
      %v5539 = vpop.f32.mrf.mxu0
      %v5540 = vadd.f32 0.0, %v5539
      %v5541 = vpop.f32.mrf.mxu0
      %v5542 = vadd.f32 0.0, %v5541
      %5543 = vmatmul.bf16.gmra.mxu0 %v5303
      %v5544 = vpop.f32.mrf.mxu0
      %v5545 = vadd.f32 0.0, %v5544
      %v5546 = vpop.f32.mrf.mxu0
      %v5547 = vadd.f32 0.0, %v5546
      %5548 = vmatmul.bf16.gmra.mxu0 %v5306
      %v5549 = vpop.f32.mrf.mxu0
      %v5550 = vadd.f32 0.0, %v5549
      %v5551 = vpop.f32.mrf.mxu0
      %v5552 = vadd.f32 0.0, %v5551
      %5553 = vmatmul.bf16.gmra.mxu0 %v5309
      %v5554 = vpop.f32.mrf.mxu0
      %v5555 = vadd.f32 0.0, %v5554
      %v5556 = vpop.f32.mrf.mxu0
      %v5557 = vadd.f32 0.0, %v5556
      %5558 = vmatmul.bf16.gmra.mxu0 %v5312
      %v5559 = vpop.f32.mrf.mxu0
      %v5560 = vadd.f32 0.0, %v5559
      %v5561 = vpop.f32.mrf.mxu0
      %v5562 = vadd.f32 0.0, %v5561
      %5563 = vmatmul.bf16.gmra.mxu0 %v5315
      %v5564 = vpop.f32.mrf.mxu0
      %v5565 = vadd.f32 0.0, %v5564
      %v5566 = vpop.f32.mrf.mxu0
      %v5567 = vadd.f32 0.0, %v5566
      %5568 = vmatmul.bf16.gmra.mxu0 %v5318
      %v5569 = vpop.f32.mrf.mxu0
      %v5570 = vadd.f32 0.0, %v5569
      %v5571 = vpop.f32.mrf.mxu0
      %v5572 = vadd.f32 0.0, %v5571
      %5573 = vmatmul.bf16.gmra.mxu0 %v5321
      %v5574 = vpop.f32.mrf.mxu0
      %v5575 = vadd.f32 0.0, %v5574
      %v5576 = vpop.f32.mrf.mxu0
      %v5577 = vadd.f32 0.0, %v5576
      %5578 = vmatmul.bf16.gmra.mxu0 %v5324
      %v5579 = vpop.f32.mrf.mxu0
      %v5580 = vadd.f32 0.0, %v5579
      %v5581 = vpop.f32.mrf.mxu0
      %v5582 = vadd.f32 0.0, %v5581
      %5583 = vmatmul.bf16.gmra.mxu0 %v5327
      %v5584 = vpop.f32.mrf.mxu0
      %v5585 = vadd.f32 0.0, %v5584
      %v5586 = vpop.f32.mrf.mxu0
      %v5587 = vadd.f32 0.0, %v5586
      %5588 = vmatmul.bf16.gmra.mxu0 %v5330
      %v5589 = vpop.f32.mrf.mxu0
      %v5590 = vadd.f32 0.0, %v5589
      %v5591 = vpop.f32.mrf.mxu0
      %v5592 = vadd.f32 0.0, %v5591
      %5593 = vmatmul.bf16.gmra.mxu0 %v5333
      %v5594 = vpop.f32.mrf.mxu0
      %v5595 = vadd.f32 0.0, %v5594
      %v5596 = vpop.f32.mrf.mxu0
      %v5597 = vadd.f32 0.0, %v5596
      %5598 = vmatmul.bf16.gmra.mxu0 %v5336
      %v5599 = vpop.f32.mrf.mxu0
      %v5600 = vadd.f32 0.0, %v5599
      %v5601 = vpop.f32.mrf.mxu0
      %v5602 = vadd.f32 0.0, %v5601
      %5603 = vmatmul.bf16.gmra.mxu0 %v5339
      %v5604 = vpop.f32.mrf.mxu0
      %v5605 = vadd.f32 0.0, %v5604
      %v5606 = vpop.f32.mrf.mxu0
      %v5607 = vadd.f32 0.0, %v5606
      %5608 = vmatmul.bf16.gmra.mxu0 %v5342
      %v5609 = vpop.f32.mrf.mxu0
      %v5610 = vadd.f32 0.0, %v5609
      %v5611 = vpop.f32.mrf.mxu0
      %v5612 = vadd.f32 0.0, %v5611
      %5613 = vmatmul.bf16.gmra.mxu0 %v5345
      %v5614 = vpop.f32.mrf.mxu0
      %v5615 = vadd.f32 0.0, %v5614
      %v5616 = vpop.f32.mrf.mxu0
      %v5617 = vadd.f32 0.0, %v5616
      %5618 = vmatmul.bf16.gmra.mxu0 %v5348
      %v5619 = vpop.f32.mrf.mxu0
      %v5620 = vadd.f32 0.0, %v5619
      %v5621 = vpop.f32.mrf.mxu0
      %v5622 = vadd.f32 0.0, %v5621
      %5623 = vmatmul.bf16.gmra.mxu0 %v5351
      %v5624 = vpop.f32.mrf.mxu0
      %v5625 = vadd.f32 0.0, %v5624
      %v5626 = vpop.f32.mrf.mxu0
      %v5627 = vadd.f32 0.0, %v5626
      %5628 = vmatmul.bf16.gmra.mxu0 %v5354
      %v5629 = vpop.f32.mrf.mxu0
      %v5630 = vadd.f32 0.0, %v5629
      %v5631 = vpop.f32.mrf.mxu0
      %v5632 = vadd.f32 0.0, %v5631
      %5633 = vmatmul.bf16.gmra.mxu0 %v5357
      %v5634 = vpop.f32.mrf.mxu0
      %v5635 = vadd.f32 0.0, %v5634
      %v5636 = vpop.f32.mrf.mxu0
      %v5637 = vadd.f32 0.0, %v5636
      %5638 = vmatmul.bf16.gmra.mxu0 %v5360
      %v5639 = vpop.f32.mrf.mxu0
      %v5640 = vadd.f32 0.0, %v5639
      %v5641 = vpop.f32.mrf.mxu0
      %v5642 = vadd.f32 0.0, %v5641
      %5643 = vmatmul.bf16.gmra.mxu0 %v5363
      %v5644 = vpop.f32.mrf.mxu0
      %v5645 = vadd.f32 0.0, %v5644
      %v5646 = vpop.f32.mrf.mxu0
      %v5647 = vadd.f32 0.0, %v5646
      %5648 = vmatmul.bf16.gmra.mxu0 %v5366
      %v5649 = vpop.f32.mrf.mxu0
      %v5650 = vadd.f32 0.0, %v5649
      %v5651 = vpop.f32.mrf.mxu0
      %v5652 = vadd.f32 0.0, %v5651
      %5653 = vmatmul.bf16.gmra.mxu0 %v5369
      %v5654 = vpop.f32.mrf.mxu0
      %v5655 = vadd.f32 0.0, %v5654
      %v5656 = vpop.f32.mrf.mxu0
      %v5657 = vadd.f32 0.0, %v5656
      %5658 = vmatmul.bf16.gmra.mxu0 %v5372
      %v5659 = vpop.f32.mrf.mxu0
      %v5660 = vadd.f32 0.0, %v5659
      %v5661 = vpop.f32.mrf.mxu0
      %v5662 = vadd.f32 0.0, %v5661
      %5663 = vmatmul.bf16.gmra.mxu0 %v5375
      %v5664 = vpop.f32.mrf.mxu0
      %v5665 = vadd.f32 0.0, %v5664
      %v5666 = vpop.f32.mrf.mxu0
      %v5667 = vadd.f32 0.0, %v5666
      %5668 = vmatmul.bf16.gmra.mxu0 %v5378
      %v5669 = vpop.f32.mrf.mxu0
      %v5670 = vadd.f32 0.0, %v5669
      %v5671 = vpop.f32.mrf.mxu0
      %v5672 = vadd.f32 0.0, %v5671
      %5673 = vmatmul.bf16.gmra.mxu0 %v5381
      %v5674 = vpop.f32.mrf.mxu0
      %v5675 = vadd.f32 0.0, %v5674
      %v5676 = vpop.f32.mrf.mxu0
      %v5677 = vadd.f32 0.0, %v5676
      %5678 = vmatmul.bf16.gmra.mxu0 %v5384
      %v5679 = vpop.f32.mrf.mxu0
      %v5680 = vadd.f32 0.0, %v5679
      %v5681 = vpop.f32.mrf.mxu0
      %v5682 = vadd.f32 0.0, %v5681
      %5683 = vmatmul.bf16.gmra.mxu0 %v5387
      %v5684 = vpop.f32.mrf.mxu0
      %v5685 = vadd.f32 0.0, %v5684
      %v5686 = vpop.f32.mrf.mxu0
      %v5687 = vadd.f32 0.0, %v5686
      %5688 = vmatmul.bf16.gmra.mxu0 %v5390
      %v5689 = vpop.f32.mrf.mxu0
      %v5690 = vadd.f32 0.0, %v5689
      %v5691 = vpop.f32.mrf.mxu0
      %v5692 = vadd.f32 0.0, %v5691
      %5693 = vmatmul.bf16.gmra.mxu0 %v5393
      %v5694 = vpop.f32.mrf.mxu0
      %v5695 = vadd.f32 0.0, %v5694
      %v5696 = vpop.f32.mrf.mxu0
      %v5697 = vadd.f32 0.0, %v5696
      %5698 = vmatmul.bf16.gmra.mxu0 %v5396
      %v5699 = vpop.f32.mrf.mxu0
      %v5700 = vadd.f32 0.0, %v5699
      %v5701 = vpop.f32.mrf.mxu0
      %v5702 = vadd.f32 0.0, %v5701
      %5703 = vmatmul.bf16.gmra.mxu0 %v5399
      %v5704 = vpop.f32.mrf.mxu0
      %v5705 = vadd.f32 0.0, %v5704
      %v5706 = vpop.f32.mrf.mxu0
      %v5707 = vadd.f32 0.0, %v5706
      %5708 = vmatmul.bf16.gmra.mxu0 %v5402
      %v5709 = vpop.f32.mrf.mxu0
      %v5710 = vadd.f32 0.0, %v5709
      %v5711 = vpop.f32.mrf.mxu0
      %v5712 = vadd.f32 0.0, %v5711
      %5713 = vmatmul.bf16.gmra.mxu0 %v5405
      %v5714 = vpop.f32.mrf.mxu0
      %v5715 = vadd.f32 0.0, %v5714
      %v5716 = vpop.f32.mrf.mxu0
      %v5717 = vadd.f32 0.0, %v5716
      %5718 = vmatmul.bf16.gmra.mxu0 %v5408
      %v5719 = vpop.f32.mrf.mxu0
      %v5720 = vadd.f32 0.0, %v5719
      %v5721 = vpop.f32.mrf.mxu0
      %v5722 = vadd.f32 0.0, %v5721
      %5723 = vmatmul.bf16.gmra.mxu0 %v5411
      %v5724 = vpop.f32.mrf.mxu0
      %v5725 = vadd.f32 0.0, %v5724
      %v5726 = vpop.f32.mrf.mxu0
      %v5727 = vadd.f32 0.0, %v5726
      %5728 = vmatmul.bf16.gmra.mxu0 %v5414
      %v5729 = vpop.f32.mrf.mxu0
      %v5730 = vadd.f32 0.0, %v5729
      %v5731 = vpop.f32.mrf.mxu0
      %v5732 = vadd.f32 0.0, %v5731
      %5733 = vmatmul.bf16.gmra.mxu0 %v5417
      %v5734 = vpop.f32.mrf.mxu0
      %v5735 = vadd.f32 0.0, %v5734
      %v5736 = vpop.f32.mrf.mxu0
      %v5737 = vadd.f32 0.0, %v5736
      %5738 = vmatmul.bf16.gmra.mxu0 %v5420
      %v5739 = vpop.f32.mrf.mxu0
      %v5740 = vadd.f32 0.0, %v5739
      %v5741 = vpop.f32.mrf.mxu0
      %v5742 = vadd.f32 0.0, %v5741
      %5743 = vmatmul.bf16.gmra.mxu0 %v5423
      %v5744 = vpop.f32.mrf.mxu0
      %v5745 = vadd.f32 0.0, %v5744
      %v5746 = vpop.f32.mrf.mxu0
      %v5747 = vadd.f32 0.0, %v5746
      %5748 = vmatmul.bf16.gmra.mxu0 %v5426
      %v5749 = vpop.f32.mrf.mxu0
      %v5750 = vadd.f32 0.0, %v5749
      %v5751 = vpop.f32.mrf.mxu0
      %v5752 = vadd.f32 0.0, %v5751
      %5753 = vmatmul.bf16.gmra.mxu0 %v5429
      %v5754 = vpop.f32.mrf.mxu0
      %v5755 = vadd.f32 0.0, %v5754
      %v5756 = vpop.f32.mrf.mxu0
      %v5757 = vadd.f32 0.0, %v5756
      %5758 = vmatmul.bf16.gmra.mxu0 %v5432
      %v5759 = vpop.f32.mrf.mxu0
      %v5760 = vadd.f32 0.0, %v5759
      %v5761 = vpop.f32.mrf.mxu0
      %v5762 = vadd.f32 0.0, %v5761
      %5763 = vmatmul.bf16.gmra.mxu0 %v5435
      %v5764 = vpop.f32.mrf.mxu0
      %v5765 = vadd.f32 0.0, %v5764
      %v5766 = vpop.f32.mrf.mxu0
      %v5767 = vadd.f32 0.0, %v5766
      %5768 = vdwg.mxu0
      %v5769 = vadd.f32 %v5051, %v5450
      %v5770 = vadd.f32 %v5052, %v5452
      %v5771 = vadd.f32 %v5053, %v5455
      %v5772 = vadd.f32 %v5054, %v5457
      %v5773 = vadd.f32 %v5055, %v5460
      %v5774 = vadd.f32 %v5056, %v5462
      %v5775 = vadd.f32 %v5057, %v5465
      %v5776 = vadd.f32 %v5058, %v5467
      %v5777 = vadd.f32 %v5059, %v5470
      %v5778 = vadd.f32 %v5060, %v5472
      %v5779 = vadd.f32 %v5061, %v5475
      %v5780 = vadd.f32 %v5062, %v5477
      %v5781 = vadd.f32 %v5063, %v5480
      %v5782 = vadd.f32 %v5064, %v5482
      %v5783 = vadd.f32 %v5065, %v5485
      %v5784 = vadd.f32 %v5066, %v5487
      %v5785 = vadd.f32 %v5067, %v5490
      %v5786 = vadd.f32 %v5068, %v5492
      %v5787 = vadd.f32 %v5069, %v5495
      %v5788 = vadd.f32 %v5070, %v5497
      %v5789 = vadd.f32 %v5071, %v5500
      %v5790 = vadd.f32 %v5072, %v5502
      %v5791 = vadd.f32 %v5073, %v5505
      %v5792 = vadd.f32 %v5074, %v5507
      %v5793 = vadd.f32 %v5075, %v5510
      %v5794 = vadd.f32 %v5076, %v5512
      %v5795 = vadd.f32 %v5077, %v5515
      %v5796 = vadd.f32 %v5078, %v5517
      %v5797 = vadd.f32 %v5079, %v5520
      %v5798 = vadd.f32 %v5080, %v5522
      %v5799 = vadd.f32 %v5081, %v5525
      %v5800 = vadd.f32 %v5082, %v5527
      %v5801 = vadd.f32 %v5083, %v5530
      %v5802 = vadd.f32 %v5084, %v5532
      %v5803 = vadd.f32 %v5085, %v5535
      %v5804 = vadd.f32 %v5086, %v5537
      %v5805 = vadd.f32 %v5087, %v5540
      %v5806 = vadd.f32 %v5088, %v5542
      %v5807 = vadd.f32 %v5089, %v5545
      %v5808 = vadd.f32 %v5090, %v5547
      %v5809 = vadd.f32 %v5091, %v5550
      %v5810 = vadd.f32 %v5092, %v5552
      %v5811 = vadd.f32 %v5093, %v5555
      %v5812 = vadd.f32 %v5094, %v5557
      %v5813 = vadd.f32 %v5095, %v5560
      %v5814 = vadd.f32 %v5096, %v5562
      %v5815 = vadd.f32 %v5097, %v5565
      %v5816 = vadd.f32 %v5098, %v5567
      %v5817 = vadd.f32 %v5099, %v5570
      %v5818 = vadd.f32 %v5100, %v5572
      %v5819 = vadd.f32 %v5101, %v5575
      %v5820 = vadd.f32 %v5102, %v5577
      %v5821 = vadd.f32 %v5103, %v5580
      %v5822 = vadd.f32 %v5104, %v5582
      %v5823 = vadd.f32 %v5105, %v5585
      %v5824 = vadd.f32 %v5106, %v5587
      %v5825 = vadd.f32 %v5107, %v5590
      %v5826 = vadd.f32 %v5108, %v5592
      %v5827 = vadd.f32 %v5109, %v5595
      %v5828 = vadd.f32 %v5110, %v5597
      %v5829 = vadd.f32 %v5111, %v5600
      %v5830 = vadd.f32 %v5112, %v5602
      %v5831 = vadd.f32 %v5113, %v5605
      %v5832 = vadd.f32 %v5114, %v5607
      %v5833 = vadd.f32 %v5115, %v5610
      %v5834 = vadd.f32 %v5116, %v5612
      %v5835 = vadd.f32 %v5117, %v5615
      %v5836 = vadd.f32 %v5118, %v5617
      %v5837 = vadd.f32 %v5119, %v5620
      %v5838 = vadd.f32 %v5120, %v5622
      %v5839 = vadd.f32 %v5121, %v5625
      %v5840 = vadd.f32 %v5122, %v5627
      %v5841 = vadd.f32 %v5123, %v5630
      %v5842 = vadd.f32 %v5124, %v5632
      %v5843 = vadd.f32 %v5125, %v5635
      %v5844 = vadd.f32 %v5126, %v5637
      %v5845 = vadd.f32 %v5127, %v5640
      %v5846 = vadd.f32 %v5128, %v5642
      %v5847 = vadd.f32 %v5129, %v5645
      %v5848 = vadd.f32 %v5130, %v5647
      %v5849 = vadd.f32 %v5131, %v5650
      %v5850 = vadd.f32 %v5132, %v5652
      %v5851 = vadd.f32 %v5133, %v5655
      %v5852 = vadd.f32 %v5134, %v5657
      %v5853 = vadd.f32 %v5135, %v5660
      %v5854 = vadd.f32 %v5136, %v5662
      %v5855 = vadd.f32 %v5137, %v5665
      %v5856 = vadd.f32 %v5138, %v5667
      %v5857 = vadd.f32 %v5139, %v5670
      %v5858 = vadd.f32 %v5140, %v5672
      %v5859 = vadd.f32 %v5141, %v5675
      %v5860 = vadd.f32 %v5142, %v5677
      %v5861 = vadd.f32 %v5143, %v5680
      %v5862 = vadd.f32 %v5144, %v5682
      %v5863 = vadd.f32 %v5145, %v5685
      %v5864 = vadd.f32 %v5146, %v5687
      %v5865 = vadd.f32 %v5147, %v5690
      %v5866 = vadd.f32 %v5148, %v5692
      %v5867 = vadd.f32 %v5149, %v5695
      %v5868 = vadd.f32 %v5150, %v5697
      %v5869 = vadd.f32 %v5151, %v5700
      %v5870 = vadd.f32 %v5152, %v5702
      %v5871 = vadd.f32 %v5153, %v5705
      %v5872 = vadd.f32 %v5154, %v5707
      %v5873 = vadd.f32 %v5155, %v5710
      %v5874 = vadd.f32 %v5156, %v5712
      %v5875 = vadd.f32 %v5157, %v5715
      %v5876 = vadd.f32 %v5158, %v5717
      %v5877 = vadd.f32 %v5159, %v5720
      %v5878 = vadd.f32 %v5160, %v5722
      %v5879 = vadd.f32 %v5161, %v5725
      %v5880 = vadd.f32 %v5162, %v5727
      %v5881 = vadd.f32 %v5163, %v5730
      %v5882 = vadd.f32 %v5164, %v5732
      %v5883 = vadd.f32 %v5165, %v5735
      %v5884 = vadd.f32 %v5166, %v5737
      %v5885 = vadd.f32 %v5167, %v5740
      %v5886 = vadd.f32 %v5168, %v5742
      %v5887 = vadd.f32 %v5169, %v5745
      %v5888 = vadd.f32 %v5170, %v5747
      %v5889 = vadd.f32 %v5171, %v5750
      %v5890 = vadd.f32 %v5172, %v5752
      %v5891 = vadd.f32 %v5173, %v5755
      %v5892 = vadd.f32 %v5174, %v5757
      %v5893 = vadd.f32 %v5175, %v5760
      %v5894 = vadd.f32 %v5176, %v5762
      %v5895 = vadd.f32 %v5177, %v5765
      %v5896 = vadd.f32 %v5178, %v5767
      %v5897 = vld [vmem:[#allocation2 + $0x3c] sm:$0xf]
      %v5898 = vld [vmem:[#allocation2 + $0x40] sm:$0xf]
      %v5899 = vld [vmem:[#allocation2 + $0x44] sm:$0xf]
      %v5900 = vld [vmem:[#allocation2 + $0x48] sm:$0xf]
      %v5901 = vld [vmem:[#allocation2 + $0x4c] sm:$0xf]
      %v5902 = vld [vmem:[#allocation2 + $0x50] sm:$0xf]
      %v5903 = vld [vmem:[#allocation2 + $0x54] sm:$0xf]
      %v5904 = vld [vmem:[#allocation2 + $0x58] sm:$0xf]
      %v5905 = vld [vmem:[#allocation2 + $0x5c] sm:$0xf]
      %v5906 = vld [vmem:[#allocation2 + $0x60] sm:$0xf]
      %v5907 = vld [vmem:[#allocation2 + $0x64] sm:$0xf]
      %v5908 = vld [vmem:[#allocation2 + $0x68] sm:$0xf]
      %v5909 = vld [vmem:[#allocation2 + $0x6c] sm:$0xf]
      %v5910 = vld [vmem:[#allocation2 + $0x70] sm:$0xf]
      %v5911 = vld [vmem:[#allocation2 + $0x74] sm:$0xf]
      %v5912 = vld [vmem:[#allocation2 + $0x78] sm:$0xf]
      %v5913 = vld [vmem:[#allocation2 + $0x7c] sm:$0xf]
      %v5914 = vld [vmem:[#allocation2 + $0x80] sm:$0xf]
      %v5915 = vld [vmem:[#allocation2 + $0x84] sm:$0xf]
      %v5916 = vld [vmem:[#allocation2 + $0x88] sm:$0xf]
      %v5917 = vld [vmem:[#allocation2 + $0x8c] sm:$0xf]
      %v5918 = vld [vmem:[#allocation2 + $0x90] sm:$0xf]
      %v5919 = vld [vmem:[#allocation2 + $0x94] sm:$0xf]
      %v5920 = vld [vmem:[#allocation2 + $0x98] sm:$0xf]
      %v5921 = vld [vmem:[#allocation2 + $0x9c] sm:$0xf]
      %v5922 = vld [vmem:[#allocation2 + $0xa0] sm:$0xf]
      %v5923 = vld [vmem:[#allocation2 + $0xa4] sm:$0xf]
      %v5924 = vld [vmem:[#allocation2 + $0xa8] sm:$0xf]
      %v5925 = vld [vmem:[#allocation2 + $0xac] sm:$0xf]
      %v5926 = vld [vmem:[#allocation2 + $0xb0] sm:$0xf]
      %v5927 = vld [vmem:[#allocation2 + $0xb4] sm:$0xf]
      %v5928 = vld [vmem:[#allocation2 + $0xb8] sm:$0xf]
      %v5929 = vld [vmem:[#allocation2 + $0xbc] sm:$0xf]
      %v5930 = vld [vmem:[#allocation2 + $0xc0] sm:$0xf]
      %v5931 = vld [vmem:[#allocation2 + $0xc4] sm:$0xf]
      %v5932 = vld [vmem:[#allocation2 + $0xc8] sm:$0xf]
      %v5933 = vld [vmem:[#allocation2 + $0xcc] sm:$0xf]
      %v5934 = vld [vmem:[#allocation2 + $0xd0] sm:$0xf]
      %v5935 = vld [vmem:[#allocation2 + $0xd4] sm:$0xf]
      %v5936 = vld [vmem:[#allocation2 + $0xd8] sm:$0xf]
      %v5937 = vld [vmem:[#allocation2 + $0xdc] sm:$0xf]
      %v5938 = vld [vmem:[#allocation2 + $0xe0] sm:$0xf]
      %v5939 = vld [vmem:[#allocation2 + $0xe4] sm:$0xf]
      %v5940 = vld [vmem:[#allocation2 + $0xe8] sm:$0xf]
      %v5941 = vld [vmem:[#allocation2 + $0xec] sm:$0xf]
      %v5942 = vld [vmem:[#allocation2 + $0xf0] sm:$0xf]
      %v5943 = vld [vmem:[#allocation2 + $0xf4] sm:$0xf]
      %v5944 = vld [vmem:[#allocation2 + $0xf8] sm:$0xf]
      %v5945 = vld [vmem:[#allocation2 + $0xfc] sm:$0xf]
      %v5946 = vld [vmem:[#allocation2 + $0x100] sm:$0xf]
      %v5947 = vld [vmem:[#allocation2 + $0x104] sm:$0xf]
      %v5948 = vld [vmem:[#allocation2 + $0x108] sm:$0xf]
      %v5949 = vld [vmem:[#allocation2 + $0x10c] sm:$0xf]
      %v5950 = vld [vmem:[#allocation2 + $0x110] sm:$0xf]
      %v5951 = vld [vmem:[#allocation2 + $0x114] sm:$0xf]
      %v5952 = vld [vmem:[#allocation2 + $0x118] sm:$0xf]
      %v5953 = vld [vmem:[#allocation2 + $0x11c] sm:$0xf]
      %v5954 = vld [vmem:[#allocation2 + $0x120] sm:$0xf]
      %v5955 = vld [vmem:[#allocation2 + $0x124] sm:$0xf]
      %v5956 = vld [vmem:[#allocation2 + $0x128] sm:$0xf]
      %v5957 = vld [vmem:[#allocation2 + $0x12c] sm:$0xf]
      %v5958 = vld [vmem:[#allocation2 + $0x130] sm:$0xf]
      %v5959 = vld [vmem:[#allocation2 + $0x134] sm:$0xf]
      %v5960 = vld [vmem:[#allocation2 + $0x138] sm:$0xf]
      %v5961 = vld [vmem:[#allocation2 + $0x13c] sm:$0xf]
      %v5962 = vld [vmem:[#allocation2 + $0x140] sm:$0xf]
      %v5963 = vld [vmem:[#allocation2 + $0x144] sm:$0xf]
      %v5964 = vld [vmem:[#allocation2 + $0x148] sm:$0xf]
      %v5965 = vld [vmem:[#allocation2 + $0x14c] sm:$0xf]
      %v5966 = vld [vmem:[#allocation2 + $0x150] sm:$0xf]
      %v5967 = vld [vmem:[#allocation2 + $0x154] sm:$0xf]
      %v5968 = vld [vmem:[#allocation2 + $0x158] sm:$0xf]
      %v5969 = vld [vmem:[#allocation2 + $0x15c] sm:$0xf]
      %v5970 = vld [vmem:[#allocation2 + $0x160] sm:$0xf]
      %v5971 = vld [vmem:[#allocation2 + $0x164] sm:$0xf]
      %v5972 = vld [vmem:[#allocation2 + $0x168] sm:$0xf]
      %v5973 = vld [vmem:[#allocation2 + $0x16c] sm:$0xf]
      %v5974 = vld [vmem:[#allocation2 + $0x170] sm:$0xf]
      %v5975 = vld [vmem:[#allocation2 + $0x174] sm:$0xf]
      %v5976 = vld [vmem:[#allocation2 + $0x178] sm:$0xf]
      %v5977 = vld [vmem:[#allocation2 + $0x17c] sm:$0xf]
      %v5978 = vld [vmem:[#allocation2 + $0x180] sm:$0xf]
      %v5979 = vld [vmem:[#allocation2 + $0x184] sm:$0xf]
      %v5980 = vld [vmem:[#allocation2 + $0x188] sm:$0xf]
      %v5981 = vld [vmem:[#allocation2 + $0x18c] sm:$0xf]
      %v5982 = vld [vmem:[#allocation2 + $0x190] sm:$0xf]
      %v5983 = vld [vmem:[#allocation2 + $0x194] sm:$0xf]
      %v5984 = vld [vmem:[#allocation2 + $0x198] sm:$0xf]
      %v5985 = vld [vmem:[#allocation2 + $0x19c] sm:$0xf]
      %v5986 = vld [vmem:[#allocation2 + $0x1a0] sm:$0xf]
      %v5987 = vld [vmem:[#allocation2 + $0x1a4] sm:$0xf]
      %v5988 = vld [vmem:[#allocation2 + $0x1a8] sm:$0xf]
      %v5989 = vld [vmem:[#allocation2 + $0x1ac] sm:$0xf]
      %v5990 = vld [vmem:[#allocation2 + $0x1b0] sm:$0xf]
      %v5991 = vld [vmem:[#allocation2 + $0x1b4] sm:$0xf]
      %v5992 = vld [vmem:[#allocation2 + $0x1b8] sm:$0xf]
      %v5993 = vld [vmem:[#allocation2 + $0x1bc] sm:$0xf]
      %v5994 = vld [vmem:[#allocation2 + $0x1c0] sm:$0xf]
      %v5995 = vld [vmem:[#allocation2 + $0x1c4] sm:$0xf]
      %v5996 = vld [vmem:[#allocation2 + $0x1c8] sm:$0xf]
      %v5997 = vld [vmem:[#allocation2 + $0x1cc] sm:$0xf]
      %v5998 = vld [vmem:[#allocation2 + $0x1d0] sm:$0xf]
      %v5999 = vld [vmem:[#allocation2 + $0x1d4] sm:$0xf]
      %v6000 = vld [vmem:[#allocation2 + $0x1d8] sm:$0xf]
      %v6001 = vld [vmem:[#allocation2 + $0x1dc] sm:$0xf]
      %v6002 = vld [vmem:[#allocation2 + $0x1e0] sm:$0xf]
      %v6003 = vld [vmem:[#allocation2 + $0x1e4] sm:$0xf]
      %v6004 = vld [vmem:[#allocation2 + $0x1e8] sm:$0xf]
      %v6005 = vld [vmem:[#allocation2 + $0x1ec] sm:$0xf]
      %v6006 = vld [vmem:[#allocation2 + $0x1f0] sm:$0xf]
      %v6007 = vld [vmem:[#allocation2 + $0x1f4] sm:$0xf]
      %v6008 = vld [vmem:[#allocation2 + $0x1f8] sm:$0xf]
      %v6009 = vld [vmem:[#allocation2 + $0x1fc] sm:$0xf]
      %v6010 = vld [vmem:[#allocation2 + $0x200] sm:$0xf]
      %v6011 = vld [vmem:[#allocation2 + $0x204] sm:$0xf]
      %v6012 = vld [vmem:[#allocation2 + $0x208] sm:$0xf]
      %v6013 = vld [vmem:[#allocation2 + $0x20c] sm:$0xf]
      %v6014 = vld [vmem:[#allocation2 + $0x210] sm:$0xf]
      %v6015 = vld [vmem:[#allocation2 + $0x214] sm:$0xf]
      %v6016 = vld [vmem:[#allocation2 + $0x218] sm:$0xf]
      %v6017 = vld [vmem:[#allocation2 + $0x21c] sm:$0xf]
      %v6018 = vld [vmem:[#allocation2 + $0x220] sm:$0xf]
      %v6019 = vld [vmem:[#allocation2 + $0x224] sm:$0xf]
      %v6020 = vld [vmem:[#allocation2 + $0x228] sm:$0xf]
      %v6021 = vld [vmem:[#allocation2 + $0x22c] sm:$0xf]
      %v6022 = vld [vmem:[#allocation2 + $0x230] sm:$0xf]
      %v6023 = vld [vmem:[#allocation2 + $0x234] sm:$0xf]
      %v6024 = vld [vmem:[#allocation2 + $0x238] sm:$0xf]
      %v6025 = vld [vmem:[#allocation2 + $0x23c] sm:$0x1]
      %s6026 = scalar_lea.vmem %s1, 20
      %v6027 = vld [vmem:[%s6026] sm:$0xf]
      %v6157 = vunpack.c.l.b16 %v5897
      %v6158 = vunpack.c.l.b16 %v5898
      %v6159 = vunpack.c.l.b16 %v5899
      %v6160 = vunpack.c.l.b16 %v5900
      %v6161 = vunpack.c.l.b16 %v5901
      %v6162 = vunpack.c.l.b16 %v5902
      %v6163 = vunpack.c.l.b16 %v5903
      %v6164 = vunpack.c.l.b16 %v5904
      %v6165 = vunpack.c.l.b16 %v5905
      %v6166 = vunpack.c.l.b16 %v5906
      %v6167 = vunpack.c.l.b16 %v5907
      %v6168 = vunpack.c.l.b16 %v5908
      %v6169 = vunpack.c.l.b16 %v5909
      %v6170 = vunpack.c.l.b16 %v5910
      %v6171 = vunpack.c.l.b16 %v5911
      %v6172 = vunpack.c.l.b16 %v5912
      %v6173 = vunpack.c.l.b16 %v5913
      %v6174 = vunpack.c.l.b16 %v5914
      %v6175 = vunpack.c.l.b16 %v5915
      %v6176 = vunpack.c.l.b16 %v5916
      %v6177 = vunpack.c.l.b16 %v5917
      %v6178 = vunpack.c.l.b16 %v5918
      %v6179 = vunpack.c.l.b16 %v5919
      %v6180 = vunpack.c.l.b16 %v5920
      %v6181 = vunpack.c.l.b16 %v5921
      %v6182 = vunpack.c.l.b16 %v5922
      %v6183 = vunpack.c.l.b16 %v5923
      %v6184 = vunpack.c.l.b16 %v5924
      %v6185 = vunpack.c.l.b16 %v5925
      %v6186 = vunpack.c.l.b16 %v5926
      %v6187 = vunpack.c.l.b16 %v5927
      %v6188 = vunpack.c.l.b16 %v5928
      %v6189 = vunpack.c.l.b16 %v5929
      %v6190 = vunpack.c.l.b16 %v5930
      %v6191 = vunpack.c.l.b16 %v5931
      %v6192 = vunpack.c.l.b16 %v5932
      %v6193 = vunpack.c.l.b16 %v5933
      %v6194 = vunpack.c.l.b16 %v5934
      %v6195 = vunpack.c.l.b16 %v5935
      %v6196 = vunpack.c.l.b16 %v5936
      %v6197 = vunpack.c.l.b16 %v5937
      %v6198 = vunpack.c.l.b16 %v5938
      %v6199 = vunpack.c.l.b16 %v5939
      %v6200 = vunpack.c.l.b16 %v5940
      %v6201 = vunpack.c.l.b16 %v5941
      %v6202 = vunpack.c.l.b16 %v5942
      %v6203 = vunpack.c.l.b16 %v5943
      %v6204 = vunpack.c.l.b16 %v5944
      %v6205 = vunpack.c.l.b16 %v5945
      %v6206 = vunpack.c.l.b16 %v5946
      %v6207 = vunpack.c.l.b16 %v5947
      %v6208 = vunpack.c.l.b16 %v5948
      %v6209 = vunpack.c.l.b16 %v5949
      %v6210 = vunpack.c.l.b16 %v5950
      %v6211 = vunpack.c.l.b16 %v5951
      %v6212 = vunpack.c.l.b16 %v5952
      %v6213 = vunpack.c.l.b16 %v5953
      %v6214 = vunpack.c.l.b16 %v5954
      %v6215 = vunpack.c.l.b16 %v5955
      %v6216 = vunpack.c.l.b16 %v5956
      %v6217 = vunpack.c.l.b16 %v5957
      %v6218 = vunpack.c.l.b16 %v5958
      %v6219 = vunpack.c.l.b16 %v5959
      %v6220 = vunpack.c.l.b16 %v5960
      %v6221 = vunpack.c.l.b16 %v5961
      %v6222 = vunpack.c.l.b16 %v5962
      %v6223 = vunpack.c.l.b16 %v5963
      %v6224 = vunpack.c.l.b16 %v5964
      %v6225 = vunpack.c.l.b16 %v5965
      %v6226 = vunpack.c.l.b16 %v5966
      %v6227 = vunpack.c.l.b16 %v5967
      %v6228 = vunpack.c.l.b16 %v5968
      %v6229 = vunpack.c.l.b16 %v5969
      %v6230 = vunpack.c.l.b16 %v5970
      %v6231 = vunpack.c.l.b16 %v5971
      %v6232 = vunpack.c.l.b16 %v5972
      %v6233 = vunpack.c.l.b16 %v5973
      %v6234 = vunpack.c.l.b16 %v5974
      %v6235 = vunpack.c.l.b16 %v5975
      %v6236 = vunpack.c.l.b16 %v5976
      %v6237 = vunpack.c.l.b16 %v5977
      %v6238 = vunpack.c.l.b16 %v5978
      %v6239 = vunpack.c.l.b16 %v5979
      %v6240 = vunpack.c.l.b16 %v5980
      %v6241 = vunpack.c.l.b16 %v5981
      %v6242 = vunpack.c.l.b16 %v5982
      %v6243 = vunpack.c.l.b16 %v5983
      %v6244 = vunpack.c.l.b16 %v5984
      %v6245 = vunpack.c.l.b16 %v5985
      %v6246 = vunpack.c.l.b16 %v5986
      %v6247 = vunpack.c.l.b16 %v5987
      %v6248 = vunpack.c.l.b16 %v5988
      %v6249 = vunpack.c.l.b16 %v5989
      %v6250 = vunpack.c.l.b16 %v5990
      %v6251 = vunpack.c.l.b16 %v5991
      %v6252 = vunpack.c.l.b16 %v5992
      %v6253 = vunpack.c.l.b16 %v5993
      %v6254 = vunpack.c.l.b16 %v5994
      %v6255 = vunpack.c.l.b16 %v5995
      %v6256 = vunpack.c.l.b16 %v5996
      %v6257 = vunpack.c.l.b16 %v5997
      %v6258 = vunpack.c.l.b16 %v5998
      %v6259 = vunpack.c.l.b16 %v5999
      %v6260 = vunpack.c.l.b16 %v6000
      %v6261 = vunpack.c.l.b16 %v6001
      %v6262 = vunpack.c.l.b16 %v6002
      %v6263 = vunpack.c.l.b16 %v6003
      %v6264 = vunpack.c.l.b16 %v6004
      %v6265 = vunpack.c.l.b16 %v6005
      %v6266 = vunpack.c.l.b16 %v6006
      %v6267 = vunpack.c.l.b16 %v6007
      %v6268 = vunpack.c.l.b16 %v6008
      %v6269 = vunpack.c.l.b16 %v6009
      %v6270 = vunpack.c.l.b16 %v6010
      %v6271 = vunpack.c.l.b16 %v6011
      %v6272 = vunpack.c.l.b16 %v6012
      %v6273 = vunpack.c.l.b16 %v6013
      %v6274 = vunpack.c.l.b16 %v6014
      %v6275 = vunpack.c.l.b16 %v6015
      %v6276 = vunpack.c.l.b16 %v6016
      %v6277 = vunpack.c.l.b16 %v6017
      %v6278 = vunpack.c.l.b16 %v6018
      %v6279 = vunpack.c.l.b16 %v6019
      %v6280 = vunpack.c.l.b16 %v6020
      %v6281 = vunpack.c.l.b16 %v6021
      %v6282 = vunpack.c.l.b16 %v6022
      %v6283 = vunpack.c.l.b16 %v6023
      %v6284 = vunpack.c.l.b16 %v6024
      %v6285 = vunpack.c.l.b16 %v6025
      %v6286 = vpack.c.b16 %v6158, %v6157
      %v6287 = vpack.c.b16 %v6160, %v6159
      %v6288 = vpack.c.b16 %v6162, %v6161
      %v6289 = vpack.c.b16 %v6164, %v6163
      %v6290 = vpack.c.b16 %v6166, %v6165
      %v6291 = vpack.c.b16 %v6168, %v6167
      %v6292 = vpack.c.b16 %v6170, %v6169
      %v6293 = vpack.c.b16 %v6172, %v6171
      %v6294 = vpack.c.b16 %v6174, %v6173
      %v6295 = vpack.c.b16 %v6176, %v6175
      %v6296 = vpack.c.b16 %v6178, %v6177
      %v6297 = vpack.c.b16 %v6180, %v6179
      %v6298 = vpack.c.b16 %v6182, %v6181
      %v6299 = vpack.c.b16 %v6184, %v6183
      %v6300 = vpack.c.b16 %v6186, %v6185
      %v6301 = vpack.c.b16 %v6188, %v6187
      %v6302 = vpack.c.b16 %v6190, %v6189
      %v6303 = vpack.c.b16 %v6192, %v6191
      %v6304 = vpack.c.b16 %v6194, %v6193
      %v6305 = vpack.c.b16 %v6196, %v6195
      %v6306 = vpack.c.b16 %v6198, %v6197
      %v6307 = vpack.c.b16 %v6200, %v6199
      %v6308 = vpack.c.b16 %v6202, %v6201
      %v6309 = vpack.c.b16 %v6204, %v6203
      %v6310 = vpack.c.b16 %v6206, %v6205
      %v6311 = vpack.c.b16 %v6208, %v6207
      %v6312 = vpack.c.b16 %v6210, %v6209
      %v6313 = vpack.c.b16 %v6212, %v6211
      %v6314 = vpack.c.b16 %v6214, %v6213
      %v6315 = vpack.c.b16 %v6216, %v6215
      %v6316 = vpack.c.b16 %v6218, %v6217
      %v6317 = vpack.c.b16 %v6220, %v6219
      %v6318 = vpack.c.b16 %v6222, %v6221
      %v6319 = vpack.c.b16 %v6224, %v6223
      %v6320 = vpack.c.b16 %v6226, %v6225
      %v6321 = vpack.c.b16 %v6228, %v6227
      %v6322 = vpack.c.b16 %v6230, %v6229
      %v6323 = vpack.c.b16 %v6232, %v6231
      %v6324 = vpack.c.b16 %v6234, %v6233
      %v6325 = vpack.c.b16 %v6236, %v6235
      %v6326 = vpack.c.b16 %v6238, %v6237
      %v6327 = vpack.c.b16 %v6240, %v6239
      %v6328 = vpack.c.b16 %v6242, %v6241
      %v6329 = vpack.c.b16 %v6244, %v6243
      %v6330 = vpack.c.b16 %v6246, %v6245
      %v6331 = vpack.c.b16 %v6248, %v6247
      %v6332 = vpack.c.b16 %v6250, %v6249
      %v6333 = vpack.c.b16 %v6252, %v6251
      %v6334 = vpack.c.b16 %v6254, %v6253
      %v6335 = vpack.c.b16 %v6256, %v6255
      %v6336 = vpack.c.b16 %v6258, %v6257
      %v6337 = vpack.c.b16 %v6260, %v6259
      %v6338 = vpack.c.b16 %v6262, %v6261
      %v6339 = vpack.c.b16 %v6264, %v6263
      %v6340 = vpack.c.b16 %v6266, %v6265
      %v6341 = vpack.c.b16 %v6268, %v6267
      %v6342 = vpack.c.b16 %v6270, %v6269
      %v6343 = vpack.c.b16 %v6272, %v6271
      %v6344 = vpack.c.b16 %v6274, %v6273
      %v6345 = vpack.c.b16 %v6276, %v6275
      %v6346 = vpack.c.b16 %v6278, %v6277
      %v6347 = vpack.c.b16 %v6280, %v6279
      %v6348 = vpack.c.b16 %v6282, %v6281
      %v6349 = vpack.c.b16 %v6284, %v6283
      %v6350 = vpack.c.b16 %v6285, %v6285
      %vm6351 = vsmask.f32 7424
      %v6353 = vshrl.u32 %v6286, 16
      %v6355 = vshll.u32 %v6286, 16
      %v6357 = vrot.slane %v6355, 1
      %v6358 = vor.u32 %v6353, %v6357
      %v6360 = vshll.u32 %v6287, 16
      %v6362 = vrot.slane %v6360, 1
      %v6363 = vsel %vm6351, %v6358, %v6362
      %v6364 = vshrl.u32 %v6287, 16
      %v6366 = vor.u32 %v6364, %v6362
      %v6368 = vshll.u32 %v6288, 16
      %v6370 = vrot.slane %v6368, 1
      %v6371 = vsel %vm6351, %v6366, %v6370
      %v6372 = vshrl.u32 %v6288, 16
      %v6374 = vor.u32 %v6372, %v6370
      %v6376 = vshll.u32 %v6289, 16
      %v6378 = vrot.slane %v6376, 1
      %v6379 = vsel %vm6351, %v6374, %v6378
      %v6380 = vshrl.u32 %v6289, 16
      %v6382 = vor.u32 %v6380, %v6378
      %v6384 = vshll.u32 %v6290, 16
      %v6386 = vrot.slane %v6384, 1
      %v6387 = vsel %vm6351, %v6382, %v6386
      %v6388 = vshrl.u32 %v6290, 16
      %v6390 = vor.u32 %v6388, %v6386
      %v6392 = vshll.u32 %v6291, 16
      %v6394 = vrot.slane %v6392, 1
      %v6395 = vsel %vm6351, %v6390, %v6394
      %v6396 = vshrl.u32 %v6291, 16
      %v6398 = vor.u32 %v6396, %v6394
      %v6400 = vshll.u32 %v6292, 16
      %v6402 = vrot.slane %v6400, 1
      %v6403 = vsel %vm6351, %v6398, %v6402
      %v6404 = vshrl.u32 %v6292, 16
      %v6406 = vor.u32 %v6404, %v6402
      %v6408 = vshll.u32 %v6293, 16
      %v6410 = vrot.slane %v6408, 1
      %v6411 = vsel %vm6351, %v6406, %v6410
      %v6412 = vshrl.u32 %v6293, 16
      %v6414 = vor.u32 %v6412, %v6410
      %v6416 = vshll.u32 %v6294, 16
      %v6418 = vrot.slane %v6416, 1
      %v6419 = vsel %vm6351, %v6414, %v6418
      %v6420 = vshrl.u32 %v6294, 16
      %v6422 = vor.u32 %v6420, %v6418
      %v6424 = vshll.u32 %v6295, 16
      %v6426 = vrot.slane %v6424, 1
      %v6427 = vsel %vm6351, %v6422, %v6426
      %v6428 = vshrl.u32 %v6295, 16
      %v6430 = vor.u32 %v6428, %v6426
      %v6432 = vshll.u32 %v6296, 16
      %v6434 = vrot.slane %v6432, 1
      %v6435 = vsel %vm6351, %v6430, %v6434
      %v6436 = vshrl.u32 %v6296, 16
      %v6438 = vor.u32 %v6436, %v6434
      %v6440 = vshll.u32 %v6297, 16
      %v6442 = vrot.slane %v6440, 1
      %v6443 = vsel %vm6351, %v6438, %v6442
      %v6444 = vshrl.u32 %v6297, 16
      %v6446 = vor.u32 %v6444, %v6442
      %v6448 = vshll.u32 %v6298, 16
      %v6450 = vrot.slane %v6448, 1
      %v6451 = vsel %vm6351, %v6446, %v6450
      %v6452 = vshrl.u32 %v6298, 16
      %v6454 = vor.u32 %v6452, %v6450
      %v6456 = vshll.u32 %v6299, 16
      %v6458 = vrot.slane %v6456, 1
      %v6459 = vsel %vm6351, %v6454, %v6458
      %v6460 = vshrl.u32 %v6299, 16
      %v6462 = vor.u32 %v6460, %v6458
      %v6464 = vshll.u32 %v6300, 16
      %v6466 = vrot.slane %v6464, 1
      %v6467 = vsel %vm6351, %v6462, %v6466
      %v6468 = vshrl.u32 %v6300, 16
      %v6470 = vor.u32 %v6468, %v6466
      %v6472 = vshll.u32 %v6301, 16
      %v6474 = vrot.slane %v6472, 1
      %v6475 = vsel %vm6351, %v6470, %v6474
      %v6476 = vshrl.u32 %v6301, 16
      %v6478 = vor.u32 %v6476, %v6474
      %v6480 = vshll.u32 %v6302, 16
      %v6482 = vrot.slane %v6480, 1
      %v6483 = vsel %vm6351, %v6478, %v6482
      %v6484 = vshrl.u32 %v6302, 16
      %v6486 = vor.u32 %v6484, %v6482
      %v6488 = vshll.u32 %v6303, 16
      %v6490 = vrot.slane %v6488, 1
      %v6491 = vsel %vm6351, %v6486, %v6490
      %v6492 = vshrl.u32 %v6303, 16
      %v6494 = vor.u32 %v6492, %v6490
      %v6496 = vshll.u32 %v6304, 16
      %v6498 = vrot.slane %v6496, 1
      %v6499 = vsel %vm6351, %v6494, %v6498
      %v6500 = vshrl.u32 %v6304, 16
      %v6502 = vor.u32 %v6500, %v6498
      %v6504 = vshll.u32 %v6305, 16
      %v6506 = vrot.slane %v6504, 1
      %v6507 = vsel %vm6351, %v6502, %v6506
      %v6508 = vshrl.u32 %v6305, 16
      %v6510 = vor.u32 %v6508, %v6506
      %v6512 = vshll.u32 %v6306, 16
      %v6514 = vrot.slane %v6512, 1
      %v6515 = vsel %vm6351, %v6510, %v6514
      %v6516 = vshrl.u32 %v6306, 16
      %v6518 = vor.u32 %v6516, %v6514
      %v6520 = vshll.u32 %v6307, 16
      %v6522 = vrot.slane %v6520, 1
      %v6523 = vsel %vm6351, %v6518, %v6522
      %v6524 = vshrl.u32 %v6307, 16
      %v6526 = vor.u32 %v6524, %v6522
      %v6528 = vshll.u32 %v6308, 16
      %v6530 = vrot.slane %v6528, 1
      %v6531 = vsel %vm6351, %v6526, %v6530
      %v6532 = vshrl.u32 %v6308, 16
      %v6534 = vor.u32 %v6532, %v6530
      %v6536 = vshll.u32 %v6309, 16
      %v6538 = vrot.slane %v6536, 1
      %v6539 = vsel %vm6351, %v6534, %v6538
      %v6540 = vshrl.u32 %v6309, 16
      %v6542 = vor.u32 %v6540, %v6538
      %v6544 = vshll.u32 %v6310, 16
      %v6546 = vrot.slane %v6544, 1
      %v6547 = vsel %vm6351, %v6542, %v6546
      %v6548 = vshrl.u32 %v6310, 16
      %v6550 = vor.u32 %v6548, %v6546
      %v6552 = vshll.u32 %v6311, 16
      %v6554 = vrot.slane %v6552, 1
      %v6555 = vsel %vm6351, %v6550, %v6554
      %v6556 = vshrl.u32 %v6311, 16
      %v6558 = vor.u32 %v6556, %v6554
      %v6560 = vshll.u32 %v6312, 16
      %v6562 = vrot.slane %v6560, 1
      %v6563 = vsel %vm6351, %v6558, %v6562
      %v6564 = vshrl.u32 %v6312, 16
      %v6566 = vor.u32 %v6564, %v6562
      %v6568 = vshll.u32 %v6313, 16
      %v6570 = vrot.slane %v6568, 1
      %v6571 = vsel %vm6351, %v6566, %v6570
      %v6572 = vshrl.u32 %v6313, 16
      %v6574 = vor.u32 %v6572, %v6570
      %v6576 = vshll.u32 %v6314, 16
      %v6578 = vrot.slane %v6576, 1
      %v6579 = vsel %vm6351, %v6574, %v6578
      %v6580 = vshrl.u32 %v6314, 16
      %v6582 = vor.u32 %v6580, %v6578
      %v6584 = vshll.u32 %v6315, 16
      %v6586 = vrot.slane %v6584, 1
      %v6587 = vsel %vm6351, %v6582, %v6586
      %v6588 = vshrl.u32 %v6315, 16
      %v6590 = vor.u32 %v6588, %v6586
      %v6592 = vshll.u32 %v6316, 16
      %v6594 = vrot.slane %v6592, 1
      %v6595 = vsel %vm6351, %v6590, %v6594
      %v6596 = vshrl.u32 %v6316, 16
      %v6598 = vor.u32 %v6596, %v6594
      %v6600 = vshll.u32 %v6317, 16
      %v6602 = vrot.slane %v6600, 1
      %v6603 = vsel %vm6351, %v6598, %v6602
      %v6604 = vshrl.u32 %v6317, 16
      %v6606 = vor.u32 %v6604, %v6602
      %v6608 = vshll.u32 %v6318, 16
      %v6610 = vrot.slane %v6608, 1
      %v6611 = vsel %vm6351, %v6606, %v6610
      %v6612 = vshrl.u32 %v6318, 16
      %v6614 = vor.u32 %v6612, %v6610
      %v6616 = vshll.u32 %v6319, 16
      %v6618 = vrot.slane %v6616, 1
      %v6619 = vsel %vm6351, %v6614, %v6618
      %v6620 = vshrl.u32 %v6319, 16
      %v6622 = vor.u32 %v6620, %v6618
      %v6624 = vshll.u32 %v6320, 16
      %v6626 = vrot.slane %v6624, 1
      %v6627 = vsel %vm6351, %v6622, %v6626
      %v6628 = vshrl.u32 %v6320, 16
      %v6630 = vor.u32 %v6628, %v6626
      %v6632 = vshll.u32 %v6321, 16
      %v6634 = vrot.slane %v6632, 1
      %v6635 = vsel %vm6351, %v6630, %v6634
      %v6636 = vshrl.u32 %v6321, 16
      %v6638 = vor.u32 %v6636, %v6634
      %v6640 = vshll.u32 %v6322, 16
      %v6642 = vrot.slane %v6640, 1
      %v6643 = vsel %vm6351, %v6638, %v6642
      %v6644 = vshrl.u32 %v6322, 16
      %v6646 = vor.u32 %v6644, %v6642
      %v6648 = vshll.u32 %v6323, 16
      %v6650 = vrot.slane %v6648, 1
      %v6651 = vsel %vm6351, %v6646, %v6650
      %v6652 = vshrl.u32 %v6323, 16
      %v6654 = vor.u32 %v6652, %v6650
      %v6656 = vshll.u32 %v6324, 16
      %v6658 = vrot.slane %v6656, 1
      %v6659 = vsel %vm6351, %v6654, %v6658
      %v6660 = vshrl.u32 %v6324, 16
      %v6662 = vor.u32 %v6660, %v6658
      %v6664 = vshll.u32 %v6325, 16
      %v6666 = vrot.slane %v6664, 1
      %v6667 = vsel %vm6351, %v6662, %v6666
      %v6668 = vshrl.u32 %v6325, 16
      %v6670 = vor.u32 %v6668, %v6666
      %v6672 = vshll.u32 %v6326, 16
      %v6674 = vrot.slane %v6672, 1
      %v6675 = vsel %vm6351, %v6670, %v6674
      %v6676 = vshrl.u32 %v6326, 16
      %v6678 = vor.u32 %v6676, %v6674
      %v6680 = vshll.u32 %v6327, 16
      %v6682 = vrot.slane %v6680, 1
      %v6683 = vsel %vm6351, %v6678, %v6682
      %v6684 = vshrl.u32 %v6327, 16
      %v6686 = vor.u32 %v6684, %v6682
      %v6688 = vshll.u32 %v6328, 16
      %v6690 = vrot.slane %v6688, 1
      %v6691 = vsel %vm6351, %v6686, %v6690
      %v6692 = vshrl.u32 %v6328, 16
      %v6694 = vor.u32 %v6692, %v6690
      %v6696 = vshll.u32 %v6329, 16
      %v6698 = vrot.slane %v6696, 1
      %v6699 = vsel %vm6351, %v6694, %v6698
      %v6700 = vshrl.u32 %v6329, 16
      %v6702 = vor.u32 %v6700, %v6698
      %v6704 = vshll.u32 %v6330, 16
      %v6706 = vrot.slane %v6704, 1
      %v6707 = vsel %vm6351, %v6702, %v6706
      %v6708 = vshrl.u32 %v6330, 16
      %v6710 = vor.u32 %v6708, %v6706
      %v6712 = vshll.u32 %v6331, 16
      %v6714 = vrot.slane %v6712, 1
      %v6715 = vsel %vm6351, %v6710, %v6714
      %v6716 = vshrl.u32 %v6331, 16
      %v6718 = vor.u32 %v6716, %v6714
      %v6720 = vshll.u32 %v6332, 16
      %v6722 = vrot.slane %v6720, 1
      %v6723 = vsel %vm6351, %v6718, %v6722
      %v6724 = vshrl.u32 %v6332, 16
      %v6726 = vor.u32 %v6724, %v6722
      %v6728 = vshll.u32 %v6333, 16
      %v6730 = vrot.slane %v6728, 1
      %v6731 = vsel %vm6351, %v6726, %v6730
      %v6732 = vshrl.u32 %v6333, 16
      %v6734 = vor.u32 %v6732, %v6730
      %v6736 = vshll.u32 %v6334, 16
      %v6738 = vrot.slane %v6736, 1
      %v6739 = vsel %vm6351, %v6734, %v6738
      %v6740 = vshrl.u32 %v6334, 16
      %v6742 = vor.u32 %v6740, %v6738
      %v6744 = vshll.u32 %v6335, 16
      %v6746 = vrot.slane %v6744, 1
      %v6747 = vsel %vm6351, %v6742, %v6746
      %v6748 = vshrl.u32 %v6335, 16
      %v6750 = vor.u32 %v6748, %v6746
      %v6752 = vshll.u32 %v6336, 16
      %v6754 = vrot.slane %v6752, 1
      %v6755 = vsel %vm6351, %v6750, %v6754
      %v6756 = vshrl.u32 %v6336, 16
      %v6758 = vor.u32 %v6756, %v6754
      %v6760 = vshll.u32 %v6337, 16
      %v6762 = vrot.slane %v6760, 1
      %v6763 = vsel %vm6351, %v6758, %v6762
      %v6764 = vshrl.u32 %v6337, 16
      %v6766 = vor.u32 %v6764, %v6762
      %v6768 = vshll.u32 %v6338, 16
      %v6770 = vrot.slane %v6768, 1
      %v6771 = vsel %vm6351, %v6766, %v6770
      %v6772 = vshrl.u32 %v6338, 16
      %v6774 = vor.u32 %v6772, %v6770
      %v6776 = vshll.u32 %v6339, 16
      %v6778 = vrot.slane %v6776, 1
      %v6779 = vsel %vm6351, %v6774, %v6778
      %v6780 = vshrl.u32 %v6339, 16
      %v6782 = vor.u32 %v6780, %v6778
      %v6784 = vshll.u32 %v6340, 16
      %v6786 = vrot.slane %v6784, 1
      %v6787 = vsel %vm6351, %v6782, %v6786
      %v6788 = vshrl.u32 %v6340, 16
      %v6790 = vor.u32 %v6788, %v6786
      %v6792 = vshll.u32 %v6341, 16
      %v6794 = vrot.slane %v6792, 1
      %v6795 = vsel %vm6351, %v6790, %v6794
      %v6796 = vshrl.u32 %v6341, 16
      %v6798 = vor.u32 %v6796, %v6794
      %v6800 = vshll.u32 %v6342, 16
      %v6802 = vrot.slane %v6800, 1
      %v6803 = vsel %vm6351, %v6798, %v6802
      %v6804 = vshrl.u32 %v6342, 16
      %v6806 = vor.u32 %v6804, %v6802
      %v6808 = vshll.u32 %v6343, 16
      %v6810 = vrot.slane %v6808, 1
      %v6811 = vsel %vm6351, %v6806, %v6810
      %v6812 = vshrl.u32 %v6343, 16
      %v6814 = vor.u32 %v6812, %v6810
      %v6816 = vshll.u32 %v6344, 16
      %v6818 = vrot.slane %v6816, 1
      %v6819 = vsel %vm6351, %v6814, %v6818
      %v6820 = vshrl.u32 %v6344, 16
      %v6822 = vor.u32 %v6820, %v6818
      %v6824 = vshll.u32 %v6345, 16
      %v6826 = vrot.slane %v6824, 1
      %v6827 = vsel %vm6351, %v6822, %v6826
      %v6828 = vshrl.u32 %v6345, 16
      %v6830 = vor.u32 %v6828, %v6826
      %v6832 = vshll.u32 %v6346, 16
      %v6834 = vrot.slane %v6832, 1
      %v6835 = vsel %vm6351, %v6830, %v6834
      %v6836 = vshrl.u32 %v6346, 16
      %v6838 = vor.u32 %v6836, %v6834
      %v6840 = vshll.u32 %v6347, 16
      %v6842 = vrot.slane %v6840, 1
      %v6843 = vsel %vm6351, %v6838, %v6842
      %v6844 = vshrl.u32 %v6347, 16
      %v6846 = vor.u32 %v6844, %v6842
      %v6848 = vshll.u32 %v6348, 16
      %v6850 = vrot.slane %v6848, 1
      %v6851 = vsel %vm6351, %v6846, %v6850
      %v6852 = vshrl.u32 %v6348, 16
      %v6854 = vor.u32 %v6852, %v6850
      %v6856 = vshll.u32 %v6349, 16
      %v6858 = vrot.slane %v6856, 1
      %v6859 = vsel %vm6351, %v6854, %v6858
      %v6860 = vshrl.u32 %v6349, 16
      %v6862 = vor.u32 %v6860, %v6858
      %v6864 = vshll.u32 %v6350, 16
      %v6866 = vrot.slane %v6864, 1
      %v6867 = vsel %vm6351, %v6862, %v6866
      %v6869 = vsel %vm923, %v6363, 0
      %v6872 = vsel %vm923, %v6371, 0
      %v6875 = vsel %vm923, %v6379, 0
      %v6878 = vsel %vm923, %v6387, 0
      %v6881 = vsel %vm923, %v6395, 0
      %v6884 = vsel %vm923, %v6403, 0
      %v6887 = vsel %vm923, %v6411, 0
      %v6890 = vsel %vm923, %v6419, 0
      %v6893 = vsel %vm923, %v6427, 0
      %v6896 = vsel %vm923, %v6435, 0
      %v6899 = vsel %vm923, %v6443, 0
      %v6902 = vsel %vm923, %v6451, 0
      %v6905 = vsel %vm923, %v6459, 0
      %v6908 = vsel %vm923, %v6467, 0
      %v6911 = vsel %vm923, %v6475, 0
      %v6914 = vsel %vm923, %v6483, 0
      %v6917 = vsel %vm923, %v6491, 0
      %v6920 = vsel %vm923, %v6499, 0
      %v6923 = vsel %vm923, %v6507, 0
      %v6926 = vsel %vm923, %v6515, 0
      %v6929 = vsel %vm923, %v6523, 0
      %v6932 = vsel %vm923, %v6531, 0
      %v6935 = vsel %vm923, %v6539, 0
      %v6938 = vsel %vm923, %v6547, 0
      %v6941 = vsel %vm923, %v6555, 0
      %v6944 = vsel %vm923, %v6563, 0
      %v6947 = vsel %vm923, %v6571, 0
      %v6950 = vsel %vm923, %v6579, 0
      %v6953 = vsel %vm923, %v6587, 0
      %v6956 = vsel %vm923, %v6595, 0
      %v6959 = vsel %vm923, %v6603, 0
      %v6962 = vsel %vm923, %v6611, 0
      %v6965 = vsel %vm923, %v6619, 0
      %v6968 = vsel %vm923, %v6627, 0
      %v6971 = vsel %vm923, %v6635, 0
      %v6974 = vsel %vm923, %v6643, 0
      %v6977 = vsel %vm923, %v6651, 0
      %v6980 = vsel %vm923, %v6659, 0
      %v6983 = vsel %vm923, %v6667, 0
      %v6986 = vsel %vm923, %v6675, 0
      %v6989 = vsel %vm923, %v6683, 0
      %v6992 = vsel %vm923, %v6691, 0
      %v6995 = vsel %vm923, %v6699, 0
      %v6998 = vsel %vm923, %v6707, 0
      %v7001 = vsel %vm923, %v6715, 0
      %v7004 = vsel %vm923, %v6723, 0
      %v7007 = vsel %vm923, %v6731, 0
      %v7010 = vsel %vm923, %v6739, 0
      %v7013 = vsel %vm923, %v6747, 0
      %v7016 = vsel %vm923, %v6755, 0
      %v7019 = vsel %vm923, %v6763, 0
      %v7022 = vsel %vm923, %v6771, 0
      %v7025 = vsel %vm923, %v6779, 0
      %v7028 = vsel %vm923, %v6787, 0
      %v7031 = vsel %vm923, %v6795, 0
      %v7034 = vsel %vm923, %v6803, 0
      %v7037 = vsel %vm923, %v6811, 0
      %v7040 = vsel %vm923, %v6819, 0
      %v7043 = vsel %vm923, %v6827, 0
      %v7046 = vsel %vm923, %v6835, 0
      %v7049 = vsel %vm923, %v6843, 0
      %v7052 = vsel %vm923, %v6851, 0
      %v7055 = vsel %vm923, %v6859, 0
      %v7058 = vsel %vm923, %v6867, 0
      %v7061 = vsel %vm1116, %v6027, 0
      %7063 = vmatpush.bf16.msra.mxu0 0
      %7064 = vmatpush.bf16.msra.mxu0 0
      %7065 = vmatpush.bf16.msra.mxu0 0
      %7066 = vmatpush.bf16.msra.mxu0 0
      %7067 = vmatpush.bf16.msra.mxu0 0
      %7068 = vmatpush.bf16.msra.mxu0 0
      %7069 = vmatpush.bf16.msra.mxu0 0
      %7070 = vmatpush.bf16.msra.mxu0 %v7061
      %7071 = vmatmul.bf16.gmra.mxu0 %v6869
      %v7072 = vpop.f32.mrf.mxu0
      %v7073 = vadd.f32 0.0, %v7072
      %v7074 = vpop.f32.mrf.mxu0
      %v7075 = vadd.f32 0.0, %v7074
      %7076 = vmatmul.bf16.gmra.mxu0 %v6872
      %v7077 = vpop.f32.mrf.mxu0
      %v7078 = vadd.f32 0.0, %v7077
      %v7079 = vpop.f32.mrf.mxu0
      %v7080 = vadd.f32 0.0, %v7079
      %7081 = vmatmul.bf16.gmra.mxu0 %v6875
      %v7082 = vpop.f32.mrf.mxu0
      %v7083 = vadd.f32 0.0, %v7082
      %v7084 = vpop.f32.mrf.mxu0
      %v7085 = vadd.f32 0.0, %v7084
      %7086 = vmatmul.bf16.gmra.mxu0 %v6878
      %v7087 = vpop.f32.mrf.mxu0
      %v7088 = vadd.f32 0.0, %v7087
      %v7089 = vpop.f32.mrf.mxu0
      %v7090 = vadd.f32 0.0, %v7089
      %7091 = vmatmul.bf16.gmra.mxu0 %v6881
      %v7092 = vpop.f32.mrf.mxu0
      %v7093 = vadd.f32 0.0, %v7092
      %v7094 = vpop.f32.mrf.mxu0
      %v7095 = vadd.f32 0.0, %v7094
      %7096 = vmatmul.bf16.gmra.mxu0 %v6884
      %v7097 = vpop.f32.mrf.mxu0
      %v7098 = vadd.f32 0.0, %v7097
      %v7099 = vpop.f32.mrf.mxu0
      %v7100 = vadd.f32 0.0, %v7099
      %7101 = vmatmul.bf16.gmra.mxu0 %v6887
      %v7102 = vpop.f32.mrf.mxu0
      %v7103 = vadd.f32 0.0, %v7102
      %v7104 = vpop.f32.mrf.mxu0
      %v7105 = vadd.f32 0.0, %v7104
      %7106 = vmatmul.bf16.gmra.mxu0 %v6890
      %v7107 = vpop.f32.mrf.mxu0
      %v7108 = vadd.f32 0.0, %v7107
      %v7109 = vpop.f32.mrf.mxu0
      %v7110 = vadd.f32 0.0, %v7109
      %7111 = vmatmul.bf16.gmra.mxu0 %v6893
      %v7112 = vpop.f32.mrf.mxu0
      %v7113 = vadd.f32 0.0, %v7112
      %v7114 = vpop.f32.mrf.mxu0
      %v7115 = vadd.f32 0.0, %v7114
      %7116 = vmatmul.bf16.gmra.mxu0 %v6896
      %v7117 = vpop.f32.mrf.mxu0
      %v7118 = vadd.f32 0.0, %v7117
      %v7119 = vpop.f32.mrf.mxu0
      %v7120 = vadd.f32 0.0, %v7119
      %7121 = vmatmul.bf16.gmra.mxu0 %v6899
      %v7122 = vpop.f32.mrf.mxu0
      %v7123 = vadd.f32 0.0, %v7122
      %v7124 = vpop.f32.mrf.mxu0
      %v7125 = vadd.f32 0.0, %v7124
      %7126 = vmatmul.bf16.gmra.mxu0 %v6902
      %v7127 = vpop.f32.mrf.mxu0
      %v7128 = vadd.f32 0.0, %v7127
      %v7129 = vpop.f32.mrf.mxu0
      %v7130 = vadd.f32 0.0, %v7129
      %7131 = vmatmul.bf16.gmra.mxu0 %v6905
      %v7132 = vpop.f32.mrf.mxu0
      %v7133 = vadd.f32 0.0, %v7132
      %v7134 = vpop.f32.mrf.mxu0
      %v7135 = vadd.f32 0.0, %v7134
      %7136 = vmatmul.bf16.gmra.mxu0 %v6908
      %v7137 = vpop.f32.mrf.mxu0
      %v7138 = vadd.f32 0.0, %v7137
      %v7139 = vpop.f32.mrf.mxu0
      %v7140 = vadd.f32 0.0, %v7139
      %7141 = vmatmul.bf16.gmra.mxu0 %v6911
      %v7142 = vpop.f32.mrf.mxu0
      %v7143 = vadd.f32 0.0, %v7142
      %v7144 = vpop.f32.mrf.mxu0
      %v7145 = vadd.f32 0.0, %v7144
      %7146 = vmatmul.bf16.gmra.mxu0 %v6914
      %v7147 = vpop.f32.mrf.mxu0
      %v7148 = vadd.f32 0.0, %v7147
      %v7149 = vpop.f32.mrf.mxu0
      %v7150 = vadd.f32 0.0, %v7149
      %7151 = vmatmul.bf16.gmra.mxu0 %v6917
      %v7152 = vpop.f32.mrf.mxu0
      %v7153 = vadd.f32 0.0, %v7152
      %v7154 = vpop.f32.mrf.mxu0
      %v7155 = vadd.f32 0.0, %v7154
      %7156 = vmatmul.bf16.gmra.mxu0 %v6920
      %v7157 = vpop.f32.mrf.mxu0
      %v7158 = vadd.f32 0.0, %v7157
      %v7159 = vpop.f32.mrf.mxu0
      %v7160 = vadd.f32 0.0, %v7159
      %7161 = vmatmul.bf16.gmra.mxu0 %v6923
      %v7162 = vpop.f32.mrf.mxu0
      %v7163 = vadd.f32 0.0, %v7162
      %v7164 = vpop.f32.mrf.mxu0
      %v7165 = vadd.f32 0.0, %v7164
      %7166 = vmatmul.bf16.gmra.mxu0 %v6926
      %v7167 = vpop.f32.mrf.mxu0
      %v7168 = vadd.f32 0.0, %v7167
      %v7169 = vpop.f32.mrf.mxu0
      %v7170 = vadd.f32 0.0, %v7169
      %7171 = vmatmul.bf16.gmra.mxu0 %v6929
      %v7172 = vpop.f32.mrf.mxu0
      %v7173 = vadd.f32 0.0, %v7172
      %v7174 = vpop.f32.mrf.mxu0
      %v7175 = vadd.f32 0.0, %v7174
      %7176 = vmatmul.bf16.gmra.mxu0 %v6932
      %v7177 = vpop.f32.mrf.mxu0
      %v7178 = vadd.f32 0.0, %v7177
      %v7179 = vpop.f32.mrf.mxu0
      %v7180 = vadd.f32 0.0, %v7179
      %7181 = vmatmul.bf16.gmra.mxu0 %v6935
      %v7182 = vpop.f32.mrf.mxu0
      %v7183 = vadd.f32 0.0, %v7182
      %v7184 = vpop.f32.mrf.mxu0
      %v7185 = vadd.f32 0.0, %v7184
      %7186 = vmatmul.bf16.gmra.mxu0 %v6938
      %v7187 = vpop.f32.mrf.mxu0
      %v7188 = vadd.f32 0.0, %v7187
      %v7189 = vpop.f32.mrf.mxu0
      %v7190 = vadd.f32 0.0, %v7189
      %7191 = vmatmul.bf16.gmra.mxu0 %v6941
      %v7192 = vpop.f32.mrf.mxu0
      %v7193 = vadd.f32 0.0, %v7192
      %v7194 = vpop.f32.mrf.mxu0
      %v7195 = vadd.f32 0.0, %v7194
      %7196 = vmatmul.bf16.gmra.mxu0 %v6944
      %v7197 = vpop.f32.mrf.mxu0
      %v7198 = vadd.f32 0.0, %v7197
      %v7199 = vpop.f32.mrf.mxu0
      %v7200 = vadd.f32 0.0, %v7199
      %7201 = vmatmul.bf16.gmra.mxu0 %v6947
      %v7202 = vpop.f32.mrf.mxu0
      %v7203 = vadd.f32 0.0, %v7202
      %v7204 = vpop.f32.mrf.mxu0
      %v7205 = vadd.f32 0.0, %v7204
      %7206 = vmatmul.bf16.gmra.mxu0 %v6950
      %v7207 = vpop.f32.mrf.mxu0
      %v7208 = vadd.f32 0.0, %v7207
      %v7209 = vpop.f32.mrf.mxu0
      %v7210 = vadd.f32 0.0, %v7209
      %7211 = vmatmul.bf16.gmra.mxu0 %v6953
      %v7212 = vpop.f32.mrf.mxu0
      %v7213 = vadd.f32 0.0, %v7212
      %v7214 = vpop.f32.mrf.mxu0
      %v7215 = vadd.f32 0.0, %v7214
      %7216 = vmatmul.bf16.gmra.mxu0 %v6956
      %v7217 = vpop.f32.mrf.mxu0
      %v7218 = vadd.f32 0.0, %v7217
      %v7219 = vpop.f32.mrf.mxu0
      %v7220 = vadd.f32 0.0, %v7219
      %7221 = vmatmul.bf16.gmra.mxu0 %v6959
      %v7222 = vpop.f32.mrf.mxu0
      %v7223 = vadd.f32 0.0, %v7222
      %v7224 = vpop.f32.mrf.mxu0
      %v7225 = vadd.f32 0.0, %v7224
      %7226 = vmatmul.bf16.gmra.mxu0 %v6962
      %v7227 = vpop.f32.mrf.mxu0
      %v7228 = vadd.f32 0.0, %v7227
      %v7229 = vpop.f32.mrf.mxu0
      %v7230 = vadd.f32 0.0, %v7229
      %7231 = vmatmul.bf16.gmra.mxu0 %v6965
      %v7232 = vpop.f32.mrf.mxu0
      %v7233 = vadd.f32 0.0, %v7232
      %v7234 = vpop.f32.mrf.mxu0
      %v7235 = vadd.f32 0.0, %v7234
      %7236 = vmatmul.bf16.gmra.mxu0 %v6968
      %v7237 = vpop.f32.mrf.mxu0
      %v7238 = vadd.f32 0.0, %v7237
      %v7239 = vpop.f32.mrf.mxu0
      %v7240 = vadd.f32 0.0, %v7239
      %7241 = vmatmul.bf16.gmra.mxu0 %v6971
      %v7242 = vpop.f32.mrf.mxu0
      %v7243 = vadd.f32 0.0, %v7242
      %v7244 = vpop.f32.mrf.mxu0
      %v7245 = vadd.f32 0.0, %v7244
      %7246 = vmatmul.bf16.gmra.mxu0 %v6974
      %v7247 = vpop.f32.mrf.mxu0
      %v7248 = vadd.f32 0.0, %v7247
      %v7249 = vpop.f32.mrf.mxu0
      %v7250 = vadd.f32 0.0, %v7249
      %7251 = vmatmul.bf16.gmra.mxu0 %v6977
      %v7252 = vpop.f32.mrf.mxu0
      %v7253 = vadd.f32 0.0, %v7252
      %v7254 = vpop.f32.mrf.mxu0
      %v7255 = vadd.f32 0.0, %v7254
      %7256 = vmatmul.bf16.gmra.mxu0 %v6980
      %v7257 = vpop.f32.mrf.mxu0
      %v7258 = vadd.f32 0.0, %v7257
      %v7259 = vpop.f32.mrf.mxu0
      %v7260 = vadd.f32 0.0, %v7259
      %7261 = vmatmul.bf16.gmra.mxu0 %v6983
      %v7262 = vpop.f32.mrf.mxu0
      %v7263 = vadd.f32 0.0, %v7262
      %v7264 = vpop.f32.mrf.mxu0
      %v7265 = vadd.f32 0.0, %v7264
      %7266 = vmatmul.bf16.gmra.mxu0 %v6986
      %v7267 = vpop.f32.mrf.mxu0
      %v7268 = vadd.f32 0.0, %v7267
      %v7269 = vpop.f32.mrf.mxu0
      %v7270 = vadd.f32 0.0, %v7269
      %7271 = vmatmul.bf16.gmra.mxu0 %v6989
      %v7272 = vpop.f32.mrf.mxu0
      %v7273 = vadd.f32 0.0, %v7272
      %v7274 = vpop.f32.mrf.mxu0
      %v7275 = vadd.f32 0.0, %v7274
      %7276 = vmatmul.bf16.gmra.mxu0 %v6992
      %v7277 = vpop.f32.mrf.mxu0
      %v7278 = vadd.f32 0.0, %v7277
      %v7279 = vpop.f32.mrf.mxu0
      %v7280 = vadd.f32 0.0, %v7279
      %7281 = vmatmul.bf16.gmra.mxu0 %v6995
      %v7282 = vpop.f32.mrf.mxu0
      %v7283 = vadd.f32 0.0, %v7282
      %v7284 = vpop.f32.mrf.mxu0
      %v7285 = vadd.f32 0.0, %v7284
      %7286 = vmatmul.bf16.gmra.mxu0 %v6998
      %v7287 = vpop.f32.mrf.mxu0
      %v7288 = vadd.f32 0.0, %v7287
      %v7289 = vpop.f32.mrf.mxu0
      %v7290 = vadd.f32 0.0, %v7289
      %7291 = vmatmul.bf16.gmra.mxu0 %v7001
      %v7292 = vpop.f32.mrf.mxu0
      %v7293 = vadd.f32 0.0, %v7292
      %v7294 = vpop.f32.mrf.mxu0
      %v7295 = vadd.f32 0.0, %v7294
      %7296 = vmatmul.bf16.gmra.mxu0 %v7004
      %v7297 = vpop.f32.mrf.mxu0
      %v7298 = vadd.f32 0.0, %v7297
      %v7299 = vpop.f32.mrf.mxu0
      %v7300 = vadd.f32 0.0, %v7299
      %7301 = vmatmul.bf16.gmra.mxu0 %v7007
      %v7302 = vpop.f32.mrf.mxu0
      %v7303 = vadd.f32 0.0, %v7302
      %v7304 = vpop.f32.mrf.mxu0
      %v7305 = vadd.f32 0.0, %v7304
      %7306 = vmatmul.bf16.gmra.mxu0 %v7010
      %v7307 = vpop.f32.mrf.mxu0
      %v7308 = vadd.f32 0.0, %v7307
      %v7309 = vpop.f32.mrf.mxu0
      %v7310 = vadd.f32 0.0, %v7309
      %7311 = vmatmul.bf16.gmra.mxu0 %v7013
      %v7312 = vpop.f32.mrf.mxu0
      %v7313 = vadd.f32 0.0, %v7312
      %v7314 = vpop.f32.mrf.mxu0
      %v7315 = vadd.f32 0.0, %v7314
      %7316 = vmatmul.bf16.gmra.mxu0 %v7016
      %v7317 = vpop.f32.mrf.mxu0
      %v7318 = vadd.f32 0.0, %v7317
      %v7319 = vpop.f32.mrf.mxu0
      %v7320 = vadd.f32 0.0, %v7319
      %7321 = vmatmul.bf16.gmra.mxu0 %v7019
      %v7322 = vpop.f32.mrf.mxu0
      %v7323 = vadd.f32 0.0, %v7322
      %v7324 = vpop.f32.mrf.mxu0
      %v7325 = vadd.f32 0.0, %v7324
      %7326 = vmatmul.bf16.gmra.mxu0 %v7022
      %v7327 = vpop.f32.mrf.mxu0
      %v7328 = vadd.f32 0.0, %v7327
      %v7329 = vpop.f32.mrf.mxu0
      %v7330 = vadd.f32 0.0, %v7329
      %7331 = vmatmul.bf16.gmra.mxu0 %v7025
      %v7332 = vpop.f32.mrf.mxu0
      %v7333 = vadd.f32 0.0, %v7332
      %v7334 = vpop.f32.mrf.mxu0
      %v7335 = vadd.f32 0.0, %v7334
      %7336 = vmatmul.bf16.gmra.mxu0 %v7028
      %v7337 = vpop.f32.mrf.mxu0
      %v7338 = vadd.f32 0.0, %v7337
      %v7339 = vpop.f32.mrf.mxu0
      %v7340 = vadd.f32 0.0, %v7339
      %7341 = vmatmul.bf16.gmra.mxu0 %v7031
      %v7342 = vpop.f32.mrf.mxu0
      %v7343 = vadd.f32 0.0, %v7342
      %v7344 = vpop.f32.mrf.mxu0
      %v7345 = vadd.f32 0.0, %v7344
      %7346 = vmatmul.bf16.gmra.mxu0 %v7034
      %v7347 = vpop.f32.mrf.mxu0
      %v7348 = vadd.f32 0.0, %v7347
      %v7349 = vpop.f32.mrf.mxu0
      %v7350 = vadd.f32 0.0, %v7349
      %7351 = vmatmul.bf16.gmra.mxu0 %v7037
      %v7352 = vpop.f32.mrf.mxu0
      %v7353 = vadd.f32 0.0, %v7352
      %v7354 = vpop.f32.mrf.mxu0
      %v7355 = vadd.f32 0.0, %v7354
      %7356 = vmatmul.bf16.gmra.mxu0 %v7040
      %v7357 = vpop.f32.mrf.mxu0
      %v7358 = vadd.f32 0.0, %v7357
      %v7359 = vpop.f32.mrf.mxu0
      %v7360 = vadd.f32 0.0, %v7359
      %7361 = vmatmul.bf16.gmra.mxu0 %v7043
      %v7362 = vpop.f32.mrf.mxu0
      %v7363 = vadd.f32 0.0, %v7362
      %v7364 = vpop.f32.mrf.mxu0
      %v7365 = vadd.f32 0.0, %v7364
      %7366 = vmatmul.bf16.gmra.mxu0 %v7046
      %v7367 = vpop.f32.mrf.mxu0
      %v7368 = vadd.f32 0.0, %v7367
      %v7369 = vpop.f32.mrf.mxu0
      %v7370 = vadd.f32 0.0, %v7369
      %7371 = vmatmul.bf16.gmra.mxu0 %v7049
      %v7372 = vpop.f32.mrf.mxu0
      %v7373 = vadd.f32 0.0, %v7372
      %v7374 = vpop.f32.mrf.mxu0
      %v7375 = vadd.f32 0.0, %v7374
      %7376 = vmatmul.bf16.gmra.mxu0 %v7052
      %v7377 = vpop.f32.mrf.mxu0
      %v7378 = vadd.f32 0.0, %v7377
      %v7379 = vpop.f32.mrf.mxu0
      %v7380 = vadd.f32 0.0, %v7379
      %7381 = vmatmul.bf16.gmra.mxu0 %v7055
      %v7382 = vpop.f32.mrf.mxu0
      %v7383 = vadd.f32 0.0, %v7382
      %v7384 = vpop.f32.mrf.mxu0
      %v7385 = vadd.f32 0.0, %v7384
      %7386 = vmatmul.bf16.gmra.mxu0 %v7058
      %v7387 = vpop.f32.mrf.mxu0
      %v7388 = vadd.f32 0.0, %v7387
      %v7389 = vpop.f32.mrf.mxu0
      %v7390 = vadd.f32 0.0, %v7389
      %7391 = vdwg.mxu0
      %v7392 = vadd.f32 %v5769, %v7073
      %v7393 = vadd.f32 %v5770, %v7075
      %v7394 = vadd.f32 %v5771, %v7078
      %v7395 = vadd.f32 %v5772, %v7080
      %v7396 = vadd.f32 %v5773, %v7083
      %v7397 = vadd.f32 %v5774, %v7085
      %v7398 = vadd.f32 %v5775, %v7088
      %v7399 = vadd.f32 %v5776, %v7090
      %v7400 = vadd.f32 %v5777, %v7093
      %v7401 = vadd.f32 %v5778, %v7095
      %v7402 = vadd.f32 %v5779, %v7098
      %v7403 = vadd.f32 %v5780, %v7100
      %v7404 = vadd.f32 %v5781, %v7103
      %v7405 = vadd.f32 %v5782, %v7105
      %v7406 = vadd.f32 %v5783, %v7108
      %v7407 = vadd.f32 %v5784, %v7110
      %v7408 = vadd.f32 %v5785, %v7113
      %v7409 = vadd.f32 %v5786, %v7115
      %v7410 = vadd.f32 %v5787, %v7118
      %v7411 = vadd.f32 %v5788, %v7120
      %v7412 = vadd.f32 %v5789, %v7123
      %v7413 = vadd.f32 %v5790, %v7125
      %v7414 = vadd.f32 %v5791, %v7128
      %v7415 = vadd.f32 %v5792, %v7130
      %v7416 = vadd.f32 %v5793, %v7133
      %v7417 = vadd.f32 %v5794, %v7135
      %v7418 = vadd.f32 %v5795, %v7138
      %v7419 = vadd.f32 %v5796, %v7140
      %v7420 = vadd.f32 %v5797, %v7143
      %v7421 = vadd.f32 %v5798, %v7145
      %v7422 = vadd.f32 %v5799, %v7148
      %v7423 = vadd.f32 %v5800, %v7150
      %v7424 = vadd.f32 %v5801, %v7153
      %v7425 = vadd.f32 %v5802, %v7155
      %v7426 = vadd.f32 %v5803, %v7158
      %v7427 = vadd.f32 %v5804, %v7160
      %v7428 = vadd.f32 %v5805, %v7163
      %v7429 = vadd.f32 %v5806, %v7165
      %v7430 = vadd.f32 %v5807, %v7168
      %v7431 = vadd.f32 %v5808, %v7170
      %v7432 = vadd.f32 %v5809, %v7173
      %v7433 = vadd.f32 %v5810, %v7175
      %v7434 = vadd.f32 %v5811, %v7178
      %v7435 = vadd.f32 %v5812, %v7180
      %v7436 = vadd.f32 %v5813, %v7183
      %v7437 = vadd.f32 %v5814, %v7185
      %v7438 = vadd.f32 %v5815, %v7188
      %v7439 = vadd.f32 %v5816, %v7190
      %v7440 = vadd.f32 %v5817, %v7193
      %v7441 = vadd.f32 %v5818, %v7195
      %v7442 = vadd.f32 %v5819, %v7198
      %v7443 = vadd.f32 %v5820, %v7200
      %v7444 = vadd.f32 %v5821, %v7203
      %v7445 = vadd.f32 %v5822, %v7205
      %v7446 = vadd.f32 %v5823, %v7208
      %v7447 = vadd.f32 %v5824, %v7210
      %v7448 = vadd.f32 %v5825, %v7213
      %v7449 = vadd.f32 %v5826, %v7215
      %v7450 = vadd.f32 %v5827, %v7218
      %v7451 = vadd.f32 %v5828, %v7220
      %v7452 = vadd.f32 %v5829, %v7223
      %v7453 = vadd.f32 %v5830, %v7225
      %v7454 = vadd.f32 %v5831, %v7228
      %v7455 = vadd.f32 %v5832, %v7230
      %v7456 = vadd.f32 %v5833, %v7233
      %v7457 = vadd.f32 %v5834, %v7235
      %v7458 = vadd.f32 %v5835, %v7238
      %v7459 = vadd.f32 %v5836, %v7240
      %v7460 = vadd.f32 %v5837, %v7243
      %v7461 = vadd.f32 %v5838, %v7245
      %v7462 = vadd.f32 %v5839, %v7248
      %v7463 = vadd.f32 %v5840, %v7250
      %v7464 = vadd.f32 %v5841, %v7253
      %v7465 = vadd.f32 %v5842, %v7255
      %v7466 = vadd.f32 %v5843, %v7258
      %v7467 = vadd.f32 %v5844, %v7260
      %v7468 = vadd.f32 %v5845, %v7263
      %v7469 = vadd.f32 %v5846, %v7265
      %v7470 = vadd.f32 %v5847, %v7268
      %v7471 = vadd.f32 %v5848, %v7270
      %v7472 = vadd.f32 %v5849, %v7273
      %v7473 = vadd.f32 %v5850, %v7275
      %v7474 = vadd.f32 %v5851, %v7278
      %v7475 = vadd.f32 %v5852, %v7280
      %v7476 = vadd.f32 %v5853, %v7283
      %v7477 = vadd.f32 %v5854, %v7285
      %v7478 = vadd.f32 %v5855, %v7288
      %v7479 = vadd.f32 %v5856, %v7290
      %v7480 = vadd.f32 %v5857, %v7293
      %v7481 = vadd.f32 %v5858, %v7295
      %v7482 = vadd.f32 %v5859, %v7298
      %v7483 = vadd.f32 %v5860, %v7300
      %v7484 = vadd.f32 %v5861, %v7303
      %v7485 = vadd.f32 %v5862, %v7305
      %v7486 = vadd.f32 %v5863, %v7308
      %v7487 = vadd.f32 %v5864, %v7310
      %v7488 = vadd.f32 %v5865, %v7313
      %v7489 = vadd.f32 %v5866, %v7315
      %v7490 = vadd.f32 %v5867, %v7318
      %v7491 = vadd.f32 %v5868, %v7320
      %v7492 = vadd.f32 %v5869, %v7323
      %v7493 = vadd.f32 %v5870, %v7325
      %v7494 = vadd.f32 %v5871, %v7328
      %v7495 = vadd.f32 %v5872, %v7330
      %v7496 = vadd.f32 %v5873, %v7333
      %v7497 = vadd.f32 %v5874, %v7335
      %v7498 = vadd.f32 %v5875, %v7338
      %v7499 = vadd.f32 %v5876, %v7340
      %v7500 = vadd.f32 %v5877, %v7343
      %v7501 = vadd.f32 %v5878, %v7345
      %v7502 = vadd.f32 %v5879, %v7348
      %v7503 = vadd.f32 %v5880, %v7350
      %v7504 = vadd.f32 %v5881, %v7353
      %v7505 = vadd.f32 %v5882, %v7355
      %v7506 = vadd.f32 %v5883, %v7358
      %v7507 = vadd.f32 %v5884, %v7360
      %v7508 = vadd.f32 %v5885, %v7363
      %v7509 = vadd.f32 %v5886, %v7365
      %v7510 = vadd.f32 %v5887, %v7368
      %v7511 = vadd.f32 %v5888, %v7370
      %v7512 = vadd.f32 %v5889, %v7373
      %v7513 = vadd.f32 %v5890, %v7375
      %v7514 = vadd.f32 %v5891, %v7378
      %v7515 = vadd.f32 %v5892, %v7380
      %v7516 = vadd.f32 %v5893, %v7383
      %v7517 = vadd.f32 %v5894, %v7385
      %v7518 = vadd.f32 %v5895, %v7388
      %v7519 = vadd.f32 %v5896, %v7390
      %v7520 = vld [vmem:[#allocation2 + $0x74] sm:$0xf]
      %v7521 = vld [vmem:[#allocation2 + $0x78] sm:$0xf]
      %v7522 = vld [vmem:[#allocation2 + $0x7c] sm:$0xf]
      %v7523 = vld [vmem:[#allocation2 + $0x80] sm:$0xf]
      %v7524 = vld [vmem:[#allocation2 + $0x84] sm:$0xf]
      %v7525 = vld [vmem:[#allocation2 + $0x88] sm:$0xf]
      %v7526 = vld [vmem:[#allocation2 + $0x8c] sm:$0xf]
      %v7527 = vld [vmem:[#allocation2 + $0x90] sm:$0xf]
      %v7528 = vld [vmem:[#allocation2 + $0x94] sm:$0xf]
      %v7529 = vld [vmem:[#allocation2 + $0x98] sm:$0xf]
      %v7530 = vld [vmem:[#allocation2 + $0x9c] sm:$0xf]
      %v7531 = vld [vmem:[#allocation2 + $0xa0] sm:$0xf]
      %v7532 = vld [vmem:[#allocation2 + $0xa4] sm:$0xf]
      %v7533 = vld [vmem:[#allocation2 + $0xa8] sm:$0xf]
      %v7534 = vld [vmem:[#allocation2 + $0xac] sm:$0xf]
      %v7535 = vld [vmem:[#allocation2 + $0xb0] sm:$0xf]
      %v7536 = vld [vmem:[#allocation2 + $0xb4] sm:$0xf]
      %v7537 = vld [vmem:[#allocation2 + $0xb8] sm:$0xf]
      %v7538 = vld [vmem:[#allocation2 + $0xbc] sm:$0xf]
      %v7539 = vld [vmem:[#allocation2 + $0xc0] sm:$0xf]
      %v7540 = vld [vmem:[#allocation2 + $0xc4] sm:$0xf]
      %v7541 = vld [vmem:[#allocation2 + $0xc8] sm:$0xf]
      %v7542 = vld [vmem:[#allocation2 + $0xcc] sm:$0xf]
      %v7543 = vld [vmem:[#allocation2 + $0xd0] sm:$0xf]
      %v7544 = vld [vmem:[#allocation2 + $0xd4] sm:$0xf]
      %v7545 = vld [vmem:[#allocation2 + $0xd8] sm:$0xf]
      %v7546 = vld [vmem:[#allocation2 + $0xdc] sm:$0xf]
      %v7547 = vld [vmem:[#allocation2 + $0xe0] sm:$0xf]
      %v7548 = vld [vmem:[#allocation2 + $0xe4] sm:$0xf]
      %v7549 = vld [vmem:[#allocation2 + $0xe8] sm:$0xf]
      %v7550 = vld [vmem:[#allocation2 + $0xec] sm:$0xf]
      %v7551 = vld [vmem:[#allocation2 + $0xf0] sm:$0xf]
      %v7552 = vld [vmem:[#allocation2 + $0xf4] sm:$0xf]
      %v7553 = vld [vmem:[#allocation2 + $0xf8] sm:$0xf]
      %v7554 = vld [vmem:[#allocation2 + $0xfc] sm:$0xf]
      %v7555 = vld [vmem:[#allocation2 + $0x100] sm:$0xf]
      %v7556 = vld [vmem:[#allocation2 + $0x104] sm:$0xf]
      %v7557 = vld [vmem:[#allocation2 + $0x108] sm:$0xf]
      %v7558 = vld [vmem:[#allocation2 + $0x10c] sm:$0xf]
      %v7559 = vld [vmem:[#allocation2 + $0x110] sm:$0xf]
      %v7560 = vld [vmem:[#allocation2 + $0x114] sm:$0xf]
      %v7561 = vld [vmem:[#allocation2 + $0x118] sm:$0xf]
      %v7562 = vld [vmem:[#allocation2 + $0x11c] sm:$0xf]
      %v7563 = vld [vmem:[#allocation2 + $0x120] sm:$0xf]
      %v7564 = vld [vmem:[#allocation2 + $0x124] sm:$0xf]
      %v7565 = vld [vmem:[#allocation2 + $0x128] sm:$0xf]
      %v7566 = vld [vmem:[#allocation2 + $0x12c] sm:$0xf]
      %v7567 = vld [vmem:[#allocation2 + $0x130] sm:$0xf]
      %v7568 = vld [vmem:[#allocation2 + $0x134] sm:$0xf]
      %v7569 = vld [vmem:[#allocation2 + $0x138] sm:$0xf]
      %v7570 = vld [vmem:[#allocation2 + $0x13c] sm:$0xf]
      %v7571 = vld [vmem:[#allocation2 + $0x140] sm:$0xf]
      %v7572 = vld [vmem:[#allocation2 + $0x144] sm:$0xf]
      %v7573 = vld [vmem:[#allocation2 + $0x148] sm:$0xf]
      %v7574 = vld [vmem:[#allocation2 + $0x14c] sm:$0xf]
      %v7575 = vld [vmem:[#allocation2 + $0x150] sm:$0xf]
      %v7576 = vld [vmem:[#allocation2 + $0x154] sm:$0xf]
      %v7577 = vld [vmem:[#allocation2 + $0x158] sm:$0xf]
      %v7578 = vld [vmem:[#allocation2 + $0x15c] sm:$0xf]
      %v7579 = vld [vmem:[#allocation2 + $0x160] sm:$0xf]
      %v7580 = vld [vmem:[#allocation2 + $0x164] sm:$0xf]
      %v7581 = vld [vmem:[#allocation2 + $0x168] sm:$0xf]
      %v7582 = vld [vmem:[#allocation2 + $0x16c] sm:$0xf]
      %v7583 = vld [vmem:[#allocation2 + $0x170] sm:$0xf]
      %v7584 = vld [vmem:[#allocation2 + $0x174] sm:$0xf]
      %v7585 = vld [vmem:[#allocation2 + $0x178] sm:$0xf]
      %v7586 = vld [vmem:[#allocation2 + $0x17c] sm:$0xf]
      %v7587 = vld [vmem:[#allocation2 + $0x180] sm:$0xf]
      %v7588 = vld [vmem:[#allocation2 + $0x184] sm:$0xf]
      %v7589 = vld [vmem:[#allocation2 + $0x188] sm:$0xf]
      %v7590 = vld [vmem:[#allocation2 + $0x18c] sm:$0xf]
      %v7591 = vld [vmem:[#allocation2 + $0x190] sm:$0xf]
      %v7592 = vld [vmem:[#allocation2 + $0x194] sm:$0xf]
      %v7593 = vld [vmem:[#allocation2 + $0x198] sm:$0xf]
      %v7594 = vld [vmem:[#allocation2 + $0x19c] sm:$0xf]
      %v7595 = vld [vmem:[#allocation2 + $0x1a0] sm:$0xf]
      %v7596 = vld [vmem:[#allocation2 + $0x1a4] sm:$0xf]
      %v7597 = vld [vmem:[#allocation2 + $0x1a8] sm:$0xf]
      %v7598 = vld [vmem:[#allocation2 + $0x1ac] sm:$0xf]
      %v7599 = vld [vmem:[#allocation2 + $0x1b0] sm:$0xf]
      %v7600 = vld [vmem:[#allocation2 + $0x1b4] sm:$0xf]
      %v7601 = vld [vmem:[#allocation2 + $0x1b8] sm:$0xf]
      %v7602 = vld [vmem:[#allocation2 + $0x1bc] sm:$0xf]
      %v7603 = vld [vmem:[#allocation2 + $0x1c0] sm:$0xf]
      %v7604 = vld [vmem:[#allocation2 + $0x1c4] sm:$0xf]
      %v7605 = vld [vmem:[#allocation2 + $0x1c8] sm:$0xf]
      %v7606 = vld [vmem:[#allocation2 + $0x1cc] sm:$0xf]
      %v7607 = vld [vmem:[#allocation2 + $0x1d0] sm:$0xf]
      %v7608 = vld [vmem:[#allocation2 + $0x1d4] sm:$0xf]
      %v7609 = vld [vmem:[#allocation2 + $0x1d8] sm:$0xf]
      %v7610 = vld [vmem:[#allocation2 + $0x1dc] sm:$0xf]
      %v7611 = vld [vmem:[#allocation2 + $0x1e0] sm:$0xf]
      %v7612 = vld [vmem:[#allocation2 + $0x1e4] sm:$0xf]
      %v7613 = vld [vmem:[#allocation2 + $0x1e8] sm:$0xf]
      %v7614 = vld [vmem:[#allocation2 + $0x1ec] sm:$0xf]
      %v7615 = vld [vmem:[#allocation2 + $0x1f0] sm:$0xf]
      %v7616 = vld [vmem:[#allocation2 + $0x1f4] sm:$0xf]
      %v7617 = vld [vmem:[#allocation2 + $0x1f8] sm:$0xf]
      %v7618 = vld [vmem:[#allocation2 + $0x1fc] sm:$0xf]
      %v7619 = vld [vmem:[#allocation2 + $0x200] sm:$0xf]
      %v7620 = vld [vmem:[#allocation2 + $0x204] sm:$0xf]
      %v7621 = vld [vmem:[#allocation2 + $0x208] sm:$0xf]
      %v7622 = vld [vmem:[#allocation2 + $0x20c] sm:$0xf]
      %v7623 = vld [vmem:[#allocation2 + $0x210] sm:$0xf]
      %v7624 = vld [vmem:[#allocation2 + $0x214] sm:$0xf]
      %v7625 = vld [vmem:[#allocation2 + $0x218] sm:$0xf]
      %v7626 = vld [vmem:[#allocation2 + $0x21c] sm:$0xf]
      %v7627 = vld [vmem:[#allocation2 + $0x220] sm:$0xf]
      %v7628 = vld [vmem:[#allocation2 + $0x224] sm:$0xf]
      %v7629 = vld [vmem:[#allocation2 + $0x228] sm:$0xf]
      %v7630 = vld [vmem:[#allocation2 + $0x22c] sm:$0xf]
      %v7631 = vld [vmem:[#allocation2 + $0x230] sm:$0xf]
      %v7632 = vld [vmem:[#allocation2 + $0x234] sm:$0xf]
      %v7633 = vld [vmem:[#allocation2 + $0x238] sm:$0xf]
      %v7634 = vld [vmem:[#allocation2 + $0x23c] sm:$0xf]
      %v7635 = vld [vmem:[#allocation2 + $0x240] sm:$0xf]
      %v7636 = vld [vmem:[#allocation2 + $0x244] sm:$0xf]
      %v7637 = vld [vmem:[#allocation2 + $0x248] sm:$0xf]
      %v7638 = vld [vmem:[#allocation2 + $0x24c] sm:$0xf]
      %v7639 = vld [vmem:[#allocation2 + $0x250] sm:$0xf]
      %v7640 = vld [vmem:[#allocation2 + $0x254] sm:$0xf]
      %v7641 = vld [vmem:[#allocation2 + $0x258] sm:$0xf]
      %v7642 = vld [vmem:[#allocation2 + $0x25c] sm:$0xf]
      %v7643 = vld [vmem:[#allocation2 + $0x260] sm:$0xf]
      %v7644 = vld [vmem:[#allocation2 + $0x264] sm:$0xf]
      %v7645 = vld [vmem:[#allocation2 + $0x268] sm:$0xf]
      %v7646 = vld [vmem:[#allocation2 + $0x26c] sm:$0xf]
      %v7647 = vld [vmem:[#allocation2 + $0x270] sm:$0xf]
      %v7648 = vld [vmem:[#allocation2 + $0x274] sm:$0x1]
      %s7649 = scalar_lea.vmem %s1, 24
      %v7650 = vld [vmem:[%s7649] sm:$0xf]
      %v7780 = vunpack.c.l.b16 %v7520
      %v7781 = vunpack.c.l.b16 %v7521
      %v7782 = vunpack.c.l.b16 %v7522
      %v7783 = vunpack.c.l.b16 %v7523
      %v7784 = vunpack.c.l.b16 %v7524
      %v7785 = vunpack.c.l.b16 %v7525
      %v7786 = vunpack.c.l.b16 %v7526
      %v7787 = vunpack.c.l.b16 %v7527
      %v7788 = vunpack.c.l.b16 %v7528
      %v7789 = vunpack.c.l.b16 %v7529
      %v7790 = vunpack.c.l.b16 %v7530
      %v7791 = vunpack.c.l.b16 %v7531
      %v7792 = vunpack.c.l.b16 %v7532
      %v7793 = vunpack.c.l.b16 %v7533
      %v7794 = vunpack.c.l.b16 %v7534
      %v7795 = vunpack.c.l.b16 %v7535
      %v7796 = vunpack.c.l.b16 %v7536
      %v7797 = vunpack.c.l.b16 %v7537
      %v7798 = vunpack.c.l.b16 %v7538
      %v7799 = vunpack.c.l.b16 %v7539
      %v7800 = vunpack.c.l.b16 %v7540
      %v7801 = vunpack.c.l.b16 %v7541
      %v7802 = vunpack.c.l.b16 %v7542
      %v7803 = vunpack.c.l.b16 %v7543
      %v7804 = vunpack.c.l.b16 %v7544
      %v7805 = vunpack.c.l.b16 %v7545
      %v7806 = vunpack.c.l.b16 %v7546
      %v7807 = vunpack.c.l.b16 %v7547
      %v7808 = vunpack.c.l.b16 %v7548
      %v7809 = vunpack.c.l.b16 %v7549
      %v7810 = vunpack.c.l.b16 %v7550
      %v7811 = vunpack.c.l.b16 %v7551
      %v7812 = vunpack.c.l.b16 %v7552
      %v7813 = vunpack.c.l.b16 %v7553
      %v7814 = vunpack.c.l.b16 %v7554
      %v7815 = vunpack.c.l.b16 %v7555
      %v7816 = vunpack.c.l.b16 %v7556
      %v7817 = vunpack.c.l.b16 %v7557
      %v7818 = vunpack.c.l.b16 %v7558
      %v7819 = vunpack.c.l.b16 %v7559
      %v7820 = vunpack.c.l.b16 %v7560
      %v7821 = vunpack.c.l.b16 %v7561
      %v7822 = vunpack.c.l.b16 %v7562
      %v7823 = vunpack.c.l.b16 %v7563
      %v7824 = vunpack.c.l.b16 %v7564
      %v7825 = vunpack.c.l.b16 %v7565
      %v7826 = vunpack.c.l.b16 %v7566
      %v7827 = vunpack.c.l.b16 %v7567
      %v7828 = vunpack.c.l.b16 %v7568
      %v7829 = vunpack.c.l.b16 %v7569
      %v7830 = vunpack.c.l.b16 %v7570
      %v7831 = vunpack.c.l.b16 %v7571
      %v7832 = vunpack.c.l.b16 %v7572
      %v7833 = vunpack.c.l.b16 %v7573
      %v7834 = vunpack.c.l.b16 %v7574
      %v7835 = vunpack.c.l.b16 %v7575
      %v7836 = vunpack.c.l.b16 %v7576
      %v7837 = vunpack.c.l.b16 %v7577
      %v7838 = vunpack.c.l.b16 %v7578
      %v7839 = vunpack.c.l.b16 %v7579
      %v7840 = vunpack.c.l.b16 %v7580
      %v7841 = vunpack.c.l.b16 %v7581
      %v7842 = vunpack.c.l.b16 %v7582
      %v7843 = vunpack.c.l.b16 %v7583
      %v7844 = vunpack.c.l.b16 %v7584
      %v7845 = vunpack.c.l.b16 %v7585
      %v7846 = vunpack.c.l.b16 %v7586
      %v7847 = vunpack.c.l.b16 %v7587
      %v7848 = vunpack.c.l.b16 %v7588
      %v7849 = vunpack.c.l.b16 %v7589
      %v7850 = vunpack.c.l.b16 %v7590
      %v7851 = vunpack.c.l.b16 %v7591
      %v7852 = vunpack.c.l.b16 %v7592
      %v7853 = vunpack.c.l.b16 %v7593
      %v7854 = vunpack.c.l.b16 %v7594
      %v7855 = vunpack.c.l.b16 %v7595
      %v7856 = vunpack.c.l.b16 %v7596
      %v7857 = vunpack.c.l.b16 %v7597
      %v7858 = vunpack.c.l.b16 %v7598
      %v7859 = vunpack.c.l.b16 %v7599
      %v7860 = vunpack.c.l.b16 %v7600
      %v7861 = vunpack.c.l.b16 %v7601
      %v7862 = vunpack.c.l.b16 %v7602
      %v7863 = vunpack.c.l.b16 %v7603
      %v7864 = vunpack.c.l.b16 %v7604
      %v7865 = vunpack.c.l.b16 %v7605
      %v7866 = vunpack.c.l.b16 %v7606
      %v7867 = vunpack.c.l.b16 %v7607
      %v7868 = vunpack.c.l.b16 %v7608
      %v7869 = vunpack.c.l.b16 %v7609
      %v7870 = vunpack.c.l.b16 %v7610
      %v7871 = vunpack.c.l.b16 %v7611
      %v7872 = vunpack.c.l.b16 %v7612
      %v7873 = vunpack.c.l.b16 %v7613
      %v7874 = vunpack.c.l.b16 %v7614
      %v7875 = vunpack.c.l.b16 %v7615
      %v7876 = vunpack.c.l.b16 %v7616
      %v7877 = vunpack.c.l.b16 %v7617
      %v7878 = vunpack.c.l.b16 %v7618
      %v7879 = vunpack.c.l.b16 %v7619
      %v7880 = vunpack.c.l.b16 %v7620
      %v7881 = vunpack.c.l.b16 %v7621
      %v7882 = vunpack.c.l.b16 %v7622
      %v7883 = vunpack.c.l.b16 %v7623
      %v7884 = vunpack.c.l.b16 %v7624
      %v7885 = vunpack.c.l.b16 %v7625
      %v7886 = vunpack.c.l.b16 %v7626
      %v7887 = vunpack.c.l.b16 %v7627
      %v7888 = vunpack.c.l.b16 %v7628
      %v7889 = vunpack.c.l.b16 %v7629
      %v7890 = vunpack.c.l.b16 %v7630
      %v7891 = vunpack.c.l.b16 %v7631
      %v7892 = vunpack.c.l.b16 %v7632
      %v7893 = vunpack.c.l.b16 %v7633
      %v7894 = vunpack.c.l.b16 %v7634
      %v7895 = vunpack.c.l.b16 %v7635
      %v7896 = vunpack.c.l.b16 %v7636
      %v7897 = vunpack.c.l.b16 %v7637
      %v7898 = vunpack.c.l.b16 %v7638
      %v7899 = vunpack.c.l.b16 %v7639
      %v7900 = vunpack.c.l.b16 %v7640
      %v7901 = vunpack.c.l.b16 %v7641
      %v7902 = vunpack.c.l.b16 %v7642
      %v7903 = vunpack.c.l.b16 %v7643
      %v7904 = vunpack.c.l.b16 %v7644
      %v7905 = vunpack.c.l.b16 %v7645
      %v7906 = vunpack.c.l.b16 %v7646
      %v7907 = vunpack.c.l.b16 %v7647
      %v7908 = vunpack.c.l.b16 %v7648
      %v7909 = vpack.c.b16 %v7781, %v7780
      %v7910 = vpack.c.b16 %v7783, %v7782
      %v7911 = vpack.c.b16 %v7785, %v7784
      %v7912 = vpack.c.b16 %v7787, %v7786
      %v7913 = vpack.c.b16 %v7789, %v7788
      %v7914 = vpack.c.b16 %v7791, %v7790
      %v7915 = vpack.c.b16 %v7793, %v7792
      %v7916 = vpack.c.b16 %v7795, %v7794
      %v7917 = vpack.c.b16 %v7797, %v7796
      %v7918 = vpack.c.b16 %v7799, %v7798
      %v7919 = vpack.c.b16 %v7801, %v7800
      %v7920 = vpack.c.b16 %v7803, %v7802
      %v7921 = vpack.c.b16 %v7805, %v7804
      %v7922 = vpack.c.b16 %v7807, %v7806
      %v7923 = vpack.c.b16 %v7809, %v7808
      %v7924 = vpack.c.b16 %v7811, %v7810
      %v7925 = vpack.c.b16 %v7813, %v7812
      %v7926 = vpack.c.b16 %v7815, %v7814
      %v7927 = vpack.c.b16 %v7817, %v7816
      %v7928 = vpack.c.b16 %v7819, %v7818
      %v7929 = vpack.c.b16 %v7821, %v7820
      %v7930 = vpack.c.b16 %v7823, %v7822
      %v7931 = vpack.c.b16 %v7825, %v7824
      %v7932 = vpack.c.b16 %v7827, %v7826
      %v7933 = vpack.c.b16 %v7829, %v7828
      %v7934 = vpack.c.b16 %v7831, %v7830
      %v7935 = vpack.c.b16 %v7833, %v7832
      %v7936 = vpack.c.b16 %v7835, %v7834
      %v7937 = vpack.c.b16 %v7837, %v7836
      %v7938 = vpack.c.b16 %v7839, %v7838
      %v7939 = vpack.c.b16 %v7841, %v7840
      %v7940 = vpack.c.b16 %v7843, %v7842
      %v7941 = vpack.c.b16 %v7845, %v7844
      %v7942 = vpack.c.b16 %v7847, %v7846
      %v7943 = vpack.c.b16 %v7849, %v7848
      %v7944 = vpack.c.b16 %v7851, %v7850
      %v7945 = vpack.c.b16 %v7853, %v7852
      %v7946 = vpack.c.b16 %v7855, %v7854
      %v7947 = vpack.c.b16 %v7857, %v7856
      %v7948 = vpack.c.b16 %v7859, %v7858
      %v7949 = vpack.c.b16 %v7861, %v7860
      %v7950 = vpack.c.b16 %v7863, %v7862
      %v7951 = vpack.c.b16 %v7865, %v7864
      %v7952 = vpack.c.b16 %v7867, %v7866
      %v7953 = vpack.c.b16 %v7869, %v7868
      %v7954 = vpack.c.b16 %v7871, %v7870
      %v7955 = vpack.c.b16 %v7873, %v7872
      %v7956 = vpack.c.b16 %v7875, %v7874
      %v7957 = vpack.c.b16 %v7877, %v7876
      %v7958 = vpack.c.b16 %v7879, %v7878
      %v7959 = vpack.c.b16 %v7881, %v7880
      %v7960 = vpack.c.b16 %v7883, %v7882
      %v7961 = vpack.c.b16 %v7885, %v7884
      %v7962 = vpack.c.b16 %v7887, %v7886
      %v7963 = vpack.c.b16 %v7889, %v7888
      %v7964 = vpack.c.b16 %v7891, %v7890
      %v7965 = vpack.c.b16 %v7893, %v7892
      %v7966 = vpack.c.b16 %v7895, %v7894
      %v7967 = vpack.c.b16 %v7897, %v7896
      %v7968 = vpack.c.b16 %v7899, %v7898
      %v7969 = vpack.c.b16 %v7901, %v7900
      %v7970 = vpack.c.b16 %v7903, %v7902
      %v7971 = vpack.c.b16 %v7905, %v7904
      %v7972 = vpack.c.b16 %v7907, %v7906
      %v7973 = vpack.c.b16 %v7908, %v7908
      %v7975 = vshrl.u32 %v7909, 16
      %v7977 = vshll.u32 %v7909, 16
      %v7979 = vrot.slane %v7977, 1
      %v7980 = vor.u32 %v7975, %v7979
      %v7982 = vshll.u32 %v7910, 16
      %v7984 = vrot.slane %v7982, 1
      %v7985 = vsel %vm6351, %v7980, %v7984
      %v7986 = vshrl.u32 %v7910, 16
      %v7988 = vor.u32 %v7986, %v7984
      %v7990 = vshll.u32 %v7911, 16
      %v7992 = vrot.slane %v7990, 1
      %v7993 = vsel %vm6351, %v7988, %v7992
      %v7994 = vshrl.u32 %v7911, 16
      %v7996 = vor.u32 %v7994, %v7992
      %v7998 = vshll.u32 %v7912, 16
      %v8000 = vrot.slane %v7998, 1
      %v8001 = vsel %vm6351, %v7996, %v8000
      %v8002 = vshrl.u32 %v7912, 16
      %v8004 = vor.u32 %v8002, %v8000
      %v8006 = vshll.u32 %v7913, 16
      %v8008 = vrot.slane %v8006, 1
      %v8009 = vsel %vm6351, %v8004, %v8008
      %v8010 = vshrl.u32 %v7913, 16
      %v8012 = vor.u32 %v8010, %v8008
      %v8014 = vshll.u32 %v7914, 16
      %v8016 = vrot.slane %v8014, 1
      %v8017 = vsel %vm6351, %v8012, %v8016
      %v8018 = vshrl.u32 %v7914, 16
      %v8020 = vor.u32 %v8018, %v8016
      %v8022 = vshll.u32 %v7915, 16
      %v8024 = vrot.slane %v8022, 1
      %v8025 = vsel %vm6351, %v8020, %v8024
      %v8026 = vshrl.u32 %v7915, 16
      %v8028 = vor.u32 %v8026, %v8024
      %v8030 = vshll.u32 %v7916, 16
      %v8032 = vrot.slane %v8030, 1
      %v8033 = vsel %vm6351, %v8028, %v8032
      %v8034 = vshrl.u32 %v7916, 16
      %v8036 = vor.u32 %v8034, %v8032
      %v8038 = vshll.u32 %v7917, 16
      %v8040 = vrot.slane %v8038, 1
      %v8041 = vsel %vm6351, %v8036, %v8040
      %v8042 = vshrl.u32 %v7917, 16
      %v8044 = vor.u32 %v8042, %v8040
      %v8046 = vshll.u32 %v7918, 16
      %v8048 = vrot.slane %v8046, 1
      %v8049 = vsel %vm6351, %v8044, %v8048
      %v8050 = vshrl.u32 %v7918, 16
      %v8052 = vor.u32 %v8050, %v8048
      %v8054 = vshll.u32 %v7919, 16
      %v8056 = vrot.slane %v8054, 1
      %v8057 = vsel %vm6351, %v8052, %v8056
      %v8058 = vshrl.u32 %v7919, 16
      %v8060 = vor.u32 %v8058, %v8056
      %v8062 = vshll.u32 %v7920, 16
      %v8064 = vrot.slane %v8062, 1
      %v8065 = vsel %vm6351, %v8060, %v8064
      %v8066 = vshrl.u32 %v7920, 16
      %v8068 = vor.u32 %v8066, %v8064
      %v8070 = vshll.u32 %v7921, 16
      %v8072 = vrot.slane %v8070, 1
      %v8073 = vsel %vm6351, %v8068, %v8072
      %v8074 = vshrl.u32 %v7921, 16
      %v8076 = vor.u32 %v8074, %v8072
      %v8078 = vshll.u32 %v7922, 16
      %v8080 = vrot.slane %v8078, 1
      %v8081 = vsel %vm6351, %v8076, %v8080
      %v8082 = vshrl.u32 %v7922, 16
      %v8084 = vor.u32 %v8082, %v8080
      %v8086 = vshll.u32 %v7923, 16
      %v8088 = vrot.slane %v8086, 1
      %v8089 = vsel %vm6351, %v8084, %v8088
      %v8090 = vshrl.u32 %v7923, 16
      %v8092 = vor.u32 %v8090, %v8088
      %v8094 = vshll.u32 %v7924, 16
      %v8096 = vrot.slane %v8094, 1
      %v8097 = vsel %vm6351, %v8092, %v8096
      %v8098 = vshrl.u32 %v7924, 16
      %v8100 = vor.u32 %v8098, %v8096
      %v8102 = vshll.u32 %v7925, 16
      %v8104 = vrot.slane %v8102, 1
      %v8105 = vsel %vm6351, %v8100, %v8104
      %v8106 = vshrl.u32 %v7925, 16
      %v8108 = vor.u32 %v8106, %v8104
      %v8110 = vshll.u32 %v7926, 16
      %v8112 = vrot.slane %v8110, 1
      %v8113 = vsel %vm6351, %v8108, %v8112
      %v8114 = vshrl.u32 %v7926, 16
      %v8116 = vor.u32 %v8114, %v8112
      %v8118 = vshll.u32 %v7927, 16
      %v8120 = vrot.slane %v8118, 1
      %v8121 = vsel %vm6351, %v8116, %v8120
      %v8122 = vshrl.u32 %v7927, 16
      %v8124 = vor.u32 %v8122, %v8120
      %v8126 = vshll.u32 %v7928, 16
      %v8128 = vrot.slane %v8126, 1
      %v8129 = vsel %vm6351, %v8124, %v8128
      %v8130 = vshrl.u32 %v7928, 16
      %v8132 = vor.u32 %v8130, %v8128
      %v8134 = vshll.u32 %v7929, 16
      %v8136 = vrot.slane %v8134, 1
      %v8137 = vsel %vm6351, %v8132, %v8136
      %v8138 = vshrl.u32 %v7929, 16
      %v8140 = vor.u32 %v8138, %v8136
      %v8142 = vshll.u32 %v7930, 16
      %v8144 = vrot.slane %v8142, 1
      %v8145 = vsel %vm6351, %v8140, %v8144
      %v8146 = vshrl.u32 %v7930, 16
      %v8148 = vor.u32 %v8146, %v8144
      %v8150 = vshll.u32 %v7931, 16
      %v8152 = vrot.slane %v8150, 1
      %v8153 = vsel %vm6351, %v8148, %v8152
      %v8154 = vshrl.u32 %v7931, 16
      %v8156 = vor.u32 %v8154, %v8152
      %v8158 = vshll.u32 %v7932, 16
      %v8160 = vrot.slane %v8158, 1
      %v8161 = vsel %vm6351, %v8156, %v8160
      %v8162 = vshrl.u32 %v7932, 16
      %v8164 = vor.u32 %v8162, %v8160
      %v8166 = vshll.u32 %v7933, 16
      %v8168 = vrot.slane %v8166, 1
      %v8169 = vsel %vm6351, %v8164, %v8168
      %v8170 = vshrl.u32 %v7933, 16
      %v8172 = vor.u32 %v8170, %v8168
      %v8174 = vshll.u32 %v7934, 16
      %v8176 = vrot.slane %v8174, 1
      %v8177 = vsel %vm6351, %v8172, %v8176
      %v8178 = vshrl.u32 %v7934, 16
      %v8180 = vor.u32 %v8178, %v8176
      %v8182 = vshll.u32 %v7935, 16
      %v8184 = vrot.slane %v8182, 1
      %v8185 = vsel %vm6351, %v8180, %v8184
      %v8186 = vshrl.u32 %v7935, 16
      %v8188 = vor.u32 %v8186, %v8184
      %v8190 = vshll.u32 %v7936, 16
      %v8192 = vrot.slane %v8190, 1
      %v8193 = vsel %vm6351, %v8188, %v8192
      %v8194 = vshrl.u32 %v7936, 16
      %v8196 = vor.u32 %v8194, %v8192
      %v8198 = vshll.u32 %v7937, 16
      %v8200 = vrot.slane %v8198, 1
      %v8201 = vsel %vm6351, %v8196, %v8200
      %v8202 = vshrl.u32 %v7937, 16
      %v8204 = vor.u32 %v8202, %v8200
      %v8206 = vshll.u32 %v7938, 16
      %v8208 = vrot.slane %v8206, 1
      %v8209 = vsel %vm6351, %v8204, %v8208
      %v8210 = vshrl.u32 %v7938, 16
      %v8212 = vor.u32 %v8210, %v8208
      %v8214 = vshll.u32 %v7939, 16
      %v8216 = vrot.slane %v8214, 1
      %v8217 = vsel %vm6351, %v8212, %v8216
      %v8218 = vshrl.u32 %v7939, 16
      %v8220 = vor.u32 %v8218, %v8216
      %v8222 = vshll.u32 %v7940, 16
      %v8224 = vrot.slane %v8222, 1
      %v8225 = vsel %vm6351, %v8220, %v8224
      %v8226 = vshrl.u32 %v7940, 16
      %v8228 = vor.u32 %v8226, %v8224
      %v8230 = vshll.u32 %v7941, 16
      %v8232 = vrot.slane %v8230, 1
      %v8233 = vsel %vm6351, %v8228, %v8232
      %v8234 = vshrl.u32 %v7941, 16
      %v8236 = vor.u32 %v8234, %v8232
      %v8238 = vshll.u32 %v7942, 16
      %v8240 = vrot.slane %v8238, 1
      %v8241 = vsel %vm6351, %v8236, %v8240
      %v8242 = vshrl.u32 %v7942, 16
      %v8244 = vor.u32 %v8242, %v8240
      %v8246 = vshll.u32 %v7943, 16
      %v8248 = vrot.slane %v8246, 1
      %v8249 = vsel %vm6351, %v8244, %v8248
      %v8250 = vshrl.u32 %v7943, 16
      %v8252 = vor.u32 %v8250, %v8248
      %v8254 = vshll.u32 %v7944, 16
      %v8256 = vrot.slane %v8254, 1
      %v8257 = vsel %vm6351, %v8252, %v8256
      %v8258 = vshrl.u32 %v7944, 16
      %v8260 = vor.u32 %v8258, %v8256
      %v8262 = vshll.u32 %v7945, 16
      %v8264 = vrot.slane %v8262, 1
      %v8265 = vsel %vm6351, %v8260, %v8264
      %v8266 = vshrl.u32 %v7945, 16
      %v8268 = vor.u32 %v8266, %v8264
      %v8270 = vshll.u32 %v7946, 16
      %v8272 = vrot.slane %v8270, 1
      %v8273 = vsel %vm6351, %v8268, %v8272
      %v8274 = vshrl.u32 %v7946, 16
      %v8276 = vor.u32 %v8274, %v8272
      %v8278 = vshll.u32 %v7947, 16
      %v8280 = vrot.slane %v8278, 1
      %v8281 = vsel %vm6351, %v8276, %v8280
      %v8282 = vshrl.u32 %v7947, 16
      %v8284 = vor.u32 %v8282, %v8280
      %v8286 = vshll.u32 %v7948, 16
      %v8288 = vrot.slane %v8286, 1
      %v8289 = vsel %vm6351, %v8284, %v8288
      %v8290 = vshrl.u32 %v7948, 16
      %v8292 = vor.u32 %v8290, %v8288
      %v8294 = vshll.u32 %v7949, 16
      %v8296 = vrot.slane %v8294, 1
      %v8297 = vsel %vm6351, %v8292, %v8296
      %v8298 = vshrl.u32 %v7949, 16
      %v8300 = vor.u32 %v8298, %v8296
      %v8302 = vshll.u32 %v7950, 16
      %v8304 = vrot.slane %v8302, 1
      %v8305 = vsel %vm6351, %v8300, %v8304
      %v8306 = vshrl.u32 %v7950, 16
      %v8308 = vor.u32 %v8306, %v8304
      %v8310 = vshll.u32 %v7951, 16
      %v8312 = vrot.slane %v8310, 1
      %v8313 = vsel %vm6351, %v8308, %v8312
      %v8314 = vshrl.u32 %v7951, 16
      %v8316 = vor.u32 %v8314, %v8312
      %v8318 = vshll.u32 %v7952, 16
      %v8320 = vrot.slane %v8318, 1
      %v8321 = vsel %vm6351, %v8316, %v8320
      %v8322 = vshrl.u32 %v7952, 16
      %v8324 = vor.u32 %v8322, %v8320
      %v8326 = vshll.u32 %v7953, 16
      %v8328 = vrot.slane %v8326, 1
      %v8329 = vsel %vm6351, %v8324, %v8328
      %v8330 = vshrl.u32 %v7953, 16
      %v8332 = vor.u32 %v8330, %v8328
      %v8334 = vshll.u32 %v7954, 16
      %v8336 = vrot.slane %v8334, 1
      %v8337 = vsel %vm6351, %v8332, %v8336
      %v8338 = vshrl.u32 %v7954, 16
      %v8340 = vor.u32 %v8338, %v8336
      %v8342 = vshll.u32 %v7955, 16
      %v8344 = vrot.slane %v8342, 1
      %v8345 = vsel %vm6351, %v8340, %v8344
      %v8346 = vshrl.u32 %v7955, 16
      %v8348 = vor.u32 %v8346, %v8344
      %v8350 = vshll.u32 %v7956, 16
      %v8352 = vrot.slane %v8350, 1
      %v8353 = vsel %vm6351, %v8348, %v8352
      %v8354 = vshrl.u32 %v7956, 16
      %v8356 = vor.u32 %v8354, %v8352
      %v8358 = vshll.u32 %v7957, 16
      %v8360 = vrot.slane %v8358, 1
      %v8361 = vsel %vm6351, %v8356, %v8360
      %v8362 = vshrl.u32 %v7957, 16
      %v8364 = vor.u32 %v8362, %v8360
      %v8366 = vshll.u32 %v7958, 16
      %v8368 = vrot.slane %v8366, 1
      %v8369 = vsel %vm6351, %v8364, %v8368
      %v8370 = vshrl.u32 %v7958, 16
      %v8372 = vor.u32 %v8370, %v8368
      %v8374 = vshll.u32 %v7959, 16
      %v8376 = vrot.slane %v8374, 1
      %v8377 = vsel %vm6351, %v8372, %v8376
      %v8378 = vshrl.u32 %v7959, 16
      %v8380 = vor.u32 %v8378, %v8376
      %v8382 = vshll.u32 %v7960, 16
      %v8384 = vrot.slane %v8382, 1
      %v8385 = vsel %vm6351, %v8380, %v8384
      %v8386 = vshrl.u32 %v7960, 16
      %v8388 = vor.u32 %v8386, %v8384
      %v8390 = vshll.u32 %v7961, 16
      %v8392 = vrot.slane %v8390, 1
      %v8393 = vsel %vm6351, %v8388, %v8392
      %v8394 = vshrl.u32 %v7961, 16
      %v8396 = vor.u32 %v8394, %v8392
      %v8398 = vshll.u32 %v7962, 16
      %v8400 = vrot.slane %v8398, 1
      %v8401 = vsel %vm6351, %v8396, %v8400
      %v8402 = vshrl.u32 %v7962, 16
      %v8404 = vor.u32 %v8402, %v8400
      %v8406 = vshll.u32 %v7963, 16
      %v8408 = vrot.slane %v8406, 1
      %v8409 = vsel %vm6351, %v8404, %v8408
      %v8410 = vshrl.u32 %v7963, 16
      %v8412 = vor.u32 %v8410, %v8408
      %v8414 = vshll.u32 %v7964, 16
      %v8416 = vrot.slane %v8414, 1
      %v8417 = vsel %vm6351, %v8412, %v8416
      %v8418 = vshrl.u32 %v7964, 16
      %v8420 = vor.u32 %v8418, %v8416
      %v8422 = vshll.u32 %v7965, 16
      %v8424 = vrot.slane %v8422, 1
      %v8425 = vsel %vm6351, %v8420, %v8424
      %v8426 = vshrl.u32 %v7965, 16
      %v8428 = vor.u32 %v8426, %v8424
      %v8430 = vshll.u32 %v7966, 16
      %v8432 = vrot.slane %v8430, 1
      %v8433 = vsel %vm6351, %v8428, %v8432
      %v8434 = vshrl.u32 %v7966, 16
      %v8436 = vor.u32 %v8434, %v8432
      %v8438 = vshll.u32 %v7967, 16
      %v8440 = vrot.slane %v8438, 1
      %v8441 = vsel %vm6351, %v8436, %v8440
      %v8442 = vshrl.u32 %v7967, 16
      %v8444 = vor.u32 %v8442, %v8440
      %v8446 = vshll.u32 %v7968, 16
      %v8448 = vrot.slane %v8446, 1
      %v8449 = vsel %vm6351, %v8444, %v8448
      %v8450 = vshrl.u32 %v7968, 16
      %v8452 = vor.u32 %v8450, %v8448
      %v8454 = vshll.u32 %v7969, 16
      %v8456 = vrot.slane %v8454, 1
      %v8457 = vsel %vm6351, %v8452, %v8456
      %v8458 = vshrl.u32 %v7969, 16
      %v8460 = vor.u32 %v8458, %v8456
      %v8462 = vshll.u32 %v7970, 16
      %v8464 = vrot.slane %v8462, 1
      %v8465 = vsel %vm6351, %v8460, %v8464
      %v8466 = vshrl.u32 %v7970, 16
      %v8468 = vor.u32 %v8466, %v8464
      %v8470 = vshll.u32 %v7971, 16
      %v8472 = vrot.slane %v8470, 1
      %v8473 = vsel %vm6351, %v8468, %v8472
      %v8474 = vshrl.u32 %v7971, 16
      %v8476 = vor.u32 %v8474, %v8472
      %v8478 = vshll.u32 %v7972, 16
      %v8480 = vrot.slane %v8478, 1
      %v8481 = vsel %vm6351, %v8476, %v8480
      %v8482 = vshrl.u32 %v7972, 16
      %v8484 = vor.u32 %v8482, %v8480
      %v8486 = vshll.u32 %v7973, 16
      %v8488 = vrot.slane %v8486, 1
      %v8489 = vsel %vm6351, %v8484, %v8488
      %v8491 = vsel %vm923, %v7985, 0
      %v8494 = vsel %vm923, %v7993, 0
      %v8497 = vsel %vm923, %v8001, 0
      %v8500 = vsel %vm923, %v8009, 0
      %v8503 = vsel %vm923, %v8017, 0
      %v8506 = vsel %vm923, %v8025, 0
      %v8509 = vsel %vm923, %v8033, 0
      %v8512 = vsel %vm923, %v8041, 0
      %v8515 = vsel %vm923, %v8049, 0
      %v8518 = vsel %vm923, %v8057, 0
      %v8521 = vsel %vm923, %v8065, 0
      %v8524 = vsel %vm923, %v8073, 0
      %v8527 = vsel %vm923, %v8081, 0
      %v8530 = vsel %vm923, %v8089, 0
      %v8533 = vsel %vm923, %v8097, 0
      %v8536 = vsel %vm923, %v8105, 0
      %v8539 = vsel %vm923, %v8113, 0
      %v8542 = vsel %vm923, %v8121, 0
      %v8545 = vsel %vm923, %v8129, 0
      %v8548 = vsel %vm923, %v8137, 0
      %v8551 = vsel %vm923, %v8145, 0
      %v8554 = vsel %vm923, %v8153, 0
      %v8557 = vsel %vm923, %v8161, 0
      %v8560 = vsel %vm923, %v8169, 0
      %v8563 = vsel %vm923, %v8177, 0
      %v8566 = vsel %vm923, %v8185, 0
      %v8569 = vsel %vm923, %v8193, 0
      %v8572 = vsel %vm923, %v8201, 0
      %v8575 = vsel %vm923, %v8209, 0
      %v8578 = vsel %vm923, %v8217, 0
      %v8581 = vsel %vm923, %v8225, 0
      %v8584 = vsel %vm923, %v8233, 0
      %v8587 = vsel %vm923, %v8241, 0
      %v8590 = vsel %vm923, %v8249, 0
      %v8593 = vsel %vm923, %v8257, 0
      %v8596 = vsel %vm923, %v8265, 0
      %v8599 = vsel %vm923, %v8273, 0
      %v8602 = vsel %vm923, %v8281, 0
      %v8605 = vsel %vm923, %v8289, 0
      %v8608 = vsel %vm923, %v8297, 0
      %v8611 = vsel %vm923, %v8305, 0
      %v8614 = vsel %vm923, %v8313, 0
      %v8617 = vsel %vm923, %v8321, 0
      %v8620 = vsel %vm923, %v8329, 0
      %v8623 = vsel %vm923, %v8337, 0
      %v8626 = vsel %vm923, %v8345, 0
      %v8629 = vsel %vm923, %v8353, 0
      %v8632 = vsel %vm923, %v8361, 0
      %v8635 = vsel %vm923, %v8369, 0
      %v8638 = vsel %vm923, %v8377, 0
      %v8641 = vsel %vm923, %v8385, 0
      %v8644 = vsel %vm923, %v8393, 0
      %v8647 = vsel %vm923, %v8401, 0
      %v8650 = vsel %vm923, %v8409, 0
      %v8653 = vsel %vm923, %v8417, 0
      %v8656 = vsel %vm923, %v8425, 0
      %v8659 = vsel %vm923, %v8433, 0
      %v8662 = vsel %vm923, %v8441, 0
      %v8665 = vsel %vm923, %v8449, 0
      %v8668 = vsel %vm923, %v8457, 0
      %v8671 = vsel %vm923, %v8465, 0
      %v8674 = vsel %vm923, %v8473, 0
      %v8677 = vsel %vm923, %v8481, 0
      %v8680 = vsel %vm923, %v8489, 0
      %v8683 = vsel %vm1116, %v7650, 0
      %8685 = vmatpush.bf16.msra.mxu0 0
      %8686 = vmatpush.bf16.msra.mxu0 0
      %8687 = vmatpush.bf16.msra.mxu0 0
      %8688 = vmatpush.bf16.msra.mxu0 0
      %8689 = vmatpush.bf16.msra.mxu0 0
      %8690 = vmatpush.bf16.msra.mxu0 0
      %8691 = vmatpush.bf16.msra.mxu0 0
      %8692 = vmatpush.bf16.msra.mxu0 %v8683
      %8693 = vmatmul.bf16.gmra.mxu0 %v8491
      %v8694 = vpop.f32.mrf.mxu0
      %v8695 = vadd.f32 0.0, %v8694
      %v8696 = vpop.f32.mrf.mxu0
      %v8697 = vadd.f32 0.0, %v8696
      %8698 = vmatmul.bf16.gmra.mxu0 %v8494
      %v8699 = vpop.f32.mrf.mxu0
      %v8700 = vadd.f32 0.0, %v8699
      %v8701 = vpop.f32.mrf.mxu0
      %v8702 = vadd.f32 0.0, %v8701
      %8703 = vmatmul.bf16.gmra.mxu0 %v8497
      %v8704 = vpop.f32.mrf.mxu0
      %v8705 = vadd.f32 0.0, %v8704
      %v8706 = vpop.f32.mrf.mxu0
      %v8707 = vadd.f32 0.0, %v8706
      %8708 = vmatmul.bf16.gmra.mxu0 %v8500
      %v8709 = vpop.f32.mrf.mxu0
      %v8710 = vadd.f32 0.0, %v8709
      %v8711 = vpop.f32.mrf.mxu0
      %v8712 = vadd.f32 0.0, %v8711
      %8713 = vmatmul.bf16.gmra.mxu0 %v8503
      %v8714 = vpop.f32.mrf.mxu0
      %v8715 = vadd.f32 0.0, %v8714
      %v8716 = vpop.f32.mrf.mxu0
      %v8717 = vadd.f32 0.0, %v8716
      %8718 = vmatmul.bf16.gmra.mxu0 %v8506
      %v8719 = vpop.f32.mrf.mxu0
      %v8720 = vadd.f32 0.0, %v8719
      %v8721 = vpop.f32.mrf.mxu0
      %v8722 = vadd.f32 0.0, %v8721
      %8723 = vmatmul.bf16.gmra.mxu0 %v8509
      %v8724 = vpop.f32.mrf.mxu0
      %v8725 = vadd.f32 0.0, %v8724
      %v8726 = vpop.f32.mrf.mxu0
      %v8727 = vadd.f32 0.0, %v8726
      %8728 = vmatmul.bf16.gmra.mxu0 %v8512
      %v8729 = vpop.f32.mrf.mxu0
      %v8730 = vadd.f32 0.0, %v8729
      %v8731 = vpop.f32.mrf.mxu0
      %v8732 = vadd.f32 0.0, %v8731
      %8733 = vmatmul.bf16.gmra.mxu0 %v8515
      %v8734 = vpop.f32.mrf.mxu0
      %v8735 = vadd.f32 0.0, %v8734
      %v8736 = vpop.f32.mrf.mxu0
      %v8737 = vadd.f32 0.0, %v8736
      %8738 = vmatmul.bf16.gmra.mxu0 %v8518
      %v8739 = vpop.f32.mrf.mxu0
      %v8740 = vadd.f32 0.0, %v8739
      %v8741 = vpop.f32.mrf.mxu0
      %v8742 = vadd.f32 0.0, %v8741
      %8743 = vmatmul.bf16.gmra.mxu0 %v8521
      %v8744 = vpop.f32.mrf.mxu0
      %v8745 = vadd.f32 0.0, %v8744
      %v8746 = vpop.f32.mrf.mxu0
      %v8747 = vadd.f32 0.0, %v8746
      %8748 = vmatmul.bf16.gmra.mxu0 %v8524
      %v8749 = vpop.f32.mrf.mxu0
      %v8750 = vadd.f32 0.0, %v8749
      %v8751 = vpop.f32.mrf.mxu0
      %v8752 = vadd.f32 0.0, %v8751
      %8753 = vmatmul.bf16.gmra.mxu0 %v8527
      %v8754 = vpop.f32.mrf.mxu0
      %v8755 = vadd.f32 0.0, %v8754
      %v8756 = vpop.f32.mrf.mxu0
      %v8757 = vadd.f32 0.0, %v8756
      %8758 = vmatmul.bf16.gmra.mxu0 %v8530
      %v8759 = vpop.f32.mrf.mxu0
      %v8760 = vadd.f32 0.0, %v8759
      %v8761 = vpop.f32.mrf.mxu0
      %v8762 = vadd.f32 0.0, %v8761
      %8763 = vmatmul.bf16.gmra.mxu0 %v8533
      %v8764 = vpop.f32.mrf.mxu0
      %v8765 = vadd.f32 0.0, %v8764
      %v8766 = vpop.f32.mrf.mxu0
      %v8767 = vadd.f32 0.0, %v8766
      %8768 = vmatmul.bf16.gmra.mxu0 %v8536
      %v8769 = vpop.f32.mrf.mxu0
      %v8770 = vadd.f32 0.0, %v8769
      %v8771 = vpop.f32.mrf.mxu0
      %v8772 = vadd.f32 0.0, %v8771
      %8773 = vmatmul.bf16.gmra.mxu0 %v8539
      %v8774 = vpop.f32.mrf.mxu0
      %v8775 = vadd.f32 0.0, %v8774
      %v8776 = vpop.f32.mrf.mxu0
      %v8777 = vadd.f32 0.0, %v8776
      %8778 = vmatmul.bf16.gmra.mxu0 %v8542
      %v8779 = vpop.f32.mrf.mxu0
      %v8780 = vadd.f32 0.0, %v8779
      %v8781 = vpop.f32.mrf.mxu0
      %v8782 = vadd.f32 0.0, %v8781
      %8783 = vmatmul.bf16.gmra.mxu0 %v8545
      %v8784 = vpop.f32.mrf.mxu0
      %v8785 = vadd.f32 0.0, %v8784
      %v8786 = vpop.f32.mrf.mxu0
      %v8787 = vadd.f32 0.0, %v8786
      %8788 = vmatmul.bf16.gmra.mxu0 %v8548
      %v8789 = vpop.f32.mrf.mxu0
      %v8790 = vadd.f32 0.0, %v8789
      %v8791 = vpop.f32.mrf.mxu0
      %v8792 = vadd.f32 0.0, %v8791
      %8793 = vmatmul.bf16.gmra.mxu0 %v8551
      %v8794 = vpop.f32.mrf.mxu0
      %v8795 = vadd.f32 0.0, %v8794
      %v8796 = vpop.f32.mrf.mxu0
      %v8797 = vadd.f32 0.0, %v8796
      %8798 = vmatmul.bf16.gmra.mxu0 %v8554
      %v8799 = vpop.f32.mrf.mxu0
      %v8800 = vadd.f32 0.0, %v8799
      %v8801 = vpop.f32.mrf.mxu0
      %v8802 = vadd.f32 0.0, %v8801
      %8803 = vmatmul.bf16.gmra.mxu0 %v8557
      %v8804 = vpop.f32.mrf.mxu0
      %v8805 = vadd.f32 0.0, %v8804
      %v8806 = vpop.f32.mrf.mxu0
      %v8807 = vadd.f32 0.0, %v8806
      %8808 = vmatmul.bf16.gmra.mxu0 %v8560
      %v8809 = vpop.f32.mrf.mxu0
      %v8810 = vadd.f32 0.0, %v8809
      %v8811 = vpop.f32.mrf.mxu0
      %v8812 = vadd.f32 0.0, %v8811
      %8813 = vmatmul.bf16.gmra.mxu0 %v8563
      %v8814 = vpop.f32.mrf.mxu0
      %v8815 = vadd.f32 0.0, %v8814
      %v8816 = vpop.f32.mrf.mxu0
      %v8817 = vadd.f32 0.0, %v8816
      %8818 = vmatmul.bf16.gmra.mxu0 %v8566
      %v8819 = vpop.f32.mrf.mxu0
      %v8820 = vadd.f32 0.0, %v8819
      %v8821 = vpop.f32.mrf.mxu0
      %v8822 = vadd.f32 0.0, %v8821
      %8823 = vmatmul.bf16.gmra.mxu0 %v8569
      %v8824 = vpop.f32.mrf.mxu0
      %v8825 = vadd.f32 0.0, %v8824
      %v8826 = vpop.f32.mrf.mxu0
      %v8827 = vadd.f32 0.0, %v8826
      %8828 = vmatmul.bf16.gmra.mxu0 %v8572
      %v8829 = vpop.f32.mrf.mxu0
      %v8830 = vadd.f32 0.0, %v8829
      %v8831 = vpop.f32.mrf.mxu0
      %v8832 = vadd.f32 0.0, %v8831
      %8833 = vmatmul.bf16.gmra.mxu0 %v8575
      %v8834 = vpop.f32.mrf.mxu0
      %v8835 = vadd.f32 0.0, %v8834
      %v8836 = vpop.f32.mrf.mxu0
      %v8837 = vadd.f32 0.0, %v8836
      %8838 = vmatmul.bf16.gmra.mxu0 %v8578
      %v8839 = vpop.f32.mrf.mxu0
      %v8840 = vadd.f32 0.0, %v8839
      %v8841 = vpop.f32.mrf.mxu0
      %v8842 = vadd.f32 0.0, %v8841
      %8843 = vmatmul.bf16.gmra.mxu0 %v8581
      %v8844 = vpop.f32.mrf.mxu0
      %v8845 = vadd.f32 0.0, %v8844
      %v8846 = vpop.f32.mrf.mxu0
      %v8847 = vadd.f32 0.0, %v8846
      %8848 = vmatmul.bf16.gmra.mxu0 %v8584
      %v8849 = vpop.f32.mrf.mxu0
      %v8850 = vadd.f32 0.0, %v8849
      %v8851 = vpop.f32.mrf.mxu0
      %v8852 = vadd.f32 0.0, %v8851
      %8853 = vmatmul.bf16.gmra.mxu0 %v8587
      %v8854 = vpop.f32.mrf.mxu0
      %v8855 = vadd.f32 0.0, %v8854
      %v8856 = vpop.f32.mrf.mxu0
      %v8857 = vadd.f32 0.0, %v8856
      %8858 = vmatmul.bf16.gmra.mxu0 %v8590
      %v8859 = vpop.f32.mrf.mxu0
      %v8860 = vadd.f32 0.0, %v8859
      %v8861 = vpop.f32.mrf.mxu0
      %v8862 = vadd.f32 0.0, %v8861
      %8863 = vmatmul.bf16.gmra.mxu0 %v8593
      %v8864 = vpop.f32.mrf.mxu0
      %v8865 = vadd.f32 0.0, %v8864
      %v8866 = vpop.f32.mrf.mxu0
      %v8867 = vadd.f32 0.0, %v8866
      %8868 = vmatmul.bf16.gmra.mxu0 %v8596
      %v8869 = vpop.f32.mrf.mxu0
      %v8870 = vadd.f32 0.0, %v8869
      %v8871 = vpop.f32.mrf.mxu0
      %v8872 = vadd.f32 0.0, %v8871
      %8873 = vmatmul.bf16.gmra.mxu0 %v8599
      %v8874 = vpop.f32.mrf.mxu0
      %v8875 = vadd.f32 0.0, %v8874
      %v8876 = vpop.f32.mrf.mxu0
      %v8877 = vadd.f32 0.0, %v8876
      %8878 = vmatmul.bf16.gmra.mxu0 %v8602
      %v8879 = vpop.f32.mrf.mxu0
      %v8880 = vadd.f32 0.0, %v8879
      %v8881 = vpop.f32.mrf.mxu0
      %v8882 = vadd.f32 0.0, %v8881
      %8883 = vmatmul.bf16.gmra.mxu0 %v8605
      %v8884 = vpop.f32.mrf.mxu0
      %v8885 = vadd.f32 0.0, %v8884
      %v8886 = vpop.f32.mrf.mxu0
      %v8887 = vadd.f32 0.0, %v8886
      %8888 = vmatmul.bf16.gmra.mxu0 %v8608
      %v8889 = vpop.f32.mrf.mxu0
      %v8890 = vadd.f32 0.0, %v8889
      %v8891 = vpop.f32.mrf.mxu0
      %v8892 = vadd.f32 0.0, %v8891
      %8893 = vmatmul.bf16.gmra.mxu0 %v8611
      %v8894 = vpop.f32.mrf.mxu0
      %v8895 = vadd.f32 0.0, %v8894
      %v8896 = vpop.f32.mrf.mxu0
      %v8897 = vadd.f32 0.0, %v8896
      %8898 = vmatmul.bf16.gmra.mxu0 %v8614
      %v8899 = vpop.f32.mrf.mxu0
      %v8900 = vadd.f32 0.0, %v8899
      %v8901 = vpop.f32.mrf.mxu0
      %v8902 = vadd.f32 0.0, %v8901
      %8903 = vmatmul.bf16.gmra.mxu0 %v8617
      %v8904 = vpop.f32.mrf.mxu0
      %v8905 = vadd.f32 0.0, %v8904
      %v8906 = vpop.f32.mrf.mxu0
      %v8907 = vadd.f32 0.0, %v8906
      %8908 = vmatmul.bf16.gmra.mxu0 %v8620
      %v8909 = vpop.f32.mrf.mxu0
      %v8910 = vadd.f32 0.0, %v8909
      %v8911 = vpop.f32.mrf.mxu0
      %v8912 = vadd.f32 0.0, %v8911
      %8913 = vmatmul.bf16.gmra.mxu0 %v8623
      %v8914 = vpop.f32.mrf.mxu0
      %v8915 = vadd.f32 0.0, %v8914
      %v8916 = vpop.f32.mrf.mxu0
      %v8917 = vadd.f32 0.0, %v8916
      %8918 = vmatmul.bf16.gmra.mxu0 %v8626
      %v8919 = vpop.f32.mrf.mxu0
      %v8920 = vadd.f32 0.0, %v8919
      %v8921 = vpop.f32.mrf.mxu0
      %v8922 = vadd.f32 0.0, %v8921
      %8923 = vmatmul.bf16.gmra.mxu0 %v8629
      %v8924 = vpop.f32.mrf.mxu0
      %v8925 = vadd.f32 0.0, %v8924
      %v8926 = vpop.f32.mrf.mxu0
      %v8927 = vadd.f32 0.0, %v8926
      %8928 = vmatmul.bf16.gmra.mxu0 %v8632
      %v8929 = vpop.f32.mrf.mxu0
      %v8930 = vadd.f32 0.0, %v8929
      %v8931 = vpop.f32.mrf.mxu0
      %v8932 = vadd.f32 0.0, %v8931
      %8933 = vmatmul.bf16.gmra.mxu0 %v8635
      %v8934 = vpop.f32.mrf.mxu0
      %v8935 = vadd.f32 0.0, %v8934
      %v8936 = vpop.f32.mrf.mxu0
      %v8937 = vadd.f32 0.0, %v8936
      %8938 = vmatmul.bf16.gmra.mxu0 %v8638
      %v8939 = vpop.f32.mrf.mxu0
      %v8940 = vadd.f32 0.0, %v8939
      %v8941 = vpop.f32.mrf.mxu0
      %v8942 = vadd.f32 0.0, %v8941
      %8943 = vmatmul.bf16.gmra.mxu0 %v8641
      %v8944 = vpop.f32.mrf.mxu0
      %v8945 = vadd.f32 0.0, %v8944
      %v8946 = vpop.f32.mrf.mxu0
      %v8947 = vadd.f32 0.0, %v8946
      %8948 = vmatmul.bf16.gmra.mxu0 %v8644
      %v8949 = vpop.f32.mrf.mxu0
      %v8950 = vadd.f32 0.0, %v8949
      %v8951 = vpop.f32.mrf.mxu0
      %v8952 = vadd.f32 0.0, %v8951
      %8953 = vmatmul.bf16.gmra.mxu0 %v8647
      %v8954 = vpop.f32.mrf.mxu0
      %v8955 = vadd.f32 0.0, %v8954
      %v8956 = vpop.f32.mrf.mxu0
      %v8957 = vadd.f32 0.0, %v8956
      %8958 = vmatmul.bf16.gmra.mxu0 %v8650
      %v8959 = vpop.f32.mrf.mxu0
      %v8960 = vadd.f32 0.0, %v8959
      %v8961 = vpop.f32.mrf.mxu0
      %v8962 = vadd.f32 0.0, %v8961
      %8963 = vmatmul.bf16.gmra.mxu0 %v8653
      %v8964 = vpop.f32.mrf.mxu0
      %v8965 = vadd.f32 0.0, %v8964
      %v8966 = vpop.f32.mrf.mxu0
      %v8967 = vadd.f32 0.0, %v8966
      %8968 = vmatmul.bf16.gmra.mxu0 %v8656
      %v8969 = vpop.f32.mrf.mxu0
      %v8970 = vadd.f32 0.0, %v8969
      %v8971 = vpop.f32.mrf.mxu0
      %v8972 = vadd.f32 0.0, %v8971
      %8973 = vmatmul.bf16.gmra.mxu0 %v8659
      %v8974 = vpop.f32.mrf.mxu0
      %v8975 = vadd.f32 0.0, %v8974
      %v8976 = vpop.f32.mrf.mxu0
      %v8977 = vadd.f32 0.0, %v8976
      %8978 = vmatmul.bf16.gmra.mxu0 %v8662
      %v8979 = vpop.f32.mrf.mxu0
      %v8980 = vadd.f32 0.0, %v8979
      %v8981 = vpop.f32.mrf.mxu0
      %v8982 = vadd.f32 0.0, %v8981
      %8983 = vmatmul.bf16.gmra.mxu0 %v8665
      %v8984 = vpop.f32.mrf.mxu0
      %v8985 = vadd.f32 0.0, %v8984
      %v8986 = vpop.f32.mrf.mxu0
      %v8987 = vadd.f32 0.0, %v8986
      %8988 = vmatmul.bf16.gmra.mxu0 %v8668
      %v8989 = vpop.f32.mrf.mxu0
      %v8990 = vadd.f32 0.0, %v8989
      %v8991 = vpop.f32.mrf.mxu0
      %v8992 = vadd.f32 0.0, %v8991
      %8993 = vmatmul.bf16.gmra.mxu0 %v8671
      %v8994 = vpop.f32.mrf.mxu0
      %v8995 = vadd.f32 0.0, %v8994
      %v8996 = vpop.f32.mrf.mxu0
      %v8997 = vadd.f32 0.0, %v8996
      %8998 = vmatmul.bf16.gmra.mxu0 %v8674
      %v8999 = vpop.f32.mrf.mxu0
      %v9000 = vadd.f32 0.0, %v8999
      %v9001 = vpop.f32.mrf.mxu0
      %v9002 = vadd.f32 0.0, %v9001
      %9003 = vmatmul.bf16.gmra.mxu0 %v8677
      %v9004 = vpop.f32.mrf.mxu0
      %v9005 = vadd.f32 0.0, %v9004
      %v9006 = vpop.f32.mrf.mxu0
      %v9007 = vadd.f32 0.0, %v9006
      %9008 = vmatmul.bf16.gmra.mxu0 %v8680
      %v9009 = vpop.f32.mrf.mxu0
      %v9010 = vadd.f32 0.0, %v9009
      %v9011 = vpop.f32.mrf.mxu0
      %v9012 = vadd.f32 0.0, %v9011
      %9013 = vdwg.mxu0
      %v9014 = vadd.f32 %v7392, %v8695
      %v9015 = vadd.f32 %v7393, %v8697
      %v9016 = vadd.f32 %v7394, %v8700
      %v9017 = vadd.f32 %v7395, %v8702
      %v9018 = vadd.f32 %v7396, %v8705
      %v9019 = vadd.f32 %v7397, %v8707
      %v9020 = vadd.f32 %v7398, %v8710
      %v9021 = vadd.f32 %v7399, %v8712
      %v9022 = vadd.f32 %v7400, %v8715
      %v9023 = vadd.f32 %v7401, %v8717
      %v9024 = vadd.f32 %v7402, %v8720
      %v9025 = vadd.f32 %v7403, %v8722
      %v9026 = vadd.f32 %v7404, %v8725
      %v9027 = vadd.f32 %v7405, %v8727
      %v9028 = vadd.f32 %v7406, %v8730
      %v9029 = vadd.f32 %v7407, %v8732
      %v9030 = vadd.f32 %v7408, %v8735
      %v9031 = vadd.f32 %v7409, %v8737
      %v9032 = vadd.f32 %v7410, %v8740
      %v9033 = vadd.f32 %v7411, %v8742
      %v9034 = vadd.f32 %v7412, %v8745
      %v9035 = vadd.f32 %v7413, %v8747
      %v9036 = vadd.f32 %v7414, %v8750
      %v9037 = vadd.f32 %v7415, %v8752
      %v9038 = vadd.f32 %v7416, %v8755
      %v9039 = vadd.f32 %v7417, %v8757
      %v9040 = vadd.f32 %v7418, %v8760
      %v9041 = vadd.f32 %v7419, %v8762
      %v9042 = vadd.f32 %v7420, %v8765
      %v9043 = vadd.f32 %v7421, %v8767
      %v9044 = vadd.f32 %v7422, %v8770
      %v9045 = vadd.f32 %v7423, %v8772
      %v9046 = vadd.f32 %v7424, %v8775
      %v9047 = vadd.f32 %v7425, %v8777
      %v9048 = vadd.f32 %v7426, %v8780
      %v9049 = vadd.f32 %v7427, %v8782
      %v9050 = vadd.f32 %v7428, %v8785
      %v9051 = vadd.f32 %v7429, %v8787
      %v9052 = vadd.f32 %v7430, %v8790
      %v9053 = vadd.f32 %v7431, %v8792
      %v9054 = vadd.f32 %v7432, %v8795
      %v9055 = vadd.f32 %v7433, %v8797
      %v9056 = vadd.f32 %v7434, %v8800
      %v9057 = vadd.f32 %v7435, %v8802
      %v9058 = vadd.f32 %v7436, %v8805
      %v9059 = vadd.f32 %v7437, %v8807
      %v9060 = vadd.f32 %v7438, %v8810
      %v9061 = vadd.f32 %v7439, %v8812
      %v9062 = vadd.f32 %v7440, %v8815
      %v9063 = vadd.f32 %v7441, %v8817
      %v9064 = vadd.f32 %v7442, %v8820
      %v9065 = vadd.f32 %v7443, %v8822
      %v9066 = vadd.f32 %v7444, %v8825
      %v9067 = vadd.f32 %v7445, %v8827
      %v9068 = vadd.f32 %v7446, %v8830
      %v9069 = vadd.f32 %v7447, %v8832
      %v9070 = vadd.f32 %v7448, %v8835
      %v9071 = vadd.f32 %v7449, %v8837
      %v9072 = vadd.f32 %v7450, %v8840
      %v9073 = vadd.f32 %v7451, %v8842
      %v9074 = vadd.f32 %v7452, %v8845
      %v9075 = vadd.f32 %v7453, %v8847
      %v9076 = vadd.f32 %v7454, %v8850
      %v9077 = vadd.f32 %v7455, %v8852
      %v9078 = vadd.f32 %v7456, %v8855
      %v9079 = vadd.f32 %v7457, %v8857
      %v9080 = vadd.f32 %v7458, %v8860
      %v9081 = vadd.f32 %v7459, %v8862
      %v9082 = vadd.f32 %v7460, %v8865
      %v9083 = vadd.f32 %v7461, %v8867
      %v9084 = vadd.f32 %v7462, %v8870
      %v9085 = vadd.f32 %v7463, %v8872
      %v9086 = vadd.f32 %v7464, %v8875
      %v9087 = vadd.f32 %v7465, %v8877
      %v9088 = vadd.f32 %v7466, %v8880
      %v9089 = vadd.f32 %v7467, %v8882
      %v9090 = vadd.f32 %v7468, %v8885
      %v9091 = vadd.f32 %v7469, %v8887
      %v9092 = vadd.f32 %v7470, %v8890
      %v9093 = vadd.f32 %v7471, %v8892
      %v9094 = vadd.f32 %v7472, %v8895
      %v9095 = vadd.f32 %v7473, %v8897
      %v9096 = vadd.f32 %v7474, %v8900
      %v9097 = vadd.f32 %v7475, %v8902
      %v9098 = vadd.f32 %v7476, %v8905
      %v9099 = vadd.f32 %v7477, %v8907
      %v9100 = vadd.f32 %v7478, %v8910
      %v9101 = vadd.f32 %v7479, %v8912
      %v9102 = vadd.f32 %v7480, %v8915
      %v9103 = vadd.f32 %v7481, %v8917
      %v9104 = vadd.f32 %v7482, %v8920
      %v9105 = vadd.f32 %v7483, %v8922
      %v9106 = vadd.f32 %v7484, %v8925
      %v9107 = vadd.f32 %v7485, %v8927
      %v9108 = vadd.f32 %v7486, %v8930
      %v9109 = vadd.f32 %v7487, %v8932
      %v9110 = vadd.f32 %v7488, %v8935
      %v9111 = vadd.f32 %v7489, %v8937
      %v9112 = vadd.f32 %v7490, %v8940
      %v9113 = vadd.f32 %v7491, %v8942
      %v9114 = vadd.f32 %v7492, %v8945
      %v9115 = vadd.f32 %v7493, %v8947
      %v9116 = vadd.f32 %v7494, %v8950
      %v9117 = vadd.f32 %v7495, %v8952
      %v9118 = vadd.f32 %v7496, %v8955
      %v9119 = vadd.f32 %v7497, %v8957
      %v9120 = vadd.f32 %v7498, %v8960
      %v9121 = vadd.f32 %v7499, %v8962
      %v9122 = vadd.f32 %v7500, %v8965
      %v9123 = vadd.f32 %v7501, %v8967
      %v9124 = vadd.f32 %v7502, %v8970
      %v9125 = vadd.f32 %v7503, %v8972
      %v9126 = vadd.f32 %v7504, %v8975
      %v9127 = vadd.f32 %v7505, %v8977
      %v9128 = vadd.f32 %v7506, %v8980
      %v9129 = vadd.f32 %v7507, %v8982
      %v9130 = vadd.f32 %v7508, %v8985
      %v9131 = vadd.f32 %v7509, %v8987
      %v9132 = vadd.f32 %v7510, %v8990
      %v9133 = vadd.f32 %v7511, %v8992
      %v9134 = vadd.f32 %v7512, %v8995
      %v9135 = vadd.f32 %v7513, %v8997
      %v9136 = vadd.f32 %v7514, %v9000
      %v9137 = vadd.f32 %v7515, %v9002
      %v9138 = vadd.f32 %v7516, %v9005
      %v9139 = vadd.f32 %v7517, %v9007
      %v9140 = vadd.f32 %v7518, %v9010
      %v9141 = vadd.f32 %v7519, %v9012
      %v9142 = vld [vmem:[#allocation2 + $0x74] sm:$0xe]
      %s9143 = scalar_lea.vmem %s1, 28
      %v9144 = vld [vmem:[%s9143] sm:$0xf]
      %v9146 = vunpack.c.l.b16 %v9142
      %v9147 = vpack.c.b16 %v7781, %v9146
      %vm9148 = vcmask 1046528
      %v9149 = vrot.slane %v9147, 1
      %v9150 = vrot.slane %v7910, 1
      %v9151 = vsel %vm9148, %v9149, %v9150
      %v9152 = vrot.slane %v7911, 1
      %v9153 = vsel %vm9148, %v9150, %v9152
      %v9154 = vrot.slane %v7912, 1
      %v9155 = vsel %vm9148, %v9152, %v9154
      %v9156 = vrot.slane %v7913, 1
      %v9157 = vsel %vm9148, %v9154, %v9156
      %v9158 = vrot.slane %v7914, 1
      %v9159 = vsel %vm9148, %v9156, %v9158
      %v9160 = vrot.slane %v7915, 1
      %v9161 = vsel %vm9148, %v9158, %v9160
      %v9162 = vrot.slane %v7916, 1
      %v9163 = vsel %vm9148, %v9160, %v9162
      %v9164 = vrot.slane %v7917, 1
      %v9165 = vsel %vm9148, %v9162, %v9164
      %v9166 = vrot.slane %v7918, 1
      %v9167 = vsel %vm9148, %v9164, %v9166
      %v9168 = vrot.slane %v7919, 1
      %v9169 = vsel %vm9148, %v9166, %v9168
      %v9170 = vrot.slane %v7920, 1
      %v9171 = vsel %vm9148, %v9168, %v9170
      %v9172 = vrot.slane %v7921, 1
      %v9173 = vsel %vm9148, %v9170, %v9172
      %v9174 = vrot.slane %v7922, 1
      %v9175 = vsel %vm9148, %v9172, %v9174
      %v9176 = vrot.slane %v7923, 1
      %v9177 = vsel %vm9148, %v9174, %v9176
      %v9178 = vrot.slane %v7924, 1
      %v9179 = vsel %vm9148, %v9176, %v9178
      %v9180 = vrot.slane %v7925, 1
      %v9181 = vsel %vm9148, %v9178, %v9180
      %v9182 = vrot.slane %v7926, 1
      %v9183 = vsel %vm9148, %v9180, %v9182
      %v9184 = vrot.slane %v7927, 1
      %v9185 = vsel %vm9148, %v9182, %v9184
      %v9186 = vrot.slane %v7928, 1
      %v9187 = vsel %vm9148, %v9184, %v9186
      %v9188 = vrot.slane %v7929, 1
      %v9189 = vsel %vm9148, %v9186, %v9188
      %v9190 = vrot.slane %v7930, 1
      %v9191 = vsel %vm9148, %v9188, %v9190
      %v9192 = vrot.slane %v7931, 1
      %v9193 = vsel %vm9148, %v9190, %v9192
      %v9194 = vrot.slane %v7932, 1
      %v9195 = vsel %vm9148, %v9192, %v9194
      %v9196 = vrot.slane %v7933, 1
      %v9197 = vsel %vm9148, %v9194, %v9196
      %v9198 = vrot.slane %v7934, 1
      %v9199 = vsel %vm9148, %v9196, %v9198
      %v9200 = vrot.slane %v7935, 1
      %v9201 = vsel %vm9148, %v9198, %v9200
      %v9202 = vrot.slane %v7936, 1
      %v9203 = vsel %vm9148, %v9200, %v9202
      %v9204 = vrot.slane %v7937, 1
      %v9205 = vsel %vm9148, %v9202, %v9204
      %v9206 = vrot.slane %v7938, 1
      %v9207 = vsel %vm9148, %v9204, %v9206
      %v9208 = vrot.slane %v7939, 1
      %v9209 = vsel %vm9148, %v9206, %v9208
      %v9210 = vrot.slane %v7940, 1
      %v9211 = vsel %vm9148, %v9208, %v9210
      %v9212 = vrot.slane %v7941, 1
      %v9213 = vsel %vm9148, %v9210, %v9212
      %v9214 = vrot.slane %v7942, 1
      %v9215 = vsel %vm9148, %v9212, %v9214
      %v9216 = vrot.slane %v7943, 1
      %v9217 = vsel %vm9148, %v9214, %v9216
      %v9218 = vrot.slane %v7944, 1
      %v9219 = vsel %vm9148, %v9216, %v9218
      %v9220 = vrot.slane %v7945, 1
      %v9221 = vsel %vm9148, %v9218, %v9220
      %v9222 = vrot.slane %v7946, 1
      %v9223 = vsel %vm9148, %v9220, %v9222
      %v9224 = vrot.slane %v7947, 1
      %v9225 = vsel %vm9148, %v9222, %v9224
      %v9226 = vrot.slane %v7948, 1
      %v9227 = vsel %vm9148, %v9224, %v9226
      %v9228 = vrot.slane %v7949, 1
      %v9229 = vsel %vm9148, %v9226, %v9228
      %v9230 = vrot.slane %v7950, 1
      %v9231 = vsel %vm9148, %v9228, %v9230
      %v9232 = vrot.slane %v7951, 1
      %v9233 = vsel %vm9148, %v9230, %v9232
      %v9234 = vrot.slane %v7952, 1
      %v9235 = vsel %vm9148, %v9232, %v9234
      %v9236 = vrot.slane %v7953, 1
      %v9237 = vsel %vm9148, %v9234, %v9236
      %v9238 = vrot.slane %v7954, 1
      %v9239 = vsel %vm9148, %v9236, %v9238
      %v9240 = vrot.slane %v7955, 1
      %v9241 = vsel %vm9148, %v9238, %v9240
      %v9242 = vrot.slane %v7956, 1
      %v9243 = vsel %vm9148, %v9240, %v9242
      %v9244 = vrot.slane %v7957, 1
      %v9245 = vsel %vm9148, %v9242, %v9244
      %v9246 = vrot.slane %v7958, 1
      %v9247 = vsel %vm9148, %v9244, %v9246
      %v9248 = vrot.slane %v7959, 1
      %v9249 = vsel %vm9148, %v9246, %v9248
      %v9250 = vrot.slane %v7960, 1
      %v9251 = vsel %vm9148, %v9248, %v9250
      %v9252 = vrot.slane %v7961, 1
      %v9253 = vsel %vm9148, %v9250, %v9252
      %v9254 = vrot.slane %v7962, 1
      %v9255 = vsel %vm9148, %v9252, %v9254
      %v9256 = vrot.slane %v7963, 1
      %v9257 = vsel %vm9148, %v9254, %v9256
      %v9258 = vrot.slane %v7964, 1
      %v9259 = vsel %vm9148, %v9256, %v9258
      %v9260 = vrot.slane %v7965, 1
      %v9261 = vsel %vm9148, %v9258, %v9260
      %v9262 = vrot.slane %v7966, 1
      %v9263 = vsel %vm9148, %v9260, %v9262
      %v9264 = vrot.slane %v7967, 1
      %v9265 = vsel %vm9148, %v9262, %v9264
      %v9266 = vrot.slane %v7968, 1
      %v9267 = vsel %vm9148, %v9264, %v9266
      %v9268 = vrot.slane %v7969, 1
      %v9269 = vsel %vm9148, %v9266, %v9268
      %v9270 = vrot.slane %v7970, 1
      %v9271 = vsel %vm9148, %v9268, %v9270
      %v9272 = vrot.slane %v7971, 1
      %v9273 = vsel %vm9148, %v9270, %v9272
      %v9274 = vrot.slane %v7972, 1
      %v9275 = vsel %vm9148, %v9272, %v9274
      %v9276 = vrot.slane %v7973, 1
      %v9277 = vsel %vm9148, %v9274, %v9276
      %v9279 = vsel %vm923, %v9151, 0
      %v9282 = vsel %vm923, %v9153, 0
      %v9285 = vsel %vm923, %v9155, 0
      %v9288 = vsel %vm923, %v9157, 0
      %v9291 = vsel %vm923, %v9159, 0
      %v9294 = vsel %vm923, %v9161, 0
      %v9297 = vsel %vm923, %v9163, 0
      %v9300 = vsel %vm923, %v9165, 0
      %v9303 = vsel %vm923, %v9167, 0
      %v9306 = vsel %vm923, %v9169, 0
      %v9309 = vsel %vm923, %v9171, 0
      %v9312 = vsel %vm923, %v9173, 0
      %v9315 = vsel %vm923, %v9175, 0
      %v9318 = vsel %vm923, %v9177, 0
      %v9321 = vsel %vm923, %v9179, 0
      %v9324 = vsel %vm923, %v9181, 0
      %v9327 = vsel %vm923, %v9183, 0
      %v9330 = vsel %vm923, %v9185, 0
      %v9333 = vsel %vm923, %v9187, 0
      %v9336 = vsel %vm923, %v9189, 0
      %v9339 = vsel %vm923, %v9191, 0
      %v9342 = vsel %vm923, %v9193, 0
      %v9345 = vsel %vm923, %v9195, 0
      %v9348 = vsel %vm923, %v9197, 0
      %v9351 = vsel %vm923, %v9199, 0
      %v9354 = vsel %vm923, %v9201, 0
      %v9357 = vsel %vm923, %v9203, 0
      %v9360 = vsel %vm923, %v9205, 0
      %v9363 = vsel %vm923, %v9207, 0
      %v9366 = vsel %vm923, %v9209, 0
      %v9369 = vsel %vm923, %v9211, 0
      %v9372 = vsel %vm923, %v9213, 0
      %v9375 = vsel %vm923, %v9215, 0
      %v9378 = vsel %vm923, %v9217, 0
      %v9381 = vsel %vm923, %v9219, 0
      %v9384 = vsel %vm923, %v9221, 0
      %v9387 = vsel %vm923, %v9223, 0
      %v9390 = vsel %vm923, %v9225, 0
      %v9393 = vsel %vm923, %v9227, 0
      %v9396 = vsel %vm923, %v9229, 0
      %v9399 = vsel %vm923, %v9231, 0
      %v9402 = vsel %vm923, %v9233, 0
      %v9405 = vsel %vm923, %v9235, 0
      %v9408 = vsel %vm923, %v9237, 0
      %v9411 = vsel %vm923, %v9239, 0
      %v9414 = vsel %vm923, %v9241, 0
      %v9417 = vsel %vm923, %v9243, 0
      %v9420 = vsel %vm923, %v9245, 0
      %v9423 = vsel %vm923, %v9247, 0
      %v9426 = vsel %vm923, %v9249, 0
      %v9429 = vsel %vm923, %v9251, 0
      %v9432 = vsel %vm923, %v9253, 0
      %v9435 = vsel %vm923, %v9255, 0
      %v9438 = vsel %vm923, %v9257, 0
      %v9441 = vsel %vm923, %v9259, 0
      %v9444 = vsel %vm923, %v9261, 0
      %v9447 = vsel %vm923, %v9263, 0
      %v9450 = vsel %vm923, %v9265, 0
      %v9453 = vsel %vm923, %v9267, 0
      %v9456 = vsel %vm923, %v9269, 0
      %v9459 = vsel %vm923, %v9271, 0
      %v9462 = vsel %vm923, %v9273, 0
      %v9465 = vsel %vm923, %v9275, 0
      %v9468 = vsel %vm923, %v9277, 0
      %v9471 = vsel %vm1116, %v9144, 0
      %9473 = vmatpush.bf16.msra.mxu0 0
      %9474 = vmatpush.bf16.msra.mxu0 0
      %9475 = vmatpush.bf16.msra.mxu0 0
      %9476 = vmatpush.bf16.msra.mxu0 0
      %9477 = vmatpush.bf16.msra.mxu0 0
      %9478 = vmatpush.bf16.msra.mxu0 0
      %9479 = vmatpush.bf16.msra.mxu0 0
      %9480 = vmatpush.bf16.msra.mxu0 %v9471
      %9481 = vmatmul.bf16.gmra.mxu0 %v9279
      %v9482 = vpop.f32.mrf.mxu0
      %v9483 = vadd.f32 0.0, %v9482
      %v9484 = vpop.f32.mrf.mxu0
      %v9485 = vadd.f32 0.0, %v9484
      %9486 = vmatmul.bf16.gmra.mxu0 %v9282
      %v9487 = vpop.f32.mrf.mxu0
      %v9488 = vadd.f32 0.0, %v9487
      %v9489 = vpop.f32.mrf.mxu0
      %v9490 = vadd.f32 0.0, %v9489
      %9491 = vmatmul.bf16.gmra.mxu0 %v9285
      %v9492 = vpop.f32.mrf.mxu0
      %v9493 = vadd.f32 0.0, %v9492
      %v9494 = vpop.f32.mrf.mxu0
      %v9495 = vadd.f32 0.0, %v9494
      %9496 = vmatmul.bf16.gmra.mxu0 %v9288
      %v9497 = vpop.f32.mrf.mxu0
      %v9498 = vadd.f32 0.0, %v9497
      %v9499 = vpop.f32.mrf.mxu0
      %v9500 = vadd.f32 0.0, %v9499
      %9501 = vmatmul.bf16.gmra.mxu0 %v9291
      %v9502 = vpop.f32.mrf.mxu0
      %v9503 = vadd.f32 0.0, %v9502
      %v9504 = vpop.f32.mrf.mxu0
      %v9505 = vadd.f32 0.0, %v9504
      %9506 = vmatmul.bf16.gmra.mxu0 %v9294
      %v9507 = vpop.f32.mrf.mxu0
      %v9508 = vadd.f32 0.0, %v9507
      %v9509 = vpop.f32.mrf.mxu0
      %v9510 = vadd.f32 0.0, %v9509
      %9511 = vmatmul.bf16.gmra.mxu0 %v9297
      %v9512 = vpop.f32.mrf.mxu0
      %v9513 = vadd.f32 0.0, %v9512
      %v9514 = vpop.f32.mrf.mxu0
      %v9515 = vadd.f32 0.0, %v9514
      %9516 = vmatmul.bf16.gmra.mxu0 %v9300
      %v9517 = vpop.f32.mrf.mxu0
      %v9518 = vadd.f32 0.0, %v9517
      %v9519 = vpop.f32.mrf.mxu0
      %v9520 = vadd.f32 0.0, %v9519
      %9521 = vmatmul.bf16.gmra.mxu0 %v9303
      %v9522 = vpop.f32.mrf.mxu0
      %v9523 = vadd.f32 0.0, %v9522
      %v9524 = vpop.f32.mrf.mxu0
      %v9525 = vadd.f32 0.0, %v9524
      %9526 = vmatmul.bf16.gmra.mxu0 %v9306
      %v9527 = vpop.f32.mrf.mxu0
      %v9528 = vadd.f32 0.0, %v9527
      %v9529 = vpop.f32.mrf.mxu0
      %v9530 = vadd.f32 0.0, %v9529
      %9531 = vmatmul.bf16.gmra.mxu0 %v9309
      %v9532 = vpop.f32.mrf.mxu0
      %v9533 = vadd.f32 0.0, %v9532
      %v9534 = vpop.f32.mrf.mxu0
      %v9535 = vadd.f32 0.0, %v9534
      %9536 = vmatmul.bf16.gmra.mxu0 %v9312
      %v9537 = vpop.f32.mrf.mxu0
      %v9538 = vadd.f32 0.0, %v9537
      %v9539 = vpop.f32.mrf.mxu0
      %v9540 = vadd.f32 0.0, %v9539
      %9541 = vmatmul.bf16.gmra.mxu0 %v9315
      %v9542 = vpop.f32.mrf.mxu0
      %v9543 = vadd.f32 0.0, %v9542
      %v9544 = vpop.f32.mrf.mxu0
      %v9545 = vadd.f32 0.0, %v9544
      %9546 = vmatmul.bf16.gmra.mxu0 %v9318
      %v9547 = vpop.f32.mrf.mxu0
      %v9548 = vadd.f32 0.0, %v9547
      %v9549 = vpop.f32.mrf.mxu0
      %v9550 = vadd.f32 0.0, %v9549
      %9551 = vmatmul.bf16.gmra.mxu0 %v9321
      %v9552 = vpop.f32.mrf.mxu0
      %v9553 = vadd.f32 0.0, %v9552
      %v9554 = vpop.f32.mrf.mxu0
      %v9555 = vadd.f32 0.0, %v9554
      %9556 = vmatmul.bf16.gmra.mxu0 %v9324
      %v9557 = vpop.f32.mrf.mxu0
      %v9558 = vadd.f32 0.0, %v9557
      %v9559 = vpop.f32.mrf.mxu0
      %v9560 = vadd.f32 0.0, %v9559
      %9561 = vmatmul.bf16.gmra.mxu0 %v9327
      %v9562 = vpop.f32.mrf.mxu0
      %v9563 = vadd.f32 0.0, %v9562
      %v9564 = vpop.f32.mrf.mxu0
      %v9565 = vadd.f32 0.0, %v9564
      %9566 = vmatmul.bf16.gmra.mxu0 %v9330
      %v9567 = vpop.f32.mrf.mxu0
      %v9568 = vadd.f32 0.0, %v9567
      %v9569 = vpop.f32.mrf.mxu0
      %v9570 = vadd.f32 0.0, %v9569
      %9571 = vmatmul.bf16.gmra.mxu0 %v9333
      %v9572 = vpop.f32.mrf.mxu0
      %v9573 = vadd.f32 0.0, %v9572
      %v9574 = vpop.f32.mrf.mxu0
      %v9575 = vadd.f32 0.0, %v9574
      %9576 = vmatmul.bf16.gmra.mxu0 %v9336
      %v9577 = vpop.f32.mrf.mxu0
      %v9578 = vadd.f32 0.0, %v9577
      %v9579 = vpop.f32.mrf.mxu0
      %v9580 = vadd.f32 0.0, %v9579
      %9581 = vmatmul.bf16.gmra.mxu0 %v9339
      %v9582 = vpop.f32.mrf.mxu0
      %v9583 = vadd.f32 0.0, %v9582
      %v9584 = vpop.f32.mrf.mxu0
      %v9585 = vadd.f32 0.0, %v9584
      %9586 = vmatmul.bf16.gmra.mxu0 %v9342
      %v9587 = vpop.f32.mrf.mxu0
      %v9588 = vadd.f32 0.0, %v9587
      %v9589 = vpop.f32.mrf.mxu0
      %v9590 = vadd.f32 0.0, %v9589
      %9591 = vmatmul.bf16.gmra.mxu0 %v9345
      %v9592 = vpop.f32.mrf.mxu0
      %v9593 = vadd.f32 0.0, %v9592
      %v9594 = vpop.f32.mrf.mxu0
      %v9595 = vadd.f32 0.0, %v9594
      %9596 = vmatmul.bf16.gmra.mxu0 %v9348
      %v9597 = vpop.f32.mrf.mxu0
      %v9598 = vadd.f32 0.0, %v9597
      %v9599 = vpop.f32.mrf.mxu0
      %v9600 = vadd.f32 0.0, %v9599
      %9601 = vmatmul.bf16.gmra.mxu0 %v9351
      %v9602 = vpop.f32.mrf.mxu0
      %v9603 = vadd.f32 0.0, %v9602
      %v9604 = vpop.f32.mrf.mxu0
      %v9605 = vadd.f32 0.0, %v9604
      %9606 = vmatmul.bf16.gmra.mxu0 %v9354
      %v9607 = vpop.f32.mrf.mxu0
      %v9608 = vadd.f32 0.0, %v9607
      %v9609 = vpop.f32.mrf.mxu0
      %v9610 = vadd.f32 0.0, %v9609
      %9611 = vmatmul.bf16.gmra.mxu0 %v9357
      %v9612 = vpop.f32.mrf.mxu0
      %v9613 = vadd.f32 0.0, %v9612
      %v9614 = vpop.f32.mrf.mxu0
      %v9615 = vadd.f32 0.0, %v9614
      %9616 = vmatmul.bf16.gmra.mxu0 %v9360
      %v9617 = vpop.f32.mrf.mxu0
      %v9618 = vadd.f32 0.0, %v9617
      %v9619 = vpop.f32.mrf.mxu0
      %v9620 = vadd.f32 0.0, %v9619
      %9621 = vmatmul.bf16.gmra.mxu0 %v9363
      %v9622 = vpop.f32.mrf.mxu0
      %v9623 = vadd.f32 0.0, %v9622
      %v9624 = vpop.f32.mrf.mxu0
      %v9625 = vadd.f32 0.0, %v9624
      %9626 = vmatmul.bf16.gmra.mxu0 %v9366
      %v9627 = vpop.f32.mrf.mxu0
      %v9628 = vadd.f32 0.0, %v9627
      %v9629 = vpop.f32.mrf.mxu0
      %v9630 = vadd.f32 0.0, %v9629
      %9631 = vmatmul.bf16.gmra.mxu0 %v9369
      %v9632 = vpop.f32.mrf.mxu0
      %v9633 = vadd.f32 0.0, %v9632
      %v9634 = vpop.f32.mrf.mxu0
      %v9635 = vadd.f32 0.0, %v9634
      %9636 = vmatmul.bf16.gmra.mxu0 %v9372
      %v9637 = vpop.f32.mrf.mxu0
      %v9638 = vadd.f32 0.0, %v9637
      %v9639 = vpop.f32.mrf.mxu0
      %v9640 = vadd.f32 0.0, %v9639
      %9641 = vmatmul.bf16.gmra.mxu0 %v9375
      %v9642 = vpop.f32.mrf.mxu0
      %v9643 = vadd.f32 0.0, %v9642
      %v9644 = vpop.f32.mrf.mxu0
      %v9645 = vadd.f32 0.0, %v9644
      %9646 = vmatmul.bf16.gmra.mxu0 %v9378
      %v9647 = vpop.f32.mrf.mxu0
      %v9648 = vadd.f32 0.0, %v9647
      %v9649 = vpop.f32.mrf.mxu0
      %v9650 = vadd.f32 0.0, %v9649
      %9651 = vmatmul.bf16.gmra.mxu0 %v9381
      %v9652 = vpop.f32.mrf.mxu0
      %v9653 = vadd.f32 0.0, %v9652
      %v9654 = vpop.f32.mrf.mxu0
      %v9655 = vadd.f32 0.0, %v9654
      %9656 = vmatmul.bf16.gmra.mxu0 %v9384
      %v9657 = vpop.f32.mrf.mxu0
      %v9658 = vadd.f32 0.0, %v9657
      %v9659 = vpop.f32.mrf.mxu0
      %v9660 = vadd.f32 0.0, %v9659
      %9661 = vmatmul.bf16.gmra.mxu0 %v9387
      %v9662 = vpop.f32.mrf.mxu0
      %v9663 = vadd.f32 0.0, %v9662
      %v9664 = vpop.f32.mrf.mxu0
      %v9665 = vadd.f32 0.0, %v9664
      %9666 = vmatmul.bf16.gmra.mxu0 %v9390
      %v9667 = vpop.f32.mrf.mxu0
      %v9668 = vadd.f32 0.0, %v9667
      %v9669 = vpop.f32.mrf.mxu0
      %v9670 = vadd.f32 0.0, %v9669
      %9671 = vmatmul.bf16.gmra.mxu0 %v9393
      %v9672 = vpop.f32.mrf.mxu0
      %v9673 = vadd.f32 0.0, %v9672
      %v9674 = vpop.f32.mrf.mxu0
      %v9675 = vadd.f32 0.0, %v9674
      %9676 = vmatmul.bf16.gmra.mxu0 %v9396
      %v9677 = vpop.f32.mrf.mxu0
      %v9678 = vadd.f32 0.0, %v9677
      %v9679 = vpop.f32.mrf.mxu0
      %v9680 = vadd.f32 0.0, %v9679
      %9681 = vmatmul.bf16.gmra.mxu0 %v9399
      %v9682 = vpop.f32.mrf.mxu0
      %v9683 = vadd.f32 0.0, %v9682
      %v9684 = vpop.f32.mrf.mxu0
      %v9685 = vadd.f32 0.0, %v9684
      %9686 = vmatmul.bf16.gmra.mxu0 %v9402
      %v9687 = vpop.f32.mrf.mxu0
      %v9688 = vadd.f32 0.0, %v9687
      %v9689 = vpop.f32.mrf.mxu0
      %v9690 = vadd.f32 0.0, %v9689
      %9691 = vmatmul.bf16.gmra.mxu0 %v9405
      %v9692 = vpop.f32.mrf.mxu0
      %v9693 = vadd.f32 0.0, %v9692
      %v9694 = vpop.f32.mrf.mxu0
      %v9695 = vadd.f32 0.0, %v9694
      %9696 = vmatmul.bf16.gmra.mxu0 %v9408
      %v9697 = vpop.f32.mrf.mxu0
      %v9698 = vadd.f32 0.0, %v9697
      %v9699 = vpop.f32.mrf.mxu0
      %v9700 = vadd.f32 0.0, %v9699
      %9701 = vmatmul.bf16.gmra.mxu0 %v9411
      %v9702 = vpop.f32.mrf.mxu0
      %v9703 = vadd.f32 0.0, %v9702
      %v9704 = vpop.f32.mrf.mxu0
      %v9705 = vadd.f32 0.0, %v9704
      %9706 = vmatmul.bf16.gmra.mxu0 %v9414
      %v9707 = vpop.f32.mrf.mxu0
      %v9708 = vadd.f32 0.0, %v9707
      %v9709 = vpop.f32.mrf.mxu0
      %v9710 = vadd.f32 0.0, %v9709
      %9711 = vmatmul.bf16.gmra.mxu0 %v9417
      %v9712 = vpop.f32.mrf.mxu0
      %v9713 = vadd.f32 0.0, %v9712
      %v9714 = vpop.f32.mrf.mxu0
      %v9715 = vadd.f32 0.0, %v9714
      %9716 = vmatmul.bf16.gmra.mxu0 %v9420
      %v9717 = vpop.f32.mrf.mxu0
      %v9718 = vadd.f32 0.0, %v9717
      %v9719 = vpop.f32.mrf.mxu0
      %v9720 = vadd.f32 0.0, %v9719
      %9721 = vmatmul.bf16.gmra.mxu0 %v9423
      %v9722 = vpop.f32.mrf.mxu0
      %v9723 = vadd.f32 0.0, %v9722
      %v9724 = vpop.f32.mrf.mxu0
      %v9725 = vadd.f32 0.0, %v9724
      %9726 = vmatmul.bf16.gmra.mxu0 %v9426
      %v9727 = vpop.f32.mrf.mxu0
      %v9728 = vadd.f32 0.0, %v9727
      %v9729 = vpop.f32.mrf.mxu0
      %v9730 = vadd.f32 0.0, %v9729
      %9731 = vmatmul.bf16.gmra.mxu0 %v9429
      %v9732 = vpop.f32.mrf.mxu0
      %v9733 = vadd.f32 0.0, %v9732
      %v9734 = vpop.f32.mrf.mxu0
      %v9735 = vadd.f32 0.0, %v9734
      %9736 = vmatmul.bf16.gmra.mxu0 %v9432
      %v9737 = vpop.f32.mrf.mxu0
      %v9738 = vadd.f32 0.0, %v9737
      %v9739 = vpop.f32.mrf.mxu0
      %v9740 = vadd.f32 0.0, %v9739
      %9741 = vmatmul.bf16.gmra.mxu0 %v9435
      %v9742 = vpop.f32.mrf.mxu0
      %v9743 = vadd.f32 0.0, %v9742
      %v9744 = vpop.f32.mrf.mxu0
      %v9745 = vadd.f32 0.0, %v9744
      %9746 = vmatmul.bf16.gmra.mxu0 %v9438
      %v9747 = vpop.f32.mrf.mxu0
      %v9748 = vadd.f32 0.0, %v9747
      %v9749 = vpop.f32.mrf.mxu0
      %v9750 = vadd.f32 0.0, %v9749
      %9751 = vmatmul.bf16.gmra.mxu0 %v9441
      %v9752 = vpop.f32.mrf.mxu0
      %v9753 = vadd.f32 0.0, %v9752
      %v9754 = vpop.f32.mrf.mxu0
      %v9755 = vadd.f32 0.0, %v9754
      %9756 = vmatmul.bf16.gmra.mxu0 %v9444
      %v9757 = vpop.f32.mrf.mxu0
      %v9758 = vadd.f32 0.0, %v9757
      %v9759 = vpop.f32.mrf.mxu0
      %v9760 = vadd.f32 0.0, %v9759
      %9761 = vmatmul.bf16.gmra.mxu0 %v9447
      %v9762 = vpop.f32.mrf.mxu0
      %v9763 = vadd.f32 0.0, %v9762
      %v9764 = vpop.f32.mrf.mxu0
      %v9765 = vadd.f32 0.0, %v9764
      %9766 = vmatmul.bf16.gmra.mxu0 %v9450
      %v9767 = vpop.f32.mrf.mxu0
      %v9768 = vadd.f32 0.0, %v9767
      %v9769 = vpop.f32.mrf.mxu0
      %v9770 = vadd.f32 0.0, %v9769
      %9771 = vmatmul.bf16.gmra.mxu0 %v9453
      %v9772 = vpop.f32.mrf.mxu0
      %v9773 = vadd.f32 0.0, %v9772
      %v9774 = vpop.f32.mrf.mxu0
      %v9775 = vadd.f32 0.0, %v9774
      %9776 = vmatmul.bf16.gmra.mxu0 %v9456
      %v9777 = vpop.f32.mrf.mxu0
      %v9778 = vadd.f32 0.0, %v9777
      %v9779 = vpop.f32.mrf.mxu0
      %v9780 = vadd.f32 0.0, %v9779
      %9781 = vmatmul.bf16.gmra.mxu0 %v9459
      %v9782 = vpop.f32.mrf.mxu0
      %v9783 = vadd.f32 0.0, %v9782
      %v9784 = vpop.f32.mrf.mxu0
      %v9785 = vadd.f32 0.0, %v9784
      %9786 = vmatmul.bf16.gmra.mxu0 %v9462
      %v9787 = vpop.f32.mrf.mxu0
      %v9788 = vadd.f32 0.0, %v9787
      %v9789 = vpop.f32.mrf.mxu0
      %v9790 = vadd.f32 0.0, %v9789
      %9791 = vmatmul.bf16.gmra.mxu0 %v9465
      %v9792 = vpop.f32.mrf.mxu0
      %v9793 = vadd.f32 0.0, %v9792
      %v9794 = vpop.f32.mrf.mxu0
      %v9795 = vadd.f32 0.0, %v9794
      %9796 = vmatmul.bf16.gmra.mxu0 %v9468
      %v9797 = vpop.f32.mrf.mxu0
      %v9798 = vadd.f32 0.0, %v9797
      %v9799 = vpop.f32.mrf.mxu0
      %v9800 = vadd.f32 0.0, %v9799
      %9801 = vdwg.mxu0
      %v9802 = vadd.f32 %v9014, %v9483
      %v9803 = vadd.f32 %v9015, %v9485
      %v9804 = vadd.f32 %v9016, %v9488
      %v9805 = vadd.f32 %v9017, %v9490
      %v9806 = vadd.f32 %v9018, %v9493
      %v9807 = vadd.f32 %v9019, %v9495
      %v9808 = vadd.f32 %v9020, %v9498
      %v9809 = vadd.f32 %v9021, %v9500
      %v9810 = vadd.f32 %v9022, %v9503
      %v9811 = vadd.f32 %v9023, %v9505
      %v9812 = vadd.f32 %v9024, %v9508
      %v9813 = vadd.f32 %v9025, %v9510
      %v9814 = vadd.f32 %v9026, %v9513
      %v9815 = vadd.f32 %v9027, %v9515
      %v9816 = vadd.f32 %v9028, %v9518
      %v9817 = vadd.f32 %v9029, %v9520
      %v9818 = vadd.f32 %v9030, %v9523
      %v9819 = vadd.f32 %v9031, %v9525
      %v9820 = vadd.f32 %v9032, %v9528
      %v9821 = vadd.f32 %v9033, %v9530
      %v9822 = vadd.f32 %v9034, %v9533
      %v9823 = vadd.f32 %v9035, %v9535
      %v9824 = vadd.f32 %v9036, %v9538
      %v9825 = vadd.f32 %v9037, %v9540
      %v9826 = vadd.f32 %v9038, %v9543
      %v9827 = vadd.f32 %v9039, %v9545
      %v9828 = vadd.f32 %v9040, %v9548
      %v9829 = vadd.f32 %v9041, %v9550
      %v9830 = vadd.f32 %v9042, %v9553
      %v9831 = vadd.f32 %v9043, %v9555
      %v9832 = vadd.f32 %v9044, %v9558
      %v9833 = vadd.f32 %v9045, %v9560
      %v9834 = vadd.f32 %v9046, %v9563
      %v9835 = vadd.f32 %v9047, %v9565
      %v9836 = vadd.f32 %v9048, %v9568
      %v9837 = vadd.f32 %v9049, %v9570
      %v9838 = vadd.f32 %v9050, %v9573
      %v9839 = vadd.f32 %v9051, %v9575
      %v9840 = vadd.f32 %v9052, %v9578
      %v9841 = vadd.f32 %v9053, %v9580
      %v9842 = vadd.f32 %v9054, %v9583
      %v9843 = vadd.f32 %v9055, %v9585
      %v9844 = vadd.f32 %v9056, %v9588
      %v9845 = vadd.f32 %v9057, %v9590
      %v9846 = vadd.f32 %v9058, %v9593
      %v9847 = vadd.f32 %v9059, %v9595
      %v9848 = vadd.f32 %v9060, %v9598
      %v9849 = vadd.f32 %v9061, %v9600
      %v9850 = vadd.f32 %v9062, %v9603
      %v9851 = vadd.f32 %v9063, %v9605
      %v9852 = vadd.f32 %v9064, %v9608
      %v9853 = vadd.f32 %v9065, %v9610
      %v9854 = vadd.f32 %v9066, %v9613
      %v9855 = vadd.f32 %v9067, %v9615
      %v9856 = vadd.f32 %v9068, %v9618
      %v9857 = vadd.f32 %v9069, %v9620
      %v9858 = vadd.f32 %v9070, %v9623
      %v9859 = vadd.f32 %v9071, %v9625
      %v9860 = vadd.f32 %v9072, %v9628
      %v9861 = vadd.f32 %v9073, %v9630
      %v9862 = vadd.f32 %v9074, %v9633
      %v9863 = vadd.f32 %v9075, %v9635
      %v9864 = vadd.f32 %v9076, %v9638
      %v9865 = vadd.f32 %v9077, %v9640
      %v9866 = vadd.f32 %v9078, %v9643
      %v9867 = vadd.f32 %v9079, %v9645
      %v9868 = vadd.f32 %v9080, %v9648
      %v9869 = vadd.f32 %v9081, %v9650
      %v9870 = vadd.f32 %v9082, %v9653
      %v9871 = vadd.f32 %v9083, %v9655
      %v9872 = vadd.f32 %v9084, %v9658
      %v9873 = vadd.f32 %v9085, %v9660
      %v9874 = vadd.f32 %v9086, %v9663
      %v9875 = vadd.f32 %v9087, %v9665
      %v9876 = vadd.f32 %v9088, %v9668
      %v9877 = vadd.f32 %v9089, %v9670
      %v9878 = vadd.f32 %v9090, %v9673
      %v9879 = vadd.f32 %v9091, %v9675
      %v9880 = vadd.f32 %v9092, %v9678
      %v9881 = vadd.f32 %v9093, %v9680
      %v9882 = vadd.f32 %v9094, %v9683
      %v9883 = vadd.f32 %v9095, %v9685
      %v9884 = vadd.f32 %v9096, %v9688
      %v9885 = vadd.f32 %v9097, %v9690
      %v9886 = vadd.f32 %v9098, %v9693
      %v9887 = vadd.f32 %v9099, %v9695
      %v9888 = vadd.f32 %v9100, %v9698
      %v9889 = vadd.f32 %v9101, %v9700
      %v9890 = vadd.f32 %v9102, %v9703
      %v9891 = vadd.f32 %v9103, %v9705
      %v9892 = vadd.f32 %v9104, %v9708
      %v9893 = vadd.f32 %v9105, %v9710
      %v9894 = vadd.f32 %v9106, %v9713
      %v9895 = vadd.f32 %v9107, %v9715
      %v9896 = vadd.f32 %v9108, %v9718
      %v9897 = vadd.f32 %v9109, %v9720
      %v9898 = vadd.f32 %v9110, %v9723
      %v9899 = vadd.f32 %v9111, %v9725
      %v9900 = vadd.f32 %v9112, %v9728
      %v9901 = vadd.f32 %v9113, %v9730
      %v9902 = vadd.f32 %v9114, %v9733
      %v9903 = vadd.f32 %v9115, %v9735
      %v9904 = vadd.f32 %v9116, %v9738
      %v9905 = vadd.f32 %v9117, %v9740
      %v9906 = vadd.f32 %v9118, %v9743
      %v9907 = vadd.f32 %v9119, %v9745
      %v9908 = vadd.f32 %v9120, %v9748
      %v9909 = vadd.f32 %v9121, %v9750
      %v9910 = vadd.f32 %v9122, %v9753
      %v9911 = vadd.f32 %v9123, %v9755
      %v9912 = vadd.f32 %v9124, %v9758
      %v9913 = vadd.f32 %v9125, %v9760
      %v9914 = vadd.f32 %v9126, %v9763
      %v9915 = vadd.f32 %v9127, %v9765
      %v9916 = vadd.f32 %v9128, %v9768
      %v9917 = vadd.f32 %v9129, %v9770
      %v9918 = vadd.f32 %v9130, %v9773
      %v9919 = vadd.f32 %v9131, %v9775
      %v9920 = vadd.f32 %v9132, %v9778
      %v9921 = vadd.f32 %v9133, %v9780
      %v9922 = vadd.f32 %v9134, %v9783
      %v9923 = vadd.f32 %v9135, %v9785
      %v9924 = vadd.f32 %v9136, %v9788
      %v9925 = vadd.f32 %v9137, %v9790
      %v9926 = vadd.f32 %v9138, %v9793
      %v9927 = vadd.f32 %v9139, %v9795
      %v9928 = vadd.f32 %v9140, %v9798
      %v9929 = vadd.f32 %v9141, %v9800
      %v9930 = vld [vmem:[#allocation2 + $0x274] sm:$0x3]
      %s9931 = scalar_lea.vmem %s1, 32
      %v9932 = vld [vmem:[%s9931] sm:$0xf]
      %v9934 = vunpack.c.l.b16 %v9930
      %v9935 = vpack.c.b16 %v9934, %v9934
      %vm9936 = vsmask.f32 6400
      %v9938 = vshrl.u32 %v9147, 16
      %v9940 = vrot.slane %v9938, 1
      %v9941 = vshll.u32 %v9147, 16
      %v9943 = vrot.slane %v9941, 2
      %v9944 = vor.u32 %v9940, %v9943
      %v9945 = vrot.slane %v7986, 1
      %v9946 = vrot.slane %v7982, 2
      %v9947 = vor.u32 %v9945, %v9946
      %v9948 = vsel %vm9936, %v9944, %v9947
      %v9949 = vrot.slane %v7994, 1
      %v9950 = vrot.slane %v7990, 2
      %v9951 = vor.u32 %v9949, %v9950
      %v9952 = vsel %vm9936, %v9947, %v9951
      %v9953 = vrot.slane %v8002, 1
      %v9954 = vrot.slane %v7998, 2
      %v9955 = vor.u32 %v9953, %v9954
      %v9956 = vsel %vm9936, %v9951, %v9955
      %v9957 = vrot.slane %v8010, 1
      %v9958 = vrot.slane %v8006, 2
      %v9959 = vor.u32 %v9957, %v9958
      %v9960 = vsel %vm9936, %v9955, %v9959
      %v9961 = vrot.slane %v8018, 1
      %v9962 = vrot.slane %v8014, 2
      %v9963 = vor.u32 %v9961, %v9962
      %v9964 = vsel %vm9936, %v9959, %v9963
      %v9965 = vrot.slane %v8026, 1
      %v9966 = vrot.slane %v8022, 2
      %v9967 = vor.u32 %v9965, %v9966
      %v9968 = vsel %vm9936, %v9963, %v9967
      %v9969 = vrot.slane %v8034, 1
      %v9970 = vrot.slane %v8030, 2
      %v9971 = vor.u32 %v9969, %v9970
      %v9972 = vsel %vm9936, %v9967, %v9971
      %v9973 = vrot.slane %v8042, 1
      %v9974 = vrot.slane %v8038, 2
      %v9975 = vor.u32 %v9973, %v9974
      %v9976 = vsel %vm9936, %v9971, %v9975
      %v9977 = vrot.slane %v8050, 1
      %v9978 = vrot.slane %v8046, 2
      %v9979 = vor.u32 %v9977, %v9978
      %v9980 = vsel %vm9936, %v9975, %v9979
      %v9981 = vrot.slane %v8058, 1
      %v9982 = vrot.slane %v8054, 2
      %v9983 = vor.u32 %v9981, %v9982
      %v9984 = vsel %vm9936, %v9979, %v9983
      %v9985 = vrot.slane %v8066, 1
      %v9986 = vrot.slane %v8062, 2
      %v9987 = vor.u32 %v9985, %v9986
      %v9988 = vsel %vm9936, %v9983, %v9987
      %v9989 = vrot.slane %v8074, 1
      %v9990 = vrot.slane %v8070, 2
      %v9991 = vor.u32 %v9989, %v9990
      %v9992 = vsel %vm9936, %v9987, %v9991
      %v9993 = vrot.slane %v8082, 1
      %v9994 = vrot.slane %v8078, 2
      %v9995 = vor.u32 %v9993, %v9994
      %v9996 = vsel %vm9936, %v9991, %v9995
      %v9997 = vrot.slane %v8090, 1
      %v9998 = vrot.slane %v8086, 2
      %v9999 = vor.u32 %v9997, %v9998
      %v10000 = vsel %vm9936, %v9995, %v9999
      %v10001 = vrot.slane %v8098, 1
      %v10002 = vrot.slane %v8094, 2
      %v10003 = vor.u32 %v10001, %v10002
      %v10004 = vsel %vm9936, %v9999, %v10003
      %v10005 = vrot.slane %v8106, 1
      %v10006 = vrot.slane %v8102, 2
      %v10007 = vor.u32 %v10005, %v10006
      %v10008 = vsel %vm9936, %v10003, %v10007
      %v10009 = vrot.slane %v8114, 1
      %v10010 = vrot.slane %v8110, 2
      %v10011 = vor.u32 %v10009, %v10010
      %v10012 = vsel %vm9936, %v10007, %v10011
      %v10013 = vrot.slane %v8122, 1
      %v10014 = vrot.slane %v8118, 2
      %v10015 = vor.u32 %v10013, %v10014
      %v10016 = vsel %vm9936, %v10011, %v10015
      %v10017 = vrot.slane %v8130, 1
      %v10018 = vrot.slane %v8126, 2
      %v10019 = vor.u32 %v10017, %v10018
      %v10020 = vsel %vm9936, %v10015, %v10019
      %v10021 = vrot.slane %v8138, 1
      %v10022 = vrot.slane %v8134, 2
      %v10023 = vor.u32 %v10021, %v10022
      %v10024 = vsel %vm9936, %v10019, %v10023
      %v10025 = vrot.slane %v8146, 1
      %v10026 = vrot.slane %v8142, 2
      %v10027 = vor.u32 %v10025, %v10026
      %v10028 = vsel %vm9936, %v10023, %v10027
      %v10029 = vrot.slane %v8154, 1
      %v10030 = vrot.slane %v8150, 2
      %v10031 = vor.u32 %v10029, %v10030
      %v10032 = vsel %vm9936, %v10027, %v10031
      %v10033 = vrot.slane %v8162, 1
      %v10034 = vrot.slane %v8158, 2
      %v10035 = vor.u32 %v10033, %v10034
      %v10036 = vsel %vm9936, %v10031, %v10035
      %v10037 = vrot.slane %v8170, 1
      %v10038 = vrot.slane %v8166, 2
      %v10039 = vor.u32 %v10037, %v10038
      %v10040 = vsel %vm9936, %v10035, %v10039
      %v10041 = vrot.slane %v8178, 1
      %v10042 = vrot.slane %v8174, 2
      %v10043 = vor.u32 %v10041, %v10042
      %v10044 = vsel %vm9936, %v10039, %v10043
      %v10045 = vrot.slane %v8186, 1
      %v10046 = vrot.slane %v8182, 2
      %v10047 = vor.u32 %v10045, %v10046
      %v10048 = vsel %vm9936, %v10043, %v10047
      %v10049 = vrot.slane %v8194, 1
      %v10050 = vrot.slane %v8190, 2
      %v10051 = vor.u32 %v10049, %v10050
      %v10052 = vsel %vm9936, %v10047, %v10051
      %v10053 = vrot.slane %v8202, 1
      %v10054 = vrot.slane %v8198, 2
      %v10055 = vor.u32 %v10053, %v10054
      %v10056 = vsel %vm9936, %v10051, %v10055
      %v10057 = vrot.slane %v8210, 1
      %v10058 = vrot.slane %v8206, 2
      %v10059 = vor.u32 %v10057, %v10058
      %v10060 = vsel %vm9936, %v10055, %v10059
      %v10061 = vrot.slane %v8218, 1
      %v10062 = vrot.slane %v8214, 2
      %v10063 = vor.u32 %v10061, %v10062
      %v10064 = vsel %vm9936, %v10059, %v10063
      %v10065 = vrot.slane %v8226, 1
      %v10066 = vrot.slane %v8222, 2
      %v10067 = vor.u32 %v10065, %v10066
      %v10068 = vsel %vm9936, %v10063, %v10067
      %v10069 = vrot.slane %v8234, 1
      %v10070 = vrot.slane %v8230, 2
      %v10071 = vor.u32 %v10069, %v10070
      %v10072 = vsel %vm9936, %v10067, %v10071
      %v10073 = vrot.slane %v8242, 1
      %v10074 = vrot.slane %v8238, 2
      %v10075 = vor.u32 %v10073, %v10074
      %v10076 = vsel %vm9936, %v10071, %v10075
      %v10077 = vrot.slane %v8250, 1
      %v10078 = vrot.slane %v8246, 2
      %v10079 = vor.u32 %v10077, %v10078
      %v10080 = vsel %vm9936, %v10075, %v10079
      %v10081 = vrot.slane %v8258, 1
      %v10082 = vrot.slane %v8254, 2
      %v10083 = vor.u32 %v10081, %v10082
      %v10084 = vsel %vm9936, %v10079, %v10083
      %v10085 = vrot.slane %v8266, 1
      %v10086 = vrot.slane %v8262, 2
      %v10087 = vor.u32 %v10085, %v10086
      %v10088 = vsel %vm9936, %v10083, %v10087
      %v10089 = vrot.slane %v8274, 1
      %v10090 = vrot.slane %v8270, 2
      %v10091 = vor.u32 %v10089, %v10090
      %v10092 = vsel %vm9936, %v10087, %v10091
      %v10093 = vrot.slane %v8282, 1
      %v10094 = vrot.slane %v8278, 2
      %v10095 = vor.u32 %v10093, %v10094
      %v10096 = vsel %vm9936, %v10091, %v10095
      %v10097 = vrot.slane %v8290, 1
      %v10098 = vrot.slane %v8286, 2
      %v10099 = vor.u32 %v10097, %v10098
      %v10100 = vsel %vm9936, %v10095, %v10099
      %v10101 = vrot.slane %v8298, 1
      %v10102 = vrot.slane %v8294, 2
      %v10103 = vor.u32 %v10101, %v10102
      %v10104 = vsel %vm9936, %v10099, %v10103
      %v10105 = vrot.slane %v8306, 1
      %v10106 = vrot.slane %v8302, 2
      %v10107 = vor.u32 %v10105, %v10106
      %v10108 = vsel %vm9936, %v10103, %v10107
      %v10109 = vrot.slane %v8314, 1
      %v10110 = vrot.slane %v8310, 2
      %v10111 = vor.u32 %v10109, %v10110
      %v10112 = vsel %vm9936, %v10107, %v10111
      %v10113 = vrot.slane %v8322, 1
      %v10114 = vrot.slane %v8318, 2
      %v10115 = vor.u32 %v10113, %v10114
      %v10116 = vsel %vm9936, %v10111, %v10115
      %v10117 = vrot.slane %v8330, 1
      %v10118 = vrot.slane %v8326, 2
      %v10119 = vor.u32 %v10117, %v10118
      %v10120 = vsel %vm9936, %v10115, %v10119
      %v10121 = vrot.slane %v8338, 1
      %v10122 = vrot.slane %v8334, 2
      %v10123 = vor.u32 %v10121, %v10122
      %v10124 = vsel %vm9936, %v10119, %v10123
      %v10125 = vrot.slane %v8346, 1
      %v10126 = vrot.slane %v8342, 2
      %v10127 = vor.u32 %v10125, %v10126
      %v10128 = vsel %vm9936, %v10123, %v10127
      %v10129 = vrot.slane %v8354, 1
      %v10130 = vrot.slane %v8350, 2
      %v10131 = vor.u32 %v10129, %v10130
      %v10132 = vsel %vm9936, %v10127, %v10131
      %v10133 = vrot.slane %v8362, 1
      %v10134 = vrot.slane %v8358, 2
      %v10135 = vor.u32 %v10133, %v10134
      %v10136 = vsel %vm9936, %v10131, %v10135
      %v10137 = vrot.slane %v8370, 1
      %v10138 = vrot.slane %v8366, 2
      %v10139 = vor.u32 %v10137, %v10138
      %v10140 = vsel %vm9936, %v10135, %v10139
      %v10141 = vrot.slane %v8378, 1
      %v10142 = vrot.slane %v8374, 2
      %v10143 = vor.u32 %v10141, %v10142
      %v10144 = vsel %vm9936, %v10139, %v10143
      %v10145 = vrot.slane %v8386, 1
      %v10146 = vrot.slane %v8382, 2
      %v10147 = vor.u32 %v10145, %v10146
      %v10148 = vsel %vm9936, %v10143, %v10147
      %v10149 = vrot.slane %v8394, 1
      %v10150 = vrot.slane %v8390, 2
      %v10151 = vor.u32 %v10149, %v10150
      %v10152 = vsel %vm9936, %v10147, %v10151
      %v10153 = vrot.slane %v8402, 1
      %v10154 = vrot.slane %v8398, 2
      %v10155 = vor.u32 %v10153, %v10154
      %v10156 = vsel %vm9936, %v10151, %v10155
      %v10157 = vrot.slane %v8410, 1
      %v10158 = vrot.slane %v8406, 2
      %v10159 = vor.u32 %v10157, %v10158
      %v10160 = vsel %vm9936, %v10155, %v10159
      %v10161 = vrot.slane %v8418, 1
      %v10162 = vrot.slane %v8414, 2
      %v10163 = vor.u32 %v10161, %v10162
      %v10164 = vsel %vm9936, %v10159, %v10163
      %v10165 = vrot.slane %v8426, 1
      %v10166 = vrot.slane %v8422, 2
      %v10167 = vor.u32 %v10165, %v10166
      %v10168 = vsel %vm9936, %v10163, %v10167
      %v10169 = vrot.slane %v8434, 1
      %v10170 = vrot.slane %v8430, 2
      %v10171 = vor.u32 %v10169, %v10170
      %v10172 = vsel %vm9936, %v10167, %v10171
      %v10173 = vrot.slane %v8442, 1
      %v10174 = vrot.slane %v8438, 2
      %v10175 = vor.u32 %v10173, %v10174
      %v10176 = vsel %vm9936, %v10171, %v10175
      %v10177 = vrot.slane %v8450, 1
      %v10178 = vrot.slane %v8446, 2
      %v10179 = vor.u32 %v10177, %v10178
      %v10180 = vsel %vm9936, %v10175, %v10179
      %v10181 = vrot.slane %v8458, 1
      %v10182 = vrot.slane %v8454, 2
      %v10183 = vor.u32 %v10181, %v10182
      %v10184 = vsel %vm9936, %v10179, %v10183
      %v10185 = vrot.slane %v8466, 1
      %v10186 = vrot.slane %v8462, 2
      %v10187 = vor.u32 %v10185, %v10186
      %v10188 = vsel %vm9936, %v10183, %v10187
      %v10189 = vrot.slane %v8474, 1
      %v10190 = vrot.slane %v8470, 2
      %v10191 = vor.u32 %v10189, %v10190
      %v10192 = vsel %vm9936, %v10187, %v10191
      %v10193 = vrot.slane %v8482, 1
      %v10194 = vrot.slane %v8478, 2
      %v10195 = vor.u32 %v10193, %v10194
      %v10196 = vsel %vm9936, %v10191, %v10195
      %v10198 = vshrl.u32 %v9935, 16
      %v10200 = vrot.slane %v10198, 1
      %v10201 = vshll.u32 %v9935, 16
      %v10203 = vrot.slane %v10201, 2
      %v10204 = vor.u32 %v10200, %v10203
      %v10205 = vsel %vm9936, %v10195, %v10204
      %v10207 = vsel %vm923, %v9948, 0
      %v10210 = vsel %vm923, %v9952, 0
      %v10213 = vsel %vm923, %v9956, 0
      %v10216 = vsel %vm923, %v9960, 0
      %v10219 = vsel %vm923, %v9964, 0
      %v10222 = vsel %vm923, %v9968, 0
      %v10225 = vsel %vm923, %v9972, 0
      %v10228 = vsel %vm923, %v9976, 0
      %v10231 = vsel %vm923, %v9980, 0
      %v10234 = vsel %vm923, %v9984, 0
      %v10237 = vsel %vm923, %v9988, 0
      %v10240 = vsel %vm923, %v9992, 0
      %v10243 = vsel %vm923, %v9996, 0
      %v10246 = vsel %vm923, %v10000, 0
      %v10249 = vsel %vm923, %v10004, 0
      %v10252 = vsel %vm923, %v10008, 0
      %v10255 = vsel %vm923, %v10012, 0
      %v10258 = vsel %vm923, %v10016, 0
      %v10261 = vsel %vm923, %v10020, 0
      %v10264 = vsel %vm923, %v10024, 0
      %v10267 = vsel %vm923, %v10028, 0
      %v10270 = vsel %vm923, %v10032, 0
      %v10273 = vsel %vm923, %v10036, 0
      %v10276 = vsel %vm923, %v10040, 0
      %v10279 = vsel %vm923, %v10044, 0
      %v10282 = vsel %vm923, %v10048, 0
      %v10285 = vsel %vm923, %v10052, 0
      %v10288 = vsel %vm923, %v10056, 0
      %v10291 = vsel %vm923, %v10060, 0
      %v10294 = vsel %vm923, %v10064, 0
      %v10297 = vsel %vm923, %v10068, 0
      %v10300 = vsel %vm923, %v10072, 0
      %v10303 = vsel %vm923, %v10076, 0
      %v10306 = vsel %vm923, %v10080, 0
      %v10309 = vsel %vm923, %v10084, 0
      %v10312 = vsel %vm923, %v10088, 0
      %v10315 = vsel %vm923, %v10092, 0
      %v10318 = vsel %vm923, %v10096, 0
      %v10321 = vsel %vm923, %v10100, 0
      %v10324 = vsel %vm923, %v10104, 0
      %v10327 = vsel %vm923, %v10108, 0
      %v10330 = vsel %vm923, %v10112, 0
      %v10333 = vsel %vm923, %v10116, 0
      %v10336 = vsel %vm923, %v10120, 0
      %v10339 = vsel %vm923, %v10124, 0
      %v10342 = vsel %vm923, %v10128, 0
      %v10345 = vsel %vm923, %v10132, 0
      %v10348 = vsel %vm923, %v10136, 0
      %v10351 = vsel %vm923, %v10140, 0
      %v10354 = vsel %vm923, %v10144, 0
      %v10357 = vsel %vm923, %v10148, 0
      %v10360 = vsel %vm923, %v10152, 0
      %v10363 = vsel %vm923, %v10156, 0
      %v10366 = vsel %vm923, %v10160, 0
      %v10369 = vsel %vm923, %v10164, 0
      %v10372 = vsel %vm923, %v10168, 0
      %v10375 = vsel %vm923, %v10172, 0
      %v10378 = vsel %vm923, %v10176, 0
      %v10381 = vsel %vm923, %v10180, 0
      %v10384 = vsel %vm923, %v10184, 0
      %v10387 = vsel %vm923, %v10188, 0
      %v10390 = vsel %vm923, %v10192, 0
      %v10393 = vsel %vm923, %v10196, 0
      %v10396 = vsel %vm923, %v10205, 0
      %v10399 = vsel %vm1116, %v9932, 0
      %10401 = vmatpush.bf16.msra.mxu0 0
      %10402 = vmatpush.bf16.msra.mxu0 0
      %10403 = vmatpush.bf16.msra.mxu0 0
      %10404 = vmatpush.bf16.msra.mxu0 0
      %10405 = vmatpush.bf16.msra.mxu0 0
      %10406 = vmatpush.bf16.msra.mxu0 0
      %10407 = vmatpush.bf16.msra.mxu0 0
      %10408 = vmatpush.bf16.msra.mxu0 %v10399
      %10409 = vmatmul.bf16.gmra.mxu0 %v10207
      %v10410 = vpop.f32.mrf.mxu0
      %v10411 = vadd.f32 0.0, %v10410
      %v10412 = vpop.f32.mrf.mxu0
      %v10413 = vadd.f32 0.0, %v10412
      %10414 = vmatmul.bf16.gmra.mxu0 %v10210
      %v10415 = vpop.f32.mrf.mxu0
      %v10416 = vadd.f32 0.0, %v10415
      %v10417 = vpop.f32.mrf.mxu0
      %v10418 = vadd.f32 0.0, %v10417
      %10419 = vmatmul.bf16.gmra.mxu0 %v10213
      %v10420 = vpop.f32.mrf.mxu0
      %v10421 = vadd.f32 0.0, %v10420
      %v10422 = vpop.f32.mrf.mxu0
      %v10423 = vadd.f32 0.0, %v10422
      %10424 = vmatmul.bf16.gmra.mxu0 %v10216
      %v10425 = vpop.f32.mrf.mxu0
      %v10426 = vadd.f32 0.0, %v10425
      %v10427 = vpop.f32.mrf.mxu0
      %v10428 = vadd.f32 0.0, %v10427
      %10429 = vmatmul.bf16.gmra.mxu0 %v10219
      %v10430 = vpop.f32.mrf.mxu0
      %v10431 = vadd.f32 0.0, %v10430
      %v10432 = vpop.f32.mrf.mxu0
      %v10433 = vadd.f32 0.0, %v10432
      %10434 = vmatmul.bf16.gmra.mxu0 %v10222
      %v10435 = vpop.f32.mrf.mxu0
      %v10436 = vadd.f32 0.0, %v10435
      %v10437 = vpop.f32.mrf.mxu0
      %v10438 = vadd.f32 0.0, %v10437
      %10439 = vmatmul.bf16.gmra.mxu0 %v10225
      %v10440 = vpop.f32.mrf.mxu0
      %v10441 = vadd.f32 0.0, %v10440
      %v10442 = vpop.f32.mrf.mxu0
      %v10443 = vadd.f32 0.0, %v10442
      %10444 = vmatmul.bf16.gmra.mxu0 %v10228
      %v10445 = vpop.f32.mrf.mxu0
      %v10446 = vadd.f32 0.0, %v10445
      %v10447 = vpop.f32.mrf.mxu0
      %v10448 = vadd.f32 0.0, %v10447
      %10449 = vmatmul.bf16.gmra.mxu0 %v10231
      %v10450 = vpop.f32.mrf.mxu0
      %v10451 = vadd.f32 0.0, %v10450
      %v10452 = vpop.f32.mrf.mxu0
      %v10453 = vadd.f32 0.0, %v10452
      %10454 = vmatmul.bf16.gmra.mxu0 %v10234
      %v10455 = vpop.f32.mrf.mxu0
      %v10456 = vadd.f32 0.0, %v10455
      %v10457 = vpop.f32.mrf.mxu0
      %v10458 = vadd.f32 0.0, %v10457
      %10459 = vmatmul.bf16.gmra.mxu0 %v10237
      %v10460 = vpop.f32.mrf.mxu0
      %v10461 = vadd.f32 0.0, %v10460
      %v10462 = vpop.f32.mrf.mxu0
      %v10463 = vadd.f32 0.0, %v10462
      %10464 = vmatmul.bf16.gmra.mxu0 %v10240
      %v10465 = vpop.f32.mrf.mxu0
      %v10466 = vadd.f32 0.0, %v10465
      %v10467 = vpop.f32.mrf.mxu0
      %v10468 = vadd.f32 0.0, %v10467
      %10469 = vmatmul.bf16.gmra.mxu0 %v10243
      %v10470 = vpop.f32.mrf.mxu0
      %v10471 = vadd.f32 0.0, %v10470
      %v10472 = vpop.f32.mrf.mxu0
      %v10473 = vadd.f32 0.0, %v10472
      %10474 = vmatmul.bf16.gmra.mxu0 %v10246
      %v10475 = vpop.f32.mrf.mxu0
      %v10476 = vadd.f32 0.0, %v10475
      %v10477 = vpop.f32.mrf.mxu0
      %v10478 = vadd.f32 0.0, %v10477
      %10479 = vmatmul.bf16.gmra.mxu0 %v10249
      %v10480 = vpop.f32.mrf.mxu0
      %v10481 = vadd.f32 0.0, %v10480
      %v10482 = vpop.f32.mrf.mxu0
      %v10483 = vadd.f32 0.0, %v10482
      %10484 = vmatmul.bf16.gmra.mxu0 %v10252
      %v10485 = vpop.f32.mrf.mxu0
      %v10486 = vadd.f32 0.0, %v10485
      %v10487 = vpop.f32.mrf.mxu0
      %v10488 = vadd.f32 0.0, %v10487
      %10489 = vmatmul.bf16.gmra.mxu0 %v10255
      %v10490 = vpop.f32.mrf.mxu0
      %v10491 = vadd.f32 0.0, %v10490
      %v10492 = vpop.f32.mrf.mxu0
      %v10493 = vadd.f32 0.0, %v10492
      %10494 = vmatmul.bf16.gmra.mxu0 %v10258
      %v10495 = vpop.f32.mrf.mxu0
      %v10496 = vadd.f32 0.0, %v10495
      %v10497 = vpop.f32.mrf.mxu0
      %v10498 = vadd.f32 0.0, %v10497
      %10499 = vmatmul.bf16.gmra.mxu0 %v10261
      %v10500 = vpop.f32.mrf.mxu0
      %v10501 = vadd.f32 0.0, %v10500
      %v10502 = vpop.f32.mrf.mxu0
      %v10503 = vadd.f32 0.0, %v10502
      %10504 = vmatmul.bf16.gmra.mxu0 %v10264
      %v10505 = vpop.f32.mrf.mxu0
      %v10506 = vadd.f32 0.0, %v10505
      %v10507 = vpop.f32.mrf.mxu0
      %v10508 = vadd.f32 0.0, %v10507
      %10509 = vmatmul.bf16.gmra.mxu0 %v10267
      %v10510 = vpop.f32.mrf.mxu0
      %v10511 = vadd.f32 0.0, %v10510
      %v10512 = vpop.f32.mrf.mxu0
      %v10513 = vadd.f32 0.0, %v10512
      %10514 = vmatmul.bf16.gmra.mxu0 %v10270
      %v10515 = vpop.f32.mrf.mxu0
      %v10516 = vadd.f32 0.0, %v10515
      %v10517 = vpop.f32.mrf.mxu0
      %v10518 = vadd.f32 0.0, %v10517
      %10519 = vmatmul.bf16.gmra.mxu0 %v10273
      %v10520 = vpop.f32.mrf.mxu0
      %v10521 = vadd.f32 0.0, %v10520
      %v10522 = vpop.f32.mrf.mxu0
      %v10523 = vadd.f32 0.0, %v10522
      %10524 = vmatmul.bf16.gmra.mxu0 %v10276
      %v10525 = vpop.f32.mrf.mxu0
      %v10526 = vadd.f32 0.0, %v10525
      %v10527 = vpop.f32.mrf.mxu0
      %v10528 = vadd.f32 0.0, %v10527
      %10529 = vmatmul.bf16.gmra.mxu0 %v10279
      %v10530 = vpop.f32.mrf.mxu0
      %v10531 = vadd.f32 0.0, %v10530
      %v10532 = vpop.f32.mrf.mxu0
      %v10533 = vadd.f32 0.0, %v10532
      %10534 = vmatmul.bf16.gmra.mxu0 %v10282
      %v10535 = vpop.f32.mrf.mxu0
      %v10536 = vadd.f32 0.0, %v10535
      %v10537 = vpop.f32.mrf.mxu0
      %v10538 = vadd.f32 0.0, %v10537
      %10539 = vmatmul.bf16.gmra.mxu0 %v10285
      %v10540 = vpop.f32.mrf.mxu0
      %v10541 = vadd.f32 0.0, %v10540
      %v10542 = vpop.f32.mrf.mxu0
      %v10543 = vadd.f32 0.0, %v10542
      %10544 = vmatmul.bf16.gmra.mxu0 %v10288
      %v10545 = vpop.f32.mrf.mxu0
      %v10546 = vadd.f32 0.0, %v10545
      %v10547 = vpop.f32.mrf.mxu0
      %v10548 = vadd.f32 0.0, %v10547
      %10549 = vmatmul.bf16.gmra.mxu0 %v10291
      %v10550 = vpop.f32.mrf.mxu0
      %v10551 = vadd.f32 0.0, %v10550
      %v10552 = vpop.f32.mrf.mxu0
      %v10553 = vadd.f32 0.0, %v10552
      %10554 = vmatmul.bf16.gmra.mxu0 %v10294
      %v10555 = vpop.f32.mrf.mxu0
      %v10556 = vadd.f32 0.0, %v10555
      %v10557 = vpop.f32.mrf.mxu0
      %v10558 = vadd.f32 0.0, %v10557
      %10559 = vmatmul.bf16.gmra.mxu0 %v10297
      %v10560 = vpop.f32.mrf.mxu0
      %v10561 = vadd.f32 0.0, %v10560
      %v10562 = vpop.f32.mrf.mxu0
      %v10563 = vadd.f32 0.0, %v10562
      %10564 = vmatmul.bf16.gmra.mxu0 %v10300
      %v10565 = vpop.f32.mrf.mxu0
      %v10566 = vadd.f32 0.0, %v10565
      %v10567 = vpop.f32.mrf.mxu0
      %v10568 = vadd.f32 0.0, %v10567
      %10569 = vmatmul.bf16.gmra.mxu0 %v10303
      %v10570 = vpop.f32.mrf.mxu0
      %v10571 = vadd.f32 0.0, %v10570
      %v10572 = vpop.f32.mrf.mxu0
      %v10573 = vadd.f32 0.0, %v10572
      %10574 = vmatmul.bf16.gmra.mxu0 %v10306
      %v10575 = vpop.f32.mrf.mxu0
      %v10576 = vadd.f32 0.0, %v10575
      %v10577 = vpop.f32.mrf.mxu0
      %v10578 = vadd.f32 0.0, %v10577
      %10579 = vmatmul.bf16.gmra.mxu0 %v10309
      %v10580 = vpop.f32.mrf.mxu0
      %v10581 = vadd.f32 0.0, %v10580
      %v10582 = vpop.f32.mrf.mxu0
      %v10583 = vadd.f32 0.0, %v10582
      %10584 = vmatmul.bf16.gmra.mxu0 %v10312
      %v10585 = vpop.f32.mrf.mxu0
      %v10586 = vadd.f32 0.0, %v10585
      %v10587 = vpop.f32.mrf.mxu0
      %v10588 = vadd.f32 0.0, %v10587
      %10589 = vmatmul.bf16.gmra.mxu0 %v10315
      %v10590 = vpop.f32.mrf.mxu0
      %v10591 = vadd.f32 0.0, %v10590
      %v10592 = vpop.f32.mrf.mxu0
      %v10593 = vadd.f32 0.0, %v10592
      %10594 = vmatmul.bf16.gmra.mxu0 %v10318
      %v10595 = vpop.f32.mrf.mxu0
      %v10596 = vadd.f32 0.0, %v10595
      %v10597 = vpop.f32.mrf.mxu0
      %v10598 = vadd.f32 0.0, %v10597
      %10599 = vmatmul.bf16.gmra.mxu0 %v10321
      %v10600 = vpop.f32.mrf.mxu0
      %v10601 = vadd.f32 0.0, %v10600
      %v10602 = vpop.f32.mrf.mxu0
      %v10603 = vadd.f32 0.0, %v10602
      %10604 = vmatmul.bf16.gmra.mxu0 %v10324
      %v10605 = vpop.f32.mrf.mxu0
      %v10606 = vadd.f32 0.0, %v10605
      %v10607 = vpop.f32.mrf.mxu0
      %v10608 = vadd.f32 0.0, %v10607
      %10609 = vmatmul.bf16.gmra.mxu0 %v10327
      %v10610 = vpop.f32.mrf.mxu0
      %v10611 = vadd.f32 0.0, %v10610
      %v10612 = vpop.f32.mrf.mxu0
      %v10613 = vadd.f32 0.0, %v10612
      %10614 = vmatmul.bf16.gmra.mxu0 %v10330
      %v10615 = vpop.f32.mrf.mxu0
      %v10616 = vadd.f32 0.0, %v10615
      %v10617 = vpop.f32.mrf.mxu0
      %v10618 = vadd.f32 0.0, %v10617
      %10619 = vmatmul.bf16.gmra.mxu0 %v10333
      %v10620 = vpop.f32.mrf.mxu0
      %v10621 = vadd.f32 0.0, %v10620
      %v10622 = vpop.f32.mrf.mxu0
      %v10623 = vadd.f32 0.0, %v10622
      %10624 = vmatmul.bf16.gmra.mxu0 %v10336
      %v10625 = vpop.f32.mrf.mxu0
      %v10626 = vadd.f32 0.0, %v10625
      %v10627 = vpop.f32.mrf.mxu0
      %v10628 = vadd.f32 0.0, %v10627
      %10629 = vmatmul.bf16.gmra.mxu0 %v10339
      %v10630 = vpop.f32.mrf.mxu0
      %v10631 = vadd.f32 0.0, %v10630
      %v10632 = vpop.f32.mrf.mxu0
      %v10633 = vadd.f32 0.0, %v10632
      %10634 = vmatmul.bf16.gmra.mxu0 %v10342
      %v10635 = vpop.f32.mrf.mxu0
      %v10636 = vadd.f32 0.0, %v10635
      %v10637 = vpop.f32.mrf.mxu0
      %v10638 = vadd.f32 0.0, %v10637
      %10639 = vmatmul.bf16.gmra.mxu0 %v10345
      %v10640 = vpop.f32.mrf.mxu0
      %v10641 = vadd.f32 0.0, %v10640
      %v10642 = vpop.f32.mrf.mxu0
      %v10643 = vadd.f32 0.0, %v10642
      %10644 = vmatmul.bf16.gmra.mxu0 %v10348
      %v10645 = vpop.f32.mrf.mxu0
      %v10646 = vadd.f32 0.0, %v10645
      %v10647 = vpop.f32.mrf.mxu0
      %v10648 = vadd.f32 0.0, %v10647
      %10649 = vmatmul.bf16.gmra.mxu0 %v10351
      %v10650 = vpop.f32.mrf.mxu0
      %v10651 = vadd.f32 0.0, %v10650
      %v10652 = vpop.f32.mrf.mxu0
      %v10653 = vadd.f32 0.0, %v10652
      %10654 = vmatmul.bf16.gmra.mxu0 %v10354
      %v10655 = vpop.f32.mrf.mxu0
      %v10656 = vadd.f32 0.0, %v10655
      %v10657 = vpop.f32.mrf.mxu0
      %v10658 = vadd.f32 0.0, %v10657
      %10659 = vmatmul.bf16.gmra.mxu0 %v10357
      %v10660 = vpop.f32.mrf.mxu0
      %v10661 = vadd.f32 0.0, %v10660
      %v10662 = vpop.f32.mrf.mxu0
      %v10663 = vadd.f32 0.0, %v10662
      %10664 = vmatmul.bf16.gmra.mxu0 %v10360
      %v10665 = vpop.f32.mrf.mxu0
      %v10666 = vadd.f32 0.0, %v10665
      %v10667 = vpop.f32.mrf.mxu0
      %v10668 = vadd.f32 0.0, %v10667
      %10669 = vmatmul.bf16.gmra.mxu0 %v10363
      %v10670 = vpop.f32.mrf.mxu0
      %v10671 = vadd.f32 0.0, %v10670
      %v10672 = vpop.f32.mrf.mxu0
      %v10673 = vadd.f32 0.0, %v10672
      %10674 = vmatmul.bf16.gmra.mxu0 %v10366
      %v10675 = vpop.f32.mrf.mxu0
      %v10676 = vadd.f32 0.0, %v10675
      %v10677 = vpop.f32.mrf.mxu0
      %v10678 = vadd.f32 0.0, %v10677
      %10679 = vmatmul.bf16.gmra.mxu0 %v10369
      %v10680 = vpop.f32.mrf.mxu0
      %v10681 = vadd.f32 0.0, %v10680
      %v10682 = vpop.f32.mrf.mxu0
      %v10683 = vadd.f32 0.0, %v10682
      %10684 = vmatmul.bf16.gmra.mxu0 %v10372
      %v10685 = vpop.f32.mrf.mxu0
      %v10686 = vadd.f32 0.0, %v10685
      %v10687 = vpop.f32.mrf.mxu0
      %v10688 = vadd.f32 0.0, %v10687
      %10689 = vmatmul.bf16.gmra.mxu0 %v10375
      %v10690 = vpop.f32.mrf.mxu0
      %v10691 = vadd.f32 0.0, %v10690
      %v10692 = vpop.f32.mrf.mxu0
      %v10693 = vadd.f32 0.0, %v10692
      %10694 = vmatmul.bf16.gmra.mxu0 %v10378
      %v10695 = vpop.f32.mrf.mxu0
      %v10696 = vadd.f32 0.0, %v10695
      %v10697 = vpop.f32.mrf.mxu0
      %v10698 = vadd.f32 0.0, %v10697
      %10699 = vmatmul.bf16.gmra.mxu0 %v10381
      %v10700 = vpop.f32.mrf.mxu0
      %v10701 = vadd.f32 0.0, %v10700
      %v10702 = vpop.f32.mrf.mxu0
      %v10703 = vadd.f32 0.0, %v10702
      %10704 = vmatmul.bf16.gmra.mxu0 %v10384
      %v10705 = vpop.f32.mrf.mxu0
      %v10706 = vadd.f32 0.0, %v10705
      %v10707 = vpop.f32.mrf.mxu0
      %v10708 = vadd.f32 0.0, %v10707
      %10709 = vmatmul.bf16.gmra.mxu0 %v10387
      %v10710 = vpop.f32.mrf.mxu0
      %v10711 = vadd.f32 0.0, %v10710
      %v10712 = vpop.f32.mrf.mxu0
      %v10713 = vadd.f32 0.0, %v10712
      %10714 = vmatmul.bf16.gmra.mxu0 %v10390
      %v10715 = vpop.f32.mrf.mxu0
      %v10716 = vadd.f32 0.0, %v10715
      %v10717 = vpop.f32.mrf.mxu0
      %v10718 = vadd.f32 0.0, %v10717
      %10719 = vmatmul.bf16.gmra.mxu0 %v10393
      %v10720 = vpop.f32.mrf.mxu0
      %v10721 = vadd.f32 0.0, %v10720
      %v10722 = vpop.f32.mrf.mxu0
      %v10723 = vadd.f32 0.0, %v10722
      %10724 = vmatmul.bf16.gmra.mxu0 %v10396
      %v10725 = vpop.f32.mrf.mxu0
      %v10726 = vadd.f32 0.0, %v10725
      %v10727 = vpop.f32.mrf.mxu0
      %v10728 = vadd.f32 0.0, %v10727
      %10729 = vdwg.mxu0
      %v10730 = vadd.f32 %v9802, %v10411
      %v10731 = vadd.f32 %v9803, %v10413
      %v10732 = vadd.f32 %v9804, %v10416
      %v10733 = vadd.f32 %v9805, %v10418
      %v10734 = vadd.f32 %v9806, %v10421
      %v10735 = vadd.f32 %v9807, %v10423
      %v10736 = vadd.f32 %v9808, %v10426
      %v10737 = vadd.f32 %v9809, %v10428
      %v10738 = vadd.f32 %v9810, %v10431
      %v10739 = vadd.f32 %v9811, %v10433
      %v10740 = vadd.f32 %v9812, %v10436
      %v10741 = vadd.f32 %v9813, %v10438
      %v10742 = vadd.f32 %v9814, %v10441
      %v10743 = vadd.f32 %v9815, %v10443
      %v10744 = vadd.f32 %v9816, %v10446
      %v10745 = vadd.f32 %v9817, %v10448
      %v10746 = vadd.f32 %v9818, %v10451
      %v10747 = vadd.f32 %v9819, %v10453
      %v10748 = vadd.f32 %v9820, %v10456
      %v10749 = vadd.f32 %v9821, %v10458
      %v10750 = vadd.f32 %v9822, %v10461
      %v10751 = vadd.f32 %v9823, %v10463
      %v10752 = vadd.f32 %v9824, %v10466
      %v10753 = vadd.f32 %v9825, %v10468
      %v10754 = vadd.f32 %v9826, %v10471
      %v10755 = vadd.f32 %v9827, %v10473
      %v10756 = vadd.f32 %v9828, %v10476
      %v10757 = vadd.f32 %v9829, %v10478
      %v10758 = vadd.f32 %v9830, %v10481
      %v10759 = vadd.f32 %v9831, %v10483
      %v10760 = vadd.f32 %v9832, %v10486
      %v10761 = vadd.f32 %v9833, %v10488
      %v10762 = vadd.f32 %v9834, %v10491
      %v10763 = vadd.f32 %v9835, %v10493
      %v10764 = vadd.f32 %v9836, %v10496
      %v10765 = vadd.f32 %v9837, %v10498
      %v10766 = vadd.f32 %v9838, %v10501
      %v10767 = vadd.f32 %v9839, %v10503
      %v10768 = vadd.f32 %v9840, %v10506
      %v10769 = vadd.f32 %v9841, %v10508
      %v10770 = vadd.f32 %v9842, %v10511
      %v10771 = vadd.f32 %v9843, %v10513
      %v10772 = vadd.f32 %v9844, %v10516
      %v10773 = vadd.f32 %v9845, %v10518
      %v10774 = vadd.f32 %v9846, %v10521
      %v10775 = vadd.f32 %v9847, %v10523
      %v10776 = vadd.f32 %v9848, %v10526
      %v10777 = vadd.f32 %v9849, %v10528
      %v10778 = vadd.f32 %v9850, %v10531
      %v10779 = vadd.f32 %v9851, %v10533
      %v10780 = vadd.f32 %v9852, %v10536
      %v10781 = vadd.f32 %v9853, %v10538
      %v10782 = vadd.f32 %v9854, %v10541
      %v10783 = vadd.f32 %v9855, %v10543
      %v10784 = vadd.f32 %v9856, %v10546
      %v10785 = vadd.f32 %v9857, %v10548
      %v10786 = vadd.f32 %v9858, %v10551
      %v10787 = vadd.f32 %v9859, %v10553
      %v10788 = vadd.f32 %v9860, %v10556
      %v10789 = vadd.f32 %v9861, %v10558
      %v10790 = vadd.f32 %v9862, %v10561
      %v10791 = vadd.f32 %v9863, %v10563
      %v10792 = vadd.f32 %v9864, %v10566
      %v10793 = vadd.f32 %v9865, %v10568
      %v10794 = vadd.f32 %v9866, %v10571
      %v10795 = vadd.f32 %v9867, %v10573
      %v10796 = vadd.f32 %v9868, %v10576
      %v10797 = vadd.f32 %v9869, %v10578
      %v10798 = vadd.f32 %v9870, %v10581
      %v10799 = vadd.f32 %v9871, %v10583
      %v10800 = vadd.f32 %v9872, %v10586
      %v10801 = vadd.f32 %v9873, %v10588
      %v10802 = vadd.f32 %v9874, %v10591
      %v10803 = vadd.f32 %v9875, %v10593
      %v10804 = vadd.f32 %v9876, %v10596
      %v10805 = vadd.f32 %v9877, %v10598
      %v10806 = vadd.f32 %v9878, %v10601
      %v10807 = vadd.f32 %v9879, %v10603
      %v10808 = vadd.f32 %v9880, %v10606
      %v10809 = vadd.f32 %v9881, %v10608
      %v10810 = vadd.f32 %v9882, %v10611
      %v10811 = vadd.f32 %v9883, %v10613
      %v10812 = vadd.f32 %v9884, %v10616
      %v10813 = vadd.f32 %v9885, %v10618
      %v10814 = vadd.f32 %v9886, %v10621
      %v10815 = vadd.f32 %v9887, %v10623
      %v10816 = vadd.f32 %v9888, %v10626
      %v10817 = vadd.f32 %v9889, %v10628
      %v10818 = vadd.f32 %v9890, %v10631
      %v10819 = vadd.f32 %v9891, %v10633
      %v10820 = vadd.f32 %v9892, %v10636
      %v10821 = vadd.f32 %v9893, %v10638
      %v10822 = vadd.f32 %v9894, %v10641
      %v10823 = vadd.f32 %v9895, %v10643
      %v10824 = vadd.f32 %v9896, %v10646
      %v10825 = vadd.f32 %v9897, %v10648
      %v10826 = vadd.f32 %v9898, %v10651
      %v10827 = vadd.f32 %v9899, %v10653
      %v10828 = vadd.f32 %v9900, %v10656
      %v10829 = vadd.f32 %v9901, %v10658
      %v10830 = vadd.f32 %v9902, %v10661
      %v10831 = vadd.f32 %v9903, %v10663
      %v10832 = vadd.f32 %v9904, %v10666
      %v10833 = vadd.f32 %v9905, %v10668
      %v10834 = vadd.f32 %v9906, %v10671
      %v10835 = vadd.f32 %v9907, %v10673
      %v10836 = vadd.f32 %v9908, %v10676
      %v10837 = vadd.f32 %v9909, %v10678
      %v10838 = vadd.f32 %v9910, %v10681
      %v10839 = vadd.f32 %v9911, %v10683
      %v10840 = vadd.f32 %v9912, %v10686
      %v10841 = vadd.f32 %v9913, %v10688
      %v10842 = vadd.f32 %v9914, %v10691
      %v10843 = vadd.f32 %v9915, %v10693
      %v10844 = vadd.f32 %v9916, %v10696
      %v10845 = vadd.f32 %v9917, %v10698
      %v10846 = vadd.f32 %v9918, %v10701
      %v10847 = vadd.f32 %v9919, %v10703
      %v10848 = vadd.f32 %v9920, %v10706
      %v10849 = vadd.f32 %v9921, %v10708
      %v10850 = vadd.f32 %v9922, %v10711
      %v10851 = vadd.f32 %v9923, %v10713
      %v10852 = vadd.f32 %v9924, %v10716
      %v10853 = vadd.f32 %v9925, %v10718
      %v10854 = vadd.f32 %v9926, %v10721
      %v10855 = vadd.f32 %v9927, %v10723
      %v10856 = vadd.f32 %v9928, %v10726
      %v10857 = vadd.f32 %v9929, %v10728
      %v10858 = vld [vmem:[%s2] sm:$0x1]
      %v10860 = vperm.slane %v10858, 0
      %v10862 = vadd.f32 %v10730, %v10860
      %v10863 = vadd.f32 %v10731, %v10860
      %v10864 = vadd.f32 %v10732, %v10860
      %v10865 = vadd.f32 %v10733, %v10860
      %v10866 = vadd.f32 %v10734, %v10860
      %v10867 = vadd.f32 %v10735, %v10860
      %v10868 = vadd.f32 %v10736, %v10860
      %v10869 = vadd.f32 %v10737, %v10860
      %v10870 = vadd.f32 %v10738, %v10860
      %v10871 = vadd.f32 %v10739, %v10860
      %v10872 = vadd.f32 %v10740, %v10860
      %v10873 = vadd.f32 %v10741, %v10860
      %v10874 = vadd.f32 %v10742, %v10860
      %v10875 = vadd.f32 %v10743, %v10860
      %v10876 = vadd.f32 %v10744, %v10860
      %v10877 = vadd.f32 %v10745, %v10860
      %v10878 = vadd.f32 %v10746, %v10860
      %v10879 = vadd.f32 %v10747, %v10860
      %v10880 = vadd.f32 %v10748, %v10860
      %v10881 = vadd.f32 %v10749, %v10860
      %v10882 = vadd.f32 %v10750, %v10860
      %v10883 = vadd.f32 %v10751, %v10860
      %v10884 = vadd.f32 %v10752, %v10860
      %v10885 = vadd.f32 %v10753, %v10860
      %v10886 = vadd.f32 %v10754, %v10860
      %v10887 = vadd.f32 %v10755, %v10860
      %v10888 = vadd.f32 %v10756, %v10860
      %v10889 = vadd.f32 %v10757, %v10860
      %v10890 = vadd.f32 %v10758, %v10860
      %v10891 = vadd.f32 %v10759, %v10860
      %v10892 = vadd.f32 %v10760, %v10860
      %v10893 = vadd.f32 %v10761, %v10860
      %v10894 = vadd.f32 %v10762, %v10860
      %v10895 = vadd.f32 %v10763, %v10860
      %v10896 = vadd.f32 %v10764, %v10860
      %v10897 = vadd.f32 %v10765, %v10860
      %v10898 = vadd.f32 %v10766, %v10860
      %v10899 = vadd.f32 %v10767, %v10860
      %v10900 = vadd.f32 %v10768, %v10860
      %v10901 = vadd.f32 %v10769, %v10860
      %v10902 = vadd.f32 %v10770, %v10860
      %v10903 = vadd.f32 %v10771, %v10860
      %v10904 = vadd.f32 %v10772, %v10860
      %v10905 = vadd.f32 %v10773, %v10860
      %v10906 = vadd.f32 %v10774, %v10860
      %v10907 = vadd.f32 %v10775, %v10860
      %v10908 = vadd.f32 %v10776, %v10860
      %v10909 = vadd.f32 %v10777, %v10860
      %v10910 = vadd.f32 %v10778, %v10860
      %v10911 = vadd.f32 %v10779, %v10860
      %v10912 = vadd.f32 %v10780, %v10860
      %v10913 = vadd.f32 %v10781, %v10860
      %v10914 = vadd.f32 %v10782, %v10860
      %v10915 = vadd.f32 %v10783, %v10860
      %v10916 = vadd.f32 %v10784, %v10860
      %v10917 = vadd.f32 %v10785, %v10860
      %v10918 = vadd.f32 %v10786, %v10860
      %v10919 = vadd.f32 %v10787, %v10860
      %v10920 = vadd.f32 %v10788, %v10860
      %v10921 = vadd.f32 %v10789, %v10860
      %v10922 = vadd.f32 %v10790, %v10860
      %v10923 = vadd.f32 %v10791, %v10860
      %v10924 = vadd.f32 %v10792, %v10860
      %v10925 = vadd.f32 %v10793, %v10860
      %v10926 = vadd.f32 %v10794, %v10860
      %v10927 = vadd.f32 %v10795, %v10860
      %v10928 = vadd.f32 %v10796, %v10860
      %v10929 = vadd.f32 %v10797, %v10860
      %v10930 = vadd.f32 %v10798, %v10860
      %v10931 = vadd.f32 %v10799, %v10860
      %v10932 = vadd.f32 %v10800, %v10860
      %v10933 = vadd.f32 %v10801, %v10860
      %v10934 = vadd.f32 %v10802, %v10860
      %v10935 = vadd.f32 %v10803, %v10860
      %v10936 = vadd.f32 %v10804, %v10860
      %v10937 = vadd.f32 %v10805, %v10860
      %v10938 = vadd.f32 %v10806, %v10860
      %v10939 = vadd.f32 %v10807, %v10860
      %v10940 = vadd.f32 %v10808, %v10860
      %v10941 = vadd.f32 %v10809, %v10860
      %v10942 = vadd.f32 %v10810, %v10860
      %v10943 = vadd.f32 %v10811, %v10860
      %v10944 = vadd.f32 %v10812, %v10860
      %v10945 = vadd.f32 %v10813, %v10860
      %v10946 = vadd.f32 %v10814, %v10860
      %v10947 = vadd.f32 %v10815, %v10860
      %v10948 = vadd.f32 %v10816, %v10860
      %v10949 = vadd.f32 %v10817, %v10860
      %v10950 = vadd.f32 %v10818, %v10860
      %v10951 = vadd.f32 %v10819, %v10860
      %v10952 = vadd.f32 %v10820, %v10860
      %v10953 = vadd.f32 %v10821, %v10860
      %v10954 = vadd.f32 %v10822, %v10860
      %v10955 = vadd.f32 %v10823, %v10860
      %v10956 = vadd.f32 %v10824, %v10860
      %v10957 = vadd.f32 %v10825, %v10860
      %v10958 = vadd.f32 %v10826, %v10860
      %v10959 = vadd.f32 %v10827, %v10860
      %v10960 = vadd.f32 %v10828, %v10860
      %v10961 = vadd.f32 %v10829, %v10860
      %v10962 = vadd.f32 %v10830, %v10860
      %v10963 = vadd.f32 %v10831, %v10860
      %v10964 = vadd.f32 %v10832, %v10860
      %v10965 = vadd.f32 %v10833, %v10860
      %v10966 = vadd.f32 %v10834, %v10860
      %v10967 = vadd.f32 %v10835, %v10860
      %v10968 = vadd.f32 %v10836, %v10860
      %v10969 = vadd.f32 %v10837, %v10860
      %v10970 = vadd.f32 %v10838, %v10860
      %v10971 = vadd.f32 %v10839, %v10860
      %v10972 = vadd.f32 %v10840, %v10860
      %v10973 = vadd.f32 %v10841, %v10860
      %v10974 = vadd.f32 %v10842, %v10860
      %v10975 = vadd.f32 %v10843, %v10860
      %v10976 = vadd.f32 %v10844, %v10860
      %v10977 = vadd.f32 %v10845, %v10860
      %v10978 = vadd.f32 %v10846, %v10860
      %v10979 = vadd.f32 %v10847, %v10860
      %v10980 = vadd.f32 %v10848, %v10860
      %v10981 = vadd.f32 %v10849, %v10860
      %v10982 = vadd.f32 %v10850, %v10860
      %v10983 = vadd.f32 %v10851, %v10860
      %v10984 = vadd.f32 %v10852, %v10860
      %v10985 = vadd.f32 %v10853, %v10860
      %v10986 = vadd.f32 %v10854, %v10860
      %v10987 = vadd.f32 %v10855, %v10860
      %v10988 = vadd.f32 %v10856, %v10860
      %v10989 = vadd.f32 %v10857, %v10860
      %vm10990 = vcmp.gt.f32.partialorder %v10862, 0.0
      %vm10991 = vcmp.gt.f32.partialorder %v10863, 0.0
      %vm10992 = vcmp.gt.f32.partialorder %v10864, 0.0
      %vm10993 = vcmp.gt.f32.partialorder %v10865, 0.0
      %vm10994 = vcmp.gt.f32.partialorder %v10866, 0.0
      %vm10995 = vcmp.gt.f32.partialorder %v10867, 0.0
      %vm10996 = vcmp.gt.f32.partialorder %v10868, 0.0
      %vm10997 = vcmp.gt.f32.partialorder %v10869, 0.0
      %vm10998 = vcmp.gt.f32.partialorder %v10870, 0.0
      %vm10999 = vcmp.gt.f32.partialorder %v10871, 0.0
      %vm11000 = vcmp.gt.f32.partialorder %v10872, 0.0
      %vm11001 = vcmp.gt.f32.partialorder %v10873, 0.0
      %vm11002 = vcmp.gt.f32.partialorder %v10874, 0.0
      %vm11003 = vcmp.gt.f32.partialorder %v10875, 0.0
      %vm11004 = vcmp.gt.f32.partialorder %v10876, 0.0
      %vm11005 = vcmp.gt.f32.partialorder %v10877, 0.0
      %vm11006 = vcmp.gt.f32.partialorder %v10878, 0.0
      %vm11007 = vcmp.gt.f32.partialorder %v10879, 0.0
      %vm11008 = vcmp.gt.f32.partialorder %v10880, 0.0
      %vm11009 = vcmp.gt.f32.partialorder %v10881, 0.0
      %vm11010 = vcmp.gt.f32.partialorder %v10882, 0.0
      %vm11011 = vcmp.gt.f32.partialorder %v10883, 0.0
      %vm11012 = vcmp.gt.f32.partialorder %v10884, 0.0
      %vm11013 = vcmp.gt.f32.partialorder %v10885, 0.0
      %vm11014 = vcmp.gt.f32.partialorder %v10886, 0.0
      %vm11015 = vcmp.gt.f32.partialorder %v10887, 0.0
      %vm11016 = vcmp.gt.f32.partialorder %v10888, 0.0
      %vm11017 = vcmp.gt.f32.partialorder %v10889, 0.0
      %vm11018 = vcmp.gt.f32.partialorder %v10890, 0.0
      %vm11019 = vcmp.gt.f32.partialorder %v10891, 0.0
      %vm11020 = vcmp.gt.f32.partialorder %v10892, 0.0
      %vm11021 = vcmp.gt.f32.partialorder %v10893, 0.0
      %vm11022 = vcmp.gt.f32.partialorder %v10894, 0.0
      %vm11023 = vcmp.gt.f32.partialorder %v10895, 0.0
      %vm11024 = vcmp.gt.f32.partialorder %v10896, 0.0
      %vm11025 = vcmp.gt.f32.partialorder %v10897, 0.0
      %vm11026 = vcmp.gt.f32.partialorder %v10898, 0.0
      %vm11027 = vcmp.gt.f32.partialorder %v10899, 0.0
      %vm11028 = vcmp.gt.f32.partialorder %v10900, 0.0
      %vm11029 = vcmp.gt.f32.partialorder %v10901, 0.0
      %vm11030 = vcmp.gt.f32.partialorder %v10902, 0.0
      %vm11031 = vcmp.gt.f32.partialorder %v10903, 0.0
      %vm11032 = vcmp.gt.f32.partialorder %v10904, 0.0
      %vm11033 = vcmp.gt.f32.partialorder %v10905, 0.0
      %vm11034 = vcmp.gt.f32.partialorder %v10906, 0.0
      %vm11035 = vcmp.gt.f32.partialorder %v10907, 0.0
      %vm11036 = vcmp.gt.f32.partialorder %v10908, 0.0
      %vm11037 = vcmp.gt.f32.partialorder %v10909, 0.0
      %vm11038 = vcmp.gt.f32.partialorder %v10910, 0.0
      %vm11039 = vcmp.gt.f32.partialorder %v10911, 0.0
      %vm11040 = vcmp.gt.f32.partialorder %v10912, 0.0
      %vm11041 = vcmp.gt.f32.partialorder %v10913, 0.0
      %vm11042 = vcmp.gt.f32.partialorder %v10914, 0.0
      %vm11043 = vcmp.gt.f32.partialorder %v10915, 0.0
      %vm11044 = vcmp.gt.f32.partialorder %v10916, 0.0
      %vm11045 = vcmp.gt.f32.partialorder %v10917, 0.0
      %vm11046 = vcmp.gt.f32.partialorder %v10918, 0.0
      %vm11047 = vcmp.gt.f32.partialorder %v10919, 0.0
      %vm11048 = vcmp.gt.f32.partialorder %v10920, 0.0
      %vm11049 = vcmp.gt.f32.partialorder %v10921, 0.0
      %vm11050 = vcmp.gt.f32.partialorder %v10922, 0.0
      %vm11051 = vcmp.gt.f32.partialorder %v10923, 0.0
      %vm11052 = vcmp.gt.f32.partialorder %v10924, 0.0
      %vm11053 = vcmp.gt.f32.partialorder %v10925, 0.0
      %vm11054 = vcmp.gt.f32.partialorder %v10926, 0.0
      %vm11055 = vcmp.gt.f32.partialorder %v10927, 0.0
      %vm11056 = vcmp.gt.f32.partialorder %v10928, 0.0
      %vm11057 = vcmp.gt.f32.partialorder %v10929, 0.0
      %vm11058 = vcmp.gt.f32.partialorder %v10930, 0.0
      %vm11059 = vcmp.gt.f32.partialorder %v10931, 0.0
      %vm11060 = vcmp.gt.f32.partialorder %v10932, 0.0
      %vm11061 = vcmp.gt.f32.partialorder %v10933, 0.0
      %vm11062 = vcmp.gt.f32.partialorder %v10934, 0.0
      %vm11063 = vcmp.gt.f32.partialorder %v10935, 0.0
      %vm11064 = vcmp.gt.f32.partialorder %v10936, 0.0
      %vm11065 = vcmp.gt.f32.partialorder %v10937, 0.0
      %vm11066 = vcmp.gt.f32.partialorder %v10938, 0.0
      %vm11067 = vcmp.gt.f32.partialorder %v10939, 0.0
      %vm11068 = vcmp.gt.f32.partialorder %v10940, 0.0
      %vm11069 = vcmp.gt.f32.partialorder %v10941, 0.0
      %vm11070 = vcmp.gt.f32.partialorder %v10942, 0.0
      %vm11071 = vcmp.gt.f32.partialorder %v10943, 0.0
      %vm11072 = vcmp.gt.f32.partialorder %v10944, 0.0
      %vm11073 = vcmp.gt.f32.partialorder %v10945, 0.0
      %vm11074 = vcmp.gt.f32.partialorder %v10946, 0.0
      %vm11075 = vcmp.gt.f32.partialorder %v10947, 0.0
      %vm11076 = vcmp.gt.f32.partialorder %v10948, 0.0
      %vm11077 = vcmp.gt.f32.partialorder %v10949, 0.0
      %vm11078 = vcmp.gt.f32.partialorder %v10950, 0.0
      %vm11079 = vcmp.gt.f32.partialorder %v10951, 0.0
      %vm11080 = vcmp.gt.f32.partialorder %v10952, 0.0
      %vm11081 = vcmp.gt.f32.partialorder %v10953, 0.0
      %vm11082 = vcmp.gt.f32.partialorder %v10954, 0.0
      %vm11083 = vcmp.gt.f32.partialorder %v10955, 0.0
      %vm11084 = vcmp.gt.f32.partialorder %v10956, 0.0
      %vm11085 = vcmp.gt.f32.partialorder %v10957, 0.0
      %vm11086 = vcmp.gt.f32.partialorder %v10958, 0.0
      %vm11087 = vcmp.gt.f32.partialorder %v10959, 0.0
      %vm11088 = vcmp.gt.f32.partialorder %v10960, 0.0
      %vm11089 = vcmp.gt.f32.partialorder %v10961, 0.0
      %vm11090 = vcmp.gt.f32.partialorder %v10962, 0.0
      %vm11091 = vcmp.gt.f32.partialorder %v10963, 0.0
      %vm11092 = vcmp.gt.f32.partialorder %v10964, 0.0
      %vm11093 = vcmp.gt.f32.partialorder %v10965, 0.0
      %vm11094 = vcmp.gt.f32.partialorder %v10966, 0.0
      %vm11095 = vcmp.gt.f32.partialorder %v10967, 0.0
      %vm11096 = vcmp.gt.f32.partialorder %v10968, 0.0
      %vm11097 = vcmp.gt.f32.partialorder %v10969, 0.0
      %vm11098 = vcmp.gt.f32.partialorder %v10970, 0.0
      %vm11099 = vcmp.gt.f32.partialorder %v10971, 0.0
      %vm11100 = vcmp.gt.f32.partialorder %v10972, 0.0
      %vm11101 = vcmp.gt.f32.partialorder %v10973, 0.0
      %vm11102 = vcmp.gt.f32.partialorder %v10974, 0.0
      %vm11103 = vcmp.gt.f32.partialorder %v10975, 0.0
      %vm11104 = vcmp.gt.f32.partialorder %v10976, 0.0
      %vm11105 = vcmp.gt.f32.partialorder %v10977, 0.0
      %vm11106 = vcmp.gt.f32.partialorder %v10978, 0.0
      %vm11107 = vcmp.gt.f32.partialorder %v10979, 0.0
      %vm11108 = vcmp.gt.f32.partialorder %v10980, 0.0
      %vm11109 = vcmp.gt.f32.partialorder %v10981, 0.0
      %vm11110 = vcmp.gt.f32.partialorder %v10982, 0.0
      %vm11111 = vcmp.gt.f32.partialorder %v10983, 0.0
      %vm11112 = vcmp.gt.f32.partialorder %v10984, 0.0
      %vm11113 = vcmp.gt.f32.partialorder %v10985, 0.0
      %vm11114 = vcmp.gt.f32.partialorder %v10986, 0.0
      %vm11115 = vcmp.gt.f32.partialorder %v10987, 0.0
      %vm11116 = vcmp.gt.f32.partialorder %v10988, 0.0
      %vm11117 = vcmp.gt.f32.partialorder %v10989, 0.0
      %v11118 = vld [vmem:[%s3] sm:$0x1]
      %v11120 = vperm.slane %v11118, 0
      %v11122 = vmul.f32 %v10862, %v11120
      %v11123 = vmul.f32 %v10863, %v11120
      %v11124 = vmul.f32 %v10864, %v11120
      %v11125 = vmul.f32 %v10865, %v11120
      %v11126 = vmul.f32 %v10866, %v11120
      %v11127 = vmul.f32 %v10867, %v11120
      %v11128 = vmul.f32 %v10868, %v11120
      %v11129 = vmul.f32 %v10869, %v11120
      %v11130 = vmul.f32 %v10870, %v11120
      %v11131 = vmul.f32 %v10871, %v11120
      %v11132 = vmul.f32 %v10872, %v11120
      %v11133 = vmul.f32 %v10873, %v11120
      %v11134 = vmul.f32 %v10874, %v11120
      %v11135 = vmul.f32 %v10875, %v11120
      %v11136 = vmul.f32 %v10876, %v11120
      %v11137 = vmul.f32 %v10877, %v11120
      %v11138 = vmul.f32 %v10878, %v11120
      %v11139 = vmul.f32 %v10879, %v11120
      %v11140 = vmul.f32 %v10880, %v11120
      %v11141 = vmul.f32 %v10881, %v11120
      %v11142 = vmul.f32 %v10882, %v11120
      %v11143 = vmul.f32 %v10883, %v11120
      %v11144 = vmul.f32 %v10884, %v11120
      %v11145 = vmul.f32 %v10885, %v11120
      %v11146 = vmul.f32 %v10886, %v11120
      %v11147 = vmul.f32 %v10887, %v11120
      %v11148 = vmul.f32 %v10888, %v11120
      %v11149 = vmul.f32 %v10889, %v11120
      %v11150 = vmul.f32 %v10890, %v11120
      %v11151 = vmul.f32 %v10891, %v11120
      %v11152 = vmul.f32 %v10892, %v11120
      %v11153 = vmul.f32 %v10893, %v11120
      %v11154 = vmul.f32 %v10894, %v11120
      %v11155 = vmul.f32 %v10895, %v11120
      %v11156 = vmul.f32 %v10896, %v11120
      %v11157 = vmul.f32 %v10897, %v11120
      %v11158 = vmul.f32 %v10898, %v11120
      %v11159 = vmul.f32 %v10899, %v11120
      %v11160 = vmul.f32 %v10900, %v11120
      %v11161 = vmul.f32 %v10901, %v11120
      %v11162 = vmul.f32 %v10902, %v11120
      %v11163 = vmul.f32 %v10903, %v11120
      %v11164 = vmul.f32 %v10904, %v11120
      %v11165 = vmul.f32 %v10905, %v11120
      %v11166 = vmul.f32 %v10906, %v11120
      %v11167 = vmul.f32 %v10907, %v11120
      %v11168 = vmul.f32 %v10908, %v11120
      %v11169 = vmul.f32 %v10909, %v11120
      %v11170 = vmul.f32 %v10910, %v11120
      %v11171 = vmul.f32 %v10911, %v11120
      %v11172 = vmul.f32 %v10912, %v11120
      %v11173 = vmul.f32 %v10913, %v11120
      %v11174 = vmul.f32 %v10914, %v11120
      %v11175 = vmul.f32 %v10915, %v11120
      %v11176 = vmul.f32 %v10916, %v11120
      %v11177 = vmul.f32 %v10917, %v11120
      %v11178 = vmul.f32 %v10918, %v11120
      %v11179 = vmul.f32 %v10919, %v11120
      %v11180 = vmul.f32 %v10920, %v11120
      %v11181 = vmul.f32 %v10921, %v11120
      %v11182 = vmul.f32 %v10922, %v11120
      %v11183 = vmul.f32 %v10923, %v11120
      %v11184 = vmul.f32 %v10924, %v11120
      %v11185 = vmul.f32 %v10925, %v11120
      %v11186 = vmul.f32 %v10926, %v11120
      %v11187 = vmul.f32 %v10927, %v11120
      %v11188 = vmul.f32 %v10928, %v11120
      %v11189 = vmul.f32 %v10929, %v11120
      %v11190 = vmul.f32 %v10930, %v11120
      %v11191 = vmul.f32 %v10931, %v11120
      %v11192 = vmul.f32 %v10932, %v11120
      %v11193 = vmul.f32 %v10933, %v11120
      %v11194 = vmul.f32 %v10934, %v11120
      %v11195 = vmul.f32 %v10935, %v11120
      %v11196 = vmul.f32 %v10936, %v11120
      %v11197 = vmul.f32 %v10937, %v11120
      %v11198 = vmul.f32 %v10938, %v11120
      %v11199 = vmul.f32 %v10939, %v11120
      %v11200 = vmul.f32 %v10940, %v11120
      %v11201 = vmul.f32 %v10941, %v11120
      %v11202 = vmul.f32 %v10942, %v11120
      %v11203 = vmul.f32 %v10943, %v11120
      %v11204 = vmul.f32 %v10944, %v11120
      %v11205 = vmul.f32 %v10945, %v11120
      %v11206 = vmul.f32 %v10946, %v11120
      %v11207 = vmul.f32 %v10947, %v11120
      %v11208 = vmul.f32 %v10948, %v11120
      %v11209 = vmul.f32 %v10949, %v11120
      %v11210 = vmul.f32 %v10950, %v11120
      %v11211 = vmul.f32 %v10951, %v11120
      %v11212 = vmul.f32 %v10952, %v11120
      %v11213 = vmul.f32 %v10953, %v11120
      %v11214 = vmul.f32 %v10954, %v11120
      %v11215 = vmul.f32 %v10955, %v11120
      %v11216 = vmul.f32 %v10956, %v11120
      %v11217 = vmul.f32 %v10957, %v11120
      %v11218 = vmul.f32 %v10958, %v11120
      %v11219 = vmul.f32 %v10959, %v11120
      %v11220 = vmul.f32 %v10960, %v11120
      %v11221 = vmul.f32 %v10961, %v11120
      %v11222 = vmul.f32 %v10962, %v11120
      %v11223 = vmul.f32 %v10963, %v11120
      %v11224 = vmul.f32 %v10964, %v11120
      %v11225 = vmul.f32 %v10965, %v11120
      %v11226 = vmul.f32 %v10966, %v11120
      %v11227 = vmul.f32 %v10967, %v11120
      %v11228 = vmul.f32 %v10968, %v11120
      %v11229 = vmul.f32 %v10969, %v11120
      %v11230 = vmul.f32 %v10970, %v11120
      %v11231 = vmul.f32 %v10971, %v11120
      %v11232 = vmul.f32 %v10972, %v11120
      %v11233 = vmul.f32 %v10973, %v11120
      %v11234 = vmul.f32 %v10974, %v11120
      %v11235 = vmul.f32 %v10975, %v11120
      %v11236 = vmul.f32 %v10976, %v11120
      %v11237 = vmul.f32 %v10977, %v11120
      %v11238 = vmul.f32 %v10978, %v11120
      %v11239 = vmul.f32 %v10979, %v11120
      %v11240 = vmul.f32 %v10980, %v11120
      %v11241 = vmul.f32 %v10981, %v11120
      %v11242 = vmul.f32 %v10982, %v11120
      %v11243 = vmul.f32 %v10983, %v11120
      %v11244 = vmul.f32 %v10984, %v11120
      %v11245 = vmul.f32 %v10985, %v11120
      %v11246 = vmul.f32 %v10986, %v11120
      %v11247 = vmul.f32 %v10987, %v11120
      %v11248 = vmul.f32 %v10988, %v11120
      %v11249 = vmul.f32 %v10989, %v11120
      %v11250 = vsel %vm10990, %v10862, %v11122
      %v11251 = vsel %vm10991, %v10863, %v11123
      %v11252 = vsel %vm10992, %v10864, %v11124
      %v11253 = vsel %vm10993, %v10865, %v11125
      %v11254 = vsel %vm10994, %v10866, %v11126
      %v11255 = vsel %vm10995, %v10867, %v11127
      %v11256 = vsel %vm10996, %v10868, %v11128
      %v11257 = vsel %vm10997, %v10869, %v11129
      %v11258 = vsel %vm10998, %v10870, %v11130
      %v11259 = vsel %vm10999, %v10871, %v11131
      %v11260 = vsel %vm11000, %v10872, %v11132
      %v11261 = vsel %vm11001, %v10873, %v11133
      %v11262 = vsel %vm11002, %v10874, %v11134
      %v11263 = vsel %vm11003, %v10875, %v11135
      %v11264 = vsel %vm11004, %v10876, %v11136
      %v11265 = vsel %vm11005, %v10877, %v11137
      %v11266 = vsel %vm11006, %v10878, %v11138
      %v11267 = vsel %vm11007, %v10879, %v11139
      %v11268 = vsel %vm11008, %v10880, %v11140
      %v11269 = vsel %vm11009, %v10881, %v11141
      %v11270 = vsel %vm11010, %v10882, %v11142
      %v11271 = vsel %vm11011, %v10883, %v11143
      %v11272 = vsel %vm11012, %v10884, %v11144
      %v11273 = vsel %vm11013, %v10885, %v11145
      %v11274 = vsel %vm11014, %v10886, %v11146
      %v11275 = vsel %vm11015, %v10887, %v11147
      %v11276 = vsel %vm11016, %v10888, %v11148
      %v11277 = vsel %vm11017, %v10889, %v11149
      %v11278 = vsel %vm11018, %v10890, %v11150
      %v11279 = vsel %vm11019, %v10891, %v11151
      %v11280 = vsel %vm11020, %v10892, %v11152
      %v11281 = vsel %vm11021, %v10893, %v11153
      %v11282 = vsel %vm11022, %v10894, %v11154
      %v11283 = vsel %vm11023, %v10895, %v11155
      %v11284 = vsel %vm11024, %v10896, %v11156
      %v11285 = vsel %vm11025, %v10897, %v11157
      %v11286 = vsel %vm11026, %v10898, %v11158
      %v11287 = vsel %vm11027, %v10899, %v11159
      %v11288 = vsel %vm11028, %v10900, %v11160
      %v11289 = vsel %vm11029, %v10901, %v11161
      %v11290 = vsel %vm11030, %v10902, %v11162
      %v11291 = vsel %vm11031, %v10903, %v11163
      %v11292 = vsel %vm11032, %v10904, %v11164
      %v11293 = vsel %vm11033, %v10905, %v11165
      %v11294 = vsel %vm11034, %v10906, %v11166
      %v11295 = vsel %vm11035, %v10907, %v11167
      %v11296 = vsel %vm11036, %v10908, %v11168
      %v11297 = vsel %vm11037, %v10909, %v11169
      %v11298 = vsel %vm11038, %v10910, %v11170
      %v11299 = vsel %vm11039, %v10911, %v11171
      %v11300 = vsel %vm11040, %v10912, %v11172
      %v11301 = vsel %vm11041, %v10913, %v11173
      %v11302 = vsel %vm11042, %v10914, %v11174
      %v11303 = vsel %vm11043, %v10915, %v11175
      %v11304 = vsel %vm11044, %v10916, %v11176
      %v11305 = vsel %vm11045, %v10917, %v11177
      %v11306 = vsel %vm11046, %v10918, %v11178
      %v11307 = vsel %vm11047, %v10919, %v11179
      %v11308 = vsel %vm11048, %v10920, %v11180
      %v11309 = vsel %vm11049, %v10921, %v11181
      %v11310 = vsel %vm11050, %v10922, %v11182
      %v11311 = vsel %vm11051, %v10923, %v11183
      %v11312 = vsel %vm11052, %v10924, %v11184
      %v11313 = vsel %vm11053, %v10925, %v11185
      %v11314 = vsel %vm11054, %v10926, %v11186
      %v11315 = vsel %vm11055, %v10927, %v11187
      %v11316 = vsel %vm11056, %v10928, %v11188
      %v11317 = vsel %vm11057, %v10929, %v11189
      %v11318 = vsel %vm11058, %v10930, %v11190
      %v11319 = vsel %vm11059, %v10931, %v11191
      %v11320 = vsel %vm11060, %v10932, %v11192
      %v11321 = vsel %vm11061, %v10933, %v11193
      %v11322 = vsel %vm11062, %v10934, %v11194
      %v11323 = vsel %vm11063, %v10935, %v11195
      %v11324 = vsel %vm11064, %v10936, %v11196
      %v11325 = vsel %vm11065, %v10937, %v11197
      %v11326 = vsel %vm11066, %v10938, %v11198
      %v11327 = vsel %vm11067, %v10939, %v11199
      %v11328 = vsel %vm11068, %v10940, %v11200
      %v11329 = vsel %vm11069, %v10941, %v11201
      %v11330 = vsel %vm11070, %v10942, %v11202
      %v11331 = vsel %vm11071, %v10943, %v11203
      %v11332 = vsel %vm11072, %v10944, %v11204
      %v11333 = vsel %vm11073, %v10945, %v11205
      %v11334 = vsel %vm11074, %v10946, %v11206
      %v11335 = vsel %vm11075, %v10947, %v11207
      %v11336 = vsel %vm11076, %v10948, %v11208
      %v11337 = vsel %vm11077, %v10949, %v11209
      %v11338 = vsel %vm11078, %v10950, %v11210
      %v11339 = vsel %vm11079, %v10951, %v11211
      %v11340 = vsel %vm11080, %v10952, %v11212
      %v11341 = vsel %vm11081, %v10953, %v11213
      %v11342 = vsel %vm11082, %v10954, %v11214
      %v11343 = vsel %vm11083, %v10955, %v11215
      %v11344 = vsel %vm11084, %v10956, %v11216
      %v11345 = vsel %vm11085, %v10957, %v11217
      %v11346 = vsel %vm11086, %v10958, %v11218
      %v11347 = vsel %vm11087, %v10959, %v11219
      %v11348 = vsel %vm11088, %v10960, %v11220
      %v11349 = vsel %vm11089, %v10961, %v11221
      %v11350 = vsel %vm11090, %v10962, %v11222
      %v11351 = vsel %vm11091, %v10963, %v11223
      %v11352 = vsel %vm11092, %v10964, %v11224
      %v11353 = vsel %vm11093, %v10965, %v11225
      %v11354 = vsel %vm11094, %v10966, %v11226
      %v11355 = vsel %vm11095, %v10967, %v11227
      %v11356 = vsel %vm11096, %v10968, %v11228
      %v11357 = vsel %vm11097, %v10969, %v11229
      %v11358 = vsel %vm11098, %v10970, %v11230
      %v11359 = vsel %vm11099, %v10971, %v11231
      %v11360 = vsel %vm11100, %v10972, %v11232
      %v11361 = vsel %vm11101, %v10973, %v11233
      %v11362 = vsel %vm11102, %v10974, %v11234
      %v11363 = vsel %vm11103, %v10975, %v11235
      %v11364 = vsel %vm11104, %v10976, %v11236
      %v11365 = vsel %vm11105, %v10977, %v11237
      %v11366 = vsel %vm11106, %v10978, %v11238
      %v11367 = vsel %vm11107, %v10979, %v11239
      %v11368 = vsel %vm11108, %v10980, %v11240
      %v11369 = vsel %vm11109, %v10981, %v11241
      %v11370 = vsel %vm11110, %v10982, %v11242
      %v11371 = vsel %vm11111, %v10983, %v11243
      %v11372 = vsel %vm11112, %v10984, %v11244
      %v11373 = vsel %vm11113, %v10985, %v11245
      %v11374 = vsel %vm11114, %v10986, %v11246
      %v11375 = vsel %vm11115, %v10987, %v11247
      %v11376 = vsel %vm11116, %v10988, %v11248
      %v11377 = vsel %vm11117, %v10989, %v11249
      %v11378 = vpack.c.bf16 %v11250, %v11250
      %v11379 = vpack.c.bf16 %v11251, %v11251
      %v11380 = vpack.c.bf16 %v11252, %v11252
      %v11381 = vpack.c.bf16 %v11253, %v11253
      %v11382 = vpack.c.bf16 %v11254, %v11254
      %v11383 = vpack.c.bf16 %v11255, %v11255
      %v11384 = vpack.c.bf16 %v11256, %v11256
      %v11385 = vpack.c.bf16 %v11257, %v11257
      %v11386 = vpack.c.bf16 %v11258, %v11258
      %v11387 = vpack.c.bf16 %v11259, %v11259
      %v11388 = vpack.c.bf16 %v11260, %v11260
      %v11389 = vpack.c.bf16 %v11261, %v11261
      %v11390 = vpack.c.bf16 %v11262, %v11262
      %v11391 = vpack.c.bf16 %v11263, %v11263
      %v11392 = vpack.c.bf16 %v11264, %v11264
      %v11393 = vpack.c.bf16 %v11265, %v11265
      %v11394 = vpack.c.bf16 %v11266, %v11266
      %v11395 = vpack.c.bf16 %v11267, %v11267
      %v11396 = vpack.c.bf16 %v11268, %v11268
      %v11397 = vpack.c.bf16 %v11269, %v11269
      %v11398 = vpack.c.bf16 %v11270, %v11270
      %v11399 = vpack.c.bf16 %v11271, %v11271
      %v11400 = vpack.c.bf16 %v11272, %v11272
      %v11401 = vpack.c.bf16 %v11273, %v11273
      %v11402 = vpack.c.bf16 %v11274, %v11274
      %v11403 = vpack.c.bf16 %v11275, %v11275
      %v11404 = vpack.c.bf16 %v11276, %v11276
      %v11405 = vpack.c.bf16 %v11277, %v11277
      %v11406 = vpack.c.bf16 %v11278, %v11278
      %v11407 = vpack.c.bf16 %v11279, %v11279
      %v11408 = vpack.c.bf16 %v11280, %v11280
      %v11409 = vpack.c.bf16 %v11281, %v11281
      %v11410 = vpack.c.bf16 %v11282, %v11282
      %v11411 = vpack.c.bf16 %v11283, %v11283
      %v11412 = vpack.c.bf16 %v11284, %v11284
      %v11413 = vpack.c.bf16 %v11285, %v11285
      %v11414 = vpack.c.bf16 %v11286, %v11286
      %v11415 = vpack.c.bf16 %v11287, %v11287
      %v11416 = vpack.c.bf16 %v11288, %v11288
      %v11417 = vpack.c.bf16 %v11289, %v11289
      %v11418 = vpack.c.bf16 %v11290, %v11290
      %v11419 = vpack.c.bf16 %v11291, %v11291
      %v11420 = vpack.c.bf16 %v11292, %v11292
      %v11421 = vpack.c.bf16 %v11293, %v11293
      %v11422 = vpack.c.bf16 %v11294, %v11294
      %v11423 = vpack.c.bf16 %v11295, %v11295
      %v11424 = vpack.c.bf16 %v11296, %v11296
      %v11425 = vpack.c.bf16 %v11297, %v11297
      %v11426 = vpack.c.bf16 %v11298, %v11298
      %v11427 = vpack.c.bf16 %v11299, %v11299
      %v11428 = vpack.c.bf16 %v11300, %v11300
      %v11429 = vpack.c.bf16 %v11301, %v11301
      %v11430 = vpack.c.bf16 %v11302, %v11302
      %v11431 = vpack.c.bf16 %v11303, %v11303
      %v11432 = vpack.c.bf16 %v11304, %v11304
      %v11433 = vpack.c.bf16 %v11305, %v11305
      %v11434 = vpack.c.bf16 %v11306, %v11306
      %v11435 = vpack.c.bf16 %v11307, %v11307
      %v11436 = vpack.c.bf16 %v11308, %v11308
      %v11437 = vpack.c.bf16 %v11309, %v11309
      %v11438 = vpack.c.bf16 %v11310, %v11310
      %v11439 = vpack.c.bf16 %v11311, %v11311
      %v11440 = vpack.c.bf16 %v11312, %v11312
      %v11441 = vpack.c.bf16 %v11313, %v11313
      %v11442 = vpack.c.bf16 %v11314, %v11314
      %v11443 = vpack.c.bf16 %v11315, %v11315
      %v11444 = vpack.c.bf16 %v11316, %v11316
      %v11445 = vpack.c.bf16 %v11317, %v11317
      %v11446 = vpack.c.bf16 %v11318, %v11318
      %v11447 = vpack.c.bf16 %v11319, %v11319
      %v11448 = vpack.c.bf16 %v11320, %v11320
      %v11449 = vpack.c.bf16 %v11321, %v11321
      %v11450 = vpack.c.bf16 %v11322, %v11322
      %v11451 = vpack.c.bf16 %v11323, %v11323
      %v11452 = vpack.c.bf16 %v11324, %v11324
      %v11453 = vpack.c.bf16 %v11325, %v11325
      %v11454 = vpack.c.bf16 %v11326, %v11326
      %v11455 = vpack.c.bf16 %v11327, %v11327
      %v11456 = vpack.c.bf16 %v11328, %v11328
      %v11457 = vpack.c.bf16 %v11329, %v11329
      %v11458 = vpack.c.bf16 %v11330, %v11330
      %v11459 = vpack.c.bf16 %v11331, %v11331
      %v11460 = vpack.c.bf16 %v11332, %v11332
      %v11461 = vpack.c.bf16 %v11333, %v11333
      %v11462 = vpack.c.bf16 %v11334, %v11334
      %v11463 = vpack.c.bf16 %v11335, %v11335
      %v11464 = vpack.c.bf16 %v11336, %v11336
      %v11465 = vpack.c.bf16 %v11337, %v11337
      %v11466 = vpack.c.bf16 %v11338, %v11338
      %v11467 = vpack.c.bf16 %v11339, %v11339
      %v11468 = vpack.c.bf16 %v11340, %v11340
      %v11469 = vpack.c.bf16 %v11341, %v11341
      %v11470 = vpack.c.bf16 %v11342, %v11342
      %v11471 = vpack.c.bf16 %v11343, %v11343
      %v11472 = vpack.c.bf16 %v11344, %v11344
      %v11473 = vpack.c.bf16 %v11345, %v11345
      %v11474 = vpack.c.bf16 %v11346, %v11346
      %v11475 = vpack.c.bf16 %v11347, %v11347
      %v11476 = vpack.c.bf16 %v11348, %v11348
      %v11477 = vpack.c.bf16 %v11349, %v11349
      %v11478 = vpack.c.bf16 %v11350, %v11350
      %v11479 = vpack.c.bf16 %v11351, %v11351
      %v11480 = vpack.c.bf16 %v11352, %v11352
      %v11481 = vpack.c.bf16 %v11353, %v11353
      %v11482 = vpack.c.bf16 %v11354, %v11354
      %v11483 = vpack.c.bf16 %v11355, %v11355
      %v11484 = vpack.c.bf16 %v11356, %v11356
      %v11485 = vpack.c.bf16 %v11357, %v11357
      %v11486 = vpack.c.bf16 %v11358, %v11358
      %v11487 = vpack.c.bf16 %v11359, %v11359
      %v11488 = vpack.c.bf16 %v11360, %v11360
      %v11489 = vpack.c.bf16 %v11361, %v11361
      %v11490 = vpack.c.bf16 %v11362, %v11362
      %v11491 = vpack.c.bf16 %v11363, %v11363
      %v11492 = vpack.c.bf16 %v11364, %v11364
      %v11493 = vpack.c.bf16 %v11365, %v11365
      %v11494 = vpack.c.bf16 %v11366, %v11366
      %v11495 = vpack.c.bf16 %v11367, %v11367
      %v11496 = vpack.c.bf16 %v11368, %v11368
      %v11497 = vpack.c.bf16 %v11369, %v11369
      %v11498 = vpack.c.bf16 %v11370, %v11370
      %v11499 = vpack.c.bf16 %v11371, %v11371
      %v11500 = vpack.c.bf16 %v11372, %v11372
      %v11501 = vpack.c.bf16 %v11373, %v11373
      %v11502 = vpack.c.bf16 %v11374, %v11374
      %v11503 = vpack.c.bf16 %v11375, %v11375
      %v11504 = vpack.c.bf16 %v11376, %v11376
      %v11505 = vpack.c.bf16 %v11377, %v11377
      %vm11506 = vcmask 519168
      %11507 = vst.msk [vmem:[%s151] sm:$0xf] %vm11506, %v11378
      %11508 = vst.msk [vmem:[%s151 + $0x4] sm:$0xf] %vm11506, %v11379
      %11509 = vst.msk [vmem:[%s151 + $0x8] sm:$0xf] %vm11506, %v11380
      %11510 = vst.msk [vmem:[%s151 + $0xc] sm:$0xf] %vm11506, %v11381
      %11511 = vst.msk [vmem:[%s151 + $0x10] sm:$0xf] %vm11506, %v11382
      %11512 = vst.msk [vmem:[%s151 + $0x14] sm:$0xf] %vm11506, %v11383
      %11513 = vst.msk [vmem:[%s151 + $0x18] sm:$0xf] %vm11506, %v11384
      %11514 = vst.msk [vmem:[%s151 + $0x1c] sm:$0xf] %vm11506, %v11385
      %11515 = vst.msk [vmem:[%s151 + $0x20] sm:$0xf] %vm11506, %v11386
      %11516 = vst.msk [vmem:[%s151 + $0x24] sm:$0xf] %vm11506, %v11387
      %11517 = vst.msk [vmem:[%s151 + $0x28] sm:$0xf] %vm11506, %v11388
      %11518 = vst.msk [vmem:[%s151 + $0x2c] sm:$0xf] %vm11506, %v11389
      %11519 = vst.msk [vmem:[%s151 + $0x30] sm:$0xf] %vm11506, %v11390
      %11520 = vst.msk [vmem:[%s151 + $0x34] sm:$0xf] %vm11506, %v11391
      %11521 = vst.msk [vmem:[%s151 + $0x38] sm:$0xf] %vm11506, %v11392
      %11522 = vst.msk [vmem:[%s151 + $0x3c] sm:$0xf] %vm11506, %v11393
      %11523 = vst.msk [vmem:[%s151 + $0x40] sm:$0xf] %vm11506, %v11394
      %11524 = vst.msk [vmem:[%s151 + $0x44] sm:$0xf] %vm11506, %v11395
      %11525 = vst.msk [vmem:[%s151 + $0x48] sm:$0xf] %vm11506, %v11396
      %11526 = vst.msk [vmem:[%s151 + $0x4c] sm:$0xf] %vm11506, %v11397
      %11527 = vst.msk [vmem:[%s151 + $0x50] sm:$0xf] %vm11506, %v11398
      %11528 = vst.msk [vmem:[%s151 + $0x54] sm:$0xf] %vm11506, %v11399
      %11529 = vst.msk [vmem:[%s151 + $0x58] sm:$0xf] %vm11506, %v11400
      %11530 = vst.msk [vmem:[%s151 + $0x5c] sm:$0xf] %vm11506, %v11401
      %11531 = vst.msk [vmem:[%s151 + $0x60] sm:$0xf] %vm11506, %v11402
      %11532 = vst.msk [vmem:[%s151 + $0x64] sm:$0xf] %vm11506, %v11403
      %11533 = vst.msk [vmem:[%s151 + $0x68] sm:$0xf] %vm11506, %v11404
      %11534 = vst.msk [vmem:[%s151 + $0x6c] sm:$0xf] %vm11506, %v11405
      %11535 = vst.msk [vmem:[%s151 + $0x70] sm:$0xf] %vm11506, %v11406
      %11536 = vst.msk [vmem:[%s151 + $0x74] sm:$0xf] %vm11506, %v11407
      %11537 = vst.msk [vmem:[%s151 + $0x78] sm:$0xf] %vm11506, %v11408
      %11538 = vst.msk [vmem:[%s151 + $0x7c] sm:$0xf] %vm11506, %v11409
      %11539 = vst.msk [vmem:[%s151 + $0x80] sm:$0xf] %vm11506, %v11410
      %11540 = vst.msk [vmem:[%s151 + $0x84] sm:$0xf] %vm11506, %v11411
      %11541 = vst.msk [vmem:[%s151 + $0x88] sm:$0xf] %vm11506, %v11412
      %11542 = vst.msk [vmem:[%s151 + $0x8c] sm:$0xf] %vm11506, %v11413
      %11543 = vst.msk [vmem:[%s151 + $0x90] sm:$0xf] %vm11506, %v11414
      %11544 = vst.msk [vmem:[%s151 + $0x94] sm:$0xf] %vm11506, %v11415
      %11545 = vst.msk [vmem:[%s151 + $0x98] sm:$0xf] %vm11506, %v11416
      %11546 = vst.msk [vmem:[%s151 + $0x9c] sm:$0xf] %vm11506, %v11417
      %11547 = vst.msk [vmem:[%s151 + $0xa0] sm:$0xf] %vm11506, %v11418
      %11548 = vst.msk [vmem:[%s151 + $0xa4] sm:$0xf] %vm11506, %v11419
      %11549 = vst.msk [vmem:[%s151 + $0xa8] sm:$0xf] %vm11506, %v11420
      %11550 = vst.msk [vmem:[%s151 + $0xac] sm:$0xf] %vm11506, %v11421
      %11551 = vst.msk [vmem:[%s151 + $0xb0] sm:$0xf] %vm11506, %v11422
      %11552 = vst.msk [vmem:[%s151 + $0xb4] sm:$0xf] %vm11506, %v11423
      %11553 = vst.msk [vmem:[%s151 + $0xb8] sm:$0xf] %vm11506, %v11424
      %11554 = vst.msk [vmem:[%s151 + $0xbc] sm:$0xf] %vm11506, %v11425
      %11555 = vst.msk [vmem:[%s151 + $0xc0] sm:$0xf] %vm11506, %v11426
      %11556 = vst.msk [vmem:[%s151 + $0xc4] sm:$0xf] %vm11506, %v11427
      %11557 = vst.msk [vmem:[%s151 + $0xc8] sm:$0xf] %vm11506, %v11428
      %11558 = vst.msk [vmem:[%s151 + $0xcc] sm:$0xf] %vm11506, %v11429
      %11559 = vst.msk [vmem:[%s151 + $0xd0] sm:$0xf] %vm11506, %v11430
      %11560 = vst.msk [vmem:[%s151 + $0xd4] sm:$0xf] %vm11506, %v11431
      %11561 = vst.msk [vmem:[%s151 + $0xd8] sm:$0xf] %vm11506, %v11432
      %11562 = vst.msk [vmem:[%s151 + $0xdc] sm:$0xf] %vm11506, %v11433
      %11563 = vst.msk [vmem:[%s151 + $0xe0] sm:$0xf] %vm11506, %v11434
      %11564 = vst.msk [vmem:[%s151 + $0xe4] sm:$0xf] %vm11506, %v11435
      %11565 = vst.msk [vmem:[%s151 + $0xe8] sm:$0xf] %vm11506, %v11436
      %11566 = vst.msk [vmem:[%s151 + $0xec] sm:$0xf] %vm11506, %v11437
      %11567 = vst.msk [vmem:[%s151 + $0xf0] sm:$0xf] %vm11506, %v11438
      %11568 = vst.msk [vmem:[%s151 + $0xf4] sm:$0xf] %vm11506, %v11439
      %11569 = vst.msk [vmem:[%s151 + $0xf8] sm:$0xf] %vm11506, %v11440
      %11570 = vst.msk [vmem:[%s151 + $0xfc] sm:$0xf] %vm11506, %v11441
      %11571 = vst.msk [vmem:[%s151 + $0x100] sm:$0xf] %vm11506, %v11442
      %11572 = vst.msk [vmem:[%s151 + $0x104] sm:$0xf] %vm11506, %v11443
      %11573 = vst.msk [vmem:[%s151 + $0x108] sm:$0xf] %vm11506, %v11444
      %11574 = vst.msk [vmem:[%s151 + $0x10c] sm:$0xf] %vm11506, %v11445
      %11575 = vst.msk [vmem:[%s151 + $0x110] sm:$0xf] %vm11506, %v11446
      %11576 = vst.msk [vmem:[%s151 + $0x114] sm:$0xf] %vm11506, %v11447
      %11577 = vst.msk [vmem:[%s151 + $0x118] sm:$0xf] %vm11506, %v11448
      %11578 = vst.msk [vmem:[%s151 + $0x11c] sm:$0xf] %vm11506, %v11449
      %11579 = vst.msk [vmem:[%s151 + $0x120] sm:$0xf] %vm11506, %v11450
      %11580 = vst.msk [vmem:[%s151 + $0x124] sm:$0xf] %vm11506, %v11451
      %11581 = vst.msk [vmem:[%s151 + $0x128] sm:$0xf] %vm11506, %v11452
      %11582 = vst.msk [vmem:[%s151 + $0x12c] sm:$0xf] %vm11506, %v11453
      %11583 = vst.msk [vmem:[%s151 + $0x130] sm:$0xf] %vm11506, %v11454
      %11584 = vst.msk [vmem:[%s151 + $0x134] sm:$0xf] %vm11506, %v11455
      %11585 = vst.msk [vmem:[%s151 + $0x138] sm:$0xf] %vm11506, %v11456
      %11586 = vst.msk [vmem:[%s151 + $0x13c] sm:$0xf] %vm11506, %v11457
      %11587 = vst.msk [vmem:[%s151 + $0x140] sm:$0xf] %vm11506, %v11458
      %11588 = vst.msk [vmem:[%s151 + $0x144] sm:$0xf] %vm11506, %v11459
      %11589 = vst.msk [vmem:[%s151 + $0x148] sm:$0xf] %vm11506, %v11460
      %11590 = vst.msk [vmem:[%s151 + $0x14c] sm:$0xf] %vm11506, %v11461
      %11591 = vst.msk [vmem:[%s151 + $0x150] sm:$0xf] %vm11506, %v11462
      %11592 = vst.msk [vmem:[%s151 + $0x154] sm:$0xf] %vm11506, %v11463
      %11593 = vst.msk [vmem:[%s151 + $0x158] sm:$0xf] %vm11506, %v11464
      %11594 = vst.msk [vmem:[%s151 + $0x15c] sm:$0xf] %vm11506, %v11465
      %11595 = vst.msk [vmem:[%s151 + $0x160] sm:$0xf] %vm11506, %v11466
      %11596 = vst.msk [vmem:[%s151 + $0x164] sm:$0xf] %vm11506, %v11467
      %11597 = vst.msk [vmem:[%s151 + $0x168] sm:$0xf] %vm11506, %v11468
      %11598 = vst.msk [vmem:[%s151 + $0x16c] sm:$0xf] %vm11506, %v11469
      %11599 = vst.msk [vmem:[%s151 + $0x170] sm:$0xf] %vm11506, %v11470
      %11600 = vst.msk [vmem:[%s151 + $0x174] sm:$0xf] %vm11506, %v11471
      %11601 = vst.msk [vmem:[%s151 + $0x178] sm:$0xf] %vm11506, %v11472
      %11602 = vst.msk [vmem:[%s151 + $0x17c] sm:$0xf] %vm11506, %v11473
      %11603 = vst.msk [vmem:[%s151 + $0x180] sm:$0xf] %vm11506, %v11474
      %11604 = vst.msk [vmem:[%s151 + $0x184] sm:$0xf] %vm11506, %v11475
      %11605 = vst.msk [vmem:[%s151 + $0x188] sm:$0xf] %vm11506, %v11476
      %11606 = vst.msk [vmem:[%s151 + $0x18c] sm:$0xf] %vm11506, %v11477
      %11607 = vst.msk [vmem:[%s151 + $0x190] sm:$0xf] %vm11506, %v11478
      %11608 = vst.msk [vmem:[%s151 + $0x194] sm:$0xf] %vm11506, %v11479
      %11609 = vst.msk [vmem:[%s151 + $0x198] sm:$0xf] %vm11506, %v11480
      %11610 = vst.msk [vmem:[%s151 + $0x19c] sm:$0xf] %vm11506, %v11481
      %11611 = vst.msk [vmem:[%s151 + $0x1a0] sm:$0xf] %vm11506, %v11482
      %11612 = vst.msk [vmem:[%s151 + $0x1a4] sm:$0xf] %vm11506, %v11483
      %11613 = vst.msk [vmem:[%s151 + $0x1a8] sm:$0xf] %vm11506, %v11484
      %11614 = vst.msk [vmem:[%s151 + $0x1ac] sm:$0xf] %vm11506, %v11485
      %11615 = vst.msk [vmem:[%s151 + $0x1b0] sm:$0xf] %vm11506, %v11486
      %11616 = vst.msk [vmem:[%s151 + $0x1b4] sm:$0xf] %vm11506, %v11487
      %11617 = vst.msk [vmem:[%s151 + $0x1b8] sm:$0xf] %vm11506, %v11488
      %11618 = vst.msk [vmem:[%s151 + $0x1bc] sm:$0xf] %vm11506, %v11489
      %11619 = vst.msk [vmem:[%s151 + $0x1c0] sm:$0xf] %vm11506, %v11490
      %11620 = vst.msk [vmem:[%s151 + $0x1c4] sm:$0xf] %vm11506, %v11491
      %11621 = vst.msk [vmem:[%s151 + $0x1c8] sm:$0xf] %vm11506, %v11492
      %11622 = vst.msk [vmem:[%s151 + $0x1cc] sm:$0xf] %vm11506, %v11493
      %11623 = vst.msk [vmem:[%s151 + $0x1d0] sm:$0xf] %vm11506, %v11494
      %11624 = vst.msk [vmem:[%s151 + $0x1d4] sm:$0xf] %vm11506, %v11495
      %11625 = vst.msk [vmem:[%s151 + $0x1d8] sm:$0xf] %vm11506, %v11496
      %11626 = vst.msk [vmem:[%s151 + $0x1dc] sm:$0xf] %vm11506, %v11497
      %11627 = vst.msk [vmem:[%s151 + $0x1e0] sm:$0xf] %vm11506, %v11498
      %11628 = vst.msk [vmem:[%s151 + $0x1e4] sm:$0xf] %vm11506, %v11499
      %11629 = vst.msk [vmem:[%s151 + $0x1e8] sm:$0xf] %vm11506, %v11500
      %11630 = vst.msk [vmem:[%s151 + $0x1ec] sm:$0xf] %vm11506, %v11501
      %11631 = vst.msk [vmem:[%s151 + $0x1f0] sm:$0xf] %vm11506, %v11502
      %11632 = vst.msk [vmem:[%s151 + $0x1f4] sm:$0xf] %vm11506, %v11503
      %11633 = vst.msk [vmem:[%s151 + $0x1f8] sm:$0xf] %vm11506, %v11504
      %11634 = vst.msk [vmem:[%s151 + $0x1fc] sm:$0xf] %vm11506, %v11505
      %s11635 = smul.u32 128, %s15
      %p11636 = scmp.lt.s32.totalorder %s11635, 3327
      %s11637 = scalar_select %p11636, %s11635, 3327
      %s11638 = smul.addr %s11637, 4
      %s11639 = scalar_lea.vmem %s4, %s11638
      // Predicated region
      $region52: #{tpu_custom_call.1} parent=31 // pred_check
        %p11640 = pneg %p96
      $region53: #{tpu_custom_call.1} parent=31 // pred_check_branch
        %11642 = sbr.rel (%p11640) target = $region55
      $region54: #{tpu_custom_call.1} parent=31 // pred_region
        %s11643 = smul.u32 128, %s15
      $region55: #{tpu_custom_call.1} parent=31 // pred_fallthru
        _
    $region32: #{tpu_custom_call.1} parent=5 // pred_fallthru
      _
    %p11644 = scmp.le.s32.totalorder 2, %s10
    // Predicated region
    $region56: #{tpu_custom_call.1} parent=5 // pred_check
      %p11645 = pneg %p11644
    $region57: #{tpu_custom_call.1} parent=5 // pred_check_branch
      %11647 = sbr.rel (%p11645) target = $region59
    $region58: #{tpu_custom_call.1} parent=5 // pred_region
      %s11648 = ssub.s32 %s10, 2
      // Predicated region
      $region60: #{tpu_custom_call.1} parent=58 // pred_check
        %p11649 = pneg %p102
      $region61: #{tpu_custom_call.1} parent=58 // pred_check_branch
        %11651 = sbr.rel (%p11649) target = $region63
      $region62: #{tpu_custom_call.1} parent=58 // pred_region
        %s11652 = smul.u32 128, %s16
        %p11653 = scmp.lt.s32.totalorder %s11652, 3327
        %s11654 = scalar_select %p11653, %s11652, 3327
        %s11655 = smul.addr %s11654, 4
        %s11656 = scalar_lea.vmem %s4, %s11655
      $region63: #{tpu_custom_call.1} parent=58 // pred_fallthru
        _
    $region59: #{tpu_custom_call.1} parent=5 // pred_fallthru
      _
  $region6: #{tpu_custom_call.1} parent=0 // loop_footer
    %s14 = sadd.s32 1, %s10
  $region7: #{tpu_custom_call.1} parent=0 // loop_footer_branch
    %9 = sbr.rel target = $region3
  $region8: #{tpu_custom_call.1} parent=0 // loop_exit
    _
  %11657 = vsyncmov [#allocation3]
  %s11658 = vpop.sfrf %11657
  %p11659 = scmp.eq.s32.totalorder %s11658, 0
  %p11660 = pneg %p11659
  %11662 = shalt.err (%p11660)

</llo_original>
